<compile_context>
chip_gen: v7x
topology: tpu7x:2x2x1
jax: 0.10.0
libtpu: 0.0.40
codegen_flags: <defaults>
</compile_context>

<pallas_src>
import functools

import jax
import jax.numpy as jnp
from jax.experimental import pallas as pl
from jax.experimental.pallas import tpu as pltpu

NEG_SLOPE = 0.01            # nn.LeakyReLU default negative_slope
BN_EPS = 1e-5               # nn.BatchNorm2d default eps
ACT_DTYPE = jnp.bfloat16    # HBM storage dtype for weights / intermediates


def _detect_vmem_limit_bytes():
    """~3/4 of physical VMEM, capped at 100 MiB (v6e -> 96 MiB, v7x -> 48 MiB)."""
    try:
        cap = getattr(pltpu.get_tpu_info(), "vmem_capacity_bytes", 0) or 0
    except Exception:
        cap = 0
    if cap:
        return int(min(cap * 3 // 4, 100 * 1024 * 1024))
    return 48 * 1024 * 1024


VMEM_LIMIT_BYTES = _detect_vmem_limit_bytes()


def _compiler_params():
    return pltpu.CompilerParams(
        dimension_semantics=("parallel",),
        vmem_limit_bytes=VMEM_LIMIT_BYTES,
    )


def _leaky(y):
    return jnp.where(y >= 0, y, NEG_SLOPE * y)


def _zero_pad2d(val, ph, pw):
    """Zero-pad a [H, W, C] value spatially by (ph, pw) on each side."""
    h, w, c = val.shape
    zr = jnp.zeros((ph, w, c), val.dtype)
    v = jnp.concatenate([zr, val, zr], axis=0)
    zc = jnp.zeros((h + 2 * ph, pw, c), val.dtype)
    return jnp.concatenate([zc, v, zc], axis=1)


def _conv_slab(img, kh, kw, dil, H, W):
    """Tap-concat im2col: img [H+2p, W+2p, C] -> wide-K slab [H*W, kh*kw*C]."""
    c = img.shape[-1]
    taps = []
    for ih in range(kh):
        for iw in range(kw):
            taps.append(img[ih * dil:ih * dil + H,
                            iw * dil:iw * dil + W, :].reshape(H * W, c))
    return jnp.concatenate(taps, axis=-1)


# ------------------------------ kernels ------------------------------

def _front_kernel(H, W, xp_ref, w2_ref, w1_ref, w3_ref, p_ref,
                  sc_ref, r1_ref, r2p_ref):
    """One image: conv1(+act1), conv2(+act2,bn1), conv3(+act3,bn2).

    xp_ref  : [1, H+2, W+2, Cin]   input, pre-padded by 1 (bf16)
    w2_ref  : [9*Cin, Cout]        conv2, wide-K layout (bf16)
    w1_ref  : [Cin, Cout]          conv1 (bf16)
    w3_ref  : [9*Cout, Cout]       conv3, wide-K layout (bf16)
    p_ref   : [7, Cout] f32        rows = b1, b2, bn1_s, bn1_sh, b3, bn2_s, bn2_sh
    sc_ref  : [1, H, W, Cout]      shortcut (bf16)
    r1_ref  : [1, H, W, Cout]      resA1 (bf16)
    r2p_ref : [1, H+2, W+2, Cout]  resA2, written pre-padded by 1 (bf16)
    """
    cin = xp_ref.shape[-1]
    cout = w1_ref.shape[-1]
    x_img = xp_ref[0]                                      # bf16, fed to MXU as-is

    # conv1 (1x1) on the centre pixels -> shortcut.
    xc = x_img[1:1 + H, 1:1 + W, :].reshape(H * W, cin)
    sc = _leaky(jnp.dot(xc, w1_ref[...], preferred_element_type=jnp.float32)
                + p_ref[0:1, :])
    sc_ref[0] = sc.reshape(H, W, cout).astype(sc_ref.dtype)

    # conv2 (3x3, pad 1): ONE wide-K matmul (K = 9*Cin) -> act2 -> bn1.
    slab2 = _conv_slab(x_img, 3, 3, 1, H, W)
    y1 = _leaky(jnp.dot(slab2, w2_ref[...], preferred_element_type=jnp.float32)
                + p_ref[1:2, :])
    y1 = y1 * p_ref[2:3, :] + p_ref[3:4, :]                # bn1 affine
    r1_bf = y1.astype(ACT_DTYPE).reshape(H, W, cout)
    r1_ref[0] = r1_bf

    # conv3 (3x3, dilation 2, pad 2) fused here: pad resA1 in-register,
    # then ONE wide-K matmul (K = 9*Cout) -> act3 -> bn2.
    r1pad = _zero_pad2d(r1_bf, 2, 2)                       # [H+4, W+4, Cout]
    slab3 = _conv_slab(r1pad, 3, 3, 2, H, W)
    y2 = _leaky(jnp.dot(slab3, w3_ref[...], preferred_element_type=jnp.float32)
                + p_ref[4:5, :])
    y2 = y2 * p_ref[5:6, :] + p_ref[6:7, :]                # bn2 affine
    # Write resA2 pre-padded by 1 so the back kernel's conv4 needs no pad pass.
    r2_bf = y2.astype(ACT_DTYPE).reshape(H, W, cout)
    r2p_ref[0] = _zero_pad2d(r2_bf, 1, 1)


def _back_core(H, W, r1_ref, r2p_ref, sc_ref, w4_ref, w5_ref, p_ref):
    """conv4(+act4,bn3), concat-free conv5(+act5,bn4), + shortcut -> resA f32.

    r1_ref  : [1, H, W, Cout]       resA1 (bf16)
    r2p_ref : [1, H+2, W+2, Cout]   resA2, pre-padded by 1 (bf16)
    sc_ref  : [1, H, W, Cout]       shortcut (bf16)
    w4_ref  : [4*Cout, Cout]        conv4, wide-K layout (bf16)
    w5_ref  : [3*Cout, Cout]        conv5, K-blocks = (resA1, resA2, resA3) (bf16)
    p_ref   : [6, Cout] f32         rows = b4, bn3_s, bn3_sh, b5, bn4_s, bn4_sh
    """
    cout = r1_ref.shape[-1]
    r2img = r2p_ref[0]                                     # bf16 [H+2, W+2, Cout]

    # conv4 (2x2, dilation 2, pad 1): ONE wide-K matmul (K = 4*Cout).
    slab4 = _conv_slab(r2img, 2, 2, 2, H, W)
    r3 = _leaky(jnp.dot(slab4, w4_ref[...], preferred_element_type=jnp.float32)
                + p_ref[0:1, :])
    r3 = r3 * p_ref[1:2, :] + p_ref[2:3, :]                # bn3 -> resA3 (f32)

    # conv5 (1x1 over concat(resA1, resA2, resA3)): ONE matmul with K = 3*Cout;
    # the concat lives only in vregs/VMEM, never in HBM.
    r1 = r1_ref[0].reshape(H * W, cout)
    r2 = r2img[1:1 + H, 1:1 + W, :].reshape(H * W, cout)
    slab5 = jnp.concatenate([r1, r2, r3.astype(ACT_DTYPE)], axis=-1)
    y = _leaky(jnp.dot(slab5, w5_ref[...], preferred_element_type=jnp.float32)
               + p_ref[3:4, :])
    y = y * p_ref[4:5, :] + p_ref[5:6, :]                  # bn4 affine
    resa = y + sc_ref[0].reshape(H * W, cout).astype(jnp.float32)
    return resa.reshape(H, W, cout)


def _back_kernel(H, W, r1_ref, r2p_ref, sc_ref, w4_ref, w5_ref, p_ref, ra_ref):
    resa = _back_core(H, W, r1_ref, r2p_ref, sc_ref, w4_ref, w5_ref, p_ref)
    ra_ref[0] = resa.astype(ra_ref.dtype)


def _back_pool_kernel(H, W, r1_ref, r2p_ref, sc_ref, w4_ref, w5_ref, p_ref,
                      ra_ref, rb_ref):
    """_back_core plus a fused AvgPool2d(3x3, stride 2, pad 1) — no transposes."""
    resa = _back_core(H, W, r1_ref, r2p_ref, sc_ref, w4_ref, w5_ref, p_ref)
    ra_ref[0] = resa.astype(ra_ref.dtype)

    cout = resa.shape[-1]
    ho, wo = H // 2, W // 2
    # Rows: RS[a] = resa[2a-1] + resa[2a] + resa[2a+1] via even/odd split.
    a4 = resa.reshape(ho, 2, W, cout)
    rows_e, rows_o = a4[:, 0], a4[:, 1]
    rows_o_up = jnp.concatenate(
        [jnp.zeros((1, W, cout), jnp.float32), rows_o[:ho - 1]], axis=0)
    rs = rows_e + rows_o + rows_o_up                       # [Ho, W, Cout]
    # Columns: same even/odd + shifted-add trick (no pooling-matrix matmul).
    c4 = rs.reshape(ho, wo, 2, cout)
    cols_e, cols_o = c4[:, :, 0], c4[:, :, 1]
    cols_o_left = jnp.concatenate(
        [jnp.zeros((ho, 1, cout), jnp.float32), cols_o[:, :wo - 1]], axis=1)
    resb = (cols_e + cols_o + cols_o_left) * (1.0 / 9.0)   # count_include_pad
    rb_ref[0] = resb.astype(rb_ref.dtype)


# ------------------------------ wrapper ------------------------------

def res_block_forward(x_nchw, params, pooling=True, drop_out=True):
    """Mirrors ResBlock.forward (inference). Returns (resB, resA) if pooling."""
    del drop_out  # Dropout2d == identity in eval mode.
    x = jnp.transpose(x_nchw, (0, 2, 3, 1)).astype(ACT_DTYPE)   # NHWC, bf16
    B, H, W, Cin = x.shape
    Cout = params["w1"].shape[-1]
    assert H % 2 == 0 and W % 2 == 0, "fused pool path assumes even H, W"

    cp = _compiler_params()

    # ---- kernel A: conv1 + conv2(+bn1) + conv3(+bn2) ----
    xp = jnp.pad(x, ((0, 0), (1, 1), (1, 1), (0, 0)))            # external pad only
    p_front = jnp.stack([params["b1"], params["b2"],
                         params["bn1_scale"], params["bn1_shift"],
                         params["b3"], params["bn2_scale"], params["bn2_shift"]])

    shortcut, resA1, resA2p = pl.pallas_call(
        functools.partial(_front_kernel, H, W),
        grid=(B,),
        in_specs=[
            pl.BlockSpec((1, H + 2, W + 2, Cin), lambda b: (b, 0, 0, 0)),
            pl.BlockSpec((9 * Cin, Cout), lambda b: (0, 0)),      # resident
            pl.BlockSpec((Cin, Cout), lambda b: (0, 0)),          # resident
            pl.BlockSpec((9 * Cout, Cout), lambda b: (0, 0)),     # resident
            pl.BlockSpec((7, Cout), lambda b: (0, 0)),            # resident
        ],
        out_specs=[
            pl.BlockSpec((1, H, W, Cout), lambda b: (b, 0, 0, 0)),
            pl.BlockSpec((1, H, W, Cout), lambda b: (b, 0, 0, 0)),
            pl.BlockSpec((1, H + 2, W + 2, Cout), lambda b: (b, 0, 0, 0)),
        ],
        out_shape=(
            jax.ShapeDtypeStruct((B, H, W, Cout), ACT_DTYPE),
            jax.ShapeDtypeStruct((B, H, W, Cout), ACT_DTYPE),
            jax.ShapeDtypeStruct((B, H + 2, W + 2, Cout), ACT_DTYPE),
        ),
        compiler_params=cp,
    )(xp, params["w2"], params["w1"], params["w3"], p_front)

    # ---- kernel B: conv4(+bn3) + conv5(+bn4) + shortcut (+ fused avg-pool) ----
    p_back = jnp.stack([params["b4"], params["bn3_scale"], params["bn3_shift"],
                        params["b5"], params["bn4_scale"], params["bn4_shift"]])
    back_in_specs = [
        pl.BlockSpec((1, H, W, Cout), lambda b: (b, 0, 0, 0)),            # resA1
        pl.BlockSpec((1, H + 2, W + 2, Cout), lambda b: (b, 0, 0, 0)),    # resA2 pad
        pl.BlockSpec((1, H, W, Cout), lambda b: (b, 0, 0, 0)),            # shortcut
        pl.BlockSpec((4 * Cout, Cout), lambda b: (0, 0)),                 # w4
        pl.BlockSpec((3 * Cout, Cout), lambda b: (0, 0)),                 # w5
        pl.BlockSpec((6, Cout), lambda b: (0, 0)),                        # bias/bn
    ]
    back_args = (resA1, resA2p, shortcut, params["w4"], params["w5"], p_back)

    if not pooling:
        resA = pl.pallas_call(
            functools.partial(_back_kernel, H, W),
            grid=(B,),
            in_specs=back_in_specs,
            out_specs=pl.BlockSpec((1, H, W, Cout), lambda b: (b, 0, 0, 0)),
            out_shape=jax.ShapeDtypeStruct((B, H, W, Cout), jnp.float32),
            compiler_params=cp,
        )(*back_args)
        return jnp.transpose(resA, (0, 3, 1, 2))

    Ho, Wo = H // 2, W // 2
    resA, resB = pl.pallas_call(
        functools.partial(_back_pool_kernel, H, W),
        grid=(B,),
        in_specs=back_in_specs,
        out_specs=[
            pl.BlockSpec((1, H, W, Cout), lambda b: (b, 0, 0, 0)),
            pl.BlockSpec((1, Ho, Wo, Cout), lambda b: (b, 0, 0, 0)),
        ],
        out_shape=(
            jax.ShapeDtypeStruct((B, H, W, Cout), jnp.float32),
            jax.ShapeDtypeStruct((B, Ho, Wo, Cout), jnp.float32),
        ),
        compiler_params=cp,
    )(*back_args)

    return jnp.transpose(resB, (0, 3, 1, 2)), jnp.transpose(resA, (0, 3, 1, 2))


# ------------------------------ params / reference ------------------------------

def fold_bn(gamma, beta, mean, var):
    scale = gamma / jnp.sqrt(var + BN_EPS)
    shift = beta - mean * scale
    return scale, shift


def init_params(key, in_filters, out_filters):
    """Synthetic parameters, already in kernel layout.

    To import real PyTorch weights: conv{2,3,4}.weight [Cout,Cin,kh,kw] must be
    transposed to [kh,kw,Cin,Cout] then reshaped to (kh*kw*Cin, Cout);
    conv1/conv5 weights [Cout,Cin,1,1] become [Cin,Cout]; BN running stats are
    folded with fold_bn.
    """
    ks = jax.random.split(key, 14)

    def rnd(k, shape):
        return 0.1 * jax.random.normal(k, shape, jnp.float32)

    p = {}
    p["w1"] = rnd(ks[0], (in_filters, out_filters)).astype(ACT_DTYPE)
    p["b1"] = rnd(ks[1], (out_filters,))
    p["w2"] = rnd(ks[2], (3, 3, in_filters, out_filters)).reshape(
        9 * in_filters, out_filters).astype(ACT_DTYPE)
    p["b2"] = rnd(ks[3], (out_filters,))
    p["w3"] = rnd(ks[4], (3, 3, out_filters, out_filters)).reshape(
        9 * out_filters, out_filters).astype(ACT_DTYPE)
    p["b3"] = rnd(ks[5], (out_filters,))
    p["w4"] = rnd(ks[6], (2, 2, out_filters, out_filters)).reshape(
        4 * out_filters, out_filters).astype(ACT_DTYPE)
    p["b4"] = rnd(ks[7], (out_filters,))
    p["w5"] = rnd(ks[8], (3 * out_filters, out_filters)).astype(ACT_DTYPE)
    p["b5"] = rnd(ks[9], (out_filters,))
    for i, k in zip(range(1, 5), ks[10:14]):
        k1, k2, k3, k4 = jax.random.split(k, 4)
        gamma = 1.0 + 0.1 * jax.random.normal(k1, (out_filters,), jnp.float32)
        beta = 0.1 * jax.random.normal(k2, (out_filters,), jnp.float32)
        mean = 0.1 * jax.random.normal(k3, (out_filters,), jnp.float32)
        var = jax.random.uniform(k4, (out_filters,), jnp.float32,
                                 minval=0.5, maxval=1.5)
        p[f"bn{i}_scale"], p[f"bn{i}_shift"] = fold_bn(gamma, beta, mean, var)
    return p


def ref_forward(x_nchw, params, pooling=True):
    """Pure-JAX f32 reference of ResBlock.forward (weights upcast from bf16)."""
    f32 = jnp.float32
    x = jnp.transpose(x_nchw, (0, 2, 3, 1)).astype(f32)
    Cin = x.shape[-1]
    Cout = params["w1"].shape[-1]
    dn = ("NHWC", "HWIO", "NHWC")

    def conv(v, w_flat, kh, kw, cin, bias, dil=1, pad=0):
        w = w_flat.astype(f32).reshape(kh, kw, cin, Cout)
        y = jax.lax.conv_general_dilated(
            v, w, (1, 1), [(pad, pad), (pad, pad)],
            rhs_dilation=(dil, dil), dimension_numbers=dn)
        return y + bias

    def leaky(v):
        return jnp.where(v >= 0, v, NEG_SLOPE * v)

    def bn(v, i):
        return v * params[f"bn{i}_scale"] + params[f"bn{i}_shift"]

    shortcut = leaky(conv(x, params["w1"], 1, 1, Cin, params["b1"]))
    resA1 = bn(leaky(conv(x, params["w2"], 3, 3, Cin, params["b2"], pad=1)), 1)
    resA2 = bn(leaky(conv(resA1, params["w3"], 3, 3, Cout, params["b3"],
                          dil=2, pad=2)), 2)
    resA3 = bn(leaky(conv(resA2, params["w4"], 2, 2, Cout, params["b4"],
                          dil=2, pad=1)), 3)
    cat = jnp.concatenate([resA1, resA2, resA3], axis=-1)
    resA = bn(leaky(conv(cat, params["w5"], 1, 1, 3 * Cout, params["b5"])), 4)
    resA = resA + shortcut
    resA_nchw = jnp.transpose(resA, (0, 3, 1, 2))
    if not pooling:
        return resA_nchw
    s = jax.lax.reduce_window(resA, 0.0, jax.lax.add, (1, 3, 3, 1),
                              (1, 2, 2, 1), [(0, 0), (1, 1), (1, 1), (0, 0)])
    resB = s / 9.0
    return jnp.transpose(resB, (0, 3, 1, 2)), resA_nchw


def _assert_close(a, b, rtol=0.1, atol=0.08):
    a = a.astype(jnp.float32)
    b = b.astype(jnp.float32)
    err = float(jnp.max(jnp.abs(a - b) - rtol * jnp.abs(b)))
    assert err < atol, f"max excess error {err}"


if __name__ == "__main__":
    key = jax.random.PRNGKey(0)
    kx, kp = jax.random.split(key)

    B, in_filters, out_filters, H, W = 2, 4, 32, 16, 16
    x = jax.random.normal(kx, (B, in_filters, H, W), jnp.float32)   # NCHW input
    params = init_params(kp, in_filters, out_filters)

    fwd = jax.jit(functools.partial(res_block_forward, pooling=True, drop_out=True))
    resB, resA = fwd(x, params)
    jax.block_until_ready((resB, resA))

    assert resB.shape == (B, out_filters, H // 2, W // 2), resB.shape
    assert resA.shape == (B, out_filters, H, W), resA.shape
    assert bool(jnp.all(jnp.isfinite(resA))) and bool(jnp.all(jnp.isfinite(resB)))

    # Numerical check vs. a pure-JAX f32 reference (tolerance covers bf16 storage
    # of intermediates/weights and bf16xbf16->f32 MXU products).
    refB, refA = ref_forward(x, params, pooling=True)
    _assert_close(resA, refA)
    _assert_close(resB, refB)

    # Non-pooling variant.
    fwd_np = jax.jit(functools.partial(res_block_forward, pooling=False,
                                       drop_out=True))
    resA_only = fwd_np(x, params)
    jax.block_until_ready(resA_only)
    assert resA_only.shape == (B, out_filters, H, W), resA_only.shape
    _assert_close(resA_only, refA)

    print("KERNEL_OK")
</pallas_src>

<mosaic_0001>
module attributes {stable_mosaic.version = 11 : i64} {
  func.func @_front_kernel(%arg0: i32, %arg1: memref<1x18x18x4xbf16, #tpu.memory_space<vmem>>, %arg2: memref<36x32xbf16, #tpu.memory_space<vmem>>, %arg3: memref<4x32xbf16, #tpu.memory_space<vmem>>, %arg4: memref<288x32xbf16, #tpu.memory_space<vmem>>, %arg5: memref<7x32xf32, #tpu.memory_space<vmem>>, %arg6: memref<1x16x16x32xbf16, #tpu.memory_space<vmem>>, %arg7: memref<1x16x16x32xbf16, #tpu.memory_space<vmem>>, %arg8: memref<1x18x18x32xbf16, #tpu.memory_space<vmem>>) attributes {dimension_semantics = [#tpu.dimension_semantics<parallel>], iteration_bounds = array<i64: 2>, scalar_prefetch = 0 : i64, scratch_operands = 0 : i64, tpu.core_type = #tpu.core_type<tc>, window_params = [{transform_indices = @transform_0, window_bounds = array<i64: 1, 18, 18, 4>}, {pipeline_mode = #tpu.pipeline_mode<synchronous>, transform_indices = @transform_1, window_bounds = array<i64: 36, 32>}, {pipeline_mode = #tpu.pipeline_mode<synchronous>, transform_indices = @transform_2, window_bounds = array<i64: 4, 32>}, {pipeline_mode = #tpu.pipeline_mode<synchronous>, transform_indices = @transform_3, window_bounds = array<i64: 288, 32>}, {pipeline_mode = #tpu.pipeline_mode<synchronous>, transform_indices = @transform_4, window_bounds = array<i64: 7, 32>}, {transform_indices = @transform_5, window_bounds = array<i64: 1, 16, 16, 32>}, {transform_indices = @transform_6, window_bounds = array<i64: 1, 16, 16, 32>}, {transform_indices = @transform_7, window_bounds = array<i64: 1, 18, 18, 32>}]} {
    %c0 = arith.constant 0 : index
    %c0_0 = arith.constant 0 : index
    %c0_1 = arith.constant 0 : index
    %c0_2 = arith.constant 0 : index
    %0 = vector.load %arg1[%c0, %c0_0, %c0_1, %c0_2] : memref<1x18x18x4xbf16, #tpu.memory_space<vmem>>, vector<1x18x18x4xbf16>
    %1 = vector.shape_cast %0 : vector<1x18x18x4xbf16> to vector<18x18x4xbf16>
    %2 = vector.extract_strided_slice %1 {offsets = [1, 1, 0], sizes = [16, 16, 4], strides = [1, 1, 1]} : vector<18x18x4xbf16> to vector<16x16x4xbf16>
    %3 = vector.shape_cast %2 : vector<16x16x4xbf16> to vector<256x4xbf16>
    %c0_3 = arith.constant 0 : index
    %c0_4 = arith.constant 0 : index
    %4 = vector.load %arg3[%c0_3, %c0_4] : memref<4x32xbf16, #tpu.memory_space<vmem>>, vector<4x32xbf16>
    %cst = arith.constant dense<0.000000e+00> : vector<256x32xf32>
    %5 = tpu.matmul %3, %4, %cst {dimension_numbers = #tpu.dot_dimension_numbers<[1], [0], [0], [1], [0, 0, 1, 1], [], []>} : vector<256x4xbf16>, vector<4x32xbf16>, vector<256x32xf32> -> vector<256x32xf32>
    %c0_5 = arith.constant 0 : index
    %c0_6 = arith.constant 0 : index
    %6 = vector.load %arg5[%c0_5, %c0_6] : memref<7x32xf32, #tpu.memory_space<vmem>>, vector<1x32xf32>
    %7 = vector.broadcast %6 : vector<1x32xf32> to vector<256x32xf32>
    %8 = arith.addf %5, %7 : vector<256x32xf32>
    %cst_7 = arith.constant 0.000000e+00 : f32
    %9 = vector.broadcast %cst_7 : f32 to vector<256x32xf32>
    %10 = arith.cmpf oge, %8, %9 : vector<256x32xf32>
    %cst_8 = arith.constant 0.00999999977 : f32
    %11 = vector.broadcast %cst_8 : f32 to vector<256x32xf32>
    %12 = arith.mulf %11, %8 : vector<256x32xf32>
    %13 = arith.select %10, %8, %12 : vector<256x32xi1>, vector<256x32xf32>
    %14 = vector.shape_cast %13 : vector<256x32xf32> to vector<16x16x32xf32>
    %15 = arith.truncf %14 : vector<16x16x32xf32> to vector<16x16x32xbf16>
    %c0_9 = arith.constant 0 : index
    %c0_10 = arith.constant 0 : index
    %c0_11 = arith.constant 0 : index
    %c0_12 = arith.constant 0 : index
    %16 = vector.load %arg6[%c0_9, %c0_10, %c0_11, %c0_12] : memref<1x16x16x32xbf16, #tpu.memory_space<vmem>>, vector<1x16x16x32xbf16>
    %17 = vector.shape_cast %16 : vector<1x16x16x32xbf16> to vector<16x16x32xbf16>
    %18 = vector.shape_cast %15 : vector<16x16x32xbf16> to vector<1x16x16x32xbf16>
    tpu.vector_store %arg6[%c0_9, %c0_10, %c0_11, %c0_12], %18 {strides = array<i32>} : memref<1x16x16x32xbf16, #tpu.memory_space<vmem>>, vector<1x16x16x32xbf16>,
    %19 = vector.extract_strided_slice %1 {offsets = [0, 0, 0], sizes = [16, 16, 4], strides = [1, 1, 1]} : vector<18x18x4xbf16> to vector<16x16x4xbf16>
    %20 = vector.shape_cast %19 : vector<16x16x4xbf16> to vector<256x4xbf16>
    %21 = vector.extract_strided_slice %1 {offsets = [0, 1, 0], sizes = [16, 16, 4], strides = [1, 1, 1]} : vector<18x18x4xbf16> to vector<16x16x4xbf16>
    %22 = vector.shape_cast %21 : vector<16x16x4xbf16> to vector<256x4xbf16>
    %23 = vector.extract_strided_slice %1 {offsets = [0, 2, 0], sizes = [16, 16, 4], strides = [1, 1, 1]} : vector<18x18x4xbf16> to vector<16x16x4xbf16>
    %24 = vector.shape_cast %23 : vector<16x16x4xbf16> to vector<256x4xbf16>
    %25 = vector.extract_strided_slice %1 {offsets = [1, 0, 0], sizes = [16, 16, 4], strides = [1, 1, 1]} : vector<18x18x4xbf16> to vector<16x16x4xbf16>
    %26 = vector.shape_cast %25 : vector<16x16x4xbf16> to vector<256x4xbf16>
    %27 = vector.extract_strided_slice %1 {offsets = [1, 1, 0], sizes = [16, 16, 4], strides = [1, 1, 1]} : vector<18x18x4xbf16> to vector<16x16x4xbf16>
    %28 = vector.shape_cast %27 : vector<16x16x4xbf16> to vector<256x4xbf16>
    %29 = vector.extract_strided_slice %1 {offsets = [1, 2, 0], sizes = [16, 16, 4], strides = [1, 1, 1]} : vector<18x18x4xbf16> to vector<16x16x4xbf16>
    %30 = vector.shape_cast %29 : vector<16x16x4xbf16> to vector<256x4xbf16>
    %31 = vector.extract_strided_slice %1 {offsets = [2, 0, 0], sizes = [16, 16, 4], strides = [1, 1, 1]} : vector<18x18x4xbf16> to vector<16x16x4xbf16>
    %32 = vector.shape_cast %31 : vector<16x16x4xbf16> to vector<256x4xbf16>
    %33 = vector.extract_strided_slice %1 {offsets = [2, 1, 0], sizes = [16, 16, 4], strides = [1, 1, 1]} : vector<18x18x4xbf16> to vector<16x16x4xbf16>
    %34 = vector.shape_cast %33 : vector<16x16x4xbf16> to vector<256x4xbf16>
    %35 = vector.extract_strided_slice %1 {offsets = [2, 2, 0], sizes = [16, 16, 4], strides = [1, 1, 1]} : vector<18x18x4xbf16> to vector<16x16x4xbf16>
    %36 = vector.shape_cast %35 : vector<16x16x4xbf16> to vector<256x4xbf16>
    %37 = tpu.concatenate %20, %22, %24, %26, %28, %30, %32, %34, %36 in 1 : vector<256x4xbf16>, vector<256x4xbf16>, vector<256x4xbf16>, vector<256x4xbf16>, vector<256x4xbf16>, vector<256x4xbf16>, vector<256x4xbf16>, vector<256x4xbf16>, vector<256x4xbf16> -> vector<256x36xbf16>
    %c0_13 = arith.constant 0 : index
    %c0_14 = arith.constant 0 : index
    %38 = vector.load %arg2[%c0_13, %c0_14] : memref<36x32xbf16, #tpu.memory_space<vmem>>, vector<36x32xbf16>
    %cst_15 = arith.constant dense<0.000000e+00> : vector<256x32xf32>
    %39 = tpu.matmul %37, %38, %cst_15 {dimension_numbers = #tpu.dot_dimension_numbers<[1], [0], [0], [1], [0, 0, 1, 1], [], []>} : vector<256x36xbf16>, vector<36x32xbf16>, vector<256x32xf32> -> vector<256x32xf32>
    %c1 = arith.constant 1 : index
    %c0_16 = arith.constant 0 : index
    %40 = vector.load %arg5[%c1, %c0_16] : memref<7x32xf32, #tpu.memory_space<vmem>>, vector<1x32xf32>
    %41 = vector.broadcast %40 : vector<1x32xf32> to vector<256x32xf32>
    %42 = arith.addf %39, %41 : vector<256x32xf32>
    %cst_17 = arith.constant 0.000000e+00 : f32
    %43 = vector.broadcast %cst_17 : f32 to vector<256x32xf32>
    %44 = arith.cmpf oge, %42, %43 : vector<256x32xf32>
    %cst_18 = arith.constant 0.00999999977 : f32
    %45 = vector.broadcast %cst_18 : f32 to vector<256x32xf32>
    %46 = arith.mulf %45, %42 : vector<256x32xf32>
    %47 = arith.select %44, %42, %46 : vector<256x32xi1>, vector<256x32xf32>
    %c2 = arith.constant 2 : index
    %c0_19 = arith.constant 0 : index
    %48 = vector.load %arg5[%c2, %c0_19] : memref<7x32xf32, #tpu.memory_space<vmem>>, vector<1x32xf32>
    %49 = vector.broadcast %48 : vector<1x32xf32> to vector<256x32xf32>
    %50 = arith.mulf %47, %49 : vector<256x32xf32>
    %c3 = arith.constant 3 : index
    %c0_20 = arith.constant 0 : index
    %51 = vector.load %arg5[%c3, %c0_20] : memref<7x32xf32, #tpu.memory_space<vmem>>, vector<1x32xf32>
    %52 = vector.broadcast %51 : vector<1x32xf32> to vector<256x32xf32>
    %53 = arith.addf %50, %52 : vector<256x32xf32>
    %54 = arith.truncf %53 : vector<256x32xf32> to vector<256x32xbf16>
    %55 = vector.shape_cast %54 : vector<256x32xbf16> to vector<16x16x32xbf16>
    %c0_21 = arith.constant 0 : index
    %c0_22 = arith.constant 0 : index
    %c0_23 = arith.constant 0 : index
    %c0_24 = arith.constant 0 : index
    %56 = vector.load %arg7[%c0_21, %c0_22, %c0_23, %c0_24] : memref<1x16x16x32xbf16, #tpu.memory_space<vmem>>, vector<1x16x16x32xbf16>
    %57 = vector.shape_cast %56 : vector<1x16x16x32xbf16> to vector<16x16x32xbf16>
    %58 = vector.shape_cast %55 : vector<16x16x32xbf16> to vector<1x16x16x32xbf16>
    tpu.vector_store %arg7[%c0_21, %c0_22, %c0_23, %c0_24], %58 {strides = array<i32>} : memref<1x16x16x32xbf16, #tpu.memory_space<vmem>>, vector<1x16x16x32xbf16>,
    %cst_25 = arith.constant 0.000000e+00 : bf16
    %59 = vector.broadcast %cst_25 : bf16 to vector<2x16x32xbf16>
    %60 = tpu.concatenate %59, %55, %59 in 0 : vector<2x16x32xbf16>, vector<16x16x32xbf16>, vector<2x16x32xbf16> -> vector<20x16x32xbf16>
    %cst_26 = arith.constant 0.000000e+00 : bf16
    %61 = vector.broadcast %cst_26 : bf16 to vector<20x2x32xbf16>
    %62 = tpu.concatenate %61, %60, %61 in 1 : vector<20x2x32xbf16>, vector<20x16x32xbf16>, vector<20x2x32xbf16> -> vector<20x20x32xbf16>
    %63 = vector.extract_strided_slice %62 {offsets = [0, 0, 0], sizes = [16, 16, 32], strides = [1, 1, 1]} : vector<20x20x32xbf16> to vector<16x16x32xbf16>
    %64 = vector.shape_cast %63 : vector<16x16x32xbf16> to vector<256x32xbf16>
    %65 = vector.extract_strided_slice %62 {offsets = [0, 2, 0], sizes = [16, 16, 32], strides = [1, 1, 1]} : vector<20x20x32xbf16> to vector<16x16x32xbf16>
    %66 = vector.shape_cast %65 : vector<16x16x32xbf16> to vector<256x32xbf16>
    %67 = vector.extract_strided_slice %62 {offsets = [0, 4, 0], sizes = [16, 16, 32], strides = [1, 1, 1]} : vector<20x20x32xbf16> to vector<16x16x32xbf16>
    %68 = vector.shape_cast %67 : vector<16x16x32xbf16> to vector<256x32xbf16>
    %69 = vector.extract_strided_slice %62 {offsets = [2, 0, 0], sizes = [16, 16, 32], strides = [1, 1, 1]} : vector<20x20x32xbf16> to vector<16x16x32xbf16>
    %70 = vector.shape_cast %69 : vector<16x16x32xbf16> to vector<256x32xbf16>
    %71 = vector.extract_strided_slice %62 {offsets = [2, 2, 0], sizes = [16, 16, 32], strides = [1, 1, 1]} : vector<20x20x32xbf16> to vector<16x16x32xbf16>
    %72 = vector.shape_cast %71 : vector<16x16x32xbf16> to vector<256x32xbf16>
    %73 = vector.extract_strided_slice %62 {offsets = [2, 4, 0], sizes = [16, 16, 32], strides = [1, 1, 1]} : vector<20x20x32xbf16> to vector<16x16x32xbf16>
    %74 = vector.shape_cast %73 : vector<16x16x32xbf16> to vector<256x32xbf16>
    %75 = vector.extract_strided_slice %62 {offsets = [4, 0, 0], sizes = [16, 16, 32], strides = [1, 1, 1]} : vector<20x20x32xbf16> to vector<16x16x32xbf16>
    %76 = vector.shape_cast %75 : vector<16x16x32xbf16> to vector<256x32xbf16>
    %77 = vector.extract_strided_slice %62 {offsets = [4, 2, 0], sizes = [16, 16, 32], strides = [1, 1, 1]} : vector<20x20x32xbf16> to vector<16x16x32xbf16>
    %78 = vector.shape_cast %77 : vector<16x16x32xbf16> to vector<256x32xbf16>
    %79 = vector.extract_strided_slice %62 {offsets = [4, 4, 0], sizes = [16, 16, 32], strides = [1, 1, 1]} : vector<20x20x32xbf16> to vector<16x16x32xbf16>
    %80 = vector.shape_cast %79 : vector<16x16x32xbf16> to vector<256x32xbf16>
    %81 = tpu.concatenate %64, %66, %68, %70, %72, %74, %76, %78, %80 in 1 : vector<256x32xbf16>, vector<256x32xbf16>, vector<256x32xbf16>, vector<256x32xbf16>, vector<256x32xbf16>, vector<256x32xbf16>, vector<256x32xbf16>, vector<256x32xbf16>, vector<256x32xbf16> -> vector<256x288xbf16>
    %c0_27 = arith.constant 0 : index
    %c0_28 = arith.constant 0 : index
    %82 = vector.load %arg4[%c0_27, %c0_28] : memref<288x32xbf16, #tpu.memory_space<vmem>>, vector<288x32xbf16>
    %cst_29 = arith.constant dense<0.000000e+00> : vector<256x32xf32>
    %83 = tpu.matmul %81, %82, %cst_29 {dimension_numbers = #tpu.dot_dimension_numbers<[1], [0], [0], [1], [0, 0, 1, 1], [], []>} : vector<256x288xbf16>, vector<288x32xbf16>, vector<256x32xf32> -> vector<256x32xf32>
    %c4 = arith.constant 4 : index
    %c0_30 = arith.constant 0 : index
    %84 = vector.load %arg5[%c4, %c0_30] : memref<7x32xf32, #tpu.memory_space<vmem>>, vector<1x32xf32>
    %85 = vector.broadcast %84 : vector<1x32xf32> to vector<256x32xf32>
    %86 = arith.addf %83, %85 : vector<256x32xf32>
    %cst_31 = arith.constant 0.000000e+00 : f32
    %87 = vector.broadcast %cst_31 : f32 to vector<256x32xf32>
    %88 = arith.cmpf oge, %86, %87 : vector<256x32xf32>
    %cst_32 = arith.constant 0.00999999977 : f32
    %89 = vector.broadcast %cst_32 : f32 to vector<256x32xf32>
    %90 = arith.mulf %89, %86 : vector<256x32xf32>
    %91 = arith.select %88, %86, %90 : vector<256x32xi1>, vector<256x32xf32>
    %c5 = arith.constant 5 : index
    %c0_33 = arith.constant 0 : index
    %92 = vector.load %arg5[%c5, %c0_33] : memref<7x32xf32, #tpu.memory_space<vmem>>, vector<1x32xf32>
    %93 = vector.broadcast %92 : vector<1x32xf32> to vector<256x32xf32>
    %94 = arith.mulf %91, %93 : vector<256x32xf32>
    %c6 = arith.constant 6 : index
    %c0_34 = arith.constant 0 : index
    %95 = vector.load %arg5[%c6, %c0_34] : memref<7x32xf32, #tpu.memory_space<vmem>>, vector<1x32xf32>
    %96 = vector.broadcast %95 : vector<1x32xf32> to vector<256x32xf32>
    %97 = arith.addf %94, %96 : vector<256x32xf32>
    %98 = arith.truncf %97 : vector<256x32xf32> to vector<256x32xbf16>
    %99 = vector.shape_cast %98 : vector<256x32xbf16> to vector<16x16x32xbf16>
    %cst_35 = arith.constant 0.000000e+00 : bf16
    %100 = vector.broadcast %cst_35 : bf16 to vector<1x16x32xbf16>
    %101 = tpu.concatenate %100, %99, %100 in 0 : vector<1x16x32xbf16>, vector<16x16x32xbf16>, vector<1x16x32xbf16> -> vector<18x16x32xbf16>
    %cst_36 = arith.constant 0.000000e+00 : bf16
    %102 = vector.broadcast %cst_36 : bf16 to vector<18x1x32xbf16>
    %103 = tpu.concatenate %102, %101, %102 in 1 : vector<18x1x32xbf16>, vector<18x16x32xbf16>, vector<18x1x32xbf16> -> vector<18x18x32xbf16>
    %c0_37 = arith.constant 0 : index
    %c0_38 = arith.constant 0 : index
    %c0_39 = arith.constant 0 : index
    %c0_40 = arith.constant 0 : index
    %104 = vector.load %arg8[%c0_37, %c0_38, %c0_39, %c0_40] : memref<1x18x18x32xbf16, #tpu.memory_space<vmem>>, vector<1x18x18x32xbf16>
    %105 = vector.shape_cast %104 : vector<1x18x18x32xbf16> to vector<18x18x32xbf16>
    %106 = vector.shape_cast %103 : vector<18x18x32xbf16> to vector<1x18x18x32xbf16>
    tpu.vector_store %arg8[%c0_37, %c0_38, %c0_39, %c0_40], %106 {strides = array<i32>} : memref<1x18x18x32xbf16, #tpu.memory_space<vmem>>, vector<1x18x18x32xbf16>,
    return
  }
  func.func @transform_0(%arg0: i32) -> (i32, i32, i32, i32) {
    %c0_i32 = arith.constant 0 : i32
    %c0_i32_0 = arith.constant 0 : i32
    %c0_i32_1 = arith.constant 0 : i32
    %c0_i32_2 = arith.constant 0 : i32
    return %arg0, %c0_i32, %c0_i32_0, %c0_i32_1 : i32, i32, i32, i32
  }
  func.func @transform_1(%arg0: i32) -> (i32, i32) {
    %c0_i32 = arith.constant 0 : i32
    %c0_i32_0 = arith.constant 0 : i32
    %c0_i32_1 = arith.constant 0 : i32
    return %c0_i32, %c0_i32_0 : i32, i32
  }
  func.func @transform_2(%arg0: i32) -> (i32, i32) {
    %c0_i32 = arith.constant 0 : i32
    %c0_i32_0 = arith.constant 0 : i32
    %c0_i32_1 = arith.constant 0 : i32
    return %c0_i32, %c0_i32_0 : i32, i32
  }
  func.func @transform_3(%arg0: i32) -> (i32, i32) {
    %c0_i32 = arith.constant 0 : i32
    %c0_i32_0 = arith.constant 0 : i32
    %c0_i32_1 = arith.constant 0 : i32
    return %c0_i32, %c0_i32_0 : i32, i32
  }
  func.func @transform_4(%arg0: i32) -> (i32, i32) {
    %c0_i32 = arith.constant 0 : i32
    %c0_i32_0 = arith.constant 0 : i32
    %c0_i32_1 = arith.constant 0 : i32
    return %c0_i32, %c0_i32_0 : i32, i32
  }
  func.func @transform_5(%arg0: i32) -> (i32, i32, i32, i32) {
    %c0_i32 = arith.constant 0 : i32
    %c0_i32_0 = arith.constant 0 : i32
    %c0_i32_1 = arith.constant 0 : i32
    %c0_i32_2 = arith.constant 0 : i32
    return %arg0, %c0_i32, %c0_i32_0, %c0_i32_1 : i32, i32, i32, i32
  }
  func.func @transform_6(%arg0: i32) -> (i32, i32, i32, i32) {
    %c0_i32 = arith.constant 0 : i32
    %c0_i32_0 = arith.constant 0 : i32
    %c0_i32_1 = arith.constant 0 : i32
    %c0_i32_2 = arith.constant 0 : i32
    return %arg0, %c0_i32, %c0_i32_0, %c0_i32_1 : i32, i32, i32, i32
  }
  func.func @transform_7(%arg0: i32) -> (i32, i32, i32, i32) {
    %c0_i32 = arith.constant 0 : i32
    %c0_i32_0 = arith.constant 0 : i32
    %c0_i32_1 = arith.constant 0 : i32
    %c0_i32_2 = arith.constant 0 : i32
    return %arg0, %c0_i32, %c0_i32_0, %c0_i32_1 : i32, i32, i32, i32
  }
}

module attributes {stable_mosaic.version = 11 : i64} {
  func.func @_back_pool_kernel(%arg0: i32, %arg1: memref<1x16x16x32xbf16, #tpu.memory_space<vmem>>, %arg2: memref<1x18x18x32xbf16, #tpu.memory_space<vmem>>, %arg3: memref<1x16x16x32xbf16, #tpu.memory_space<vmem>>, %arg4: memref<128x32xbf16, #tpu.memory_space<vmem>>, %arg5: memref<96x32xbf16, #tpu.memory_space<vmem>>, %arg6: memref<6x32xf32, #tpu.memory_space<vmem>>, %arg7: memref<1x16x16x32xf32, #tpu.memory_space<vmem>>, %arg8: memref<1x8x8x32xf32, #tpu.memory_space<vmem>>) attributes {dimension_semantics = [#tpu.dimension_semantics<parallel>], iteration_bounds = array<i64: 2>, scalar_prefetch = 0 : i64, scratch_operands = 0 : i64, tpu.core_type = #tpu.core_type<tc>, window_params = [{transform_indices = @transform_0, window_bounds = array<i64: 1, 16, 16, 32>}, {transform_indices = @transform_1, window_bounds = array<i64: 1, 18, 18, 32>}, {transform_indices = @transform_2, window_bounds = array<i64: 1, 16, 16, 32>}, {pipeline_mode = #tpu.pipeline_mode<synchronous>, transform_indices = @transform_3, window_bounds = array<i64: 128, 32>}, {pipeline_mode = #tpu.pipeline_mode<synchronous>, transform_indices = @transform_4, window_bounds = array<i64: 96, 32>}, {pipeline_mode = #tpu.pipeline_mode<synchronous>, transform_indices = @transform_5, window_bounds = array<i64: 6, 32>}, {transform_indices = @transform_6, window_bounds = array<i64: 1, 16, 16, 32>}, {transform_indices = @transform_7, window_bounds = array<i64: 1, 8, 8, 32>}]} {
    %c0 = arith.constant 0 : index
    %c0_0 = arith.constant 0 : index
    %c0_1 = arith.constant 0 : index
    %c0_2 = arith.constant 0 : index
    %0 = vector.load %arg2[%c0, %c0_0, %c0_1, %c0_2] : memref<1x18x18x32xbf16, #tpu.memory_space<vmem>>, vector<1x18x18x32xbf16>
    %1 = vector.shape_cast %0 : vector<1x18x18x32xbf16> to vector<18x18x32xbf16>
    %2 = vector.extract_strided_slice %1 {offsets = [0, 0, 0], sizes = [16, 16, 32], strides = [1, 1, 1]} : vector<18x18x32xbf16> to vector<16x16x32xbf16>
    %3 = vector.shape_cast %2 : vector<16x16x32xbf16> to vector<256x32xbf16>
    %4 = vector.extract_strided_slice %1 {offsets = [0, 2, 0], sizes = [16, 16, 32], strides = [1, 1, 1]} : vector<18x18x32xbf16> to vector<16x16x32xbf16>
    %5 = vector.shape_cast %4 : vector<16x16x32xbf16> to vector<256x32xbf16>
    %6 = vector.extract_strided_slice %1 {offsets = [2, 0, 0], sizes = [16, 16, 32], strides = [1, 1, 1]} : vector<18x18x32xbf16> to vector<16x16x32xbf16>
    %7 = vector.shape_cast %6 : vector<16x16x32xbf16> to vector<256x32xbf16>
    %8 = vector.extract_strided_slice %1 {offsets = [2, 2, 0], sizes = [16, 16, 32], strides = [1, 1, 1]} : vector<18x18x32xbf16> to vector<16x16x32xbf16>
    %9 = vector.shape_cast %8 : vector<16x16x32xbf16> to vector<256x32xbf16>
    %10 = tpu.concatenate %3, %5, %7, %9 in 1 : vector<256x32xbf16>, vector<256x32xbf16>, vector<256x32xbf16>, vector<256x32xbf16> -> vector<256x128xbf16>
    %c0_3 = arith.constant 0 : index
    %c0_4 = arith.constant 0 : index
    %11 = vector.load %arg4[%c0_3, %c0_4] : memref<128x32xbf16, #tpu.memory_space<vmem>>, vector<128x32xbf16>
    %cst = arith.constant dense<0.000000e+00> : vector<256x32xf32>
    %12 = tpu.matmul %10, %11, %cst {dimension_numbers = #tpu.dot_dimension_numbers<[1], [0], [0], [1], [0, 0, 1, 1], [], []>} : vector<256x128xbf16>, vector<128x32xbf16>, vector<256x32xf32> -> vector<256x32xf32>
    %c0_5 = arith.constant 0 : index
    %c0_6 = arith.constant 0 : index
    %13 = vector.load %arg6[%c0_5, %c0_6] : memref<6x32xf32, #tpu.memory_space<vmem>>, vector<1x32xf32>
    %14 = vector.broadcast %13 : vector<1x32xf32> to vector<256x32xf32>
    %15 = arith.addf %12, %14 : vector<256x32xf32>
    %cst_7 = arith.constant 0.000000e+00 : f32
    %16 = vector.broadcast %cst_7 : f32 to vector<256x32xf32>
    %17 = arith.cmpf oge, %15, %16 : vector<256x32xf32>
    %cst_8 = arith.constant 0.00999999977 : f32
    %18 = vector.broadcast %cst_8 : f32 to vector<256x32xf32>
    %19 = arith.mulf %18, %15 : vector<256x32xf32>
    %20 = arith.select %17, %15, %19 : vector<256x32xi1>, vector<256x32xf32>
    %c1 = arith.constant 1 : index
    %c0_9 = arith.constant 0 : index
    %21 = vector.load %arg6[%c1, %c0_9] : memref<6x32xf32, #tpu.memory_space<vmem>>, vector<1x32xf32>
    %22 = vector.broadcast %21 : vector<1x32xf32> to vector<256x32xf32>
    %23 = arith.mulf %20, %22 : vector<256x32xf32>
    %c2 = arith.constant 2 : index
    %c0_10 = arith.constant 0 : index
    %24 = vector.load %arg6[%c2, %c0_10] : memref<6x32xf32, #tpu.memory_space<vmem>>, vector<1x32xf32>
    %25 = vector.broadcast %24 : vector<1x32xf32> to vector<256x32xf32>
    %26 = arith.addf %23, %25 : vector<256x32xf32>
    %c0_11 = arith.constant 0 : index
    %c0_12 = arith.constant 0 : index
    %c0_13 = arith.constant 0 : index
    %c0_14 = arith.constant 0 : index
    %27 = vector.load %arg1[%c0_11, %c0_12, %c0_13, %c0_14] : memref<1x16x16x32xbf16, #tpu.memory_space<vmem>>, vector<1x16x16x32xbf16>
    %28 = vector.shape_cast %27 : vector<1x16x16x32xbf16> to vector<16x16x32xbf16>
    %29 = vector.shape_cast %28 : vector<16x16x32xbf16> to vector<256x32xbf16>
    %30 = vector.extract_strided_slice %1 {offsets = [1, 1, 0], sizes = [16, 16, 32], strides = [1, 1, 1]} : vector<18x18x32xbf16> to vector<16x16x32xbf16>
    %31 = vector.shape_cast %30 : vector<16x16x32xbf16> to vector<256x32xbf16>
    %32 = arith.truncf %26 : vector<256x32xf32> to vector<256x32xbf16>
    %33 = tpu.concatenate %29, %31, %32 in 1 : vector<256x32xbf16>, vector<256x32xbf16>, vector<256x32xbf16> -> vector<256x96xbf16>
    %c0_15 = arith.constant 0 : index
    %c0_16 = arith.constant 0 : index
    %34 = vector.load %arg5[%c0_15, %c0_16] : memref<96x32xbf16, #tpu.memory_space<vmem>>, vector<96x32xbf16>
    %cst_17 = arith.constant dense<0.000000e+00> : vector<256x32xf32>
    %35 = tpu.matmul %33, %34, %cst_17 {dimension_numbers = #tpu.dot_dimension_numbers<[1], [0], [0], [1], [0, 0, 1, 1], [], []>} : vector<256x96xbf16>, vector<96x32xbf16>, vector<256x32xf32> -> vector<256x32xf32>
    %c3 = arith.constant 3 : index
    %c0_18 = arith.constant 0 : index
    %36 = vector.load %arg6[%c3, %c0_18] : memref<6x32xf32, #tpu.memory_space<vmem>>, vector<1x32xf32>
    %37 = vector.broadcast %36 : vector<1x32xf32> to vector<256x32xf32>
    %38 = arith.addf %35, %37 : vector<256x32xf32>
    %cst_19 = arith.constant 0.000000e+00 : f32
    %39 = vector.broadcast %cst_19 : f32 to vector<256x32xf32>
    %40 = arith.cmpf oge, %38, %39 : vector<256x32xf32>
    %cst_20 = arith.constant 0.00999999977 : f32
    %41 = vector.broadcast %cst_20 : f32 to vector<256x32xf32>
    %42 = arith.mulf %41, %38 : vector<256x32xf32>
    %43 = arith.select %40, %38, %42 : vector<256x32xi1>, vector<256x32xf32>
    %c4 = arith.constant 4 : index
    %c0_21 = arith.constant 0 : index
    %44 = vector.load %arg6[%c4, %c0_21] : memref<6x32xf32, #tpu.memory_space<vmem>>, vector<1x32xf32>
    %45 = vector.broadcast %44 : vector<1x32xf32> to vector<256x32xf32>
    %46 = arith.mulf %43, %45 : vector<256x32xf32>
    %c5 = arith.constant 5 : index
    %c0_22 = arith.constant 0 : index
    %47 = vector.load %arg6[%c5, %c0_22] : memref<6x32xf32, #tpu.memory_space<vmem>>, vector<1x32xf32>
    %48 = vector.broadcast %47 : vector<1x32xf32> to vector<256x32xf32>
    %49 = arith.addf %46, %48 : vector<256x32xf32>
    %c0_23 = arith.constant 0 : index
    %c0_24 = arith.constant 0 : index
    %c0_25 = arith.constant 0 : index
    %c0_26 = arith.constant 0 : index
    %50 = vector.load %arg3[%c0_23, %c0_24, %c0_25, %c0_26] : memref<1x16x16x32xbf16, #tpu.memory_space<vmem>>, vector<1x16x16x32xbf16>
    %51 = vector.shape_cast %50 : vector<1x16x16x32xbf16> to vector<16x16x32xbf16>
    %52 = vector.shape_cast %51 : vector<16x16x32xbf16> to vector<256x32xbf16>
    %53 = arith.extf %52 : vector<256x32xbf16> to vector<256x32xf32>
    %54 = arith.addf %49, %53 : vector<256x32xf32>
    %55 = vector.shape_cast %54 : vector<256x32xf32> to vector<16x16x32xf32>
    %c0_27 = arith.constant 0 : index
    %c0_28 = arith.constant 0 : index
    %c0_29 = arith.constant 0 : index
    %c0_30 = arith.constant 0 : index
    %56 = vector.load %arg7[%c0_27, %c0_28, %c0_29, %c0_30] : memref<1x16x16x32xf32, #tpu.memory_space<vmem>>, vector<1x16x16x32xf32>
    %57 = vector.shape_cast %56 : vector<1x16x16x32xf32> to vector<16x16x32xf32>
    %58 = vector.shape_cast %55 : vector<16x16x32xf32> to vector<1x16x16x32xf32>
    tpu.vector_store %arg7[%c0_27, %c0_28, %c0_29, %c0_30], %58 {strides = array<i32>} : memref<1x16x16x32xf32, #tpu.memory_space<vmem>>, vector<1x16x16x32xf32>,
    %59 = vector.shape_cast %55 : vector<16x16x32xf32> to vector<8x2x16x32xf32>
    %60 = vector.extract_strided_slice %59 {offsets = [0, 0, 0, 0], sizes = [8, 1, 16, 32], strides = [1, 1, 1, 1]} : vector<8x2x16x32xf32> to vector<8x1x16x32xf32>
    %61 = vector.shape_cast %60 : vector<8x1x16x32xf32> to vector<8x16x32xf32>
    %62 = vector.extract_strided_slice %59 {offsets = [0, 1, 0, 0], sizes = [8, 1, 16, 32], strides = [1, 1, 1, 1]} : vector<8x2x16x32xf32> to vector<8x1x16x32xf32>
    %63 = vector.shape_cast %62 : vector<8x1x16x32xf32> to vector<8x16x32xf32>
    %cst_31 = arith.constant 0.000000e+00 : f32
    %64 = vector.broadcast %cst_31 : f32 to vector<1x16x32xf32>
    %65 = vector.extract_strided_slice %63 {offsets = [0, 0, 0], sizes = [7, 16, 32], strides = [1, 1, 1]} : vector<8x16x32xf32> to vector<7x16x32xf32>
    %66 = tpu.concatenate %64, %65 in 0 : vector<1x16x32xf32>, vector<7x16x32xf32> -> vector<8x16x32xf32>
    %67 = arith.addf %61, %63 : vector<8x16x32xf32>
    %68 = arith.addf %67, %66 : vector<8x16x32xf32>
    %69 = vector.shape_cast %68 : vector<8x16x32xf32> to vector<8x8x2x32xf32>
    %70 = vector.extract_strided_slice %69 {offsets = [0, 0, 0, 0], sizes = [8, 8, 1, 32], strides = [1, 1, 1, 1]} : vector<8x8x2x32xf32> to vector<8x8x1x32xf32>
    %71 = vector.shape_cast %70 : vector<8x8x1x32xf32> to vector<8x8x32xf32>
    %72 = vector.extract_strided_slice %69 {offsets = [0, 0, 1, 0], sizes = [8, 8, 1, 32], strides = [1, 1, 1, 1]} : vector<8x8x2x32xf32> to vector<8x8x1x32xf32>
    %73 = vector.shape_cast %72 : vector<8x8x1x32xf32> to vector<8x8x32xf32>
    %cst_32 = arith.constant 0.000000e+00 : f32
    %74 = vector.broadcast %cst_32 : f32 to vector<8x1x32xf32>
    %75 = vector.extract_strided_slice %73 {offsets = [0, 0, 0], sizes = [8, 7, 32], strides = [1, 1, 1]} : vector<8x8x32xf32> to vector<8x7x32xf32>
    %76 = tpu.concatenate %74, %75 in 1 : vector<8x1x32xf32>, vector<8x7x32xf32> -> vector<8x8x32xf32>
    %77 = arith.addf %71, %73 : vector<8x8x32xf32>
    %78 = arith.addf %77, %76 : vector<8x8x32xf32>
    %cst_33 = arith.constant 0.111111112 : f32
    %79 = vector.broadcast %cst_33 : f32 to vector<8x8x32xf32>
    %80 = arith.mulf %78, %79 : vector<8x8x32xf32>
    %c0_34 = arith.constant 0 : index
    %c0_35 = arith.constant 0 : index
    %c0_36 = arith.constant 0 : index
    %c0_37 = arith.constant 0 : index
    %81 = vector.load %arg8[%c0_34, %c0_35, %c0_36, %c0_37] : memref<1x8x8x32xf32, #tpu.memory_space<vmem>>, vector<1x8x8x32xf32>
    %82 = vector.shape_cast %81 : vector<1x8x8x32xf32> to vector<8x8x32xf32>
    %83 = vector.shape_cast %80 : vector<8x8x32xf32> to vector<1x8x8x32xf32>
    tpu.vector_store %arg8[%c0_34, %c0_35, %c0_36, %c0_37], %83 {strides = array<i32>} : memref<1x8x8x32xf32, #tpu.memory_space<vmem>>, vector<1x8x8x32xf32>,
    return
  }
  func.func @transform_0(%arg0: i32) -> (i32, i32, i32, i32) {
    %c0_i32 = arith.constant 0 : i32
    %c0_i32_0 = arith.constant 0 : i32
    %c0_i32_1 = arith.constant 0 : i32
    %c0_i32_2 = arith.constant 0 : i32
    return %arg0, %c0_i32, %c0_i32_0, %c0_i32_1 : i32, i32, i32, i32
  }
  func.func @transform_1(%arg0: i32) -> (i32, i32, i32, i32) {
    %c0_i32 = arith.constant 0 : i32
    %c0_i32_0 = arith.constant 0 : i32
    %c0_i32_1 = arith.constant 0 : i32
    %c0_i32_2 = arith.constant 0 : i32
    return %arg0, %c0_i32, %c0_i32_0, %c0_i32_1 : i32, i32, i32, i32
  }
  func.func @transform_2(%arg0: i32) -> (i32, i32, i32, i32) {
    %c0_i32 = arith.constant 0 : i32
    %c0_i32_0 = arith.constant 0 : i32
    %c0_i32_1 = arith.constant 0 : i32
    %c0_i32_2 = arith.constant 0 : i32
    return %arg0, %c0_i32, %c0_i32_0, %c0_i32_1 : i32, i32, i32, i32
  }
  func.func @transform_3(%arg0: i32) -> (i32, i32) {
    %c0_i32 = arith.constant 0 : i32
    %c0_i32_0 = arith.constant 0 : i32
    %c0_i32_1 = arith.constant 0 : i32
    return %c0_i32, %c0_i32_0 : i32, i32
  }
  func.func @transform_4(%arg0: i32) -> (i32, i32) {
    %c0_i32 = arith.constant 0 : i32
    %c0_i32_0 = arith.constant 0 : i32
    %c0_i32_1 = arith.constant 0 : i32
    return %c0_i32, %c0_i32_0 : i32, i32
  }
  func.func @transform_5(%arg0: i32) -> (i32, i32) {
    %c0_i32 = arith.constant 0 : i32
    %c0_i32_0 = arith.constant 0 : i32
    %c0_i32_1 = arith.constant 0 : i32
    return %c0_i32, %c0_i32_0 : i32, i32
  }
  func.func @transform_6(%arg0: i32) -> (i32, i32, i32, i32) {
    %c0_i32 = arith.constant 0 : i32
    %c0_i32_0 = arith.constant 0 : i32
    %c0_i32_1 = arith.constant 0 : i32
    %c0_i32_2 = arith.constant 0 : i32
    return %arg0, %c0_i32, %c0_i32_0, %c0_i32_1 : i32, i32, i32, i32
  }
  func.func @transform_7(%arg0: i32) -> (i32, i32, i32, i32) {
    %c0_i32 = arith.constant 0 : i32
    %c0_i32_0 = arith.constant 0 : i32
    %c0_i32_1 = arith.constant 0 : i32
    %c0_i32_2 = arith.constant 0 : i32
    return %arg0, %c0_i32, %c0_i32_0, %c0_i32_1 : i32, i32, i32, i32
  }
}

</mosaic_0001>

<llo_original>
// kernel: res_block_forward.3
$region0: #{res_block_forward.3}
  #allocation0 [shape = 'u32[]', space=smem, size = 0x4, offset = 0x4, fixed_abs, tag = 'smem constant byte address 0x4 - core index']
  #allocation1 [shape = 'u32[144,128]{1,0:T(1,128)}', space=vmem, size = 0x12000, scoped, tag = 'internal scratch']
  %s0 = inlined_call_operand.vmem [shape: bf16[2,16,16,32], index: 0, kind: input, shape index: {}]
  %s1 = inlined_call_operand.vmem [shape: bf16[2,18,18,32], index: 1, kind: input, shape index: {}]
  %s2 = inlined_call_operand.vmem [shape: bf16[2,16,16,32], index: 2, kind: input, shape index: {}]
  %s3 = inlined_call_operand.vmem [shape: bf16[128,32], index: 3, kind: input, shape index: {}]
  %s4 = inlined_call_operand.vmem [shape: bf16[96,32], index: 4, kind: input, shape index: {}]
  %s5 = inlined_call_operand.vmem [shape: f32[6,32], index: 5, kind: input, shape index: {}]
  %s6 = inlined_call_operand.hbm [shape: f32[2,16,16,32], index: 6, kind: output, shape index: {0}]
  %s7 = inlined_call_operand.hbm [shape: f32[2,8,8,32], index: 7, kind: output, shape index: {1}]
  %8 = xla_tuple %s6, %s7
  %s9 = sld [smem:[#allocation0]]
  $region65: #{res_block_forward.3} parent=0
    _
  %s11 = ssub.s32 1, %s9
  %s12 = scalar_select 0, %s11, %s9
  $region1: #{res_block_forward.3} parent=0
    #allocation2 [shape = 'u8[262144]{0}', space=vmem, size = 0x40000, scoped, tag = 'output window, operand 0']
    #allocation3 [shape = 's32[2]{0}', space=sflag, size = 0x8, scoped, tag = 'scoped memory for res_block_forward.3']
    #allocation4 [shape = 'u8[65536]{0}', space=vmem, size = 0x10000, scoped, tag = 'output window, operand 1']
    #allocation5 [shape = 's32[2]{0}', space=sflag, size = 0x8, scoped, tag = 'scoped memory for res_block_forward.3']
    %13 = vsyncpa [#allocation3], 0
    %s14 = scalar_lea.sflag [#allocation3], 1
    %15 = vsyncpa %s14, 0
    %16 = vsyncpa [#allocation5], 0
    %s17 = scalar_lea.sflag [#allocation5], 1
    %18 = vsyncpa %s17, 0
    loop: start=0, step=1, limit=4
    $region2: #{res_block_forward.3} parent=1 // loop_pre_header
      _
    $region3: #{res_block_forward.3} parent=1 // loop_header
      %s20 = sphi 0, %s24
      %p21 = scmp.ge.s32.totalorder %s20, 4
      %s30 = sphi 0, %s32
      %s33 = sphi 0, %s30
      %s34 = sphi 0, %s33
      %s50 = sphi 0, %s34
      %s56 = sphi 0, %s58
      %s59 = sphi 0, %s56
      %s60 = sphi 0, %s59
      %s76 = sphi 0, %s60
      %s82 = sphi 0, %s84
      %s85 = sphi 0, %s82
      %s86 = sphi 0, %s85
      %s102 = sphi 0, %s86
      %s106 = sphi 0, %s106
      %s108 = sphi 0, %s106
      %s109 = sphi 0, %s108
      %s123 = sphi 0, %s109
      %s127 = sphi 0, %s127
      %s129 = sphi 0, %s127
      %s130 = sphi 0, %s129
      %s144 = sphi 0, %s130
      %s148 = sphi 0, %s148
      %s150 = sphi 0, %s148
      %s151 = sphi 0, %s150
      %s165 = sphi 0, %s151
      %s171 = sphi 0, %s173
      %s174 = sphi 0, %s171
      %s175 = sphi 0, %s174
      %s191 = sphi 0, %s175
      %s197 = sphi 0, %s199
      %s200 = sphi 0, %s197
      %s201 = sphi 0, %s200
      %s217 = sphi 0, %s201
    $region4: #{res_block_forward.3} parent=1 // loop_header_branch
      %23 = sbr.rel (%p21) target = $region8
    $region5: #{res_block_forward.3} parent=1 // loop_body
      %s25 = ssub.s32 %s20, 1
      %s26 = ssub.s32 %s20, 2
      %s27 = sadd.s32 %s20, 1
      %s28 = ssub.s32 %s20, %s27
      %p29 = scmp.eq.s32.totalorder %s28, 0
      %s31 = sadd.s32 %s30, 1
      %s32 = scalar_select %p29, %s30, %s31
      %p35 = pneg %p29
      %p36 = scmp.eq.s32.totalorder %s20, 1
      %p37 = por %p35, %p36
      %p38 = scmp.ne.s32.totalorder %s30, %s33
      %p39 = scmp.eq.s32.totalorder %s20, 0
      %p40 = por %p38, %p39
      %p41 = scmp.ne.s32.totalorder %s30, %s33
      %p42 = scmp.eq.s32.totalorder %s25, 1
      %p43 = por %p41, %p42
      %p44 = scmp.ne.s32.totalorder %s33, %s34
      %p45 = scmp.eq.s32.totalorder %s25, 0
      %p46 = por %p44, %p45
      %p47 = scmp.ne.s32.totalorder %s33, %s34
      %p48 = scmp.eq.s32.totalorder %s26, 1
      %p49 = por %p47, %p48
      %p51 = scmp.ne.s32.totalorder %s34, %s50
      %p52 = scmp.eq.s32.totalorder %s26, 0
      %p53 = por %p51, %p52
      %s54 = ssub.s32 %s20, %s27
      %p55 = scmp.eq.s32.totalorder %s54, 0
      %s57 = sadd.s32 %s56, 1
      %s58 = scalar_select %p55, %s56, %s57
      %p61 = pneg %p55
      %p62 = scmp.eq.s32.totalorder %s20, 1
      %p63 = por %p61, %p62
      %p64 = scmp.ne.s32.totalorder %s56, %s59
      %p65 = scmp.eq.s32.totalorder %s20, 0
      %p66 = por %p64, %p65
      %p67 = scmp.ne.s32.totalorder %s56, %s59
      %p68 = scmp.eq.s32.totalorder %s25, 1
      %p69 = por %p67, %p68
      %p70 = scmp.ne.s32.totalorder %s59, %s60
      %p71 = scmp.eq.s32.totalorder %s25, 0
      %p72 = por %p70, %p71
      %p73 = scmp.ne.s32.totalorder %s59, %s60
      %p74 = scmp.eq.s32.totalorder %s26, 1
      %p75 = por %p73, %p74
      %p77 = scmp.ne.s32.totalorder %s60, %s76
      %p78 = scmp.eq.s32.totalorder %s26, 0
      %p79 = por %p77, %p78
      %s80 = ssub.s32 %s20, %s27
      %p81 = scmp.eq.s32.totalorder %s80, 0
      %s83 = sadd.s32 %s82, 1
      %s84 = scalar_select %p81, %s82, %s83
      %p87 = pneg %p81
      %p88 = scmp.eq.s32.totalorder %s20, 1
      %p89 = por %p87, %p88
      %p90 = scmp.ne.s32.totalorder %s82, %s85
      %p91 = scmp.eq.s32.totalorder %s20, 0
      %p92 = por %p90, %p91
      %p93 = scmp.ne.s32.totalorder %s82, %s85
      %p94 = scmp.eq.s32.totalorder %s25, 1
      %p95 = por %p93, %p94
      %p96 = scmp.ne.s32.totalorder %s85, %s86
      %p97 = scmp.eq.s32.totalorder %s25, 0
      %p98 = por %p96, %p97
      %p99 = scmp.ne.s32.totalorder %s85, %s86
      %p100 = scmp.eq.s32.totalorder %s26, 1
      %p101 = por %p99, %p100
      %p103 = scmp.ne.s32.totalorder %s86, %s102
      %p104 = scmp.eq.s32.totalorder %s26, 0
      %p105 = por %p103, %p104
      %s107 = sadd.s32 %s106, 1
      %p110 = scmp.eq.s32.totalorder %s20, 1
      %p111 = scmp.ne.s32.totalorder %s106, %s108
      %p112 = scmp.eq.s32.totalorder %s20, 0
      %p113 = por %p111, %p112
      %p114 = scmp.ne.s32.totalorder %s106, %s108
      %p115 = scmp.eq.s32.totalorder %s25, 1
      %p116 = por %p114, %p115
      %p117 = scmp.ne.s32.totalorder %s108, %s109
      %p118 = scmp.eq.s32.totalorder %s25, 0
      %p119 = por %p117, %p118
      %p120 = scmp.ne.s32.totalorder %s108, %s109
      %p121 = scmp.eq.s32.totalorder %s26, 1
      %p122 = por %p120, %p121
      %p124 = scmp.ne.s32.totalorder %s109, %s123
      %p125 = scmp.eq.s32.totalorder %s26, 0
      %p126 = por %p124, %p125
      %s128 = sadd.s32 %s127, 1
      %p131 = scmp.eq.s32.totalorder %s20, 1
      %p132 = scmp.ne.s32.totalorder %s127, %s129
      %p133 = scmp.eq.s32.totalorder %s20, 0
      %p134 = por %p132, %p133
      %p135 = scmp.ne.s32.totalorder %s127, %s129
      %p136 = scmp.eq.s32.totalorder %s25, 1
      %p137 = por %p135, %p136
      %p138 = scmp.ne.s32.totalorder %s129, %s130
      %p139 = scmp.eq.s32.totalorder %s25, 0
      %p140 = por %p138, %p139
      %p141 = scmp.ne.s32.totalorder %s129, %s130
      %p142 = scmp.eq.s32.totalorder %s26, 1
      %p143 = por %p141, %p142
      %p145 = scmp.ne.s32.totalorder %s130, %s144
      %p146 = scmp.eq.s32.totalorder %s26, 0
      %p147 = por %p145, %p146
      %s149 = sadd.s32 %s148, 1
      %p152 = scmp.eq.s32.totalorder %s20, 1
      %p153 = scmp.ne.s32.totalorder %s148, %s150
      %p154 = scmp.eq.s32.totalorder %s20, 0
      %p155 = por %p153, %p154
      %p156 = scmp.ne.s32.totalorder %s148, %s150
      %p157 = scmp.eq.s32.totalorder %s25, 1
      %p158 = por %p156, %p157
      %p159 = scmp.ne.s32.totalorder %s150, %s151
      %p160 = scmp.eq.s32.totalorder %s25, 0
      %p161 = por %p159, %p160
      %p162 = scmp.ne.s32.totalorder %s150, %s151
      %p163 = scmp.eq.s32.totalorder %s26, 1
      %p164 = por %p162, %p163
      %p166 = scmp.ne.s32.totalorder %s151, %s165
      %p167 = scmp.eq.s32.totalorder %s26, 0
      %p168 = por %p166, %p167
      %s169 = ssub.s32 %s20, %s27
      %p170 = scmp.eq.s32.totalorder %s169, 0
      %s172 = sadd.s32 %s171, 1
      %s173 = scalar_select %p170, %s171, %s172
      %p176 = pneg %p170
      %p177 = scmp.eq.s32.totalorder %s20, 1
      %p178 = por %p176, %p177
      %p179 = scmp.ne.s32.totalorder %s171, %s174
      %p180 = scmp.eq.s32.totalorder %s20, 0
      %p181 = por %p179, %p180
      %p182 = scmp.ne.s32.totalorder %s171, %s174
      %p183 = scmp.eq.s32.totalorder %s25, 1
      %p184 = por %p182, %p183
      %p185 = scmp.ne.s32.totalorder %s174, %s175
      %p186 = scmp.eq.s32.totalorder %s25, 0
      %p187 = por %p185, %p186
      %p188 = scmp.ne.s32.totalorder %s174, %s175
      %p189 = scmp.eq.s32.totalorder %s26, 1
      %p190 = por %p188, %p189
      %p192 = scmp.ne.s32.totalorder %s175, %s191
      %p193 = scmp.eq.s32.totalorder %s26, 0
      %p194 = por %p192, %p193
      %s195 = ssub.s32 %s20, %s27
      %p196 = scmp.eq.s32.totalorder %s195, 0
      %s198 = sadd.s32 %s197, 1
      %s199 = scalar_select %p196, %s197, %s198
      %p202 = pneg %p196
      %p203 = scmp.eq.s32.totalorder %s20, 1
      %p204 = por %p202, %p203
      %p205 = scmp.ne.s32.totalorder %s197, %s200
      %p206 = scmp.eq.s32.totalorder %s20, 0
      %p207 = por %p205, %p206
      %p208 = scmp.ne.s32.totalorder %s197, %s200
      %p209 = scmp.eq.s32.totalorder %s25, 1
      %p210 = por %p208, %p209
      %p211 = scmp.ne.s32.totalorder %s200, %s201
      %p212 = scmp.eq.s32.totalorder %s25, 0
      %p213 = por %p211, %p212
      %p214 = scmp.ne.s32.totalorder %s200, %s201
      %p215 = scmp.eq.s32.totalorder %s26, 1
      %p216 = por %p214, %p215
      %p218 = scmp.ne.s32.totalorder %s201, %s217
      %p219 = scmp.eq.s32.totalorder %s26, 0
      %p220 = por %p218, %p219
      %p221 = scmp.le.s32.totalorder 1, %s20
      %p222 = scmp.lt.s32.totalorder %s20, 3
      %p223 = pnand %p221, %p222
      %p224 = pneg %p223
      // Predicated region
      $region9: #{res_block_forward.3} parent=5 // pred_check
        _
      $region10: #{res_block_forward.3} parent=5 // pred_check_branch
        %226 = sbr.rel (%p223) target = $region12
      $region11: #{res_block_forward.3} parent=5 // pred_region
        %s227 = ssub.s32 %s20, 1
        // Predicated region
        $region13: #{res_block_forward.3} parent=11 // pred_check
          %p228 = pneg %p119
        $region14: #{res_block_forward.3} parent=11 // pred_check_branch
          %230 = sbr.rel (%p228) target = $region16
        $region15: #{res_block_forward.3} parent=11 // pred_region
          _
        $region16: #{res_block_forward.3} parent=11 // pred_fallthru
          _
        // Predicated region
        $region17: #{res_block_forward.3} parent=11 // pred_check
          %p231 = pneg %p140
        $region18: #{res_block_forward.3} parent=11 // pred_check_branch
          %233 = sbr.rel (%p231) target = $region20
        $region19: #{res_block_forward.3} parent=11 // pred_region
          _
        $region20: #{res_block_forward.3} parent=11 // pred_fallthru
          _
        // Predicated region
        $region21: #{res_block_forward.3} parent=11 // pred_check
          %p234 = pneg %p161
        $region22: #{res_block_forward.3} parent=11 // pred_check_branch
          %236 = sbr.rel (%p234) target = $region24
        $region23: #{res_block_forward.3} parent=11 // pred_region
          _
        $region24: #{res_block_forward.3} parent=11 // pred_fallthru
          _
      $region12: #{res_block_forward.3} parent=5 // pred_fallthru
        _
      %p237 = scmp.lt.s32.totalorder %s20, 2
      // Predicated region
      $region25: #{res_block_forward.3} parent=5 // pred_check
        %p238 = pneg %p237
      $region26: #{res_block_forward.3} parent=5 // pred_check_branch
        %240 = sbr.rel (%p238) target = $region28
      $region27: #{res_block_forward.3} parent=5 // pred_region
        // Predicated region
        $region29: #{res_block_forward.3} parent=27 // pred_check
          %p241 = pneg %p40
        $region30: #{res_block_forward.3} parent=27 // pred_check_branch
          %243 = sbr.rel (%p241) target = $region32
        $region31: #{res_block_forward.3} parent=27 // pred_region
          %p244 = scmp.lt.s32.totalorder %s20, 1
          %s245 = scalar_select %p244, %s20, 1
          %s246 = smul.addr %s245, 32
          %s247 = smul.addr %s246, 4
          %s248 = scalar_lea.vmem %s0, %s247
        $region32: #{res_block_forward.3} parent=27 // pred_fallthru
          _
        // Predicated region
        $region33: #{res_block_forward.3} parent=27 // pred_check
          %p249 = pneg %p66
        $region34: #{res_block_forward.3} parent=27 // pred_check_branch
          %251 = sbr.rel (%p249) target = $region36
        $region35: #{res_block_forward.3} parent=27 // pred_region
          %p252 = scmp.lt.s32.totalorder %s20, 1
          %s253 = scalar_select %p252, %s20, 1
          %s254 = smul.addr %s253, 54
          %s255 = smul.addr %s254, 4
          %s256 = scalar_lea.vmem %s1, %s255
        $region36: #{res_block_forward.3} parent=27 // pred_fallthru
          _
        // Predicated region
        $region37: #{res_block_forward.3} parent=27 // pred_check
          %p257 = pneg %p92
        $region38: #{res_block_forward.3} parent=27 // pred_check_branch
          %259 = sbr.rel (%p257) target = $region40
        $region39: #{res_block_forward.3} parent=27 // pred_region
          %p260 = scmp.lt.s32.totalorder %s20, 1
          %s261 = scalar_select %p260, %s20, 1
          %s262 = smul.addr %s261, 32
          %s263 = smul.addr %s262, 4
          %s264 = scalar_lea.vmem %s2, %s263
        $region40: #{res_block_forward.3} parent=27 // pred_fallthru
          _
      $region28: #{res_block_forward.3} parent=5 // pred_fallthru
        _
      %p265 = scmp.le.s32.totalorder 1, %s20
      %p266 = scmp.lt.s32.totalorder %s20, 3
      %p267 = pnand %p265, %p266
      %p268 = pneg %p267
      // Predicated region
      $region41: #{res_block_forward.3} parent=5 // pred_check
        _
      $region42: #{res_block_forward.3} parent=5 // pred_check_branch
        %270 = sbr.rel (%p267) target = $region44
      $region43: #{res_block_forward.3} parent=5 // pred_region
        %s271 = ssub.s32 %s20, 1
        %p272 = scmp.lt.s32.totalorder %s25, 1
        %s273 = scalar_select %p272, %s25, 1
        %s274 = smul.addr %s273, 32
        %s275 = smul.addr %s274, 4
        %s276 = scalar_lea.vmem %s0, %s275
        %p277 = pneg %p46
        %p278 = pneg %p43
        %p279 = scmp.lt.s32.totalorder %s25, 1
        %s280 = scalar_select %p279, %s25, 1
        %s281 = smul.addr %s280, 54
        %s282 = smul.addr %s281, 4
        %s283 = scalar_lea.vmem %s1, %s282
        %p284 = pneg %p72
        %p285 = pneg %p69
        %p286 = scmp.lt.s32.totalorder %s25, 1
        %s287 = scalar_select %p286, %s25, 1
        %s288 = smul.addr %s287, 32
        %s289 = smul.addr %s288, 4
        %s290 = scalar_lea.vmem %s2, %s289
        %p291 = pneg %p98
        %p292 = pneg %p95
        %p293 = pneg %p119
        %p294 = pneg %p116
        %p295 = pneg %p140
        %p296 = pneg %p137
        %p297 = pneg %p161
        %p298 = pneg %p158
        %p299 = pneg %p187
        %p300 = pneg %p184
        %s301 = sand.u32 %s174, 1
        %s302 = scalar_lea.sflag [#allocation3], %s301
        %s303 = sand.u32 %s174, 1
        %s304 = smul.addr %s303, 256
        %s305 = scalar_lea.vmem [#allocation2], %s304
        %p306 = pneg %p213
        %p307 = pneg %p210
        %s308 = sand.u32 %s200, 1
        %s309 = scalar_lea.sflag [#allocation5], %s308
        %s310 = sand.u32 %s200, 1
        %s311 = smul.addr %s310, 64
        %s312 = scalar_lea.vmem [#allocation4], %s311
        %p313 = scmp.lt.s32.totalorder %s25, 1
        %s314 = scalar_select %p313, %s25, 1
        %s315 = smul.addr %s314, 32
        %s316 = smul.addr %s315, 4
        %s317 = scalar_lea.vmem %s0, %s316
        %p318 = scmp.lt.s32.totalorder %s25, 1
        %s319 = scalar_select %p318, %s25, 1
        %s320 = smul.addr %s319, 54
        %s321 = smul.addr %s320, 4
        %s322 = scalar_lea.vmem %s1, %s321
        %p323 = scmp.lt.s32.totalorder %s25, 1
        %s324 = scalar_select %p323, %s25, 1
        %s325 = smul.addr %s324, 32
        %s326 = smul.addr %s325, 4
        %s327 = scalar_lea.vmem %s2, %s326
        %v329 = vld [vmem:[%s322] sm:$0xf]
        %v330 = vld [vmem:[%s322 + $0x4] sm:$0xf]
        %v331 = vld [vmem:[%s322 + $0x8] sm:$0x1]
        %v332 = vld [vmem:[%s322 + $0xc] sm:$0xf]
        %v333 = vld [vmem:[%s322 + $0x10] sm:$0xf]
        %v334 = vld [vmem:[%s322 + $0x14] sm:$0x1]
        %v335 = vld [vmem:[%s322 + $0x18] sm:$0xf]
        %v336 = vld [vmem:[%s322 + $0x1c] sm:$0xf]
        %v337 = vld [vmem:[%s322 + $0x20] sm:$0x1]
        %v338 = vld [vmem:[%s322 + $0x24] sm:$0xf]
        %v339 = vld [vmem:[%s322 + $0x28] sm:$0xf]
        %v340 = vld [vmem:[%s322 + $0x2c] sm:$0x1]
        %v341 = vld [vmem:[%s322 + $0x30] sm:$0xf]
        %v342 = vld [vmem:[%s322 + $0x34] sm:$0xf]
        %v343 = vld [vmem:[%s322 + $0x38] sm:$0x1]
        %v344 = vld [vmem:[%s322 + $0x3c] sm:$0xf]
        %v345 = vld [vmem:[%s322 + $0x40] sm:$0xf]
        %v346 = vld [vmem:[%s322 + $0x44] sm:$0x1]
        %v347 = vld [vmem:[%s322 + $0x48] sm:$0xf]
        %v348 = vld [vmem:[%s322 + $0x4c] sm:$0xf]
        %v349 = vld [vmem:[%s322 + $0x50] sm:$0x1]
        %v350 = vld [vmem:[%s322 + $0x54] sm:$0xf]
        %v351 = vld [vmem:[%s322 + $0x58] sm:$0xf]
        %v352 = vld [vmem:[%s322 + $0x5c] sm:$0x1]
        %v353 = vld [vmem:[%s322 + $0x60] sm:$0xf]
        %v354 = vld [vmem:[%s322 + $0x64] sm:$0xf]
        %v355 = vld [vmem:[%s322 + $0x68] sm:$0x1]
        %v356 = vld [vmem:[%s322 + $0x6c] sm:$0xf]
        %v357 = vld [vmem:[%s322 + $0x70] sm:$0xf]
        %v358 = vld [vmem:[%s322 + $0x74] sm:$0x1]
        %v359 = vld [vmem:[%s322 + $0x78] sm:$0xf]
        %v360 = vld [vmem:[%s322 + $0x7c] sm:$0xf]
        %v361 = vld [vmem:[%s322 + $0x80] sm:$0x1]
        %v362 = vld [vmem:[%s322 + $0x84] sm:$0xf]
        %v363 = vld [vmem:[%s322 + $0x88] sm:$0xf]
        %v364 = vld [vmem:[%s322 + $0x8c] sm:$0x1]
        %v365 = vld [vmem:[%s322 + $0x90] sm:$0xf]
        %v366 = vld [vmem:[%s322 + $0x94] sm:$0xf]
        %v367 = vld [vmem:[%s322 + $0x98] sm:$0x1]
        %v368 = vld [vmem:[%s322 + $0x9c] sm:$0xf]
        %v369 = vld [vmem:[%s322 + $0xa0] sm:$0xf]
        %v370 = vld [vmem:[%s322 + $0xa4] sm:$0x1]
        %v371 = vld [vmem:[%s322 + $0xa8] sm:$0xf]
        %v372 = vld [vmem:[%s322 + $0xac] sm:$0xf]
        %v373 = vld [vmem:[%s322 + $0xb0] sm:$0x1]
        %v374 = vld [vmem:[%s322 + $0xb4] sm:$0xf]
        %v375 = vld [vmem:[%s322 + $0xb8] sm:$0xf]
        %v376 = vld [vmem:[%s322 + $0xbc] sm:$0x1]
        %v377 = vld [vmem:[%s322 + $0xc0] sm:$0xf]
        %v378 = vld [vmem:[%s322 + $0xc4] sm:$0xf]
        %v379 = vld [vmem:[%s322 + $0xc8] sm:$0x1]
        %v380 = vld [vmem:[%s322 + $0xcc] sm:$0xf]
        %v381 = vld [vmem:[%s322 + $0xd0] sm:$0xf]
        %v382 = vld [vmem:[%s322 + $0xd4] sm:$0x1]
        %vm431 = vcmask 1042432
        %vm432 = vcmask 1046532
        %vm433 = vmor %vm431, %vm432
        %v434 = vrot.slane %v329, 5
        %v435 = vrot.slane %v434, 4
        %v436 = vrot.slane %v330, 5
        %v437 = vsel %vm433, %v435, %v436
        %v438 = vrot.slane %v436, 4
        %v439 = vrot.slane %v331, 5
        %v440 = vsel %vm433, %v438, %v439
        %v441 = vrot.slane %v332, 5
        %v442 = vrot.slane %v441, 4
        %v443 = vrot.slane %v333, 5
        %v444 = vsel %vm433, %v442, %v443
        %v445 = vrot.slane %v443, 4
        %v446 = vrot.slane %v334, 5
        %v447 = vsel %vm433, %v445, %v446
        %v448 = vrot.slane %v335, 5
        %v449 = vrot.slane %v448, 4
        %v450 = vrot.slane %v336, 5
        %v451 = vsel %vm433, %v449, %v450
        %v452 = vrot.slane %v450, 4
        %v453 = vrot.slane %v337, 5
        %v454 = vsel %vm433, %v452, %v453
        %v455 = vrot.slane %v338, 5
        %v456 = vrot.slane %v455, 4
        %v457 = vrot.slane %v339, 5
        %v458 = vsel %vm433, %v456, %v457
        %v459 = vrot.slane %v457, 4
        %v460 = vrot.slane %v340, 5
        %v461 = vsel %vm433, %v459, %v460
        %v462 = vrot.slane %v341, 5
        %v463 = vrot.slane %v462, 4
        %v464 = vrot.slane %v342, 5
        %v465 = vsel %vm433, %v463, %v464
        %v466 = vrot.slane %v464, 4
        %v467 = vrot.slane %v343, 5
        %v468 = vsel %vm433, %v466, %v467
        %v469 = vrot.slane %v344, 5
        %v470 = vrot.slane %v469, 4
        %v471 = vrot.slane %v345, 5
        %v472 = vsel %vm433, %v470, %v471
        %v473 = vrot.slane %v471, 4
        %v474 = vrot.slane %v346, 5
        %v475 = vsel %vm433, %v473, %v474
        %v476 = vrot.slane %v347, 5
        %v477 = vrot.slane %v476, 4
        %v478 = vrot.slane %v348, 5
        %v479 = vsel %vm433, %v477, %v478
        %v480 = vrot.slane %v478, 4
        %v481 = vrot.slane %v349, 5
        %v482 = vsel %vm433, %v480, %v481
        %v483 = vrot.slane %v350, 5
        %v484 = vrot.slane %v483, 4
        %v485 = vrot.slane %v351, 5
        %v486 = vsel %vm433, %v484, %v485
        %v487 = vrot.slane %v485, 4
        %v488 = vrot.slane %v352, 5
        %v489 = vsel %vm433, %v487, %v488
        %v490 = vrot.slane %v353, 5
        %v491 = vrot.slane %v490, 4
        %v492 = vrot.slane %v354, 5
        %v493 = vsel %vm433, %v491, %v492
        %v494 = vrot.slane %v492, 4
        %v495 = vrot.slane %v355, 5
        %v496 = vsel %vm433, %v494, %v495
        %v497 = vrot.slane %v356, 5
        %v498 = vrot.slane %v497, 4
        %v499 = vrot.slane %v357, 5
        %v500 = vsel %vm433, %v498, %v499
        %v501 = vrot.slane %v499, 4
        %v502 = vrot.slane %v358, 5
        %v503 = vsel %vm433, %v501, %v502
        %v504 = vrot.slane %v359, 5
        %v505 = vrot.slane %v504, 4
        %v506 = vrot.slane %v360, 5
        %v507 = vsel %vm433, %v505, %v506
        %v508 = vrot.slane %v506, 4
        %v509 = vrot.slane %v361, 5
        %v510 = vsel %vm433, %v508, %v509
        %v511 = vrot.slane %v362, 5
        %v512 = vrot.slane %v511, 4
        %v513 = vrot.slane %v363, 5
        %v514 = vsel %vm433, %v512, %v513
        %v515 = vrot.slane %v513, 4
        %v516 = vrot.slane %v364, 5
        %v517 = vsel %vm433, %v515, %v516
        %v518 = vrot.slane %v365, 5
        %v519 = vrot.slane %v518, 4
        %v520 = vrot.slane %v366, 5
        %v521 = vsel %vm433, %v519, %v520
        %v522 = vrot.slane %v520, 4
        %v523 = vrot.slane %v367, 5
        %v524 = vsel %vm433, %v522, %v523
        %v525 = vrot.slane %v368, 5
        %v526 = vrot.slane %v525, 4
        %v527 = vrot.slane %v369, 5
        %v528 = vsel %vm433, %v526, %v527
        %v529 = vrot.slane %v527, 4
        %v530 = vrot.slane %v370, 5
        %v531 = vsel %vm433, %v529, %v530
        %v532 = vrot.slane %v371, 5
        %v533 = vrot.slane %v532, 4
        %v534 = vrot.slane %v372, 5
        %v535 = vsel %vm433, %v533, %v534
        %v536 = vrot.slane %v534, 4
        %v537 = vrot.slane %v373, 5
        %v538 = vsel %vm433, %v536, %v537
        %v539 = vrot.slane %v374, 5
        %v540 = vrot.slane %v539, 4
        %v541 = vrot.slane %v375, 5
        %v542 = vsel %vm433, %v540, %v541
        %v543 = vrot.slane %v541, 4
        %v544 = vrot.slane %v376, 5
        %v545 = vsel %vm433, %v543, %v544
        %v552 = vrot.slane %v377, 5
        %v553 = vrot.slane %v552, 4
        %v554 = vrot.slane %v378, 5
        %v555 = vsel %vm433, %v553, %v554
        %v556 = vrot.slane %v554, 4
        %v557 = vrot.slane %v379, 5
        %v558 = vsel %vm433, %v556, %v557
        %v559 = vrot.slane %v380, 5
        %v560 = vrot.slane %v559, 4
        %v561 = vrot.slane %v381, 5
        %v562 = vsel %vm433, %v560, %v561
        %v563 = vrot.slane %v561, 4
        %v564 = vrot.slane %v382, 5
        %v565 = vsel %vm433, %v563, %v564
        %v566 = vunpack.c.l.b16 %v329
        %v567 = vunpack.c.l.b16 %v330
        %v568 = vunpack.c.l.b16 %v332
        %v569 = vunpack.c.l.b16 %v333
        %v570 = vunpack.c.l.b16 %v335
        %v571 = vunpack.c.l.b16 %v336
        %v572 = vunpack.c.l.b16 %v338
        %v573 = vunpack.c.l.b16 %v339
        %v574 = vunpack.c.l.b16 %v341
        %v575 = vunpack.c.l.b16 %v342
        %v576 = vunpack.c.l.b16 %v344
        %v577 = vunpack.c.l.b16 %v345
        %v578 = vunpack.c.l.b16 %v347
        %v579 = vunpack.c.l.b16 %v348
        %v580 = vunpack.c.l.b16 %v350
        %v581 = vunpack.c.l.b16 %v351
        %v582 = vunpack.c.l.b16 %v353
        %v583 = vunpack.c.l.b16 %v354
        %v584 = vunpack.c.l.b16 %v356
        %v585 = vunpack.c.l.b16 %v357
        %v586 = vunpack.c.l.b16 %v359
        %v587 = vunpack.c.l.b16 %v360
        %v588 = vunpack.c.l.b16 %v362
        %v589 = vunpack.c.l.b16 %v363
        %v590 = vunpack.c.l.b16 %v365
        %v591 = vunpack.c.l.b16 %v366
        %v592 = vunpack.c.l.b16 %v368
        %v593 = vunpack.c.l.b16 %v369
        %v594 = vunpack.c.l.b16 %v371
        %v595 = vunpack.c.l.b16 %v372
        %v596 = vunpack.c.l.b16 %v374
        %v597 = vunpack.c.l.b16 %v375
        %v598 = vpack.c.b16 %v567, %v566
        %v599 = vpack.c.b16 %v569, %v568
        %v600 = vpack.c.b16 %v571, %v570
        %v601 = vpack.c.b16 %v573, %v572
        %v602 = vpack.c.b16 %v575, %v574
        %v603 = vpack.c.b16 %v577, %v576
        %v604 = vpack.c.b16 %v579, %v578
        %v605 = vpack.c.b16 %v581, %v580
        %v606 = vpack.c.b16 %v583, %v582
        %v607 = vpack.c.b16 %v585, %v584
        %v608 = vpack.c.b16 %v587, %v586
        %v609 = vpack.c.b16 %v589, %v588
        %v610 = vpack.c.b16 %v591, %v590
        %v611 = vpack.c.b16 %v593, %v592
        %v612 = vpack.c.b16 %v595, %v594
        %v613 = vpack.c.b16 %v597, %v596
        %v614 = vunpack.c.l.b16 %v437
        %v615 = vunpack.c.l.b16 %v440
        %v616 = vunpack.c.l.b16 %v444
        %v617 = vunpack.c.l.b16 %v447
        %v618 = vunpack.c.l.b16 %v451
        %v619 = vunpack.c.l.b16 %v454
        %v620 = vunpack.c.l.b16 %v458
        %v621 = vunpack.c.l.b16 %v461
        %v622 = vunpack.c.l.b16 %v465
        %v623 = vunpack.c.l.b16 %v468
        %v624 = vunpack.c.l.b16 %v472
        %v625 = vunpack.c.l.b16 %v475
        %v626 = vunpack.c.l.b16 %v479
        %v627 = vunpack.c.l.b16 %v482
        %v628 = vunpack.c.l.b16 %v486
        %v629 = vunpack.c.l.b16 %v489
        %v630 = vunpack.c.l.b16 %v493
        %v631 = vunpack.c.l.b16 %v496
        %v632 = vunpack.c.l.b16 %v500
        %v633 = vunpack.c.l.b16 %v503
        %v634 = vunpack.c.l.b16 %v507
        %v635 = vunpack.c.l.b16 %v510
        %v636 = vunpack.c.l.b16 %v514
        %v637 = vunpack.c.l.b16 %v517
        %v638 = vunpack.c.l.b16 %v521
        %v639 = vunpack.c.l.b16 %v524
        %v640 = vunpack.c.l.b16 %v528
        %v641 = vunpack.c.l.b16 %v531
        %v642 = vunpack.c.l.b16 %v535
        %v643 = vunpack.c.l.b16 %v538
        %v644 = vunpack.c.l.b16 %v542
        %v645 = vunpack.c.l.b16 %v545
        %v646 = vpack.c.b16 %v615, %v614
        %v647 = vpack.c.b16 %v617, %v616
        %v648 = vpack.c.b16 %v619, %v618
        %v649 = vpack.c.b16 %v621, %v620
        %v650 = vpack.c.b16 %v623, %v622
        %v651 = vpack.c.b16 %v625, %v624
        %v652 = vpack.c.b16 %v627, %v626
        %v653 = vpack.c.b16 %v629, %v628
        %v654 = vpack.c.b16 %v631, %v630
        %v655 = vpack.c.b16 %v633, %v632
        %v656 = vpack.c.b16 %v635, %v634
        %v657 = vpack.c.b16 %v637, %v636
        %v658 = vpack.c.b16 %v639, %v638
        %v659 = vpack.c.b16 %v641, %v640
        %v660 = vpack.c.b16 %v643, %v642
        %v661 = vpack.c.b16 %v645, %v644
        %662 = vrot.lane.b32.xlu0 %v646, 32
        %v663 = vpop.permute.xlu0 %662
        %664 = vrot.lane.b32.xlu0 %v647, 32
        %v665 = vpop.permute.xlu0 %664
        %666 = vrot.lane.b32.xlu0 %v648, 32
        %v667 = vpop.permute.xlu0 %666
        %668 = vrot.lane.b32.xlu0 %v649, 32
        %v669 = vpop.permute.xlu0 %668
        %670 = vrot.lane.b32.xlu0 %v650, 32
        %v671 = vpop.permute.xlu0 %670
        %672 = vrot.lane.b32.xlu0 %v651, 32
        %v673 = vpop.permute.xlu0 %672
        %674 = vrot.lane.b32.xlu0 %v652, 32
        %v675 = vpop.permute.xlu0 %674
        %676 = vrot.lane.b32.xlu0 %v653, 32
        %v677 = vpop.permute.xlu0 %676
        %678 = vrot.lane.b32.xlu0 %v654, 32
        %v679 = vpop.permute.xlu0 %678
        %680 = vrot.lane.b32.xlu0 %v655, 32
        %v681 = vpop.permute.xlu0 %680
        %682 = vrot.lane.b32.xlu0 %v656, 32
        %v683 = vpop.permute.xlu0 %682
        %684 = vrot.lane.b32.xlu0 %v657, 32
        %v685 = vpop.permute.xlu0 %684
        %686 = vrot.lane.b32.xlu0 %v658, 32
        %v687 = vpop.permute.xlu0 %686
        %688 = vrot.lane.b32.xlu0 %v659, 32
        %v689 = vpop.permute.xlu0 %688
        %690 = vrot.lane.b32.xlu0 %v660, 32
        %v691 = vpop.permute.xlu0 %690
        %692 = vrot.lane.b32.xlu0 %v661, 32
        %v693 = vpop.permute.xlu0 %692
        %v694 = vunpack.c.l.b16 %v377
        %v695 = vunpack.c.l.b16 %v378
        %v696 = vunpack.c.l.b16 %v380
        %v697 = vunpack.c.l.b16 %v381
        %v698 = vpack.c.b16 %v695, %v694
        %v699 = vpack.c.b16 %v697, %v696
        %700 = vrot.lane.b32.xlu0 %v600, 64
        %v701 = vpop.permute.xlu0 %700
        %702 = vrot.lane.b32.xlu0 %v601, 64
        %v703 = vpop.permute.xlu0 %702
        %704 = vrot.lane.b32.xlu0 %v602, 64
        %v705 = vpop.permute.xlu0 %704
        %706 = vrot.lane.b32.xlu0 %v603, 64
        %v707 = vpop.permute.xlu0 %706
        %708 = vrot.lane.b32.xlu0 %v604, 64
        %v709 = vpop.permute.xlu0 %708
        %710 = vrot.lane.b32.xlu0 %v605, 64
        %v711 = vpop.permute.xlu0 %710
        %712 = vrot.lane.b32.xlu0 %v606, 64
        %v713 = vpop.permute.xlu0 %712
        %714 = vrot.lane.b32.xlu0 %v607, 64
        %v715 = vpop.permute.xlu0 %714
        %716 = vrot.lane.b32.xlu0 %v608, 64
        %v717 = vpop.permute.xlu0 %716
        %718 = vrot.lane.b32.xlu0 %v609, 64
        %v719 = vpop.permute.xlu0 %718
        %720 = vrot.lane.b32.xlu0 %v610, 64
        %v721 = vpop.permute.xlu0 %720
        %722 = vrot.lane.b32.xlu0 %v611, 64
        %v723 = vpop.permute.xlu0 %722
        %724 = vrot.lane.b32.xlu0 %v612, 64
        %v725 = vpop.permute.xlu0 %724
        %726 = vrot.lane.b32.xlu0 %v613, 64
        %v727 = vpop.permute.xlu0 %726
        %728 = vrot.lane.b32.xlu0 %v698, 64
        %v729 = vpop.permute.xlu0 %728
        %730 = vrot.lane.b32.xlu0 %v699, 64
        %v731 = vpop.permute.xlu0 %730
        %v732 = vunpack.c.l.b16 %v555
        %v733 = vunpack.c.l.b16 %v558
        %v734 = vunpack.c.l.b16 %v562
        %v735 = vunpack.c.l.b16 %v565
        %v736 = vpack.c.b16 %v733, %v732
        %v737 = vpack.c.b16 %v735, %v734
        %738 = vrot.lane.b32.xlu0 %v648, 96
        %v739 = vpop.permute.xlu0 %738
        %740 = vrot.lane.b32.xlu0 %v649, 96
        %v741 = vpop.permute.xlu0 %740
        %742 = vrot.lane.b32.xlu0 %v650, 96
        %v743 = vpop.permute.xlu0 %742
        %744 = vrot.lane.b32.xlu0 %v651, 96
        %v745 = vpop.permute.xlu0 %744
        %746 = vrot.lane.b32.xlu0 %v652, 96
        %v747 = vpop.permute.xlu0 %746
        %748 = vrot.lane.b32.xlu0 %v653, 96
        %v749 = vpop.permute.xlu0 %748
        %750 = vrot.lane.b32.xlu0 %v654, 96
        %v751 = vpop.permute.xlu0 %750
        %752 = vrot.lane.b32.xlu0 %v655, 96
        %v753 = vpop.permute.xlu0 %752
        %754 = vrot.lane.b32.xlu0 %v656, 96
        %v755 = vpop.permute.xlu0 %754
        %756 = vrot.lane.b32.xlu0 %v657, 96
        %v757 = vpop.permute.xlu0 %756
        %758 = vrot.lane.b32.xlu0 %v658, 96
        %v759 = vpop.permute.xlu0 %758
        %760 = vrot.lane.b32.xlu0 %v659, 96
        %v761 = vpop.permute.xlu0 %760
        %762 = vrot.lane.b32.xlu0 %v660, 96
        %v763 = vpop.permute.xlu0 %762
        %764 = vrot.lane.b32.xlu0 %v661, 96
        %v765 = vpop.permute.xlu0 %764
        %766 = vrot.lane.b32.xlu0 %v736, 96
        %v767 = vpop.permute.xlu0 %766
        %768 = vrot.lane.b32.xlu0 %v737, 96
        %v769 = vpop.permute.xlu0 %768
        %vm770 = vcmask 261120
        %v773 = vsel %vm770, %v598, %v663
        %v776 = vsel %vm770, %v599, %v665
        %v779 = vsel %vm770, %v600, %v667
        %v782 = vsel %vm770, %v601, %v669
        %v785 = vsel %vm770, %v602, %v671
        %v788 = vsel %vm770, %v603, %v673
        %v791 = vsel %vm770, %v604, %v675
        %v794 = vsel %vm770, %v605, %v677
        %v797 = vsel %vm770, %v606, %v679
        %v800 = vsel %vm770, %v607, %v681
        %v803 = vsel %vm770, %v608, %v683
        %v806 = vsel %vm770, %v609, %v685
        %v809 = vsel %vm770, %v610, %v687
        %v812 = vsel %vm770, %v611, %v689
        %v815 = vsel %vm770, %v612, %v691
        %v818 = vsel %vm770, %v613, %v693
        %vm819 = vcmask 523264
        %v821 = vsel %vm819, %v773, %v701
        %v823 = vsel %vm819, %v776, %v703
        %v825 = vsel %vm819, %v779, %v705
        %v827 = vsel %vm819, %v782, %v707
        %v829 = vsel %vm819, %v785, %v709
        %v831 = vsel %vm819, %v788, %v711
        %v833 = vsel %vm819, %v791, %v713
        %v835 = vsel %vm819, %v794, %v715
        %v837 = vsel %vm819, %v797, %v717
        %v839 = vsel %vm819, %v800, %v719
        %v841 = vsel %vm819, %v803, %v721
        %v843 = vsel %vm819, %v806, %v723
        %v845 = vsel %vm819, %v809, %v725
        %v847 = vsel %vm819, %v812, %v727
        %v849 = vsel %vm819, %v815, %v729
        %v851 = vsel %vm819, %v818, %v731
        %vm852 = vcmask 785408
        %v854 = vsel %vm852, %v821, %v739
        %v857 = vsel %vm852, %v823, %v741
        %v860 = vsel %vm852, %v825, %v743
        %v863 = vsel %vm852, %v827, %v745
        %v866 = vsel %vm852, %v829, %v747
        %v869 = vsel %vm852, %v831, %v749
        %v872 = vsel %vm852, %v833, %v751
        %v875 = vsel %vm852, %v835, %v753
        %v878 = vsel %vm852, %v837, %v755
        %v881 = vsel %vm852, %v839, %v757
        %v884 = vsel %vm852, %v841, %v759
        %v887 = vsel %vm852, %v843, %v761
        %v890 = vsel %vm852, %v845, %v763
        %v893 = vsel %vm852, %v847, %v765
        %v896 = vsel %vm852, %v849, %v767
        %v899 = vsel %vm852, %v851, %v769
        %v901 = vld [vmem:[%s3] sm:$0xf]
        %v902 = vld [vmem:[%s3 + $0x4] sm:$0xf]
        %v903 = vld [vmem:[%s3 + $0x8] sm:$0xf]
        %v904 = vld [vmem:[%s3 + $0xc] sm:$0xf]
        %v905 = vld [vmem:[%s3 + $0x10] sm:$0xf]
        %v906 = vld [vmem:[%s3 + $0x14] sm:$0xf]
        %v907 = vld [vmem:[%s3 + $0x18] sm:$0xf]
        %v908 = vld [vmem:[%s3 + $0x1c] sm:$0xf]
        %v909 = vld [vmem:[%s3 + $0x20] sm:$0xf]
        %v910 = vld [vmem:[%s3 + $0x24] sm:$0xf]
        %v911 = vld [vmem:[%s3 + $0x28] sm:$0xf]
        %v912 = vld [vmem:[%s3 + $0x2c] sm:$0xf]
        %v913 = vld [vmem:[%s3 + $0x30] sm:$0xf]
        %v914 = vld [vmem:[%s3 + $0x34] sm:$0xf]
        %v915 = vld [vmem:[%s3 + $0x38] sm:$0xf]
        %v916 = vld [vmem:[%s3 + $0x3c] sm:$0xf]
        %v917 = vld [vmem:[%s5] sm:$0x1]
        %v918 = vlaneseq
        %v919 = vshrl.u32 %v918, 7
        %v920 = vsub.s32 0, %v919
        %v921 = vrot.slane %v917, %v920
        %v938 = vunpack.c.l.b16 %v901
        %v939 = vunpack.c.l.b16 %v902
        %v940 = vunpack.c.l.b16 %v903
        %v941 = vunpack.c.l.b16 %v904
        %v942 = vunpack.c.l.b16 %v905
        %v943 = vunpack.c.l.b16 %v906
        %v944 = vunpack.c.l.b16 %v907
        %v945 = vunpack.c.l.b16 %v908
        %v946 = vunpack.c.l.b16 %v909
        %v947 = vunpack.c.l.b16 %v910
        %v948 = vunpack.c.l.b16 %v911
        %v949 = vunpack.c.l.b16 %v912
        %v950 = vunpack.c.l.b16 %v913
        %v951 = vunpack.c.l.b16 %v914
        %v952 = vunpack.c.l.b16 %v915
        %v953 = vunpack.c.l.b16 %v916
        %v954 = vpack.c.b16 %v939, %v938
        %v955 = vpack.c.b16 %v941, %v940
        %v956 = vpack.c.b16 %v943, %v942
        %v957 = vpack.c.b16 %v945, %v944
        %v958 = vpack.c.b16 %v947, %v946
        %v959 = vpack.c.b16 %v949, %v948
        %v960 = vpack.c.b16 %v951, %v950
        %v961 = vpack.c.b16 %v953, %v952
        %970 = vmatprep.subr.bf16.mxu0 0
        %971 = vmatpush1.bf16.msra.mxu0 %v954
        %972 = vmatprep.subr.bf16.mxu0 0
        %973 = vmatpush1.bf16.msra.mxu0 %v955
        %974 = vmatprep.subr.bf16.mxu0 0
        %975 = vmatpush1.bf16.msra.mxu0 %v956
        %976 = vmatprep.subr.bf16.mxu0 0
        %977 = vmatpush1.bf16.msra.mxu0 %v957
        %978 = vmatprep.subr.bf16.mxu0 0
        %979 = vmatpush1.bf16.msra.mxu0 %v958
        %980 = vmatprep.subr.bf16.mxu0 0
        %981 = vmatpush1.bf16.msra.mxu0 %v959
        %982 = vmatprep.subr.bf16.mxu0 0
        %983 = vmatpush1.bf16.msra.mxu0 %v960
        %984 = vmatprep.subr.bf16.mxu0 0
        %985 = vmatpush1.bf16.msra.mxu0 %v961
        %986 = vmatprep.subr.bf16.mxu0 0
        %987 = vmatpush1.bf16.msra.mxu0 0
        %988 = vmatprep.subr.bf16.mxu0 0
        %989 = vmatpush1.bf16.msra.mxu0 0
        %990 = vmatprep.subr.bf16.mxu0 0
        %991 = vmatpush1.bf16.msra.mxu0 0
        %992 = vmatprep.subr.bf16.mxu0 0
        %993 = vmatpush1.bf16.msra.mxu0 0
        %994 = vmatprep.subr.bf16.mxu0 0
        %995 = vmatpush1.bf16.msra.mxu0 0
        %996 = vmatprep.subr.bf16.mxu0 0
        %997 = vmatpush1.bf16.msra.mxu0 0
        %998 = vmatprep.subr.bf16.mxu0 0
        %999 = vmatpush1.bf16.msra.mxu0 0
        %1000 = vmatprep.subr.bf16.mxu0 0
        %1001 = vmatpush1.bf16.msra.mxu0 0
        %1002 = vmatprep.mubr.bf16.mxu0 0
        %1003 = vmatmul.mubr.bf16.gmra.mrb[0].mxu0 %v854
        %v1004 = vpop.f32.mrb[0].mxu0
        %v1005 = vadd.f32 %v921, %v1004
        %v1006 = vpop.f32.mrb[0].mxu0
        %v1007 = vpop.f32.mrb[0].mxu0
        %v1008 = vadd.f32 %v921, %v1007
        %v1009 = vpop.f32.mrb[0].mxu0
        %1010 = vmatprep.mubr.bf16.mxu0 0
        %1011 = vmatmul.mubr.bf16.gmra.mrb[0].mxu0 %v857
        %v1012 = vpop.f32.mrb[0].mxu0
        %v1013 = vadd.f32 %v921, %v1012
        %v1014 = vpop.f32.mrb[0].mxu0
        %v1015 = vpop.f32.mrb[0].mxu0
        %v1016 = vadd.f32 %v921, %v1015
        %v1017 = vpop.f32.mrb[0].mxu0
        %1018 = vmatprep.mubr.bf16.mxu0 0
        %1019 = vmatmul.mubr.bf16.gmra.mrb[0].mxu0 %v860
        %v1020 = vpop.f32.mrb[0].mxu0
        %v1021 = vadd.f32 %v921, %v1020
        %v1022 = vpop.f32.mrb[0].mxu0
        %v1023 = vpop.f32.mrb[0].mxu0
        %v1024 = vadd.f32 %v921, %v1023
        %v1025 = vpop.f32.mrb[0].mxu0
        %1026 = vmatprep.mubr.bf16.mxu0 0
        %1027 = vmatmul.mubr.bf16.gmra.mrb[0].mxu0 %v863
        %v1028 = vpop.f32.mrb[0].mxu0
        %v1029 = vadd.f32 %v921, %v1028
        %v1030 = vpop.f32.mrb[0].mxu0
        %v1031 = vpop.f32.mrb[0].mxu0
        %v1032 = vadd.f32 %v921, %v1031
        %v1033 = vpop.f32.mrb[0].mxu0
        %1034 = vmatprep.mubr.bf16.mxu0 0
        %1035 = vmatmul.mubr.bf16.gmra.mrb[0].mxu0 %v866
        %v1036 = vpop.f32.mrb[0].mxu0
        %v1037 = vadd.f32 %v921, %v1036
        %v1038 = vpop.f32.mrb[0].mxu0
        %v1039 = vpop.f32.mrb[0].mxu0
        %v1040 = vadd.f32 %v921, %v1039
        %v1041 = vpop.f32.mrb[0].mxu0
        %1042 = vmatprep.mubr.bf16.mxu0 0
        %1043 = vmatmul.mubr.bf16.gmra.mrb[0].mxu0 %v869
        %v1044 = vpop.f32.mrb[0].mxu0
        %v1045 = vadd.f32 %v921, %v1044
        %v1046 = vpop.f32.mrb[0].mxu0
        %v1047 = vpop.f32.mrb[0].mxu0
        %v1048 = vadd.f32 %v921, %v1047
        %v1049 = vpop.f32.mrb[0].mxu0
        %1050 = vmatprep.mubr.bf16.mxu0 0
        %1051 = vmatmul.mubr.bf16.gmra.mrb[0].mxu0 %v872
        %v1052 = vpop.f32.mrb[0].mxu0
        %v1053 = vadd.f32 %v921, %v1052
        %v1054 = vpop.f32.mrb[0].mxu0
        %v1055 = vpop.f32.mrb[0].mxu0
        %v1056 = vadd.f32 %v921, %v1055
        %v1057 = vpop.f32.mrb[0].mxu0
        %1058 = vmatprep.mubr.bf16.mxu0 0
        %1059 = vmatmul.mubr.bf16.gmra.mrb[0].mxu0 %v875
        %v1060 = vpop.f32.mrb[0].mxu0
        %v1061 = vadd.f32 %v921, %v1060
        %v1062 = vpop.f32.mrb[0].mxu0
        %v1063 = vpop.f32.mrb[0].mxu0
        %v1064 = vadd.f32 %v921, %v1063
        %v1065 = vpop.f32.mrb[0].mxu0
        %1066 = vmatprep.mubr.bf16.mxu0 0
        %1067 = vmatmul.mubr.bf16.gmra.mrb[0].mxu0 %v878
        %v1068 = vpop.f32.mrb[0].mxu0
        %v1069 = vadd.f32 %v921, %v1068
        %v1070 = vpop.f32.mrb[0].mxu0
        %v1071 = vpop.f32.mrb[0].mxu0
        %v1072 = vadd.f32 %v921, %v1071
        %v1073 = vpop.f32.mrb[0].mxu0
        %1074 = vmatprep.mubr.bf16.mxu0 0
        %1075 = vmatmul.mubr.bf16.gmra.mrb[0].mxu0 %v881
        %v1076 = vpop.f32.mrb[0].mxu0
        %v1077 = vadd.f32 %v921, %v1076
        %v1078 = vpop.f32.mrb[0].mxu0
        %v1079 = vpop.f32.mrb[0].mxu0
        %v1080 = vadd.f32 %v921, %v1079
        %v1081 = vpop.f32.mrb[0].mxu0
        %1082 = vmatprep.mubr.bf16.mxu0 0
        %1083 = vmatmul.mubr.bf16.gmra.mrb[0].mxu0 %v884
        %v1084 = vpop.f32.mrb[0].mxu0
        %v1085 = vadd.f32 %v921, %v1084
        %v1086 = vpop.f32.mrb[0].mxu0
        %v1087 = vpop.f32.mrb[0].mxu0
        %v1088 = vadd.f32 %v921, %v1087
        %v1089 = vpop.f32.mrb[0].mxu0
        %1090 = vmatprep.mubr.bf16.mxu0 0
        %1091 = vmatmul.mubr.bf16.gmra.mrb[0].mxu0 %v887
        %v1092 = vpop.f32.mrb[0].mxu0
        %v1093 = vadd.f32 %v921, %v1092
        %v1094 = vpop.f32.mrb[0].mxu0
        %v1095 = vpop.f32.mrb[0].mxu0
        %v1096 = vadd.f32 %v921, %v1095
        %v1097 = vpop.f32.mrb[0].mxu0
        %1098 = vmatprep.mubr.bf16.mxu0 0
        %1099 = vmatmul.mubr.bf16.gmra.mrb[0].mxu0 %v890
        %v1100 = vpop.f32.mrb[0].mxu0
        %v1101 = vadd.f32 %v921, %v1100
        %v1102 = vpop.f32.mrb[0].mxu0
        %v1103 = vpop.f32.mrb[0].mxu0
        %v1104 = vadd.f32 %v921, %v1103
        %v1105 = vpop.f32.mrb[0].mxu0
        %1106 = vmatprep.mubr.bf16.mxu0 0
        %1107 = vmatmul.mubr.bf16.gmra.mrb[0].mxu0 %v893
        %v1108 = vpop.f32.mrb[0].mxu0
        %v1109 = vadd.f32 %v921, %v1108
        %v1110 = vpop.f32.mrb[0].mxu0
        %v1111 = vpop.f32.mrb[0].mxu0
        %v1112 = vadd.f32 %v921, %v1111
        %v1113 = vpop.f32.mrb[0].mxu0
        %1114 = vmatprep.mubr.bf16.mxu0 0
        %1115 = vmatmul.mubr.bf16.gmra.mrb[0].mxu0 %v896
        %v1116 = vpop.f32.mrb[0].mxu0
        %v1117 = vadd.f32 %v921, %v1116
        %v1118 = vpop.f32.mrb[0].mxu0
        %v1119 = vpop.f32.mrb[0].mxu0
        %v1120 = vadd.f32 %v921, %v1119
        %v1121 = vpop.f32.mrb[0].mxu0
        %1122 = vmatprep.mubr.bf16.mxu0 0
        %1123 = vmatmul.mubr.bf16.gmra.mrb[0].mxu0 %v899
        %v1124 = vpop.f32.mrb[0].mxu0
        %v1125 = vadd.f32 %v921, %v1124
        %v1126 = vpop.f32.mrb[0].mxu0
        %v1127 = vpop.f32.mrb[0].mxu0
        %v1128 = vadd.f32 %v921, %v1127
        %v1129 = vpop.f32.mrb[0].mxu0
        %1130 = vdwg.mxu0
        %vm1131 = vcmp.ge.f32.partialorder %v1005, 0.0
        %vm1132 = vcmp.ge.f32.partialorder %v1008, 0.0
        %vm1133 = vcmp.ge.f32.partialorder %v1013, 0.0
        %vm1134 = vcmp.ge.f32.partialorder %v1016, 0.0
        %vm1135 = vcmp.ge.f32.partialorder %v1021, 0.0
        %vm1136 = vcmp.ge.f32.partialorder %v1024, 0.0
        %vm1137 = vcmp.ge.f32.partialorder %v1029, 0.0
        %vm1138 = vcmp.ge.f32.partialorder %v1032, 0.0
        %vm1139 = vcmp.ge.f32.partialorder %v1037, 0.0
        %vm1140 = vcmp.ge.f32.partialorder %v1040, 0.0
        %vm1141 = vcmp.ge.f32.partialorder %v1045, 0.0
        %vm1142 = vcmp.ge.f32.partialorder %v1048, 0.0
        %vm1143 = vcmp.ge.f32.partialorder %v1053, 0.0
        %vm1144 = vcmp.ge.f32.partialorder %v1056, 0.0
        %vm1145 = vcmp.ge.f32.partialorder %v1061, 0.0
        %vm1146 = vcmp.ge.f32.partialorder %v1064, 0.0
        %vm1147 = vcmp.ge.f32.partialorder %v1069, 0.0
        %vm1148 = vcmp.ge.f32.partialorder %v1072, 0.0
        %vm1149 = vcmp.ge.f32.partialorder %v1077, 0.0
        %vm1150 = vcmp.ge.f32.partialorder %v1080, 0.0
        %vm1151 = vcmp.ge.f32.partialorder %v1085, 0.0
        %vm1152 = vcmp.ge.f32.partialorder %v1088, 0.0
        %vm1153 = vcmp.ge.f32.partialorder %v1093, 0.0
        %vm1154 = vcmp.ge.f32.partialorder %v1096, 0.0
        %vm1155 = vcmp.ge.f32.partialorder %v1101, 0.0
        %vm1156 = vcmp.ge.f32.partialorder %v1104, 0.0
        %vm1157 = vcmp.ge.f32.partialorder %v1109, 0.0
        %vm1158 = vcmp.ge.f32.partialorder %v1112, 0.0
        %vm1159 = vcmp.ge.f32.partialorder %v1117, 0.0
        %vm1160 = vcmp.ge.f32.partialorder %v1120, 0.0
        %vm1161 = vcmp.ge.f32.partialorder %v1125, 0.0
        %vm1162 = vcmp.ge.f32.partialorder %v1128, 0.0
        %v1163 = vmul.f32 %v1005, 0.01
        %v1164 = vmul.f32 %v1008, 0.01
        %v1165 = vmul.f32 %v1013, 0.01
        %v1166 = vmul.f32 %v1016, 0.01
        %v1167 = vmul.f32 %v1021, 0.01
        %v1168 = vmul.f32 %v1024, 0.01
        %v1169 = vmul.f32 %v1029, 0.01
        %v1170 = vmul.f32 %v1032, 0.01
        %v1171 = vmul.f32 %v1037, 0.01
        %v1172 = vmul.f32 %v1040, 0.01
        %v1173 = vmul.f32 %v1045, 0.01
        %v1174 = vmul.f32 %v1048, 0.01
        %v1175 = vmul.f32 %v1053, 0.01
        %v1176 = vmul.f32 %v1056, 0.01
        %v1177 = vmul.f32 %v1061, 0.01
        %v1178 = vmul.f32 %v1064, 0.01
        %v1179 = vmul.f32 %v1069, 0.01
        %v1180 = vmul.f32 %v1072, 0.01
        %v1181 = vmul.f32 %v1077, 0.01
        %v1182 = vmul.f32 %v1080, 0.01
        %v1183 = vmul.f32 %v1085, 0.01
        %v1184 = vmul.f32 %v1088, 0.01
        %v1185 = vmul.f32 %v1093, 0.01
        %v1186 = vmul.f32 %v1096, 0.01
        %v1187 = vmul.f32 %v1101, 0.01
        %v1188 = vmul.f32 %v1104, 0.01
        %v1189 = vmul.f32 %v1109, 0.01
        %v1190 = vmul.f32 %v1112, 0.01
        %v1191 = vmul.f32 %v1117, 0.01
        %v1192 = vmul.f32 %v1120, 0.01
        %v1193 = vmul.f32 %v1125, 0.01
        %v1194 = vmul.f32 %v1128, 0.01
        %v1195 = vsel %vm1131, %v1005, %v1163
        %v1196 = vsel %vm1132, %v1008, %v1164
        %v1197 = vsel %vm1133, %v1013, %v1165
        %v1198 = vsel %vm1134, %v1016, %v1166
        %v1199 = vsel %vm1135, %v1021, %v1167
        %v1200 = vsel %vm1136, %v1024, %v1168
        %v1201 = vsel %vm1137, %v1029, %v1169
        %v1202 = vsel %vm1138, %v1032, %v1170
        %v1203 = vsel %vm1139, %v1037, %v1171
        %v1204 = vsel %vm1140, %v1040, %v1172
        %v1205 = vsel %vm1141, %v1045, %v1173
        %v1206 = vsel %vm1142, %v1048, %v1174
        %v1207 = vsel %vm1143, %v1053, %v1175
        %v1208 = vsel %vm1144, %v1056, %v1176
        %v1209 = vsel %vm1145, %v1061, %v1177
        %v1210 = vsel %vm1146, %v1064, %v1178
        %v1211 = vsel %vm1147, %v1069, %v1179
        %v1212 = vsel %vm1148, %v1072, %v1180
        %v1213 = vsel %vm1149, %v1077, %v1181
        %v1214 = vsel %vm1150, %v1080, %v1182
        %v1215 = vsel %vm1151, %v1085, %v1183
        %v1216 = vsel %vm1152, %v1088, %v1184
        %v1217 = vsel %vm1153, %v1093, %v1185
        %v1218 = vsel %vm1154, %v1096, %v1186
        %v1219 = vsel %vm1155, %v1101, %v1187
        %v1220 = vsel %vm1156, %v1104, %v1188
        %v1221 = vsel %vm1157, %v1109, %v1189
        %v1222 = vsel %vm1158, %v1112, %v1190
        %v1223 = vsel %vm1159, %v1117, %v1191
        %v1224 = vsel %vm1160, %v1120, %v1192
        %v1225 = vsel %vm1161, %v1125, %v1193
        %v1226 = vsel %vm1162, %v1128, %v1194
        %v1227 = vld [vmem:[%s5 + $0x1] sm:$0x1]
        %v1228 = vlaneseq
        %v1229 = vshrl.u32 %v1228, 7
        %v1230 = vsub.s32 0, %v1229
        %v1231 = vrot.slane %v1227, %v1230
        %v1232 = vmul.f32 %v1195, %v1231
        %v1233 = vmul.f32 %v1196, %v1231
        %v1234 = vmul.f32 %v1197, %v1231
        %v1235 = vmul.f32 %v1198, %v1231
        %v1236 = vmul.f32 %v1199, %v1231
        %v1237 = vmul.f32 %v1200, %v1231
        %v1238 = vmul.f32 %v1201, %v1231
        %v1239 = vmul.f32 %v1202, %v1231
        %v1240 = vmul.f32 %v1203, %v1231
        %v1241 = vmul.f32 %v1204, %v1231
        %v1242 = vmul.f32 %v1205, %v1231
        %v1243 = vmul.f32 %v1206, %v1231
        %v1244 = vmul.f32 %v1207, %v1231
        %v1245 = vmul.f32 %v1208, %v1231
        %v1246 = vmul.f32 %v1209, %v1231
        %v1247 = vmul.f32 %v1210, %v1231
        %v1248 = vmul.f32 %v1211, %v1231
        %v1249 = vmul.f32 %v1212, %v1231
        %v1250 = vmul.f32 %v1213, %v1231
        %v1251 = vmul.f32 %v1214, %v1231
        %v1252 = vmul.f32 %v1215, %v1231
        %v1253 = vmul.f32 %v1216, %v1231
        %v1254 = vmul.f32 %v1217, %v1231
        %v1255 = vmul.f32 %v1218, %v1231
        %v1256 = vmul.f32 %v1219, %v1231
        %v1257 = vmul.f32 %v1220, %v1231
        %v1258 = vmul.f32 %v1221, %v1231
        %v1259 = vmul.f32 %v1222, %v1231
        %v1260 = vmul.f32 %v1223, %v1231
        %v1261 = vmul.f32 %v1224, %v1231
        %v1262 = vmul.f32 %v1225, %v1231
        %v1263 = vmul.f32 %v1226, %v1231
        %v1264 = vld [vmem:[%s5 + $0x2] sm:$0x1]
        %v1265 = vlaneseq
        %v1266 = vshrl.u32 %v1265, 7
        %v1267 = vsub.s32 0, %v1266
        %v1268 = vrot.slane %v1264, %v1267
        %v1269 = vadd.f32 %v1232, %v1268
        %v1270 = vadd.f32 %v1233, %v1268
        %v1271 = vadd.f32 %v1234, %v1268
        %v1272 = vadd.f32 %v1235, %v1268
        %v1273 = vadd.f32 %v1236, %v1268
        %v1274 = vadd.f32 %v1237, %v1268
        %v1275 = vadd.f32 %v1238, %v1268
        %v1276 = vadd.f32 %v1239, %v1268
        %v1277 = vadd.f32 %v1240, %v1268
        %v1278 = vadd.f32 %v1241, %v1268
        %v1279 = vadd.f32 %v1242, %v1268
        %v1280 = vadd.f32 %v1243, %v1268
        %v1281 = vadd.f32 %v1244, %v1268
        %v1282 = vadd.f32 %v1245, %v1268
        %v1283 = vadd.f32 %v1246, %v1268
        %v1284 = vadd.f32 %v1247, %v1268
        %v1285 = vadd.f32 %v1248, %v1268
        %v1286 = vadd.f32 %v1249, %v1268
        %v1287 = vadd.f32 %v1250, %v1268
        %v1288 = vadd.f32 %v1251, %v1268
        %v1289 = vadd.f32 %v1252, %v1268
        %v1290 = vadd.f32 %v1253, %v1268
        %v1291 = vadd.f32 %v1254, %v1268
        %v1292 = vadd.f32 %v1255, %v1268
        %v1293 = vadd.f32 %v1256, %v1268
        %v1294 = vadd.f32 %v1257, %v1268
        %v1295 = vadd.f32 %v1258, %v1268
        %v1296 = vadd.f32 %v1259, %v1268
        %v1297 = vadd.f32 %v1260, %v1268
        %v1298 = vadd.f32 %v1261, %v1268
        %v1299 = vadd.f32 %v1262, %v1268
        %v1300 = vadd.f32 %v1263, %v1268
        %v1301 = vld [vmem:[%s317] sm:$0xf]
        %v1302 = vld [vmem:[%s317 + $0x4] sm:$0xf]
        %v1303 = vld [vmem:[%s317 + $0x8] sm:$0xf]
        %v1304 = vld [vmem:[%s317 + $0xc] sm:$0xf]
        %v1305 = vld [vmem:[%s317 + $0x10] sm:$0xf]
        %v1306 = vld [vmem:[%s317 + $0x14] sm:$0xf]
        %v1307 = vld [vmem:[%s317 + $0x18] sm:$0xf]
        %v1308 = vld [vmem:[%s317 + $0x1c] sm:$0xf]
        %v1309 = vld [vmem:[%s317 + $0x20] sm:$0xf]
        %v1310 = vld [vmem:[%s317 + $0x24] sm:$0xf]
        %v1311 = vld [vmem:[%s317 + $0x28] sm:$0xf]
        %v1312 = vld [vmem:[%s317 + $0x2c] sm:$0xf]
        %v1313 = vld [vmem:[%s317 + $0x30] sm:$0xf]
        %v1314 = vld [vmem:[%s317 + $0x34] sm:$0xf]
        %v1315 = vld [vmem:[%s317 + $0x38] sm:$0xf]
        %v1316 = vld [vmem:[%s317 + $0x3c] sm:$0xf]
        %v1317 = vld [vmem:[%s317 + $0x40] sm:$0xf]
        %v1318 = vld [vmem:[%s317 + $0x44] sm:$0xf]
        %v1319 = vld [vmem:[%s317 + $0x48] sm:$0xf]
        %v1320 = vld [vmem:[%s317 + $0x4c] sm:$0xf]
        %v1321 = vld [vmem:[%s317 + $0x50] sm:$0xf]
        %v1322 = vld [vmem:[%s317 + $0x54] sm:$0xf]
        %v1323 = vld [vmem:[%s317 + $0x58] sm:$0xf]
        %v1324 = vld [vmem:[%s317 + $0x5c] sm:$0xf]
        %v1325 = vld [vmem:[%s317 + $0x60] sm:$0xf]
        %v1326 = vld [vmem:[%s317 + $0x64] sm:$0xf]
        %v1327 = vld [vmem:[%s317 + $0x68] sm:$0xf]
        %v1328 = vld [vmem:[%s317 + $0x6c] sm:$0xf]
        %v1329 = vld [vmem:[%s317 + $0x70] sm:$0xf]
        %v1330 = vld [vmem:[%s317 + $0x74] sm:$0xf]
        %v1331 = vld [vmem:[%s317 + $0x78] sm:$0xf]
        %v1332 = vld [vmem:[%s317 + $0x7c] sm:$0xf]
        %vm1333 = vsmask.f32 3328
        %vm1334 = vsmask.f32 7440
        %vm1335 = vmor %vm1333, %vm1334
        %v1337 = vshrl.u32 %v332, 16
        %v1339 = vrot.slane %v1337, 4
        %v1340 = vshll.u32 %v332, 16
        %v1342 = vrot.slane %v1340, 5
        %v1343 = vor.u32 %v1339, %v1342
        %v1344 = vrot.slane %v1343, 4
        %v1346 = vshll.u32 %v333, 16
        %v1348 = vrot.slane %v1346, 5
        %v1349 = vsel %vm1335, %v1344, %v1348
        %v1350 = vshrl.u32 %v333, 16
        %v1352 = vrot.slane %v1350, 4
        %v1353 = vor.u32 %v1352, %v1348
        %v1354 = vrot.slane %v1353, 4
        %v1356 = vshll.u32 %v334, 16
        %v1358 = vrot.slane %v1356, 5
        %v1359 = vsel %vm1335, %v1354, %v1358
        %v1361 = vshrl.u32 %v335, 16
        %v1363 = vrot.slane %v1361, 4
        %v1364 = vshll.u32 %v335, 16
        %v1366 = vrot.slane %v1364, 5
        %v1367 = vor.u32 %v1363, %v1366
        %v1368 = vrot.slane %v1367, 4
        %v1370 = vshll.u32 %v336, 16
        %v1372 = vrot.slane %v1370, 5
        %v1373 = vsel %vm1335, %v1368, %v1372
        %v1374 = vshrl.u32 %v336, 16
        %v1376 = vrot.slane %v1374, 4
        %v1377 = vor.u32 %v1376, %v1372
        %v1378 = vrot.slane %v1377, 4
        %v1380 = vshll.u32 %v337, 16
        %v1382 = vrot.slane %v1380, 5
        %v1383 = vsel %vm1335, %v1378, %v1382
        %v1385 = vshrl.u32 %v338, 16
        %v1387 = vrot.slane %v1385, 4
        %v1388 = vshll.u32 %v338, 16
        %v1390 = vrot.slane %v1388, 5
        %v1391 = vor.u32 %v1387, %v1390
        %v1392 = vrot.slane %v1391, 4
        %v1394 = vshll.u32 %v339, 16
        %v1396 = vrot.slane %v1394, 5
        %v1397 = vsel %vm1335, %v1392, %v1396
        %v1398 = vshrl.u32 %v339, 16
        %v1400 = vrot.slane %v1398, 4
        %v1401 = vor.u32 %v1400, %v1396
        %v1402 = vrot.slane %v1401, 4
        %v1404 = vshll.u32 %v340, 16
        %v1406 = vrot.slane %v1404, 5
        %v1407 = vsel %vm1335, %v1402, %v1406
        %v1409 = vshrl.u32 %v341, 16
        %v1411 = vrot.slane %v1409, 4
        %v1412 = vshll.u32 %v341, 16
        %v1414 = vrot.slane %v1412, 5
        %v1415 = vor.u32 %v1411, %v1414
        %v1416 = vrot.slane %v1415, 4
        %v1418 = vshll.u32 %v342, 16
        %v1420 = vrot.slane %v1418, 5
        %v1421 = vsel %vm1335, %v1416, %v1420
        %v1422 = vshrl.u32 %v342, 16
        %v1424 = vrot.slane %v1422, 4
        %v1425 = vor.u32 %v1424, %v1420
        %v1426 = vrot.slane %v1425, 4
        %v1428 = vshll.u32 %v343, 16
        %v1430 = vrot.slane %v1428, 5
        %v1431 = vsel %vm1335, %v1426, %v1430
        %v1433 = vshrl.u32 %v344, 16
        %v1435 = vrot.slane %v1433, 4
        %v1436 = vshll.u32 %v344, 16
        %v1438 = vrot.slane %v1436, 5
        %v1439 = vor.u32 %v1435, %v1438
        %v1440 = vrot.slane %v1439, 4
        %v1442 = vshll.u32 %v345, 16
        %v1444 = vrot.slane %v1442, 5
        %v1445 = vsel %vm1335, %v1440, %v1444
        %v1446 = vshrl.u32 %v345, 16
        %v1448 = vrot.slane %v1446, 4
        %v1449 = vor.u32 %v1448, %v1444
        %v1450 = vrot.slane %v1449, 4
        %v1452 = vshll.u32 %v346, 16
        %v1454 = vrot.slane %v1452, 5
        %v1455 = vsel %vm1335, %v1450, %v1454
        %v1457 = vshrl.u32 %v347, 16
        %v1459 = vrot.slane %v1457, 4
        %v1460 = vshll.u32 %v347, 16
        %v1462 = vrot.slane %v1460, 5
        %v1463 = vor.u32 %v1459, %v1462
        %v1464 = vrot.slane %v1463, 4
        %v1466 = vshll.u32 %v348, 16
        %v1468 = vrot.slane %v1466, 5
        %v1469 = vsel %vm1335, %v1464, %v1468
        %v1470 = vshrl.u32 %v348, 16
        %v1472 = vrot.slane %v1470, 4
        %v1473 = vor.u32 %v1472, %v1468
        %v1474 = vrot.slane %v1473, 4
        %v1476 = vshll.u32 %v349, 16
        %v1478 = vrot.slane %v1476, 5
        %v1479 = vsel %vm1335, %v1474, %v1478
        %v1481 = vshrl.u32 %v350, 16
        %v1483 = vrot.slane %v1481, 4
        %v1484 = vshll.u32 %v350, 16
        %v1486 = vrot.slane %v1484, 5
        %v1487 = vor.u32 %v1483, %v1486
        %v1488 = vrot.slane %v1487, 4
        %v1490 = vshll.u32 %v351, 16
        %v1492 = vrot.slane %v1490, 5
        %v1493 = vsel %vm1335, %v1488, %v1492
        %v1494 = vshrl.u32 %v351, 16
        %v1496 = vrot.slane %v1494, 4
        %v1497 = vor.u32 %v1496, %v1492
        %v1498 = vrot.slane %v1497, 4
        %v1500 = vshll.u32 %v352, 16
        %v1502 = vrot.slane %v1500, 5
        %v1503 = vsel %vm1335, %v1498, %v1502
        %v1505 = vshrl.u32 %v353, 16
        %v1507 = vrot.slane %v1505, 4
        %v1508 = vshll.u32 %v353, 16
        %v1510 = vrot.slane %v1508, 5
        %v1511 = vor.u32 %v1507, %v1510
        %v1512 = vrot.slane %v1511, 4
        %v1514 = vshll.u32 %v354, 16
        %v1516 = vrot.slane %v1514, 5
        %v1517 = vsel %vm1335, %v1512, %v1516
        %v1518 = vshrl.u32 %v354, 16
        %v1520 = vrot.slane %v1518, 4
        %v1521 = vor.u32 %v1520, %v1516
        %v1522 = vrot.slane %v1521, 4
        %v1524 = vshll.u32 %v355, 16
        %v1526 = vrot.slane %v1524, 5
        %v1527 = vsel %vm1335, %v1522, %v1526
        %v1529 = vshrl.u32 %v356, 16
        %v1531 = vrot.slane %v1529, 4
        %v1532 = vshll.u32 %v356, 16
        %v1534 = vrot.slane %v1532, 5
        %v1535 = vor.u32 %v1531, %v1534
        %v1536 = vrot.slane %v1535, 4
        %v1538 = vshll.u32 %v357, 16
        %v1540 = vrot.slane %v1538, 5
        %v1541 = vsel %vm1335, %v1536, %v1540
        %v1542 = vshrl.u32 %v357, 16
        %v1544 = vrot.slane %v1542, 4
        %v1545 = vor.u32 %v1544, %v1540
        %v1546 = vrot.slane %v1545, 4
        %v1548 = vshll.u32 %v358, 16
        %v1550 = vrot.slane %v1548, 5
        %v1551 = vsel %vm1335, %v1546, %v1550
        %v1553 = vshrl.u32 %v359, 16
        %v1555 = vrot.slane %v1553, 4
        %v1556 = vshll.u32 %v359, 16
        %v1558 = vrot.slane %v1556, 5
        %v1559 = vor.u32 %v1555, %v1558
        %v1560 = vrot.slane %v1559, 4
        %v1562 = vshll.u32 %v360, 16
        %v1564 = vrot.slane %v1562, 5
        %v1565 = vsel %vm1335, %v1560, %v1564
        %v1566 = vshrl.u32 %v360, 16
        %v1568 = vrot.slane %v1566, 4
        %v1569 = vor.u32 %v1568, %v1564
        %v1570 = vrot.slane %v1569, 4
        %v1572 = vshll.u32 %v361, 16
        %v1574 = vrot.slane %v1572, 5
        %v1575 = vsel %vm1335, %v1570, %v1574
        %v1577 = vshrl.u32 %v362, 16
        %v1579 = vrot.slane %v1577, 4
        %v1580 = vshll.u32 %v362, 16
        %v1582 = vrot.slane %v1580, 5
        %v1583 = vor.u32 %v1579, %v1582
        %v1584 = vrot.slane %v1583, 4
        %v1586 = vshll.u32 %v363, 16
        %v1588 = vrot.slane %v1586, 5
        %v1589 = vsel %vm1335, %v1584, %v1588
        %v1590 = vshrl.u32 %v363, 16
        %v1592 = vrot.slane %v1590, 4
        %v1593 = vor.u32 %v1592, %v1588
        %v1594 = vrot.slane %v1593, 4
        %v1596 = vshll.u32 %v364, 16
        %v1598 = vrot.slane %v1596, 5
        %v1599 = vsel %vm1335, %v1594, %v1598
        %v1601 = vshrl.u32 %v365, 16
        %v1603 = vrot.slane %v1601, 4
        %v1604 = vshll.u32 %v365, 16
        %v1606 = vrot.slane %v1604, 5
        %v1607 = vor.u32 %v1603, %v1606
        %v1608 = vrot.slane %v1607, 4
        %v1610 = vshll.u32 %v366, 16
        %v1612 = vrot.slane %v1610, 5
        %v1613 = vsel %vm1335, %v1608, %v1612
        %v1614 = vshrl.u32 %v366, 16
        %v1616 = vrot.slane %v1614, 4
        %v1617 = vor.u32 %v1616, %v1612
        %v1618 = vrot.slane %v1617, 4
        %v1620 = vshll.u32 %v367, 16
        %v1622 = vrot.slane %v1620, 5
        %v1623 = vsel %vm1335, %v1618, %v1622
        %v1625 = vshrl.u32 %v368, 16
        %v1627 = vrot.slane %v1625, 4
        %v1628 = vshll.u32 %v368, 16
        %v1630 = vrot.slane %v1628, 5
        %v1631 = vor.u32 %v1627, %v1630
        %v1632 = vrot.slane %v1631, 4
        %v1634 = vshll.u32 %v369, 16
        %v1636 = vrot.slane %v1634, 5
        %v1637 = vsel %vm1335, %v1632, %v1636
        %v1638 = vshrl.u32 %v369, 16
        %v1640 = vrot.slane %v1638, 4
        %v1641 = vor.u32 %v1640, %v1636
        %v1642 = vrot.slane %v1641, 4
        %v1644 = vshll.u32 %v370, 16
        %v1646 = vrot.slane %v1644, 5
        %v1647 = vsel %vm1335, %v1642, %v1646
        %v1649 = vshrl.u32 %v371, 16
        %v1651 = vrot.slane %v1649, 4
        %v1652 = vshll.u32 %v371, 16
        %v1654 = vrot.slane %v1652, 5
        %v1655 = vor.u32 %v1651, %v1654
        %v1656 = vrot.slane %v1655, 4
        %v1658 = vshll.u32 %v372, 16
        %v1660 = vrot.slane %v1658, 5
        %v1661 = vsel %vm1335, %v1656, %v1660
        %v1662 = vshrl.u32 %v372, 16
        %v1664 = vrot.slane %v1662, 4
        %v1665 = vor.u32 %v1664, %v1660
        %v1666 = vrot.slane %v1665, 4
        %v1668 = vshll.u32 %v373, 16
        %v1670 = vrot.slane %v1668, 5
        %v1671 = vsel %vm1335, %v1666, %v1670
        %v1673 = vshrl.u32 %v374, 16
        %v1675 = vrot.slane %v1673, 4
        %v1676 = vshll.u32 %v374, 16
        %v1678 = vrot.slane %v1676, 5
        %v1679 = vor.u32 %v1675, %v1678
        %v1680 = vrot.slane %v1679, 4
        %v1682 = vshll.u32 %v375, 16
        %v1684 = vrot.slane %v1682, 5
        %v1685 = vsel %vm1335, %v1680, %v1684
        %v1686 = vshrl.u32 %v375, 16
        %v1688 = vrot.slane %v1686, 4
        %v1689 = vor.u32 %v1688, %v1684
        %v1690 = vrot.slane %v1689, 4
        %v1692 = vshll.u32 %v376, 16
        %v1694 = vrot.slane %v1692, 5
        %v1695 = vsel %vm1335, %v1690, %v1694
        %v1697 = vshrl.u32 %v377, 16
        %v1699 = vrot.slane %v1697, 4
        %v1700 = vshll.u32 %v377, 16
        %v1702 = vrot.slane %v1700, 5
        %v1703 = vor.u32 %v1699, %v1702
        %v1704 = vrot.slane %v1703, 4
        %v1706 = vshll.u32 %v378, 16
        %v1708 = vrot.slane %v1706, 5
        %v1709 = vsel %vm1335, %v1704, %v1708
        %v1710 = vshrl.u32 %v378, 16
        %v1712 = vrot.slane %v1710, 4
        %v1713 = vor.u32 %v1712, %v1708
        %v1714 = vrot.slane %v1713, 4
        %v1716 = vshll.u32 %v379, 16
        %v1718 = vrot.slane %v1716, 5
        %v1719 = vsel %vm1335, %v1714, %v1718
        %v1720 = vpack.c.bf16 %v1270, %v1269
        %v1721 = vpack.c.bf16 %v1272, %v1271
        %v1722 = vpack.c.bf16 %v1274, %v1273
        %v1723 = vpack.c.bf16 %v1276, %v1275
        %v1724 = vpack.c.bf16 %v1278, %v1277
        %v1725 = vpack.c.bf16 %v1280, %v1279
        %v1726 = vpack.c.bf16 %v1282, %v1281
        %v1727 = vpack.c.bf16 %v1284, %v1283
        %v1728 = vpack.c.bf16 %v1286, %v1285
        %v1729 = vpack.c.bf16 %v1288, %v1287
        %v1730 = vpack.c.bf16 %v1290, %v1289
        %v1731 = vpack.c.bf16 %v1292, %v1291
        %v1732 = vpack.c.bf16 %v1294, %v1293
        %v1733 = vpack.c.bf16 %v1296, %v1295
        %v1734 = vpack.c.bf16 %v1298, %v1297
        %v1735 = vpack.c.bf16 %v1300, %v1299
        %v1768 = vunpack.c.l.b16 %v1301
        %v1769 = vunpack.c.l.b16 %v1302
        %v1770 = vunpack.c.l.b16 %v1303
        %v1771 = vunpack.c.l.b16 %v1304
        %v1772 = vunpack.c.l.b16 %v1305
        %v1773 = vunpack.c.l.b16 %v1306
        %v1774 = vunpack.c.l.b16 %v1307
        %v1775 = vunpack.c.l.b16 %v1308
        %v1776 = vunpack.c.l.b16 %v1309
        %v1777 = vunpack.c.l.b16 %v1310
        %v1778 = vunpack.c.l.b16 %v1311
        %v1779 = vunpack.c.l.b16 %v1312
        %v1780 = vunpack.c.l.b16 %v1313
        %v1781 = vunpack.c.l.b16 %v1314
        %v1782 = vunpack.c.l.b16 %v1315
        %v1783 = vunpack.c.l.b16 %v1316
        %v1784 = vunpack.c.l.b16 %v1317
        %v1785 = vunpack.c.l.b16 %v1318
        %v1786 = vunpack.c.l.b16 %v1319
        %v1787 = vunpack.c.l.b16 %v1320
        %v1788 = vunpack.c.l.b16 %v1321
        %v1789 = vunpack.c.l.b16 %v1322
        %v1790 = vunpack.c.l.b16 %v1323
        %v1791 = vunpack.c.l.b16 %v1324
        %v1792 = vunpack.c.l.b16 %v1325
        %v1793 = vunpack.c.l.b16 %v1326
        %v1794 = vunpack.c.l.b16 %v1327
        %v1795 = vunpack.c.l.b16 %v1328
        %v1796 = vunpack.c.l.b16 %v1329
        %v1797 = vunpack.c.l.b16 %v1330
        %v1798 = vunpack.c.l.b16 %v1331
        %v1799 = vunpack.c.l.b16 %v1332
        %v1800 = vpack.c.b16 %v1769, %v1768
        %v1801 = vpack.c.b16 %v1771, %v1770
        %v1802 = vpack.c.b16 %v1773, %v1772
        %v1803 = vpack.c.b16 %v1775, %v1774
        %v1804 = vpack.c.b16 %v1777, %v1776
        %v1805 = vpack.c.b16 %v1779, %v1778
        %v1806 = vpack.c.b16 %v1781, %v1780
        %v1807 = vpack.c.b16 %v1783, %v1782
        %v1808 = vpack.c.b16 %v1785, %v1784
        %v1809 = vpack.c.b16 %v1787, %v1786
        %v1810 = vpack.c.b16 %v1789, %v1788
        %v1811 = vpack.c.b16 %v1791, %v1790
        %v1812 = vpack.c.b16 %v1793, %v1792
        %v1813 = vpack.c.b16 %v1795, %v1794
        %v1814 = vpack.c.b16 %v1797, %v1796
        %v1815 = vpack.c.b16 %v1799, %v1798
        %v1816 = vunpack.c.l.b16 %v1349
        %v1817 = vunpack.c.l.b16 %v1359
        %v1818 = vunpack.c.l.b16 %v1373
        %v1819 = vunpack.c.l.b16 %v1383
        %v1820 = vunpack.c.l.b16 %v1397
        %v1821 = vunpack.c.l.b16 %v1407
        %v1822 = vunpack.c.l.b16 %v1421
        %v1823 = vunpack.c.l.b16 %v1431
        %v1824 = vunpack.c.l.b16 %v1445
        %v1825 = vunpack.c.l.b16 %v1455
        %v1826 = vunpack.c.l.b16 %v1469
        %v1827 = vunpack.c.l.b16 %v1479
        %v1828 = vunpack.c.l.b16 %v1493
        %v1829 = vunpack.c.l.b16 %v1503
        %v1830 = vunpack.c.l.b16 %v1517
        %v1831 = vunpack.c.l.b16 %v1527
        %v1832 = vunpack.c.l.b16 %v1541
        %v1833 = vunpack.c.l.b16 %v1551
        %v1834 = vunpack.c.l.b16 %v1565
        %v1835 = vunpack.c.l.b16 %v1575
        %v1836 = vunpack.c.l.b16 %v1589
        %v1837 = vunpack.c.l.b16 %v1599
        %v1838 = vunpack.c.l.b16 %v1613
        %v1839 = vunpack.c.l.b16 %v1623
        %v1840 = vunpack.c.l.b16 %v1637
        %v1841 = vunpack.c.l.b16 %v1647
        %v1842 = vunpack.c.l.b16 %v1661
        %v1843 = vunpack.c.l.b16 %v1671
        %v1844 = vunpack.c.l.b16 %v1685
        %v1845 = vunpack.c.l.b16 %v1695
        %v1846 = vunpack.c.l.b16 %v1709
        %v1847 = vunpack.c.l.b16 %v1719
        %v1848 = vpack.c.b16 %v1817, %v1816
        %v1849 = vpack.c.b16 %v1819, %v1818
        %v1850 = vpack.c.b16 %v1821, %v1820
        %v1851 = vpack.c.b16 %v1823, %v1822
        %v1852 = vpack.c.b16 %v1825, %v1824
        %v1853 = vpack.c.b16 %v1827, %v1826
        %v1854 = vpack.c.b16 %v1829, %v1828
        %v1855 = vpack.c.b16 %v1831, %v1830
        %v1856 = vpack.c.b16 %v1833, %v1832
        %v1857 = vpack.c.b16 %v1835, %v1834
        %v1858 = vpack.c.b16 %v1837, %v1836
        %v1859 = vpack.c.b16 %v1839, %v1838
        %v1860 = vpack.c.b16 %v1841, %v1840
        %v1861 = vpack.c.b16 %v1843, %v1842
        %v1862 = vpack.c.b16 %v1845, %v1844
        %v1863 = vpack.c.b16 %v1847, %v1846
        %1864 = vrot.lane.b32.xlu0 %v1848, 32
        %v1865 = vpop.permute.xlu0 %1864
        %1866 = vrot.lane.b32.xlu0 %v1849, 32
        %v1867 = vpop.permute.xlu0 %1866
        %1868 = vrot.lane.b32.xlu0 %v1850, 32
        %v1869 = vpop.permute.xlu0 %1868
        %1870 = vrot.lane.b32.xlu0 %v1851, 32
        %v1871 = vpop.permute.xlu0 %1870
        %1872 = vrot.lane.b32.xlu0 %v1852, 32
        %v1873 = vpop.permute.xlu0 %1872
        %1874 = vrot.lane.b32.xlu0 %v1853, 32
        %v1875 = vpop.permute.xlu0 %1874
        %1876 = vrot.lane.b32.xlu0 %v1854, 32
        %v1877 = vpop.permute.xlu0 %1876
        %1878 = vrot.lane.b32.xlu0 %v1855, 32
        %v1879 = vpop.permute.xlu0 %1878
        %1880 = vrot.lane.b32.xlu0 %v1856, 32
        %v1881 = vpop.permute.xlu0 %1880
        %1882 = vrot.lane.b32.xlu0 %v1857, 32
        %v1883 = vpop.permute.xlu0 %1882
        %1884 = vrot.lane.b32.xlu0 %v1858, 32
        %v1885 = vpop.permute.xlu0 %1884
        %1886 = vrot.lane.b32.xlu0 %v1859, 32
        %v1887 = vpop.permute.xlu0 %1886
        %1888 = vrot.lane.b32.xlu0 %v1860, 32
        %v1889 = vpop.permute.xlu0 %1888
        %1890 = vrot.lane.b32.xlu0 %v1861, 32
        %v1891 = vpop.permute.xlu0 %1890
        %1892 = vrot.lane.b32.xlu0 %v1862, 32
        %v1893 = vpop.permute.xlu0 %1892
        %1894 = vrot.lane.b32.xlu0 %v1863, 32
        %v1895 = vpop.permute.xlu0 %1894
        %1912 = vrot.lane.b32.xlu0 %v1720, 64
        %v1913 = vpop.permute.xlu0 %1912
        %1914 = vrot.lane.b32.xlu0 %v1721, 64
        %v1915 = vpop.permute.xlu0 %1914
        %1916 = vrot.lane.b32.xlu0 %v1722, 64
        %v1917 = vpop.permute.xlu0 %1916
        %1918 = vrot.lane.b32.xlu0 %v1723, 64
        %v1919 = vpop.permute.xlu0 %1918
        %1920 = vrot.lane.b32.xlu0 %v1724, 64
        %v1921 = vpop.permute.xlu0 %1920
        %1922 = vrot.lane.b32.xlu0 %v1725, 64
        %v1923 = vpop.permute.xlu0 %1922
        %1924 = vrot.lane.b32.xlu0 %v1726, 64
        %v1925 = vpop.permute.xlu0 %1924
        %1926 = vrot.lane.b32.xlu0 %v1727, 64
        %v1927 = vpop.permute.xlu0 %1926
        %1928 = vrot.lane.b32.xlu0 %v1728, 64
        %v1929 = vpop.permute.xlu0 %1928
        %1930 = vrot.lane.b32.xlu0 %v1729, 64
        %v1931 = vpop.permute.xlu0 %1930
        %1932 = vrot.lane.b32.xlu0 %v1730, 64
        %v1933 = vpop.permute.xlu0 %1932
        %1934 = vrot.lane.b32.xlu0 %v1731, 64
        %v1935 = vpop.permute.xlu0 %1934
        %1936 = vrot.lane.b32.xlu0 %v1732, 64
        %v1937 = vpop.permute.xlu0 %1936
        %1938 = vrot.lane.b32.xlu0 %v1733, 64
        %v1939 = vpop.permute.xlu0 %1938
        %1940 = vrot.lane.b32.xlu0 %v1734, 64
        %v1941 = vpop.permute.xlu0 %1940
        %1942 = vrot.lane.b32.xlu0 %v1735, 64
        %v1943 = vpop.permute.xlu0 %1942
        %v1946 = vsel %vm770, %v1800, %v1865
        %v1949 = vsel %vm770, %v1801, %v1867
        %v1952 = vsel %vm770, %v1802, %v1869
        %v1955 = vsel %vm770, %v1803, %v1871
        %v1958 = vsel %vm770, %v1804, %v1873
        %v1961 = vsel %vm770, %v1805, %v1875
        %v1964 = vsel %vm770, %v1806, %v1877
        %v1967 = vsel %vm770, %v1807, %v1879
        %v1970 = vsel %vm770, %v1808, %v1881
        %v1973 = vsel %vm770, %v1809, %v1883
        %v1976 = vsel %vm770, %v1810, %v1885
        %v1979 = vsel %vm770, %v1811, %v1887
        %v1982 = vsel %vm770, %v1812, %v1889
        %v1985 = vsel %vm770, %v1813, %v1891
        %v1988 = vsel %vm770, %v1814, %v1893
        %v1991 = vsel %vm770, %v1815, %v1895
        %v1993 = vsel %vm819, %v1946, %v1913
        %v1995 = vsel %vm819, %v1949, %v1915
        %v1997 = vsel %vm819, %v1952, %v1917
        %v1999 = vsel %vm819, %v1955, %v1919
        %v2001 = vsel %vm819, %v1958, %v1921
        %v2003 = vsel %vm819, %v1961, %v1923
        %v2005 = vsel %vm819, %v1964, %v1925
        %v2007 = vsel %vm819, %v1967, %v1927
        %v2009 = vsel %vm819, %v1970, %v1929
        %v2011 = vsel %vm819, %v1973, %v1931
        %v2013 = vsel %vm819, %v1976, %v1933
        %v2015 = vsel %vm819, %v1979, %v1935
        %v2017 = vsel %vm819, %v1982, %v1937
        %v2019 = vsel %vm819, %v1985, %v1939
        %v2021 = vsel %vm819, %v1988, %v1941
        %v2023 = vsel %vm819, %v1991, %v1943
        %v2024 = vld [vmem:[%s4] sm:$0xf]
        %v2025 = vld [vmem:[%s4 + $0x4] sm:$0xf]
        %v2026 = vld [vmem:[%s4 + $0x8] sm:$0xf]
        %v2027 = vld [vmem:[%s4 + $0xc] sm:$0xf]
        %v2028 = vld [vmem:[%s4 + $0x10] sm:$0xf]
        %v2029 = vld [vmem:[%s4 + $0x14] sm:$0xf]
        %v2030 = vld [vmem:[%s4 + $0x18] sm:$0xf]
        %v2031 = vld [vmem:[%s4 + $0x1c] sm:$0xf]
        %v2032 = vld [vmem:[%s4 + $0x20] sm:$0xf]
        %v2033 = vld [vmem:[%s4 + $0x24] sm:$0xf]
        %v2034 = vld [vmem:[%s4 + $0x28] sm:$0xf]
        %v2035 = vld [vmem:[%s4 + $0x2c] sm:$0xf]
        %v2036 = vld [vmem:[%s5 + $0x3] sm:$0x1]
        %v2037 = vlaneseq
        %v2038 = vshrl.u32 %v2037, 7
        %v2039 = vsub.s32 0, %v2038
        %v2040 = vrot.slane %v2036, %v2039
        %v2053 = vunpack.c.l.b16 %v2024
        %v2054 = vunpack.c.l.b16 %v2025
        %v2055 = vunpack.c.l.b16 %v2026
        %v2056 = vunpack.c.l.b16 %v2027
        %v2057 = vunpack.c.l.b16 %v2028
        %v2058 = vunpack.c.l.b16 %v2029
        %v2059 = vunpack.c.l.b16 %v2030
        %v2060 = vunpack.c.l.b16 %v2031
        %v2061 = vunpack.c.l.b16 %v2032
        %v2062 = vunpack.c.l.b16 %v2033
        %v2063 = vunpack.c.l.b16 %v2034
        %v2064 = vunpack.c.l.b16 %v2035
        %v2065 = vpack.c.b16 %v2054, %v2053
        %v2066 = vpack.c.b16 %v2056, %v2055
        %v2067 = vpack.c.b16 %v2058, %v2057
        %v2068 = vpack.c.b16 %v2060, %v2059
        %v2069 = vpack.c.b16 %v2062, %v2061
        %v2070 = vpack.c.b16 %v2064, %v2063
        %v2077 = vsel %vm852, %v1993, 0
        %v2079 = vsel %vm852, %v1995, 0
        %v2081 = vsel %vm852, %v1997, 0
        %v2083 = vsel %vm852, %v1999, 0
        %v2085 = vsel %vm852, %v2001, 0
        %v2087 = vsel %vm852, %v2003, 0
        %v2089 = vsel %vm852, %v2005, 0
        %v2091 = vsel %vm852, %v2007, 0
        %v2093 = vsel %vm852, %v2009, 0
        %v2095 = vsel %vm852, %v2011, 0
        %v2097 = vsel %vm852, %v2013, 0
        %v2099 = vsel %vm852, %v2015, 0
        %v2101 = vsel %vm852, %v2017, 0
        %v2103 = vsel %vm852, %v2019, 0
        %v2105 = vsel %vm852, %v2021, 0
        %v2107 = vsel %vm852, %v2023, 0
        %2109 = vmatprep.subr.bf16.mxu0 0
        %2110 = vmatpush1.bf16.msra.mxu0 %v2065
        %2111 = vmatprep.subr.bf16.mxu0 0
        %2112 = vmatpush1.bf16.msra.mxu0 %v2066
        %2113 = vmatprep.subr.bf16.mxu0 0
        %2114 = vmatpush1.bf16.msra.mxu0 %v2067
        %2115 = vmatprep.subr.bf16.mxu0 0
        %2116 = vmatpush1.bf16.msra.mxu0 %v2068
        %2117 = vmatprep.subr.bf16.mxu0 0
        %2118 = vmatpush1.bf16.msra.mxu0 %v2069
        %2119 = vmatprep.subr.bf16.mxu0 0
        %2120 = vmatpush1.bf16.msra.mxu0 %v2070
        %2121 = vmatprep.subr.bf16.mxu0 0
        %2122 = vmatpush1.bf16.msra.mxu0 0
        %2123 = vmatprep.subr.bf16.mxu0 0
        %2124 = vmatpush1.bf16.msra.mxu0 0
        %2125 = vmatprep.subr.bf16.mxu0 0
        %2126 = vmatpush1.bf16.msra.mxu0 0
        %2127 = vmatprep.subr.bf16.mxu0 0
        %2128 = vmatpush1.bf16.msra.mxu0 0
        %2129 = vmatprep.subr.bf16.mxu0 0
        %2130 = vmatpush1.bf16.msra.mxu0 0
        %2131 = vmatprep.subr.bf16.mxu0 0
        %2132 = vmatpush1.bf16.msra.mxu0 0
        %2133 = vmatprep.subr.bf16.mxu0 0
        %2134 = vmatpush1.bf16.msra.mxu0 0
        %2135 = vmatprep.subr.bf16.mxu0 0
        %2136 = vmatpush1.bf16.msra.mxu0 0
        %2137 = vmatprep.subr.bf16.mxu0 0
        %2138 = vmatpush1.bf16.msra.mxu0 0
        %2139 = vmatprep.subr.bf16.mxu0 0
        %2140 = vmatpush1.bf16.msra.mxu0 0
        %2141 = vmatprep.mubr.bf16.mxu0 0
        %2142 = vmatmul.mubr.bf16.gmra.mrb[0].mxu0 %v2077
        %v2143 = vpop.f32.mrb[0].mxu0
        %v2144 = vadd.f32 %v2040, %v2143
        %v2145 = vpop.f32.mrb[0].mxu0
        %v2146 = vpop.f32.mrb[0].mxu0
        %v2147 = vadd.f32 %v2040, %v2146
        %v2148 = vpop.f32.mrb[0].mxu0
        %2149 = vmatprep.mubr.bf16.mxu0 0
        %2150 = vmatmul.mubr.bf16.gmra.mrb[0].mxu0 %v2079
        %v2151 = vpop.f32.mrb[0].mxu0
        %v2152 = vadd.f32 %v2040, %v2151
        %v2153 = vpop.f32.mrb[0].mxu0
        %v2154 = vpop.f32.mrb[0].mxu0
        %v2155 = vadd.f32 %v2040, %v2154
        %v2156 = vpop.f32.mrb[0].mxu0
        %2157 = vmatprep.mubr.bf16.mxu0 0
        %2158 = vmatmul.mubr.bf16.gmra.mrb[0].mxu0 %v2081
        %v2159 = vpop.f32.mrb[0].mxu0
        %v2160 = vadd.f32 %v2040, %v2159
        %v2161 = vpop.f32.mrb[0].mxu0
        %v2162 = vpop.f32.mrb[0].mxu0
        %v2163 = vadd.f32 %v2040, %v2162
        %v2164 = vpop.f32.mrb[0].mxu0
        %2165 = vmatprep.mubr.bf16.mxu0 0
        %2166 = vmatmul.mubr.bf16.gmra.mrb[0].mxu0 %v2083
        %v2167 = vpop.f32.mrb[0].mxu0
        %v2168 = vadd.f32 %v2040, %v2167
        %v2169 = vpop.f32.mrb[0].mxu0
        %v2170 = vpop.f32.mrb[0].mxu0
        %v2171 = vadd.f32 %v2040, %v2170
        %v2172 = vpop.f32.mrb[0].mxu0
        %2173 = vmatprep.mubr.bf16.mxu0 0
        %2174 = vmatmul.mubr.bf16.gmra.mrb[0].mxu0 %v2085
        %v2175 = vpop.f32.mrb[0].mxu0
        %v2176 = vadd.f32 %v2040, %v2175
        %v2177 = vpop.f32.mrb[0].mxu0
        %v2178 = vpop.f32.mrb[0].mxu0
        %v2179 = vadd.f32 %v2040, %v2178
        %v2180 = vpop.f32.mrb[0].mxu0
        %2181 = vmatprep.mubr.bf16.mxu0 0
        %2182 = vmatmul.mubr.bf16.gmra.mrb[0].mxu0 %v2087
        %v2183 = vpop.f32.mrb[0].mxu0
        %v2184 = vadd.f32 %v2040, %v2183
        %v2185 = vpop.f32.mrb[0].mxu0
        %v2186 = vpop.f32.mrb[0].mxu0
        %v2187 = vadd.f32 %v2040, %v2186
        %v2188 = vpop.f32.mrb[0].mxu0
        %2189 = vmatprep.mubr.bf16.mxu0 0
        %2190 = vmatmul.mubr.bf16.gmra.mrb[0].mxu0 %v2089
        %v2191 = vpop.f32.mrb[0].mxu0
        %v2192 = vadd.f32 %v2040, %v2191
        %v2193 = vpop.f32.mrb[0].mxu0
        %v2194 = vpop.f32.mrb[0].mxu0
        %v2195 = vadd.f32 %v2040, %v2194
        %v2196 = vpop.f32.mrb[0].mxu0
        %2197 = vmatprep.mubr.bf16.mxu0 0
        %2198 = vmatmul.mubr.bf16.gmra.mrb[0].mxu0 %v2091
        %v2199 = vpop.f32.mrb[0].mxu0
        %v2200 = vadd.f32 %v2040, %v2199
        %v2201 = vpop.f32.mrb[0].mxu0
        %v2202 = vpop.f32.mrb[0].mxu0
        %v2203 = vadd.f32 %v2040, %v2202
        %v2204 = vpop.f32.mrb[0].mxu0
        %2205 = vmatprep.mubr.bf16.mxu0 0
        %2206 = vmatmul.mubr.bf16.gmra.mrb[0].mxu0 %v2093
        %v2207 = vpop.f32.mrb[0].mxu0
        %v2208 = vadd.f32 %v2040, %v2207
        %v2209 = vpop.f32.mrb[0].mxu0
        %v2210 = vpop.f32.mrb[0].mxu0
        %v2211 = vadd.f32 %v2040, %v2210
        %v2212 = vpop.f32.mrb[0].mxu0
        %2213 = vmatprep.mubr.bf16.mxu0 0
        %2214 = vmatmul.mubr.bf16.gmra.mrb[0].mxu0 %v2095
        %v2215 = vpop.f32.mrb[0].mxu0
        %v2216 = vadd.f32 %v2040, %v2215
        %v2217 = vpop.f32.mrb[0].mxu0
        %v2218 = vpop.f32.mrb[0].mxu0
        %v2219 = vadd.f32 %v2040, %v2218
        %v2220 = vpop.f32.mrb[0].mxu0
        %2221 = vmatprep.mubr.bf16.mxu0 0
        %2222 = vmatmul.mubr.bf16.gmra.mrb[0].mxu0 %v2097
        %v2223 = vpop.f32.mrb[0].mxu0
        %v2224 = vadd.f32 %v2040, %v2223
        %v2225 = vpop.f32.mrb[0].mxu0
        %v2226 = vpop.f32.mrb[0].mxu0
        %v2227 = vadd.f32 %v2040, %v2226
        %v2228 = vpop.f32.mrb[0].mxu0
        %2229 = vmatprep.mubr.bf16.mxu0 0
        %2230 = vmatmul.mubr.bf16.gmra.mrb[0].mxu0 %v2099
        %v2231 = vpop.f32.mrb[0].mxu0
        %v2232 = vadd.f32 %v2040, %v2231
        %v2233 = vpop.f32.mrb[0].mxu0
        %v2234 = vpop.f32.mrb[0].mxu0
        %v2235 = vadd.f32 %v2040, %v2234
        %v2236 = vpop.f32.mrb[0].mxu0
        %2237 = vmatprep.mubr.bf16.mxu0 0
        %2238 = vmatmul.mubr.bf16.gmra.mrb[0].mxu0 %v2101
        %v2239 = vpop.f32.mrb[0].mxu0
        %v2240 = vadd.f32 %v2040, %v2239
        %v2241 = vpop.f32.mrb[0].mxu0
        %v2242 = vpop.f32.mrb[0].mxu0
        %v2243 = vadd.f32 %v2040, %v2242
        %v2244 = vpop.f32.mrb[0].mxu0
        %2245 = vmatprep.mubr.bf16.mxu0 0
        %2246 = vmatmul.mubr.bf16.gmra.mrb[0].mxu0 %v2103
        %v2247 = vpop.f32.mrb[0].mxu0
        %v2248 = vadd.f32 %v2040, %v2247
        %v2249 = vpop.f32.mrb[0].mxu0
        %v2250 = vpop.f32.mrb[0].mxu0
        %v2251 = vadd.f32 %v2040, %v2250
        %v2252 = vpop.f32.mrb[0].mxu0
        %2253 = vmatprep.mubr.bf16.mxu0 0
        %2254 = vmatmul.mubr.bf16.gmra.mrb[0].mxu0 %v2105
        %v2255 = vpop.f32.mrb[0].mxu0
        %v2256 = vadd.f32 %v2040, %v2255
        %v2257 = vpop.f32.mrb[0].mxu0
        %v2258 = vpop.f32.mrb[0].mxu0
        %v2259 = vadd.f32 %v2040, %v2258
        %v2260 = vpop.f32.mrb[0].mxu0
        %2261 = vmatprep.mubr.bf16.mxu0 0
        %2262 = vmatmul.mubr.bf16.gmra.mrb[0].mxu0 %v2107
        %v2263 = vpop.f32.mrb[0].mxu0
        %v2264 = vadd.f32 %v2040, %v2263
        %v2265 = vpop.f32.mrb[0].mxu0
        %v2266 = vpop.f32.mrb[0].mxu0
        %v2267 = vadd.f32 %v2040, %v2266
        %v2268 = vpop.f32.mrb[0].mxu0
        %2269 = vdwg.mxu0
        %vm2270 = vcmp.ge.f32.partialorder %v2144, 0.0
        %vm2271 = vcmp.ge.f32.partialorder %v2147, 0.0
        %vm2272 = vcmp.ge.f32.partialorder %v2152, 0.0
        %vm2273 = vcmp.ge.f32.partialorder %v2155, 0.0
        %vm2274 = vcmp.ge.f32.partialorder %v2160, 0.0
        %vm2275 = vcmp.ge.f32.partialorder %v2163, 0.0
        %vm2276 = vcmp.ge.f32.partialorder %v2168, 0.0
        %vm2277 = vcmp.ge.f32.partialorder %v2171, 0.0
        %vm2278 = vcmp.ge.f32.partialorder %v2176, 0.0
        %vm2279 = vcmp.ge.f32.partialorder %v2179, 0.0
        %vm2280 = vcmp.ge.f32.partialorder %v2184, 0.0
        %vm2281 = vcmp.ge.f32.partialorder %v2187, 0.0
        %vm2282 = vcmp.ge.f32.partialorder %v2192, 0.0
        %vm2283 = vcmp.ge.f32.partialorder %v2195, 0.0
        %vm2284 = vcmp.ge.f32.partialorder %v2200, 0.0
        %vm2285 = vcmp.ge.f32.partialorder %v2203, 0.0
        %vm2286 = vcmp.ge.f32.partialorder %v2208, 0.0
        %vm2287 = vcmp.ge.f32.partialorder %v2211, 0.0
        %vm2288 = vcmp.ge.f32.partialorder %v2216, 0.0
        %vm2289 = vcmp.ge.f32.partialorder %v2219, 0.0
        %vm2290 = vcmp.ge.f32.partialorder %v2224, 0.0
        %vm2291 = vcmp.ge.f32.partialorder %v2227, 0.0
        %vm2292 = vcmp.ge.f32.partialorder %v2232, 0.0
        %vm2293 = vcmp.ge.f32.partialorder %v2235, 0.0
        %vm2294 = vcmp.ge.f32.partialorder %v2240, 0.0
        %vm2295 = vcmp.ge.f32.partialorder %v2243, 0.0
        %vm2296 = vcmp.ge.f32.partialorder %v2248, 0.0
        %vm2297 = vcmp.ge.f32.partialorder %v2251, 0.0
        %vm2298 = vcmp.ge.f32.partialorder %v2256, 0.0
        %vm2299 = vcmp.ge.f32.partialorder %v2259, 0.0
        %vm2300 = vcmp.ge.f32.partialorder %v2264, 0.0
        %vm2301 = vcmp.ge.f32.partialorder %v2267, 0.0
        %v2302 = vmul.f32 %v2144, 0.01
        %v2303 = vmul.f32 %v2147, 0.01
        %v2304 = vmul.f32 %v2152, 0.01
        %v2305 = vmul.f32 %v2155, 0.01
        %v2306 = vmul.f32 %v2160, 0.01
        %v2307 = vmul.f32 %v2163, 0.01
        %v2308 = vmul.f32 %v2168, 0.01
        %v2309 = vmul.f32 %v2171, 0.01
        %v2310 = vmul.f32 %v2176, 0.01
        %v2311 = vmul.f32 %v2179, 0.01
        %v2312 = vmul.f32 %v2184, 0.01
        %v2313 = vmul.f32 %v2187, 0.01
        %v2314 = vmul.f32 %v2192, 0.01
        %v2315 = vmul.f32 %v2195, 0.01
        %v2316 = vmul.f32 %v2200, 0.01
        %v2317 = vmul.f32 %v2203, 0.01
        %v2318 = vmul.f32 %v2208, 0.01
        %v2319 = vmul.f32 %v2211, 0.01
        %v2320 = vmul.f32 %v2216, 0.01
        %v2321 = vmul.f32 %v2219, 0.01
        %v2322 = vmul.f32 %v2224, 0.01
        %v2323 = vmul.f32 %v2227, 0.01
        %v2324 = vmul.f32 %v2232, 0.01
        %v2325 = vmul.f32 %v2235, 0.01
        %v2326 = vmul.f32 %v2240, 0.01
        %v2327 = vmul.f32 %v2243, 0.01
        %v2328 = vmul.f32 %v2248, 0.01
        %v2329 = vmul.f32 %v2251, 0.01
        %v2330 = vmul.f32 %v2256, 0.01
        %v2331 = vmul.f32 %v2259, 0.01
        %v2332 = vmul.f32 %v2264, 0.01
        %v2333 = vmul.f32 %v2267, 0.01
        %v2334 = vsel %vm2270, %v2144, %v2302
        %v2335 = vsel %vm2271, %v2147, %v2303
        %v2336 = vsel %vm2272, %v2152, %v2304
        %v2337 = vsel %vm2273, %v2155, %v2305
        %v2338 = vsel %vm2274, %v2160, %v2306
        %v2339 = vsel %vm2275, %v2163, %v2307
        %v2340 = vsel %vm2276, %v2168, %v2308
        %v2341 = vsel %vm2277, %v2171, %v2309
        %v2342 = vsel %vm2278, %v2176, %v2310
        %v2343 = vsel %vm2279, %v2179, %v2311
        %v2344 = vsel %vm2280, %v2184, %v2312
        %v2345 = vsel %vm2281, %v2187, %v2313
        %v2346 = vsel %vm2282, %v2192, %v2314
        %v2347 = vsel %vm2283, %v2195, %v2315
        %v2348 = vsel %vm2284, %v2200, %v2316
        %v2349 = vsel %vm2285, %v2203, %v2317
        %v2350 = vsel %vm2286, %v2208, %v2318
        %v2351 = vsel %vm2287, %v2211, %v2319
        %v2352 = vsel %vm2288, %v2216, %v2320
        %v2353 = vsel %vm2289, %v2219, %v2321
        %v2354 = vsel %vm2290, %v2224, %v2322
        %v2355 = vsel %vm2291, %v2227, %v2323
        %v2356 = vsel %vm2292, %v2232, %v2324
        %v2357 = vsel %vm2293, %v2235, %v2325
        %v2358 = vsel %vm2294, %v2240, %v2326
        %v2359 = vsel %vm2295, %v2243, %v2327
        %v2360 = vsel %vm2296, %v2248, %v2328
        %v2361 = vsel %vm2297, %v2251, %v2329
        %v2362 = vsel %vm2298, %v2256, %v2330
        %v2363 = vsel %vm2299, %v2259, %v2331
        %v2364 = vsel %vm2300, %v2264, %v2332
        %v2365 = vsel %vm2301, %v2267, %v2333
        %v2366 = vld [vmem:[%s5 + $0x4] sm:$0x1]
        %v2367 = vlaneseq
        %v2368 = vshrl.u32 %v2367, 7
        %v2369 = vsub.s32 0, %v2368
        %v2370 = vrot.slane %v2366, %v2369
        %v2371 = vmul.f32 %v2334, %v2370
        %v2372 = vmul.f32 %v2335, %v2370
        %v2373 = vmul.f32 %v2336, %v2370
        %v2374 = vmul.f32 %v2337, %v2370
        %v2375 = vmul.f32 %v2338, %v2370
        %v2376 = vmul.f32 %v2339, %v2370
        %v2377 = vmul.f32 %v2340, %v2370
        %v2378 = vmul.f32 %v2341, %v2370
        %v2379 = vmul.f32 %v2342, %v2370
        %v2380 = vmul.f32 %v2343, %v2370
        %v2381 = vmul.f32 %v2344, %v2370
        %v2382 = vmul.f32 %v2345, %v2370
        %v2383 = vmul.f32 %v2346, %v2370
        %v2384 = vmul.f32 %v2347, %v2370
        %v2385 = vmul.f32 %v2348, %v2370
        %v2386 = vmul.f32 %v2349, %v2370
        %v2387 = vmul.f32 %v2350, %v2370
        %v2388 = vmul.f32 %v2351, %v2370
        %v2389 = vmul.f32 %v2352, %v2370
        %v2390 = vmul.f32 %v2353, %v2370
        %v2391 = vmul.f32 %v2354, %v2370
        %v2392 = vmul.f32 %v2355, %v2370
        %v2393 = vmul.f32 %v2356, %v2370
        %v2394 = vmul.f32 %v2357, %v2370
        %v2395 = vmul.f32 %v2358, %v2370
        %v2396 = vmul.f32 %v2359, %v2370
        %v2397 = vmul.f32 %v2360, %v2370
        %v2398 = vmul.f32 %v2361, %v2370
        %v2399 = vmul.f32 %v2362, %v2370
        %v2400 = vmul.f32 %v2363, %v2370
        %v2401 = vmul.f32 %v2364, %v2370
        %v2402 = vmul.f32 %v2365, %v2370
        %v2403 = vld [vmem:[%s5 + $0x5] sm:$0x1]
        %v2404 = vlaneseq
        %v2405 = vshrl.u32 %v2404, 7
        %v2406 = vsub.s32 0, %v2405
        %v2407 = vrot.slane %v2403, %v2406
        %v2408 = vadd.f32 %v2371, %v2407
        %v2409 = vadd.f32 %v2372, %v2407
        %v2410 = vadd.f32 %v2373, %v2407
        %v2411 = vadd.f32 %v2374, %v2407
        %v2412 = vadd.f32 %v2375, %v2407
        %v2413 = vadd.f32 %v2376, %v2407
        %v2414 = vadd.f32 %v2377, %v2407
        %v2415 = vadd.f32 %v2378, %v2407
        %v2416 = vadd.f32 %v2379, %v2407
        %v2417 = vadd.f32 %v2380, %v2407
        %v2418 = vadd.f32 %v2381, %v2407
        %v2419 = vadd.f32 %v2382, %v2407
        %v2420 = vadd.f32 %v2383, %v2407
        %v2421 = vadd.f32 %v2384, %v2407
        %v2422 = vadd.f32 %v2385, %v2407
        %v2423 = vadd.f32 %v2386, %v2407
        %v2424 = vadd.f32 %v2387, %v2407
        %v2425 = vadd.f32 %v2388, %v2407
        %v2426 = vadd.f32 %v2389, %v2407
        %v2427 = vadd.f32 %v2390, %v2407
        %v2428 = vadd.f32 %v2391, %v2407
        %v2429 = vadd.f32 %v2392, %v2407
        %v2430 = vadd.f32 %v2393, %v2407
        %v2431 = vadd.f32 %v2394, %v2407
        %v2432 = vadd.f32 %v2395, %v2407
        %v2433 = vadd.f32 %v2396, %v2407
        %v2434 = vadd.f32 %v2397, %v2407
        %v2435 = vadd.f32 %v2398, %v2407
        %v2436 = vadd.f32 %v2399, %v2407
        %v2437 = vadd.f32 %v2400, %v2407
        %v2438 = vadd.f32 %v2401, %v2407
        %v2439 = vadd.f32 %v2402, %v2407
        %v2440 = vld [vmem:[%s327] sm:$0xf]
        %v2441 = vld [vmem:[%s327 + $0x4] sm:$0xf]
        %v2442 = vld [vmem:[%s327 + $0x8] sm:$0xf]
        %v2443 = vld [vmem:[%s327 + $0xc] sm:$0xf]
        %v2444 = vld [vmem:[%s327 + $0x10] sm:$0xf]
        %v2445 = vld [vmem:[%s327 + $0x14] sm:$0xf]
        %v2446 = vld [vmem:[%s327 + $0x18] sm:$0xf]
        %v2447 = vld [vmem:[%s327 + $0x1c] sm:$0xf]
        %v2448 = vld [vmem:[%s327 + $0x20] sm:$0xf]
        %v2449 = vld [vmem:[%s327 + $0x24] sm:$0xf]
        %v2450 = vld [vmem:[%s327 + $0x28] sm:$0xf]
        %v2451 = vld [vmem:[%s327 + $0x2c] sm:$0xf]
        %v2452 = vld [vmem:[%s327 + $0x30] sm:$0xf]
        %v2453 = vld [vmem:[%s327 + $0x34] sm:$0xf]
        %v2454 = vld [vmem:[%s327 + $0x38] sm:$0xf]
        %v2455 = vld [vmem:[%s327 + $0x3c] sm:$0xf]
        %v2456 = vld [vmem:[%s327 + $0x40] sm:$0xf]
        %v2457 = vld [vmem:[%s327 + $0x44] sm:$0xf]
        %v2458 = vld [vmem:[%s327 + $0x48] sm:$0xf]
        %v2459 = vld [vmem:[%s327 + $0x4c] sm:$0xf]
        %v2460 = vld [vmem:[%s327 + $0x50] sm:$0xf]
        %v2461 = vld [vmem:[%s327 + $0x54] sm:$0xf]
        %v2462 = vld [vmem:[%s327 + $0x58] sm:$0xf]
        %v2463 = vld [vmem:[%s327 + $0x5c] sm:$0xf]
        %v2464 = vld [vmem:[%s327 + $0x60] sm:$0xf]
        %v2465 = vld [vmem:[%s327 + $0x64] sm:$0xf]
        %v2466 = vld [vmem:[%s327 + $0x68] sm:$0xf]
        %v2467 = vld [vmem:[%s327 + $0x6c] sm:$0xf]
        %v2468 = vld [vmem:[%s327 + $0x70] sm:$0xf]
        %v2469 = vld [vmem:[%s327 + $0x74] sm:$0xf]
        %v2470 = vld [vmem:[%s327 + $0x78] sm:$0xf]
        %v2471 = vld [vmem:[%s327 + $0x7c] sm:$0xf]
        %v2472 = vunpack.c.l.bf16 %v2440
        %v2473 = vunpack.c.l.bf16 %v2441
        %v2474 = vunpack.c.l.bf16 %v2442
        %v2475 = vunpack.c.l.bf16 %v2443
        %v2476 = vunpack.c.l.bf16 %v2444
        %v2477 = vunpack.c.l.bf16 %v2445
        %v2478 = vunpack.c.l.bf16 %v2446
        %v2479 = vunpack.c.l.bf16 %v2447
        %v2480 = vunpack.c.l.bf16 %v2448
        %v2481 = vunpack.c.l.bf16 %v2449
        %v2482 = vunpack.c.l.bf16 %v2450
        %v2483 = vunpack.c.l.bf16 %v2451
        %v2484 = vunpack.c.l.bf16 %v2452
        %v2485 = vunpack.c.l.bf16 %v2453
        %v2486 = vunpack.c.l.bf16 %v2454
        %v2487 = vunpack.c.l.bf16 %v2455
        %v2488 = vunpack.c.l.bf16 %v2456
        %v2489 = vunpack.c.l.bf16 %v2457
        %v2490 = vunpack.c.l.bf16 %v2458
        %v2491 = vunpack.c.l.bf16 %v2459
        %v2492 = vunpack.c.l.bf16 %v2460
        %v2493 = vunpack.c.l.bf16 %v2461
        %v2494 = vunpack.c.l.bf16 %v2462
        %v2495 = vunpack.c.l.bf16 %v2463
        %v2496 = vunpack.c.l.bf16 %v2464
        %v2497 = vunpack.c.l.bf16 %v2465
        %v2498 = vunpack.c.l.bf16 %v2466
        %v2499 = vunpack.c.l.bf16 %v2467
        %v2500 = vunpack.c.l.bf16 %v2468
        %v2501 = vunpack.c.l.bf16 %v2469
        %v2502 = vunpack.c.l.bf16 %v2470
        %v2503 = vunpack.c.l.bf16 %v2471
        %v2504 = vadd.f32 %v2408, %v2472
        %v2505 = vadd.f32 %v2409, %v2473
        %v2506 = vadd.f32 %v2410, %v2474
        %v2507 = vadd.f32 %v2411, %v2475
        %v2508 = vadd.f32 %v2412, %v2476
        %v2509 = vadd.f32 %v2413, %v2477
        %v2510 = vadd.f32 %v2414, %v2478
        %v2511 = vadd.f32 %v2415, %v2479
        %v2512 = vadd.f32 %v2416, %v2480
        %v2513 = vadd.f32 %v2417, %v2481
        %v2514 = vadd.f32 %v2418, %v2482
        %v2515 = vadd.f32 %v2419, %v2483
        %v2516 = vadd.f32 %v2420, %v2484
        %v2517 = vadd.f32 %v2421, %v2485
        %v2518 = vadd.f32 %v2422, %v2486
        %v2519 = vadd.f32 %v2423, %v2487
        %v2520 = vadd.f32 %v2424, %v2488
        %v2521 = vadd.f32 %v2425, %v2489
        %v2522 = vadd.f32 %v2426, %v2490
        %v2523 = vadd.f32 %v2427, %v2491
        %v2524 = vadd.f32 %v2428, %v2492
        %v2525 = vadd.f32 %v2429, %v2493
        %v2526 = vadd.f32 %v2430, %v2494
        %v2527 = vadd.f32 %v2431, %v2495
        %v2528 = vadd.f32 %v2432, %v2496
        %v2529 = vadd.f32 %v2433, %v2497
        %v2530 = vadd.f32 %v2434, %v2498
        %v2531 = vadd.f32 %v2435, %v2499
        %v2532 = vadd.f32 %v2436, %v2500
        %v2533 = vadd.f32 %v2437, %v2501
        %v2534 = vadd.f32 %v2438, %v2502
        %v2535 = vadd.f32 %v2439, %v2503
        %2536 = vst.msk [vmem:[%s305] sm:$0xff] %vm770, %v2504
        %2537 = vst.msk [vmem:[%s305 + $0x8] sm:$0xff] %vm770, %v2505
        %2538 = vst.msk [vmem:[%s305 + $0x10] sm:$0xff] %vm770, %v2506
        %2539 = vst.msk [vmem:[%s305 + $0x18] sm:$0xff] %vm770, %v2507
        %2540 = vst.msk [vmem:[%s305 + $0x20] sm:$0xff] %vm770, %v2508
        %2541 = vst.msk [vmem:[%s305 + $0x28] sm:$0xff] %vm770, %v2509
        %2542 = vst.msk [vmem:[%s305 + $0x30] sm:$0xff] %vm770, %v2510
        %2543 = vst.msk [vmem:[%s305 + $0x38] sm:$0xff] %vm770, %v2511
        %2544 = vst.msk [vmem:[%s305 + $0x40] sm:$0xff] %vm770, %v2512
        %2545 = vst.msk [vmem:[%s305 + $0x48] sm:$0xff] %vm770, %v2513
        %2546 = vst.msk [vmem:[%s305 + $0x50] sm:$0xff] %vm770, %v2514
        %2547 = vst.msk [vmem:[%s305 + $0x58] sm:$0xff] %vm770, %v2515
        %2548 = vst.msk [vmem:[%s305 + $0x60] sm:$0xff] %vm770, %v2516
        %2549 = vst.msk [vmem:[%s305 + $0x68] sm:$0xff] %vm770, %v2517
        %2550 = vst.msk [vmem:[%s305 + $0x70] sm:$0xff] %vm770, %v2518
        %2551 = vst.msk [vmem:[%s305 + $0x78] sm:$0xff] %vm770, %v2519
        %2552 = vst.msk [vmem:[%s305 + $0x80] sm:$0xff] %vm770, %v2520
        %2553 = vst.msk [vmem:[%s305 + $0x88] sm:$0xff] %vm770, %v2521
        %2554 = vst.msk [vmem:[%s305 + $0x90] sm:$0xff] %vm770, %v2522
        %2555 = vst.msk [vmem:[%s305 + $0x98] sm:$0xff] %vm770, %v2523
        %2556 = vst.msk [vmem:[%s305 + $0xa0] sm:$0xff] %vm770, %v2524
        %2557 = vst.msk [vmem:[%s305 + $0xa8] sm:$0xff] %vm770, %v2525
        %2558 = vst.msk [vmem:[%s305 + $0xb0] sm:$0xff] %vm770, %v2526
        %2559 = vst.msk [vmem:[%s305 + $0xb8] sm:$0xff] %vm770, %v2527
        %2560 = vst.msk [vmem:[%s305 + $0xc0] sm:$0xff] %vm770, %v2528
        %2561 = vst.msk [vmem:[%s305 + $0xc8] sm:$0xff] %vm770, %v2529
        %2562 = vst.msk [vmem:[%s305 + $0xd0] sm:$0xff] %vm770, %v2530
        %2563 = vst.msk [vmem:[%s305 + $0xd8] sm:$0xff] %vm770, %v2531
        %2564 = vst.msk [vmem:[%s305 + $0xe0] sm:$0xff] %vm770, %v2532
        %2565 = vst.msk [vmem:[%s305 + $0xe8] sm:$0xff] %vm770, %v2533
        %2566 = vst.msk [vmem:[%s305 + $0xf0] sm:$0xff] %vm770, %v2534
        %2567 = vst.msk [vmem:[%s305 + $0xf8] sm:$0xff] %vm770, %v2535
        %v2568 = vadd.f32 %v2504, %v2506
        %v2569 = vadd.f32 %v2505, %v2507
        %v2570 = vadd.f32 %v2508, %v2510
        %v2571 = vadd.f32 %v2509, %v2511
        %v2572 = vadd.f32 %v2512, %v2514
        %v2573 = vadd.f32 %v2513, %v2515
        %v2574 = vadd.f32 %v2516, %v2518
        %v2575 = vadd.f32 %v2517, %v2519
        %v2576 = vadd.f32 %v2520, %v2522
        %v2577 = vadd.f32 %v2521, %v2523
        %v2578 = vadd.f32 %v2524, %v2526
        %v2579 = vadd.f32 %v2525, %v2527
        %v2580 = vadd.f32 %v2528, %v2530
        %v2581 = vadd.f32 %v2529, %v2531
        %v2582 = vadd.f32 %v2532, %v2534
        %v2583 = vadd.f32 %v2533, %v2535
        %v2584 = vadd.f32 %v2568, 0.0
        %v2585 = vadd.f32 %v2569, 0.0
        %v2586 = vadd.f32 %v2570, %v2506
        %v2587 = vadd.f32 %v2571, %v2507
        %v2588 = vadd.f32 %v2572, %v2510
        %v2589 = vadd.f32 %v2573, %v2511
        %v2590 = vadd.f32 %v2574, %v2514
        %v2591 = vadd.f32 %v2575, %v2515
        %v2592 = vadd.f32 %v2576, %v2518
        %v2593 = vadd.f32 %v2577, %v2519
        %v2594 = vadd.f32 %v2578, %v2522
        %v2595 = vadd.f32 %v2579, %v2523
        %v2596 = vadd.f32 %v2580, %v2526
        %v2597 = vadd.f32 %v2581, %v2527
        %v2598 = vadd.f32 %v2582, %v2530
        %v2599 = vadd.f32 %v2583, %v2531
        %v2616 = vcombine.high %v2584, %v2584
        %v2618 = vunpack.c.l.s4 1983009808
        %v2619 = vunpack.c.0.s8 %v2618
        %v2620 = vlaneseq
        %v2621 = vshrl.u32 %v2620, 7
        %v2622 = vsub.s32 %v2619, %v2621
        %v2623 = vrot.slane %v2584, %v2622
        %v2625 = vunpack.c.l.s4 1983009808
        %v2626 = vunpack.c.0.s8 %v2625
        %v2627 = vlaneseq
        %v2628 = vshrl.u32 %v2627, 7
        %v2629 = vsub.s32 %v2626, %v2628
        %v2630 = vrot.slane %v2616, %v2629
        %v2631 = vcombine.high %v2623, %v2623
        %v2632 = vcombine.high %v2630, %v2630
        %v2633 = vcombine.high %v2585, %v2585
        %v2635 = vunpack.c.l.s4 1983009808
        %v2636 = vunpack.c.0.s8 %v2635
        %v2637 = vlaneseq
        %v2638 = vshrl.u32 %v2637, 7
        %v2639 = vsub.s32 %v2636, %v2638
        %v2640 = vrot.slane %v2585, %v2639
        %v2642 = vunpack.c.l.s4 1983009808
        %v2643 = vunpack.c.0.s8 %v2642
        %v2644 = vlaneseq
        %v2645 = vshrl.u32 %v2644, 7
        %v2646 = vsub.s32 %v2643, %v2645
        %v2647 = vrot.slane %v2633, %v2646
        %v2648 = vcombine.high %v2640, %v2640
        %v2649 = vcombine.high %v2647, %v2647
        %v2650 = vcombine.high %v2586, %v2586
        %v2652 = vunpack.c.l.s4 1983009808
        %v2653 = vunpack.c.0.s8 %v2652
        %v2654 = vlaneseq
        %v2655 = vshrl.u32 %v2654, 7
        %v2656 = vsub.s32 %v2653, %v2655
        %v2657 = vrot.slane %v2586, %v2656
        %v2659 = vunpack.c.l.s4 1983009808
        %v2660 = vunpack.c.0.s8 %v2659
        %v2661 = vlaneseq
        %v2662 = vshrl.u32 %v2661, 7
        %v2663 = vsub.s32 %v2660, %v2662
        %v2664 = vrot.slane %v2650, %v2663
        %v2665 = vcombine.high %v2657, %v2657
        %v2666 = vcombine.high %v2664, %v2664
        %v2667 = vcombine.high %v2587, %v2587
        %v2669 = vunpack.c.l.s4 1983009808
        %v2670 = vunpack.c.0.s8 %v2669
        %v2671 = vlaneseq
        %v2672 = vshrl.u32 %v2671, 7
        %v2673 = vsub.s32 %v2670, %v2672
        %v2674 = vrot.slane %v2587, %v2673
        %v2676 = vunpack.c.l.s4 1983009808
        %v2677 = vunpack.c.0.s8 %v2676
        %v2678 = vlaneseq
        %v2679 = vshrl.u32 %v2678, 7
        %v2680 = vsub.s32 %v2677, %v2679
        %v2681 = vrot.slane %v2667, %v2680
        %v2682 = vcombine.high %v2674, %v2674
        %v2683 = vcombine.high %v2681, %v2681
        %v2684 = vcombine.high %v2588, %v2588
        %v2686 = vunpack.c.l.s4 1983009808
        %v2687 = vunpack.c.0.s8 %v2686
        %v2688 = vlaneseq
        %v2689 = vshrl.u32 %v2688, 7
        %v2690 = vsub.s32 %v2687, %v2689
        %v2691 = vrot.slane %v2588, %v2690
        %v2693 = vunpack.c.l.s4 1983009808
        %v2694 = vunpack.c.0.s8 %v2693
        %v2695 = vlaneseq
        %v2696 = vshrl.u32 %v2695, 7
        %v2697 = vsub.s32 %v2694, %v2696
        %v2698 = vrot.slane %v2684, %v2697
        %v2699 = vcombine.high %v2691, %v2691
        %v2700 = vcombine.high %v2698, %v2698
        %v2701 = vcombine.high %v2589, %v2589
        %v2703 = vunpack.c.l.s4 1983009808
        %v2704 = vunpack.c.0.s8 %v2703
        %v2705 = vlaneseq
        %v2706 = vshrl.u32 %v2705, 7
        %v2707 = vsub.s32 %v2704, %v2706
        %v2708 = vrot.slane %v2589, %v2707
        %v2710 = vunpack.c.l.s4 1983009808
        %v2711 = vunpack.c.0.s8 %v2710
        %v2712 = vlaneseq
        %v2713 = vshrl.u32 %v2712, 7
        %v2714 = vsub.s32 %v2711, %v2713
        %v2715 = vrot.slane %v2701, %v2714
        %v2716 = vcombine.high %v2708, %v2708
        %v2717 = vcombine.high %v2715, %v2715
        %v2718 = vcombine.high %v2590, %v2590
        %v2720 = vunpack.c.l.s4 1983009808
        %v2721 = vunpack.c.0.s8 %v2720
        %v2722 = vlaneseq
        %v2723 = vshrl.u32 %v2722, 7
        %v2724 = vsub.s32 %v2721, %v2723
        %v2725 = vrot.slane %v2590, %v2724
        %v2727 = vunpack.c.l.s4 1983009808
        %v2728 = vunpack.c.0.s8 %v2727
        %v2729 = vlaneseq
        %v2730 = vshrl.u32 %v2729, 7
        %v2731 = vsub.s32 %v2728, %v2730
        %v2732 = vrot.slane %v2718, %v2731
        %v2733 = vcombine.high %v2725, %v2725
        %v2734 = vcombine.high %v2732, %v2732
        %v2735 = vcombine.high %v2591, %v2591
        %v2737 = vunpack.c.l.s4 1983009808
        %v2738 = vunpack.c.0.s8 %v2737
        %v2739 = vlaneseq
        %v2740 = vshrl.u32 %v2739, 7
        %v2741 = vsub.s32 %v2738, %v2740
        %v2742 = vrot.slane %v2591, %v2741
        %v2744 = vunpack.c.l.s4 1983009808
        %v2745 = vunpack.c.0.s8 %v2744
        %v2746 = vlaneseq
        %v2747 = vshrl.u32 %v2746, 7
        %v2748 = vsub.s32 %v2745, %v2747
        %v2749 = vrot.slane %v2735, %v2748
        %v2750 = vcombine.high %v2742, %v2742
        %v2751 = vcombine.high %v2749, %v2749
        %v2752 = vcombine.high %v2592, %v2592
        %v2754 = vunpack.c.l.s4 1983009808
        %v2755 = vunpack.c.0.s8 %v2754
        %v2756 = vlaneseq
        %v2757 = vshrl.u32 %v2756, 7
        %v2758 = vsub.s32 %v2755, %v2757
        %v2759 = vrot.slane %v2592, %v2758
        %v2761 = vunpack.c.l.s4 1983009808
        %v2762 = vunpack.c.0.s8 %v2761
        %v2763 = vlaneseq
        %v2764 = vshrl.u32 %v2763, 7
        %v2765 = vsub.s32 %v2762, %v2764
        %v2766 = vrot.slane %v2752, %v2765
        %v2767 = vcombine.high %v2759, %v2759
        %v2768 = vcombine.high %v2766, %v2766
        %v2769 = vcombine.high %v2593, %v2593
        %v2771 = vunpack.c.l.s4 1983009808
        %v2772 = vunpack.c.0.s8 %v2771
        %v2773 = vlaneseq
        %v2774 = vshrl.u32 %v2773, 7
        %v2775 = vsub.s32 %v2772, %v2774
        %v2776 = vrot.slane %v2593, %v2775
        %v2778 = vunpack.c.l.s4 1983009808
        %v2779 = vunpack.c.0.s8 %v2778
        %v2780 = vlaneseq
        %v2781 = vshrl.u32 %v2780, 7
        %v2782 = vsub.s32 %v2779, %v2781
        %v2783 = vrot.slane %v2769, %v2782
        %v2784 = vcombine.high %v2776, %v2776
        %v2785 = vcombine.high %v2783, %v2783
        %v2786 = vcombine.high %v2594, %v2594
        %v2788 = vunpack.c.l.s4 1983009808
        %v2789 = vunpack.c.0.s8 %v2788
        %v2790 = vlaneseq
        %v2791 = vshrl.u32 %v2790, 7
        %v2792 = vsub.s32 %v2789, %v2791
        %v2793 = vrot.slane %v2594, %v2792
        %v2795 = vunpack.c.l.s4 1983009808
        %v2796 = vunpack.c.0.s8 %v2795
        %v2797 = vlaneseq
        %v2798 = vshrl.u32 %v2797, 7
        %v2799 = vsub.s32 %v2796, %v2798
        %v2800 = vrot.slane %v2786, %v2799
        %v2801 = vcombine.high %v2793, %v2793
        %v2802 = vcombine.high %v2800, %v2800
        %v2803 = vcombine.high %v2595, %v2595
        %v2805 = vunpack.c.l.s4 1983009808
        %v2806 = vunpack.c.0.s8 %v2805
        %v2807 = vlaneseq
        %v2808 = vshrl.u32 %v2807, 7
        %v2809 = vsub.s32 %v2806, %v2808
        %v2810 = vrot.slane %v2595, %v2809
        %v2812 = vunpack.c.l.s4 1983009808
        %v2813 = vunpack.c.0.s8 %v2812
        %v2814 = vlaneseq
        %v2815 = vshrl.u32 %v2814, 7
        %v2816 = vsub.s32 %v2813, %v2815
        %v2817 = vrot.slane %v2803, %v2816
        %v2818 = vcombine.high %v2810, %v2810
        %v2819 = vcombine.high %v2817, %v2817
        %v2820 = vcombine.high %v2596, %v2596
        %v2822 = vunpack.c.l.s4 1983009808
        %v2823 = vunpack.c.0.s8 %v2822
        %v2824 = vlaneseq
        %v2825 = vshrl.u32 %v2824, 7
        %v2826 = vsub.s32 %v2823, %v2825
        %v2827 = vrot.slane %v2596, %v2826
        %v2829 = vunpack.c.l.s4 1983009808
        %v2830 = vunpack.c.0.s8 %v2829
        %v2831 = vlaneseq
        %v2832 = vshrl.u32 %v2831, 7
        %v2833 = vsub.s32 %v2830, %v2832
        %v2834 = vrot.slane %v2820, %v2833
        %v2835 = vcombine.high %v2827, %v2827
        %v2836 = vcombine.high %v2834, %v2834
        %v2837 = vcombine.high %v2597, %v2597
        %v2839 = vunpack.c.l.s4 1983009808
        %v2840 = vunpack.c.0.s8 %v2839
        %v2841 = vlaneseq
        %v2842 = vshrl.u32 %v2841, 7
        %v2843 = vsub.s32 %v2840, %v2842
        %v2844 = vrot.slane %v2597, %v2843
        %v2846 = vunpack.c.l.s4 1983009808
        %v2847 = vunpack.c.0.s8 %v2846
        %v2848 = vlaneseq
        %v2849 = vshrl.u32 %v2848, 7
        %v2850 = vsub.s32 %v2847, %v2849
        %v2851 = vrot.slane %v2837, %v2850
        %v2852 = vcombine.high %v2844, %v2844
        %v2853 = vcombine.high %v2851, %v2851
        %v2854 = vcombine.high %v2598, %v2598
        %v2856 = vunpack.c.l.s4 1983009808
        %v2857 = vunpack.c.0.s8 %v2856
        %v2858 = vlaneseq
        %v2859 = vshrl.u32 %v2858, 7
        %v2860 = vsub.s32 %v2857, %v2859
        %v2861 = vrot.slane %v2598, %v2860
        %v2863 = vunpack.c.l.s4 1983009808
        %v2864 = vunpack.c.0.s8 %v2863
        %v2865 = vlaneseq
        %v2866 = vshrl.u32 %v2865, 7
        %v2867 = vsub.s32 %v2864, %v2866
        %v2868 = vrot.slane %v2854, %v2867
        %v2869 = vcombine.high %v2861, %v2861
        %v2870 = vcombine.high %v2868, %v2868
        %v2871 = vcombine.high %v2599, %v2599
        %v2873 = vunpack.c.l.s4 1983009808
        %v2874 = vunpack.c.0.s8 %v2873
        %v2875 = vlaneseq
        %v2876 = vshrl.u32 %v2875, 7
        %v2877 = vsub.s32 %v2874, %v2876
        %v2878 = vrot.slane %v2599, %v2877
        %v2880 = vunpack.c.l.s4 1983009808
        %v2881 = vunpack.c.0.s8 %v2880
        %v2882 = vlaneseq
        %v2883 = vshrl.u32 %v2882, 7
        %v2884 = vsub.s32 %v2881, %v2883
        %v2885 = vrot.slane %v2871, %v2884
        %v2886 = vcombine.high %v2878, %v2878
        %v2887 = vcombine.high %v2885, %v2885
        %v2952 = vlaneseq
        %v2953 = vshrl.u32 %v2952, 7
        %v2954 = vsub.s32 1, %v2953
        %v2955 = vrot.slane %v2623, %v2954
        %v2956 = vlaneseq
        %v2957 = vshrl.u32 %v2956, 7
        %v2958 = vsub.s32 1, %v2957
        %v2959 = vrot.slane %v2631, %v2958
        %v2960 = vlaneseq
        %v2961 = vshrl.u32 %v2960, 7
        %v2962 = vsub.s32 1, %v2961
        %v2963 = vrot.slane %v2630, %v2962
        %v2964 = vlaneseq
        %v2965 = vshrl.u32 %v2964, 7
        %v2966 = vsub.s32 1, %v2965
        %v2967 = vrot.slane %v2632, %v2966
        %v2968 = vlaneseq
        %v2969 = vshrl.u32 %v2968, 7
        %v2970 = vsub.s32 1, %v2969
        %v2971 = vrot.slane %v2640, %v2970
        %v2972 = vlaneseq
        %v2973 = vshrl.u32 %v2972, 7
        %v2974 = vsub.s32 1, %v2973
        %v2975 = vrot.slane %v2648, %v2974
        %v2976 = vlaneseq
        %v2977 = vshrl.u32 %v2976, 7
        %v2978 = vsub.s32 1, %v2977
        %v2979 = vrot.slane %v2647, %v2978
        %v2980 = vlaneseq
        %v2981 = vshrl.u32 %v2980, 7
        %v2982 = vsub.s32 1, %v2981
        %v2983 = vrot.slane %v2657, %v2982
        %v2984 = vlaneseq
        %v2985 = vshrl.u32 %v2984, 7
        %v2986 = vsub.s32 1, %v2985
        %v2987 = vrot.slane %v2665, %v2986
        %v2988 = vlaneseq
        %v2989 = vshrl.u32 %v2988, 7
        %v2990 = vsub.s32 1, %v2989
        %v2991 = vrot.slane %v2664, %v2990
        %v2992 = vlaneseq
        %v2993 = vshrl.u32 %v2992, 7
        %v2994 = vsub.s32 1, %v2993
        %v2995 = vrot.slane %v2666, %v2994
        %v2996 = vlaneseq
        %v2997 = vshrl.u32 %v2996, 7
        %v2998 = vsub.s32 1, %v2997
        %v2999 = vrot.slane %v2674, %v2998
        %v3000 = vlaneseq
        %v3001 = vshrl.u32 %v3000, 7
        %v3002 = vsub.s32 1, %v3001
        %v3003 = vrot.slane %v2682, %v3002
        %v3004 = vlaneseq
        %v3005 = vshrl.u32 %v3004, 7
        %v3006 = vsub.s32 1, %v3005
        %v3007 = vrot.slane %v2681, %v3006
        %v3008 = vlaneseq
        %v3009 = vshrl.u32 %v3008, 7
        %v3010 = vsub.s32 1, %v3009
        %v3011 = vrot.slane %v2691, %v3010
        %v3012 = vlaneseq
        %v3013 = vshrl.u32 %v3012, 7
        %v3014 = vsub.s32 1, %v3013
        %v3015 = vrot.slane %v2699, %v3014
        %v3016 = vlaneseq
        %v3017 = vshrl.u32 %v3016, 7
        %v3018 = vsub.s32 1, %v3017
        %v3019 = vrot.slane %v2698, %v3018
        %v3020 = vlaneseq
        %v3021 = vshrl.u32 %v3020, 7
        %v3022 = vsub.s32 1, %v3021
        %v3023 = vrot.slane %v2700, %v3022
        %v3024 = vlaneseq
        %v3025 = vshrl.u32 %v3024, 7
        %v3026 = vsub.s32 1, %v3025
        %v3027 = vrot.slane %v2708, %v3026
        %v3028 = vlaneseq
        %v3029 = vshrl.u32 %v3028, 7
        %v3030 = vsub.s32 1, %v3029
        %v3031 = vrot.slane %v2716, %v3030
        %v3032 = vlaneseq
        %v3033 = vshrl.u32 %v3032, 7
        %v3034 = vsub.s32 1, %v3033
        %v3035 = vrot.slane %v2715, %v3034
        %v3036 = vlaneseq
        %v3037 = vshrl.u32 %v3036, 7
        %v3038 = vsub.s32 1, %v3037
        %v3039 = vrot.slane %v2725, %v3038
        %v3040 = vlaneseq
        %v3041 = vshrl.u32 %v3040, 7
        %v3042 = vsub.s32 1, %v3041
        %v3043 = vrot.slane %v2733, %v3042
        %v3044 = vlaneseq
        %v3045 = vshrl.u32 %v3044, 7
        %v3046 = vsub.s32 1, %v3045
        %v3047 = vrot.slane %v2732, %v3046
        %v3048 = vlaneseq
        %v3049 = vshrl.u32 %v3048, 7
        %v3050 = vsub.s32 1, %v3049
        %v3051 = vrot.slane %v2734, %v3050
        %v3052 = vlaneseq
        %v3053 = vshrl.u32 %v3052, 7
        %v3054 = vsub.s32 1, %v3053
        %v3055 = vrot.slane %v2742, %v3054
        %v3056 = vlaneseq
        %v3057 = vshrl.u32 %v3056, 7
        %v3058 = vsub.s32 1, %v3057
        %v3059 = vrot.slane %v2750, %v3058
        %v3060 = vlaneseq
        %v3061 = vshrl.u32 %v3060, 7
        %v3062 = vsub.s32 1, %v3061
        %v3063 = vrot.slane %v2749, %v3062
        %v3064 = vlaneseq
        %v3065 = vshrl.u32 %v3064, 7
        %v3066 = vsub.s32 1, %v3065
        %v3067 = vrot.slane %v2759, %v3066
        %v3068 = vlaneseq
        %v3069 = vshrl.u32 %v3068, 7
        %v3070 = vsub.s32 1, %v3069
        %v3071 = vrot.slane %v2767, %v3070
        %v3072 = vlaneseq
        %v3073 = vshrl.u32 %v3072, 7
        %v3074 = vsub.s32 1, %v3073
        %v3075 = vrot.slane %v2766, %v3074
        %v3076 = vlaneseq
        %v3077 = vshrl.u32 %v3076, 7
        %v3078 = vsub.s32 1, %v3077
        %v3079 = vrot.slane %v2768, %v3078
        %v3080 = vlaneseq
        %v3081 = vshrl.u32 %v3080, 7
        %v3082 = vsub.s32 1, %v3081
        %v3083 = vrot.slane %v2776, %v3082
        %v3084 = vlaneseq
        %v3085 = vshrl.u32 %v3084, 7
        %v3086 = vsub.s32 1, %v3085
        %v3087 = vrot.slane %v2784, %v3086
        %v3088 = vlaneseq
        %v3089 = vshrl.u32 %v3088, 7
        %v3090 = vsub.s32 1, %v3089
        %v3091 = vrot.slane %v2783, %v3090
        %v3092 = vlaneseq
        %v3093 = vshrl.u32 %v3092, 7
        %v3094 = vsub.s32 1, %v3093
        %v3095 = vrot.slane %v2793, %v3094
        %v3096 = vlaneseq
        %v3097 = vshrl.u32 %v3096, 7
        %v3098 = vsub.s32 1, %v3097
        %v3099 = vrot.slane %v2801, %v3098
        %v3100 = vlaneseq
        %v3101 = vshrl.u32 %v3100, 7
        %v3102 = vsub.s32 1, %v3101
        %v3103 = vrot.slane %v2800, %v3102
        %v3104 = vlaneseq
        %v3105 = vshrl.u32 %v3104, 7
        %v3106 = vsub.s32 1, %v3105
        %v3107 = vrot.slane %v2802, %v3106
        %v3108 = vlaneseq
        %v3109 = vshrl.u32 %v3108, 7
        %v3110 = vsub.s32 1, %v3109
        %v3111 = vrot.slane %v2810, %v3110
        %v3112 = vlaneseq
        %v3113 = vshrl.u32 %v3112, 7
        %v3114 = vsub.s32 1, %v3113
        %v3115 = vrot.slane %v2818, %v3114
        %v3116 = vlaneseq
        %v3117 = vshrl.u32 %v3116, 7
        %v3118 = vsub.s32 1, %v3117
        %v3119 = vrot.slane %v2817, %v3118
        %v3120 = vlaneseq
        %v3121 = vshrl.u32 %v3120, 7
        %v3122 = vsub.s32 1, %v3121
        %v3123 = vrot.slane %v2827, %v3122
        %v3124 = vlaneseq
        %v3125 = vshrl.u32 %v3124, 7
        %v3126 = vsub.s32 1, %v3125
        %v3127 = vrot.slane %v2835, %v3126
        %v3128 = vlaneseq
        %v3129 = vshrl.u32 %v3128, 7
        %v3130 = vsub.s32 1, %v3129
        %v3131 = vrot.slane %v2834, %v3130
        %v3132 = vlaneseq
        %v3133 = vshrl.u32 %v3132, 7
        %v3134 = vsub.s32 1, %v3133
        %v3135 = vrot.slane %v2836, %v3134
        %v3136 = vlaneseq
        %v3137 = vshrl.u32 %v3136, 7
        %v3138 = vsub.s32 1, %v3137
        %v3139 = vrot.slane %v2844, %v3138
        %v3140 = vlaneseq
        %v3141 = vshrl.u32 %v3140, 7
        %v3142 = vsub.s32 1, %v3141
        %v3143 = vrot.slane %v2852, %v3142
        %v3144 = vlaneseq
        %v3145 = vshrl.u32 %v3144, 7
        %v3146 = vsub.s32 1, %v3145
        %v3147 = vrot.slane %v2851, %v3146
        %v3148 = vlaneseq
        %v3149 = vshrl.u32 %v3148, 7
        %v3150 = vsub.s32 1, %v3149
        %v3151 = vrot.slane %v2861, %v3150
        %v3152 = vlaneseq
        %v3153 = vshrl.u32 %v3152, 7
        %v3154 = vsub.s32 1, %v3153
        %v3155 = vrot.slane %v2869, %v3154
        %v3156 = vlaneseq
        %v3157 = vshrl.u32 %v3156, 7
        %v3158 = vsub.s32 1, %v3157
        %v3159 = vrot.slane %v2868, %v3158
        %v3160 = vlaneseq
        %v3161 = vshrl.u32 %v3160, 7
        %v3162 = vsub.s32 1, %v3161
        %v3163 = vrot.slane %v2870, %v3162
        %v3164 = vlaneseq
        %v3165 = vshrl.u32 %v3164, 7
        %v3166 = vsub.s32 1, %v3165
        %v3167 = vrot.slane %v2878, %v3166
        %v3168 = vlaneseq
        %v3169 = vshrl.u32 %v3168, 7
        %v3170 = vsub.s32 1, %v3169
        %v3171 = vrot.slane %v2886, %v3170
        %v3172 = vlaneseq
        %v3173 = vshrl.u32 %v3172, 7
        %v3174 = vsub.s32 1, %v3173
        %v3175 = vrot.slane %v2885, %v3174
        %vm3176 = vcmask 1042434
        %v3177 = vsel %vm3176, %v2959, %v2955
        %vm3178 = vcmask 1043459
        %v3179 = vsel %vm3178, %v2963, %v3177
        %vm3180 = vcmask 1044484
        %v3181 = vsel %vm3180, %v2967, %v3179
        %vm3182 = vcmask 1045509
        %v3183 = vsel %vm3182, %v2971, %v3181
        %vm3184 = vcmask 1046534
        %v3185 = vsel %vm3184, %v2975, %v3183
        %vm3186 = vcmask 1047559
        %v3187 = vsel %vm3186, %v2979, %v3185
        %v3188 = vsel %vm3176, %v2987, %v2983
        %v3189 = vsel %vm3178, %v2991, %v3188
        %v3190 = vsel %vm3180, %v2995, %v3189
        %v3191 = vsel %vm3182, %v2999, %v3190
        %v3192 = vsel %vm3184, %v3003, %v3191
        %v3193 = vsel %vm3186, %v3007, %v3192
        %v3194 = vsel %vm3176, %v3015, %v3011
        %v3195 = vsel %vm3178, %v3019, %v3194
        %v3196 = vsel %vm3180, %v3023, %v3195
        %v3197 = vsel %vm3182, %v3027, %v3196
        %v3198 = vsel %vm3184, %v3031, %v3197
        %v3199 = vsel %vm3186, %v3035, %v3198
        %v3200 = vsel %vm3176, %v3043, %v3039
        %v3201 = vsel %vm3178, %v3047, %v3200
        %v3202 = vsel %vm3180, %v3051, %v3201
        %v3203 = vsel %vm3182, %v3055, %v3202
        %v3204 = vsel %vm3184, %v3059, %v3203
        %v3205 = vsel %vm3186, %v3063, %v3204
        %v3206 = vsel %vm3176, %v3071, %v3067
        %v3207 = vsel %vm3178, %v3075, %v3206
        %v3208 = vsel %vm3180, %v3079, %v3207
        %v3209 = vsel %vm3182, %v3083, %v3208
        %v3210 = vsel %vm3184, %v3087, %v3209
        %v3211 = vsel %vm3186, %v3091, %v3210
        %v3212 = vsel %vm3176, %v3099, %v3095
        %v3213 = vsel %vm3178, %v3103, %v3212
        %v3214 = vsel %vm3180, %v3107, %v3213
        %v3215 = vsel %vm3182, %v3111, %v3214
        %v3216 = vsel %vm3184, %v3115, %v3215
        %v3217 = vsel %vm3186, %v3119, %v3216
        %v3218 = vsel %vm3176, %v3127, %v3123
        %v3219 = vsel %vm3178, %v3131, %v3218
        %v3220 = vsel %vm3180, %v3135, %v3219
        %v3221 = vsel %vm3182, %v3139, %v3220
        %v3222 = vsel %vm3184, %v3143, %v3221
        %v3223 = vsel %vm3186, %v3147, %v3222
        %v3224 = vsel %vm3176, %v3155, %v3151
        %v3225 = vsel %vm3178, %v3159, %v3224
        %v3226 = vsel %vm3180, %v3163, %v3225
        %v3227 = vsel %vm3182, %v3167, %v3226
        %v3228 = vsel %vm3184, %v3171, %v3227
        %v3229 = vsel %vm3186, %v3175, %v3228
        %vm3238 = vcmask 1040384
        %v3239 = vsel %vm3238, 0.0, %v3187
        %v3240 = vsel %vm3238, 0.0, %v3193
        %v3241 = vsel %vm3238, 0.0, %v3199
        %v3242 = vsel %vm3238, 0.0, %v3205
        %v3243 = vsel %vm3238, 0.0, %v3211
        %v3244 = vsel %vm3238, 0.0, %v3217
        %v3245 = vsel %vm3238, 0.0, %v3223
        %v3246 = vsel %vm3238, 0.0, %v3229
        %v3247 = vrot.slane %v2623, 7
        %v3248 = vrot.slane %v3247, 2
        %v3249 = vrot.slane %v2631, 7
        %v3250 = vrot.slane %v3249, 2
        %v3251 = vrot.slane %v2630, 7
        %v3252 = vrot.slane %v3251, 2
        %v3253 = vrot.slane %v2632, 7
        %v3254 = vrot.slane %v3253, 2
        %v3255 = vrot.slane %v2640, 7
        %v3256 = vrot.slane %v3255, 2
        %v3257 = vrot.slane %v2648, 7
        %v3258 = vrot.slane %v3257, 2
        %v3259 = vrot.slane %v2647, 7
        %v3260 = vrot.slane %v3259, 2
        %v3261 = vrot.slane %v2649, 7
        %v3262 = vrot.slane %v3261, 2
        %v3263 = vrot.slane %v2657, 7
        %v3264 = vrot.slane %v3263, 2
        %v3265 = vrot.slane %v2665, 7
        %v3266 = vrot.slane %v3265, 2
        %v3267 = vrot.slane %v2664, 7
        %v3268 = vrot.slane %v3267, 2
        %v3269 = vrot.slane %v2666, 7
        %v3270 = vrot.slane %v3269, 2
        %v3271 = vrot.slane %v2674, 7
        %v3272 = vrot.slane %v3271, 2
        %v3273 = vrot.slane %v2682, 7
        %v3274 = vrot.slane %v3273, 2
        %v3275 = vrot.slane %v2681, 7
        %v3276 = vrot.slane %v3275, 2
        %v3277 = vrot.slane %v2683, 7
        %v3278 = vrot.slane %v3277, 2
        %v3279 = vrot.slane %v2691, 7
        %v3280 = vrot.slane %v3279, 2
        %v3281 = vrot.slane %v2699, 7
        %v3282 = vrot.slane %v3281, 2
        %v3283 = vrot.slane %v2698, 7
        %v3284 = vrot.slane %v3283, 2
        %v3285 = vrot.slane %v2700, 7
        %v3286 = vrot.slane %v3285, 2
        %v3287 = vrot.slane %v2708, 7
        %v3288 = vrot.slane %v3287, 2
        %v3289 = vrot.slane %v2716, 7
        %v3290 = vrot.slane %v3289, 2
        %v3291 = vrot.slane %v2715, 7
        %v3292 = vrot.slane %v3291, 2
        %v3293 = vrot.slane %v2717, 7
        %v3294 = vrot.slane %v3293, 2
        %v3295 = vrot.slane %v2725, 7
        %v3296 = vrot.slane %v3295, 2
        %v3297 = vrot.slane %v2733, 7
        %v3298 = vrot.slane %v3297, 2
        %v3299 = vrot.slane %v2732, 7
        %v3300 = vrot.slane %v3299, 2
        %v3301 = vrot.slane %v2734, 7
        %v3302 = vrot.slane %v3301, 2
        %v3303 = vrot.slane %v2742, 7
        %v3304 = vrot.slane %v3303, 2
        %v3305 = vrot.slane %v2750, 7
        %v3306 = vrot.slane %v3305, 2
        %v3307 = vrot.slane %v2749, 7
        %v3308 = vrot.slane %v3307, 2
        %v3309 = vrot.slane %v2751, 7
        %v3310 = vrot.slane %v3309, 2
        %v3311 = vrot.slane %v2759, 7
        %v3312 = vrot.slane %v3311, 2
        %v3313 = vrot.slane %v2767, 7
        %v3314 = vrot.slane %v3313, 2
        %v3315 = vrot.slane %v2766, 7
        %v3316 = vrot.slane %v3315, 2
        %v3317 = vrot.slane %v2768, 7
        %v3318 = vrot.slane %v3317, 2
        %v3319 = vrot.slane %v2776, 7
        %v3320 = vrot.slane %v3319, 2
        %v3321 = vrot.slane %v2784, 7
        %v3322 = vrot.slane %v3321, 2
        %v3323 = vrot.slane %v2783, 7
        %v3324 = vrot.slane %v3323, 2
        %v3325 = vrot.slane %v2785, 7
        %v3326 = vrot.slane %v3325, 2
        %v3327 = vrot.slane %v2793, 7
        %v3328 = vrot.slane %v3327, 2
        %v3329 = vrot.slane %v2801, 7
        %v3330 = vrot.slane %v3329, 2
        %v3331 = vrot.slane %v2800, 7
        %v3332 = vrot.slane %v3331, 2
        %v3333 = vrot.slane %v2802, 7
        %v3334 = vrot.slane %v3333, 2
        %v3335 = vrot.slane %v2810, 7
        %v3336 = vrot.slane %v3335, 2
        %v3337 = vrot.slane %v2818, 7
        %v3338 = vrot.slane %v3337, 2
        %v3339 = vrot.slane %v2817, 7
        %v3340 = vrot.slane %v3339, 2
        %v3341 = vrot.slane %v2819, 7
        %v3342 = vrot.slane %v3341, 2
        %v3343 = vrot.slane %v2827, 7
        %v3344 = vrot.slane %v3343, 2
        %v3345 = vrot.slane %v2835, 7
        %v3346 = vrot.slane %v3345, 2
        %v3347 = vrot.slane %v2834, 7
        %v3348 = vrot.slane %v3347, 2
        %v3349 = vrot.slane %v2836, 7
        %v3350 = vrot.slane %v3349, 2
        %v3351 = vrot.slane %v2844, 7
        %v3352 = vrot.slane %v3351, 2
        %v3353 = vrot.slane %v2852, 7
        %v3354 = vrot.slane %v3353, 2
        %v3355 = vrot.slane %v2851, 7
        %v3356 = vrot.slane %v3355, 2
        %v3357 = vrot.slane %v2853, 7
        %v3358 = vrot.slane %v3357, 2
        %v3359 = vrot.slane %v2861, 7
        %v3360 = vrot.slane %v3359, 2
        %v3361 = vrot.slane %v2869, 7
        %v3362 = vrot.slane %v3361, 2
        %v3363 = vrot.slane %v2868, 7
        %v3364 = vrot.slane %v3363, 2
        %v3365 = vrot.slane %v2870, 7
        %v3366 = vrot.slane %v3365, 2
        %v3367 = vrot.slane %v2878, 7
        %v3368 = vrot.slane %v3367, 2
        %v3369 = vrot.slane %v2886, 7
        %v3370 = vrot.slane %v3369, 2
        %v3371 = vrot.slane %v2885, 7
        %v3372 = vrot.slane %v3371, 2
        %v3373 = vrot.slane %v2887, 7
        %v3374 = vrot.slane %v3373, 2
        %v3439 = vadd.f32 %v2623, %v3248
        %v3440 = vadd.f32 %v2631, %v3250
        %v3441 = vadd.f32 %v2630, %v3252
        %v3442 = vadd.f32 %v2632, %v3254
        %v3443 = vadd.f32 %v2640, %v3256
        %v3444 = vadd.f32 %v2648, %v3258
        %v3445 = vadd.f32 %v2647, %v3260
        %v3446 = vadd.f32 %v2649, %v3262
        %v3447 = vadd.f32 %v2657, %v3264
        %v3448 = vadd.f32 %v2665, %v3266
        %v3449 = vadd.f32 %v2664, %v3268
        %v3450 = vadd.f32 %v2666, %v3270
        %v3451 = vadd.f32 %v2674, %v3272
        %v3452 = vadd.f32 %v2682, %v3274
        %v3453 = vadd.f32 %v2681, %v3276
        %v3454 = vadd.f32 %v2683, %v3278
        %v3455 = vadd.f32 %v2691, %v3280
        %v3456 = vadd.f32 %v2699, %v3282
        %v3457 = vadd.f32 %v2698, %v3284
        %v3458 = vadd.f32 %v2700, %v3286
        %v3459 = vadd.f32 %v2708, %v3288
        %v3460 = vadd.f32 %v2716, %v3290
        %v3461 = vadd.f32 %v2715, %v3292
        %v3462 = vadd.f32 %v2717, %v3294
        %v3463 = vadd.f32 %v2725, %v3296
        %v3464 = vadd.f32 %v2733, %v3298
        %v3465 = vadd.f32 %v2732, %v3300
        %v3466 = vadd.f32 %v2734, %v3302
        %v3467 = vadd.f32 %v2742, %v3304
        %v3468 = vadd.f32 %v2750, %v3306
        %v3469 = vadd.f32 %v2749, %v3308
        %v3470 = vadd.f32 %v2751, %v3310
        %v3471 = vadd.f32 %v2759, %v3312
        %v3472 = vadd.f32 %v2767, %v3314
        %v3473 = vadd.f32 %v2766, %v3316
        %v3474 = vadd.f32 %v2768, %v3318
        %v3475 = vadd.f32 %v2776, %v3320
        %v3476 = vadd.f32 %v2784, %v3322
        %v3477 = vadd.f32 %v2783, %v3324
        %v3478 = vadd.f32 %v2785, %v3326
        %v3479 = vadd.f32 %v2793, %v3328
        %v3480 = vadd.f32 %v2801, %v3330
        %v3481 = vadd.f32 %v2800, %v3332
        %v3482 = vadd.f32 %v2802, %v3334
        %v3483 = vadd.f32 %v2810, %v3336
        %v3484 = vadd.f32 %v2818, %v3338
        %v3485 = vadd.f32 %v2817, %v3340
        %v3486 = vadd.f32 %v2819, %v3342
        %v3487 = vadd.f32 %v2827, %v3344
        %v3488 = vadd.f32 %v2835, %v3346
        %v3489 = vadd.f32 %v2834, %v3348
        %v3490 = vadd.f32 %v2836, %v3350
        %v3491 = vadd.f32 %v2844, %v3352
        %v3492 = vadd.f32 %v2852, %v3354
        %v3493 = vadd.f32 %v2851, %v3356
        %v3494 = vadd.f32 %v2853, %v3358
        %v3495 = vadd.f32 %v2861, %v3360
        %v3496 = vadd.f32 %v2869, %v3362
        %v3497 = vadd.f32 %v2868, %v3364
        %v3498 = vadd.f32 %v2870, %v3366
        %v3499 = vadd.f32 %v2878, %v3368
        %v3500 = vadd.f32 %v2886, %v3370
        %v3501 = vadd.f32 %v2885, %v3372
        %v3502 = vadd.f32 %v2887, %v3374
        %v3511 = vcombine.high %v3239, %v3239
        %v3513 = vunpack.c.l.s4 1983009808
        %v3514 = vunpack.c.0.s8 %v3513
        %v3515 = vlaneseq
        %v3516 = vshrl.u32 %v3515, 7
        %v3517 = vsub.s32 %v3514, %v3516
        %v3518 = vrot.slane %v3239, %v3517
        %v3520 = vunpack.c.l.s4 1983009808
        %v3521 = vunpack.c.0.s8 %v3520
        %v3522 = vlaneseq
        %v3523 = vshrl.u32 %v3522, 7
        %v3524 = vsub.s32 %v3521, %v3523
        %v3525 = vrot.slane %v3511, %v3524
        %v3526 = vcombine.high %v3518, %v3518
        %v3527 = vcombine.high %v3525, %v3525
        %v3528 = vcombine.high %v3240, %v3240
        %v3530 = vunpack.c.l.s4 1983009808
        %v3531 = vunpack.c.0.s8 %v3530
        %v3532 = vlaneseq
        %v3533 = vshrl.u32 %v3532, 7
        %v3534 = vsub.s32 %v3531, %v3533
        %v3535 = vrot.slane %v3240, %v3534
        %v3537 = vunpack.c.l.s4 1983009808
        %v3538 = vunpack.c.0.s8 %v3537
        %v3539 = vlaneseq
        %v3540 = vshrl.u32 %v3539, 7
        %v3541 = vsub.s32 %v3538, %v3540
        %v3542 = vrot.slane %v3528, %v3541
        %v3543 = vcombine.high %v3535, %v3535
        %v3544 = vcombine.high %v3542, %v3542
        %v3545 = vcombine.high %v3241, %v3241
        %v3547 = vunpack.c.l.s4 1983009808
        %v3548 = vunpack.c.0.s8 %v3547
        %v3549 = vlaneseq
        %v3550 = vshrl.u32 %v3549, 7
        %v3551 = vsub.s32 %v3548, %v3550
        %v3552 = vrot.slane %v3241, %v3551
        %v3554 = vunpack.c.l.s4 1983009808
        %v3555 = vunpack.c.0.s8 %v3554
        %v3556 = vlaneseq
        %v3557 = vshrl.u32 %v3556, 7
        %v3558 = vsub.s32 %v3555, %v3557
        %v3559 = vrot.slane %v3545, %v3558
        %v3560 = vcombine.high %v3552, %v3552
        %v3561 = vcombine.high %v3559, %v3559
        %v3562 = vcombine.high %v3242, %v3242
        %v3564 = vunpack.c.l.s4 1983009808
        %v3565 = vunpack.c.0.s8 %v3564
        %v3566 = vlaneseq
        %v3567 = vshrl.u32 %v3566, 7
        %v3568 = vsub.s32 %v3565, %v3567
        %v3569 = vrot.slane %v3242, %v3568
        %v3571 = vunpack.c.l.s4 1983009808
        %v3572 = vunpack.c.0.s8 %v3571
        %v3573 = vlaneseq
        %v3574 = vshrl.u32 %v3573, 7
        %v3575 = vsub.s32 %v3572, %v3574
        %v3576 = vrot.slane %v3562, %v3575
        %v3577 = vcombine.high %v3569, %v3569
        %v3578 = vcombine.high %v3576, %v3576
        %v3579 = vcombine.high %v3243, %v3243
        %v3581 = vunpack.c.l.s4 1983009808
        %v3582 = vunpack.c.0.s8 %v3581
        %v3583 = vlaneseq
        %v3584 = vshrl.u32 %v3583, 7
        %v3585 = vsub.s32 %v3582, %v3584
        %v3586 = vrot.slane %v3243, %v3585
        %v3588 = vunpack.c.l.s4 1983009808
        %v3589 = vunpack.c.0.s8 %v3588
        %v3590 = vlaneseq
        %v3591 = vshrl.u32 %v3590, 7
        %v3592 = vsub.s32 %v3589, %v3591
        %v3593 = vrot.slane %v3579, %v3592
        %v3594 = vcombine.high %v3586, %v3586
        %v3595 = vcombine.high %v3593, %v3593
        %v3596 = vcombine.high %v3244, %v3244
        %v3598 = vunpack.c.l.s4 1983009808
        %v3599 = vunpack.c.0.s8 %v3598
        %v3600 = vlaneseq
        %v3601 = vshrl.u32 %v3600, 7
        %v3602 = vsub.s32 %v3599, %v3601
        %v3603 = vrot.slane %v3244, %v3602
        %v3605 = vunpack.c.l.s4 1983009808
        %v3606 = vunpack.c.0.s8 %v3605
        %v3607 = vlaneseq
        %v3608 = vshrl.u32 %v3607, 7
        %v3609 = vsub.s32 %v3606, %v3608
        %v3610 = vrot.slane %v3596, %v3609
        %v3611 = vcombine.high %v3603, %v3603
        %v3612 = vcombine.high %v3610, %v3610
        %v3613 = vcombine.high %v3245, %v3245
        %v3615 = vunpack.c.l.s4 1983009808
        %v3616 = vunpack.c.0.s8 %v3615
        %v3617 = vlaneseq
        %v3618 = vshrl.u32 %v3617, 7
        %v3619 = vsub.s32 %v3616, %v3618
        %v3620 = vrot.slane %v3245, %v3619
        %v3622 = vunpack.c.l.s4 1983009808
        %v3623 = vunpack.c.0.s8 %v3622
        %v3624 = vlaneseq
        %v3625 = vshrl.u32 %v3624, 7
        %v3626 = vsub.s32 %v3623, %v3625
        %v3627 = vrot.slane %v3613, %v3626
        %v3628 = vcombine.high %v3620, %v3620
        %v3629 = vcombine.high %v3627, %v3627
        %v3630 = vcombine.high %v3246, %v3246
        %v3632 = vunpack.c.l.s4 1983009808
        %v3633 = vunpack.c.0.s8 %v3632
        %v3634 = vlaneseq
        %v3635 = vshrl.u32 %v3634, 7
        %v3636 = vsub.s32 %v3633, %v3635
        %v3637 = vrot.slane %v3246, %v3636
        %v3639 = vunpack.c.l.s4 1983009808
        %v3640 = vunpack.c.0.s8 %v3639
        %v3641 = vlaneseq
        %v3642 = vshrl.u32 %v3641, 7
        %v3643 = vsub.s32 %v3640, %v3642
        %v3644 = vrot.slane %v3630, %v3643
        %v3645 = vcombine.high %v3637, %v3637
        %v3646 = vcombine.high %v3644, %v3644
        %v3647 = vrot.slane %v3518, 1
        %v3648 = vrot.slane %v3526, 1
        %v3649 = vrot.slane %v3525, 1
        %v3650 = vrot.slane %v3527, 1
        %v3651 = vrot.slane %v3535, 1
        %v3652 = vrot.slane %v3543, 1
        %v3653 = vrot.slane %v3542, 1
        %v3654 = vrot.slane %v3544, 1
        %v3655 = vrot.slane %v3552, 1
        %v3656 = vrot.slane %v3560, 1
        %v3657 = vrot.slane %v3559, 1
        %v3658 = vrot.slane %v3561, 1
        %v3659 = vrot.slane %v3569, 1
        %v3660 = vrot.slane %v3577, 1
        %v3661 = vrot.slane %v3576, 1
        %v3662 = vrot.slane %v3578, 1
        %v3663 = vrot.slane %v3586, 1
        %v3664 = vrot.slane %v3594, 1
        %v3665 = vrot.slane %v3593, 1
        %v3666 = vrot.slane %v3595, 1
        %v3667 = vrot.slane %v3603, 1
        %v3668 = vrot.slane %v3611, 1
        %v3669 = vrot.slane %v3610, 1
        %v3670 = vrot.slane %v3612, 1
        %v3671 = vrot.slane %v3620, 1
        %v3672 = vrot.slane %v3628, 1
        %v3673 = vrot.slane %v3627, 1
        %v3674 = vrot.slane %v3629, 1
        %v3675 = vrot.slane %v3637, 1
        %v3676 = vrot.slane %v3645, 1
        %v3677 = vrot.slane %v3644, 1
        %v3678 = vrot.slane %v3646, 1
        %v3743 = vadd.f32 %v3439, %v3518
        %v3744 = vadd.f32 %v3440, %v3647
        %v3745 = vadd.f32 %v3441, %v3526
        %v3746 = vadd.f32 %v3442, %v3648
        %v3747 = vadd.f32 %v3443, %v3525
        %v3748 = vadd.f32 %v3444, %v3649
        %v3749 = vadd.f32 %v3445, %v3527
        %v3750 = vadd.f32 %v3446, %v3650
        %v3751 = vadd.f32 %v3447, %v3535
        %v3752 = vadd.f32 %v3448, %v3651
        %v3753 = vadd.f32 %v3449, %v3543
        %v3754 = vadd.f32 %v3450, %v3652
        %v3755 = vadd.f32 %v3451, %v3542
        %v3756 = vadd.f32 %v3452, %v3653
        %v3757 = vadd.f32 %v3453, %v3544
        %v3758 = vadd.f32 %v3454, %v3654
        %v3759 = vadd.f32 %v3455, %v3552
        %v3760 = vadd.f32 %v3456, %v3655
        %v3761 = vadd.f32 %v3457, %v3560
        %v3762 = vadd.f32 %v3458, %v3656
        %v3763 = vadd.f32 %v3459, %v3559
        %v3764 = vadd.f32 %v3460, %v3657
        %v3765 = vadd.f32 %v3461, %v3561
        %v3766 = vadd.f32 %v3462, %v3658
        %v3767 = vadd.f32 %v3463, %v3569
        %v3768 = vadd.f32 %v3464, %v3659
        %v3769 = vadd.f32 %v3465, %v3577
        %v3770 = vadd.f32 %v3466, %v3660
        %v3771 = vadd.f32 %v3467, %v3576
        %v3772 = vadd.f32 %v3468, %v3661
        %v3773 = vadd.f32 %v3469, %v3578
        %v3774 = vadd.f32 %v3470, %v3662
        %v3775 = vadd.f32 %v3471, %v3586
        %v3776 = vadd.f32 %v3472, %v3663
        %v3777 = vadd.f32 %v3473, %v3594
        %v3778 = vadd.f32 %v3474, %v3664
        %v3779 = vadd.f32 %v3475, %v3593
        %v3780 = vadd.f32 %v3476, %v3665
        %v3781 = vadd.f32 %v3477, %v3595
        %v3782 = vadd.f32 %v3478, %v3666
        %v3783 = vadd.f32 %v3479, %v3603
        %v3784 = vadd.f32 %v3480, %v3667
        %v3785 = vadd.f32 %v3481, %v3611
        %v3786 = vadd.f32 %v3482, %v3668
        %v3787 = vadd.f32 %v3483, %v3610
        %v3788 = vadd.f32 %v3484, %v3669
        %v3789 = vadd.f32 %v3485, %v3612
        %v3790 = vadd.f32 %v3486, %v3670
        %v3791 = vadd.f32 %v3487, %v3620
        %v3792 = vadd.f32 %v3488, %v3671
        %v3793 = vadd.f32 %v3489, %v3628
        %v3794 = vadd.f32 %v3490, %v3672
        %v3795 = vadd.f32 %v3491, %v3627
        %v3796 = vadd.f32 %v3492, %v3673
        %v3797 = vadd.f32 %v3493, %v3629
        %v3798 = vadd.f32 %v3494, %v3674
        %v3799 = vadd.f32 %v3495, %v3637
        %v3800 = vadd.f32 %v3496, %v3675
        %v3801 = vadd.f32 %v3497, %v3645
        %v3802 = vadd.f32 %v3498, %v3676
        %v3803 = vadd.f32 %v3499, %v3644
        %v3804 = vadd.f32 %v3500, %v3677
        %v3805 = vadd.f32 %v3501, %v3646
        %v3806 = vadd.f32 %v3502, %v3678
        %v3807 = vmul.f32 %v3743, 0.11111111
        %v3808 = vmul.f32 %v3744, 0.11111111
        %v3809 = vmul.f32 %v3745, 0.11111111
        %v3810 = vmul.f32 %v3746, 0.11111111
        %v3811 = vmul.f32 %v3747, 0.11111111
        %v3812 = vmul.f32 %v3748, 0.11111111
        %v3813 = vmul.f32 %v3749, 0.11111111
        %v3814 = vmul.f32 %v3750, 0.11111111
        %v3815 = vmul.f32 %v3751, 0.11111111
        %v3816 = vmul.f32 %v3752, 0.11111111
        %v3817 = vmul.f32 %v3753, 0.11111111
        %v3818 = vmul.f32 %v3754, 0.11111111
        %v3819 = vmul.f32 %v3755, 0.11111111
        %v3820 = vmul.f32 %v3756, 0.11111111
        %v3821 = vmul.f32 %v3757, 0.11111111
        %v3822 = vmul.f32 %v3758, 0.11111111
        %v3823 = vmul.f32 %v3759, 0.11111111
        %v3824 = vmul.f32 %v3760, 0.11111111
        %v3825 = vmul.f32 %v3761, 0.11111111
        %v3826 = vmul.f32 %v3762, 0.11111111
        %v3827 = vmul.f32 %v3763, 0.11111111
        %v3828 = vmul.f32 %v3764, 0.11111111
        %v3829 = vmul.f32 %v3765, 0.11111111
        %v3830 = vmul.f32 %v3766, 0.11111111
        %v3831 = vmul.f32 %v3767, 0.11111111
        %v3832 = vmul.f32 %v3768, 0.11111111
        %v3833 = vmul.f32 %v3769, 0.11111111
        %v3834 = vmul.f32 %v3770, 0.11111111
        %v3835 = vmul.f32 %v3771, 0.11111111
        %v3836 = vmul.f32 %v3772, 0.11111111
        %v3837 = vmul.f32 %v3773, 0.11111111
        %v3838 = vmul.f32 %v3774, 0.11111111
        %v3839 = vmul.f32 %v3775, 0.11111111
        %v3840 = vmul.f32 %v3776, 0.11111111
        %v3841 = vmul.f32 %v3777, 0.11111111
        %v3842 = vmul.f32 %v3778, 0.11111111
        %v3843 = vmul.f32 %v3779, 0.11111111
        %v3844 = vmul.f32 %v3780, 0.11111111
        %v3845 = vmul.f32 %v3781, 0.11111111
        %v3846 = vmul.f32 %v3782, 0.11111111
        %v3847 = vmul.f32 %v3783, 0.11111111
        %v3848 = vmul.f32 %v3784, 0.11111111
        %v3849 = vmul.f32 %v3785, 0.11111111
        %v3850 = vmul.f32 %v3786, 0.11111111
        %v3851 = vmul.f32 %v3787, 0.11111111
        %v3852 = vmul.f32 %v3788, 0.11111111
        %v3853 = vmul.f32 %v3789, 0.11111111
        %v3854 = vmul.f32 %v3790, 0.11111111
        %v3855 = vmul.f32 %v3791, 0.11111111
        %v3856 = vmul.f32 %v3792, 0.11111111
        %v3857 = vmul.f32 %v3793, 0.11111111
        %v3858 = vmul.f32 %v3794, 0.11111111
        %v3859 = vmul.f32 %v3795, 0.11111111
        %v3860 = vmul.f32 %v3796, 0.11111111
        %v3861 = vmul.f32 %v3797, 0.11111111
        %v3862 = vmul.f32 %v3798, 0.11111111
        %v3863 = vmul.f32 %v3799, 0.11111111
        %v3864 = vmul.f32 %v3800, 0.11111111
        %v3865 = vmul.f32 %v3801, 0.11111111
        %v3866 = vmul.f32 %v3802, 0.11111111
        %v3867 = vmul.f32 %v3803, 0.11111111
        %v3868 = vmul.f32 %v3804, 0.11111111
        %v3869 = vmul.f32 %v3805, 0.11111111
        %v3870 = vmul.f32 %v3806, 0.11111111
        %v3935 = vlaneseq
        %v3936 = vshrl.u32 %v3935, 7
        %v3937 = vsub.s32 0, %v3936
        %v3938 = vrot.slane %v3807, %v3937
        %v3939 = vlaneseq
        %v3940 = vshrl.u32 %v3939, 7
        %v3941 = vsub.s32 0, %v3940
        %v3942 = vrot.slane %v3808, %v3941
        %v3943 = vlaneseq
        %v3944 = vshrl.u32 %v3943, 7
        %v3945 = vsub.s32 0, %v3944
        %v3946 = vrot.slane %v3809, %v3945
        %v3947 = vlaneseq
        %v3948 = vshrl.u32 %v3947, 7
        %v3949 = vsub.s32 0, %v3948
        %v3950 = vrot.slane %v3810, %v3949
        %v3951 = vlaneseq
        %v3952 = vshrl.u32 %v3951, 7
        %v3953 = vsub.s32 0, %v3952
        %v3954 = vrot.slane %v3811, %v3953
        %v3955 = vlaneseq
        %v3956 = vshrl.u32 %v3955, 7
        %v3957 = vsub.s32 0, %v3956
        %v3958 = vrot.slane %v3812, %v3957
        %v3959 = vlaneseq
        %v3960 = vshrl.u32 %v3959, 7
        %v3961 = vsub.s32 0, %v3960
        %v3962 = vrot.slane %v3813, %v3961
        %v3963 = vlaneseq
        %v3964 = vshrl.u32 %v3963, 7
        %v3965 = vsub.s32 0, %v3964
        %v3966 = vrot.slane %v3814, %v3965
        %v3967 = vlaneseq
        %v3968 = vshrl.u32 %v3967, 7
        %v3969 = vsub.s32 0, %v3968
        %v3970 = vrot.slane %v3815, %v3969
        %v3971 = vlaneseq
        %v3972 = vshrl.u32 %v3971, 7
        %v3973 = vsub.s32 0, %v3972
        %v3974 = vrot.slane %v3816, %v3973
        %v3975 = vlaneseq
        %v3976 = vshrl.u32 %v3975, 7
        %v3977 = vsub.s32 0, %v3976
        %v3978 = vrot.slane %v3817, %v3977
        %v3979 = vlaneseq
        %v3980 = vshrl.u32 %v3979, 7
        %v3981 = vsub.s32 0, %v3980
        %v3982 = vrot.slane %v3818, %v3981
        %v3983 = vlaneseq
        %v3984 = vshrl.u32 %v3983, 7
        %v3985 = vsub.s32 0, %v3984
        %v3986 = vrot.slane %v3819, %v3985
        %v3987 = vlaneseq
        %v3988 = vshrl.u32 %v3987, 7
        %v3989 = vsub.s32 0, %v3988
        %v3990 = vrot.slane %v3820, %v3989
        %v3991 = vlaneseq
        %v3992 = vshrl.u32 %v3991, 7
        %v3993 = vsub.s32 0, %v3992
        %v3994 = vrot.slane %v3821, %v3993
        %v3995 = vlaneseq
        %v3996 = vshrl.u32 %v3995, 7
        %v3997 = vsub.s32 0, %v3996
        %v3998 = vrot.slane %v3822, %v3997
        %v3999 = vlaneseq
        %v4000 = vshrl.u32 %v3999, 7
        %v4001 = vsub.s32 0, %v4000
        %v4002 = vrot.slane %v3823, %v4001
        %v4003 = vlaneseq
        %v4004 = vshrl.u32 %v4003, 7
        %v4005 = vsub.s32 0, %v4004
        %v4006 = vrot.slane %v3824, %v4005
        %v4007 = vlaneseq
        %v4008 = vshrl.u32 %v4007, 7
        %v4009 = vsub.s32 0, %v4008
        %v4010 = vrot.slane %v3825, %v4009
        %v4011 = vlaneseq
        %v4012 = vshrl.u32 %v4011, 7
        %v4013 = vsub.s32 0, %v4012
        %v4014 = vrot.slane %v3826, %v4013
        %v4015 = vlaneseq
        %v4016 = vshrl.u32 %v4015, 7
        %v4017 = vsub.s32 0, %v4016
        %v4018 = vrot.slane %v3827, %v4017
        %v4019 = vlaneseq
        %v4020 = vshrl.u32 %v4019, 7
        %v4021 = vsub.s32 0, %v4020
        %v4022 = vrot.slane %v3828, %v4021
        %v4023 = vlaneseq
        %v4024 = vshrl.u32 %v4023, 7
        %v4025 = vsub.s32 0, %v4024
        %v4026 = vrot.slane %v3829, %v4025
        %v4027 = vlaneseq
        %v4028 = vshrl.u32 %v4027, 7
        %v4029 = vsub.s32 0, %v4028
        %v4030 = vrot.slane %v3830, %v4029
        %v4031 = vlaneseq
        %v4032 = vshrl.u32 %v4031, 7
        %v4033 = vsub.s32 0, %v4032
        %v4034 = vrot.slane %v3831, %v4033
        %v4035 = vlaneseq
        %v4036 = vshrl.u32 %v4035, 7
        %v4037 = vsub.s32 0, %v4036
        %v4038 = vrot.slane %v3832, %v4037
        %v4039 = vlaneseq
        %v4040 = vshrl.u32 %v4039, 7
        %v4041 = vsub.s32 0, %v4040
        %v4042 = vrot.slane %v3833, %v4041
        %v4043 = vlaneseq
        %v4044 = vshrl.u32 %v4043, 7
        %v4045 = vsub.s32 0, %v4044
        %v4046 = vrot.slane %v3834, %v4045
        %v4047 = vlaneseq
        %v4048 = vshrl.u32 %v4047, 7
        %v4049 = vsub.s32 0, %v4048
        %v4050 = vrot.slane %v3835, %v4049
        %v4051 = vlaneseq
        %v4052 = vshrl.u32 %v4051, 7
        %v4053 = vsub.s32 0, %v4052
        %v4054 = vrot.slane %v3836, %v4053
        %v4055 = vlaneseq
        %v4056 = vshrl.u32 %v4055, 7
        %v4057 = vsub.s32 0, %v4056
        %v4058 = vrot.slane %v3837, %v4057
        %v4059 = vlaneseq
        %v4060 = vshrl.u32 %v4059, 7
        %v4061 = vsub.s32 0, %v4060
        %v4062 = vrot.slane %v3838, %v4061
        %v4063 = vlaneseq
        %v4064 = vshrl.u32 %v4063, 7
        %v4065 = vsub.s32 0, %v4064
        %v4066 = vrot.slane %v3839, %v4065
        %v4067 = vlaneseq
        %v4068 = vshrl.u32 %v4067, 7
        %v4069 = vsub.s32 0, %v4068
        %v4070 = vrot.slane %v3840, %v4069
        %v4071 = vlaneseq
        %v4072 = vshrl.u32 %v4071, 7
        %v4073 = vsub.s32 0, %v4072
        %v4074 = vrot.slane %v3841, %v4073
        %v4075 = vlaneseq
        %v4076 = vshrl.u32 %v4075, 7
        %v4077 = vsub.s32 0, %v4076
        %v4078 = vrot.slane %v3842, %v4077
        %v4079 = vlaneseq
        %v4080 = vshrl.u32 %v4079, 7
        %v4081 = vsub.s32 0, %v4080
        %v4082 = vrot.slane %v3843, %v4081
        %v4083 = vlaneseq
        %v4084 = vshrl.u32 %v4083, 7
        %v4085 = vsub.s32 0, %v4084
        %v4086 = vrot.slane %v3844, %v4085
        %v4087 = vlaneseq
        %v4088 = vshrl.u32 %v4087, 7
        %v4089 = vsub.s32 0, %v4088
        %v4090 = vrot.slane %v3845, %v4089
        %v4091 = vlaneseq
        %v4092 = vshrl.u32 %v4091, 7
        %v4093 = vsub.s32 0, %v4092
        %v4094 = vrot.slane %v3846, %v4093
        %v4095 = vlaneseq
        %v4096 = vshrl.u32 %v4095, 7
        %v4097 = vsub.s32 0, %v4096
        %v4098 = vrot.slane %v3847, %v4097
        %v4099 = vlaneseq
        %v4100 = vshrl.u32 %v4099, 7
        %v4101 = vsub.s32 0, %v4100
        %v4102 = vrot.slane %v3848, %v4101
        %v4103 = vlaneseq
        %v4104 = vshrl.u32 %v4103, 7
        %v4105 = vsub.s32 0, %v4104
        %v4106 = vrot.slane %v3849, %v4105
        %v4107 = vlaneseq
        %v4108 = vshrl.u32 %v4107, 7
        %v4109 = vsub.s32 0, %v4108
        %v4110 = vrot.slane %v3850, %v4109
        %v4111 = vlaneseq
        %v4112 = vshrl.u32 %v4111, 7
        %v4113 = vsub.s32 0, %v4112
        %v4114 = vrot.slane %v3851, %v4113
        %v4115 = vlaneseq
        %v4116 = vshrl.u32 %v4115, 7
        %v4117 = vsub.s32 0, %v4116
        %v4118 = vrot.slane %v3852, %v4117
        %v4119 = vlaneseq
        %v4120 = vshrl.u32 %v4119, 7
        %v4121 = vsub.s32 0, %v4120
        %v4122 = vrot.slane %v3853, %v4121
        %v4123 = vlaneseq
        %v4124 = vshrl.u32 %v4123, 7
        %v4125 = vsub.s32 0, %v4124
        %v4126 = vrot.slane %v3854, %v4125
        %v4127 = vlaneseq
        %v4128 = vshrl.u32 %v4127, 7
        %v4129 = vsub.s32 0, %v4128
        %v4130 = vrot.slane %v3855, %v4129
        %v4131 = vlaneseq
        %v4132 = vshrl.u32 %v4131, 7
        %v4133 = vsub.s32 0, %v4132
        %v4134 = vrot.slane %v3856, %v4133
        %v4135 = vlaneseq
        %v4136 = vshrl.u32 %v4135, 7
        %v4137 = vsub.s32 0, %v4136
        %v4138 = vrot.slane %v3857, %v4137
        %v4139 = vlaneseq
        %v4140 = vshrl.u32 %v4139, 7
        %v4141 = vsub.s32 0, %v4140
        %v4142 = vrot.slane %v3858, %v4141
        %v4143 = vlaneseq
        %v4144 = vshrl.u32 %v4143, 7
        %v4145 = vsub.s32 0, %v4144
        %v4146 = vrot.slane %v3859, %v4145
        %v4147 = vlaneseq
        %v4148 = vshrl.u32 %v4147, 7
        %v4149 = vsub.s32 0, %v4148
        %v4150 = vrot.slane %v3860, %v4149
        %v4151 = vlaneseq
        %v4152 = vshrl.u32 %v4151, 7
        %v4153 = vsub.s32 0, %v4152
        %v4154 = vrot.slane %v3861, %v4153
        %v4155 = vlaneseq
        %v4156 = vshrl.u32 %v4155, 7
        %v4157 = vsub.s32 0, %v4156
        %v4158 = vrot.slane %v3862, %v4157
        %v4159 = vlaneseq
        %v4160 = vshrl.u32 %v4159, 7
        %v4161 = vsub.s32 0, %v4160
        %v4162 = vrot.slane %v3863, %v4161
        %v4163 = vlaneseq
        %v4164 = vshrl.u32 %v4163, 7
        %v4165 = vsub.s32 0, %v4164
        %v4166 = vrot.slane %v3864, %v4165
        %v4167 = vlaneseq
        %v4168 = vshrl.u32 %v4167, 7
        %v4169 = vsub.s32 0, %v4168
        %v4170 = vrot.slane %v3865, %v4169
        %v4171 = vlaneseq
        %v4172 = vshrl.u32 %v4171, 7
        %v4173 = vsub.s32 0, %v4172
        %v4174 = vrot.slane %v3866, %v4173
        %v4175 = vlaneseq
        %v4176 = vshrl.u32 %v4175, 7
        %v4177 = vsub.s32 0, %v4176
        %v4178 = vrot.slane %v3867, %v4177
        %v4179 = vlaneseq
        %v4180 = vshrl.u32 %v4179, 7
        %v4181 = vsub.s32 0, %v4180
        %v4182 = vrot.slane %v3868, %v4181
        %v4183 = vlaneseq
        %v4184 = vshrl.u32 %v4183, 7
        %v4185 = vsub.s32 0, %v4184
        %v4186 = vrot.slane %v3869, %v4185
        %v4187 = vlaneseq
        %v4188 = vshrl.u32 %v4187, 7
        %v4189 = vsub.s32 0, %v4188
        %v4190 = vrot.slane %v3870, %v4189
        %vm4191 = vcmask 1041409
        %v4192 = vsel %vm4191, %v3942, %v3938
        %v4193 = vsel %vm3176, %v3946, %v4192
        %v4194 = vsel %vm3178, %v3950, %v4193
        %v4195 = vsel %vm3180, %v3954, %v4194
        %v4196 = vsel %vm3182, %v3958, %v4195
        %v4197 = vsel %vm3184, %v3962, %v4196
        %v4198 = vsel %vm3186, %v3966, %v4197
        %v4199 = vsel %vm4191, %v3974, %v3970
        %v4200 = vsel %vm3176, %v3978, %v4199
        %v4201 = vsel %vm3178, %v3982, %v4200
        %v4202 = vsel %vm3180, %v3986, %v4201
        %v4203 = vsel %vm3182, %v3990, %v4202
        %v4204 = vsel %vm3184, %v3994, %v4203
        %v4205 = vsel %vm3186, %v3998, %v4204
        %v4206 = vsel %vm4191, %v4006, %v4002
        %v4207 = vsel %vm3176, %v4010, %v4206
        %v4208 = vsel %vm3178, %v4014, %v4207
        %v4209 = vsel %vm3180, %v4018, %v4208
        %v4210 = vsel %vm3182, %v4022, %v4209
        %v4211 = vsel %vm3184, %v4026, %v4210
        %v4212 = vsel %vm3186, %v4030, %v4211
        %v4213 = vsel %vm4191, %v4038, %v4034
        %v4214 = vsel %vm3176, %v4042, %v4213
        %v4215 = vsel %vm3178, %v4046, %v4214
        %v4216 = vsel %vm3180, %v4050, %v4215
        %v4217 = vsel %vm3182, %v4054, %v4216
        %v4218 = vsel %vm3184, %v4058, %v4217
        %v4219 = vsel %vm3186, %v4062, %v4218
        %v4220 = vsel %vm4191, %v4070, %v4066
        %v4221 = vsel %vm3176, %v4074, %v4220
        %v4222 = vsel %vm3178, %v4078, %v4221
        %v4223 = vsel %vm3180, %v4082, %v4222
        %v4224 = vsel %vm3182, %v4086, %v4223
        %v4225 = vsel %vm3184, %v4090, %v4224
        %v4226 = vsel %vm3186, %v4094, %v4225
        %v4227 = vsel %vm4191, %v4102, %v4098
        %v4228 = vsel %vm3176, %v4106, %v4227
        %v4229 = vsel %vm3178, %v4110, %v4228
        %v4230 = vsel %vm3180, %v4114, %v4229
        %v4231 = vsel %vm3182, %v4118, %v4230
        %v4232 = vsel %vm3184, %v4122, %v4231
        %v4233 = vsel %vm3186, %v4126, %v4232
        %v4234 = vsel %vm4191, %v4134, %v4130
        %v4235 = vsel %vm3176, %v4138, %v4234
        %v4236 = vsel %vm3178, %v4142, %v4235
        %v4237 = vsel %vm3180, %v4146, %v4236
        %v4238 = vsel %vm3182, %v4150, %v4237
        %v4239 = vsel %vm3184, %v4154, %v4238
        %v4240 = vsel %vm3186, %v4158, %v4239
        %v4241 = vsel %vm4191, %v4166, %v4162
        %v4242 = vsel %vm3176, %v4170, %v4241
        %v4243 = vsel %vm3178, %v4174, %v4242
        %v4244 = vsel %vm3180, %v4178, %v4243
        %v4245 = vsel %vm3182, %v4182, %v4244
        %v4246 = vsel %vm3184, %v4186, %v4245
        %v4247 = vsel %vm3186, %v4190, %v4246
        %4256 = vst.msk [vmem:[%s312] sm:$0xff] %vm770, %v4198
        %4257 = vst.msk [vmem:[%s312 + $0x8] sm:$0xff] %vm770, %v4205
        %4258 = vst.msk [vmem:[%s312 + $0x10] sm:$0xff] %vm770, %v4212
        %4259 = vst.msk [vmem:[%s312 + $0x18] sm:$0xff] %vm770, %v4219
        %4260 = vst.msk [vmem:[%s312 + $0x20] sm:$0xff] %vm770, %v4226
        %4261 = vst.msk [vmem:[%s312 + $0x28] sm:$0xff] %vm770, %v4233
        %4262 = vst.msk [vmem:[%s312 + $0x30] sm:$0xff] %vm770, %v4240
        %4263 = vst.msk [vmem:[%s312 + $0x38] sm:$0xff] %vm770, %v4247
        %s4264 = sand.u32 %s174, 1
        %s4265 = scalar_lea.sflag [#allocation3], %s4264
        %s4266 = sand.u32 %s174, 1
        %s4267 = smul.addr %s4266, 256
        %s4268 = scalar_lea.vmem [#allocation2], %s4267
        %s4269 = sand.u32 %s200, 1
        %s4270 = scalar_lea.sflag [#allocation5], %s4269
        %s4271 = sand.u32 %s200, 1
        %s4272 = smul.addr %s4271, 64
        %s4273 = scalar_lea.vmem [#allocation4], %s4272
        // Predicated region
        $region45: #{res_block_forward.3} parent=43 // pred_check
          %p4274 = pneg %p184
        $region46: #{res_block_forward.3} parent=43 // pred_check_branch
          %4276 = sbr.rel (%p4274) target = $region48
        $region47: #{res_block_forward.3} parent=43 // pred_region
          %s4278 = ssub.s32 4096, 4096
          %4279 = vsyncadd %s4265, %s4278
          %s4280 = smul.addr %s25, 32
          %s4281 = smul.addr %s4280, 128
          %s4282 = scalar_lea.hbm %s6, %s4281
          %s4283 = sshll.u32 %s4268, 4
          %s4284 = int_to_ptr.vmem [resolvable:$true] %s4283
          %4289 = dma.vmem_to_hbm [thread:$0]  %s4284, 4096, %s4282, %s4265, 128, 128, 8
        $region48: #{res_block_forward.3} parent=43 // pred_fallthru
          _
        // Predicated region
        $region49: #{res_block_forward.3} parent=43 // pred_check
          %p4290 = pneg %p210
        $region50: #{res_block_forward.3} parent=43 // pred_check_branch
          %4292 = sbr.rel (%p4290) target = $region52
        $region51: #{res_block_forward.3} parent=43 // pred_region
          %s4294 = ssub.s32 1024, 1024
          %4295 = vsyncadd %s4270, %s4294
          %s4296 = smul.addr %s25, 8
          %s4297 = smul.addr %s4296, 128
          %s4298 = scalar_lea.hbm %s7, %s4297
          %s4299 = sshll.u32 %s4273, 4
          %s4300 = int_to_ptr.vmem [resolvable:$true] %s4299
          %4305 = dma.vmem_to_hbm [thread:$0]  %s4300, 1024, %s4298, %s4270, 128, 128, 8
        $region52: #{res_block_forward.3} parent=43 // pred_fallthru
          _
      $region44: #{res_block_forward.3} parent=5 // pred_fallthru
        _
      %p4306 = scmp.le.s32.totalorder 2, %s20
      // Predicated region
      $region53: #{res_block_forward.3} parent=5 // pred_check
        %p4307 = pneg %p4306
      $region54: #{res_block_forward.3} parent=5 // pred_check_branch
        %4309 = sbr.rel (%p4307) target = $region56
      $region55: #{res_block_forward.3} parent=5 // pred_region
        %s4310 = ssub.s32 %s20, 2
        // Predicated region
        $region57: #{res_block_forward.3} parent=55 // pred_check
          %p4311 = pneg %p190
        $region58: #{res_block_forward.3} parent=55 // pred_check_branch
          %4313 = sbr.rel (%p4311) target = $region60
        $region59: #{res_block_forward.3} parent=55 // pred_region
          %s4314 = sand.u32 %s175, 1
          %s4315 = scalar_lea.sflag [#allocation3], %s4314
          %s4316 = sand.u32 %s175, 1
          %s4317 = smul.addr %s4316, 256
          %s4318 = scalar_lea.vmem [#allocation2], %s4317
          %4319 = dma.done %s4315, 4096
        $region60: #{res_block_forward.3} parent=55 // pred_fallthru
          _
        // Predicated region
        $region61: #{res_block_forward.3} parent=55 // pred_check
          %p4320 = pneg %p216
        $region62: #{res_block_forward.3} parent=55 // pred_check_branch
          %4322 = sbr.rel (%p4320) target = $region64
        $region63: #{res_block_forward.3} parent=55 // pred_region
          %s4323 = sand.u32 %s201, 1
          %s4324 = scalar_lea.sflag [#allocation5], %s4323
          %s4325 = sand.u32 %s201, 1
          %s4326 = smul.addr %s4325, 64
          %s4327 = scalar_lea.vmem [#allocation4], %s4326
          %4328 = dma.done %s4324, 1024
        $region64: #{res_block_forward.3} parent=55 // pred_fallthru
          _
      $region56: #{res_block_forward.3} parent=5 // pred_fallthru
        _
    $region6: #{res_block_forward.3} parent=1 // loop_footer
      %s24 = sadd.s32 1, %s20
    $region7: #{res_block_forward.3} parent=1 // loop_footer_branch
      %19 = sbr.rel target = $region3
    $region8: #{res_block_forward.3} parent=1 // loop_exit
      _
    %4329 = vsyncpa [#allocation3], 1
    %s4330 = scalar_lea.sflag [#allocation3], 1
    %4331 = vsyncpa %s4330, 1
    %4332 = vsyncpa [#allocation5], 1
    %s4333 = scalar_lea.sflag [#allocation5], 1
    %4334 = vsyncpa %s4333, 1

// kernel: res_block_forward.2
$region0: #{res_block_forward.2}
  #allocation0 [shape = 'u32[]', space=smem, size = 0x4, offset = 0x4, fixed_abs, tag = 'smem constant byte address 0x4 - core index']
  #allocation1 [shape = 'u32[144,128]{1,0:T(1,128)}', space=vmem, size = 0x12000, scoped, tag = 'internal scratch']
  %s0 = inlined_call_operand.vmem [shape: bf16[2,18,18,4], index: 0, kind: input, shape index: {}]
  %s1 = inlined_call_operand.vmem [shape: bf16[36,32], index: 1, kind: input, shape index: {}]
  %s2 = inlined_call_operand.vmem [shape: bf16[4,32], index: 2, kind: input, shape index: {}]
  %s3 = inlined_call_operand.vmem [shape: bf16[288,32], index: 3, kind: input, shape index: {}]
  %s4 = inlined_call_operand.vmem [shape: f32[7,32], index: 4, kind: input, shape index: {}]
  %s5 = inlined_call_operand.vmem [shape: bf16[2,16,16,32], index: 5, kind: output, shape index: {0}]
  %s6 = inlined_call_operand.vmem [shape: bf16[2,16,16,32], index: 6, kind: output, shape index: {1}]
  %s7 = inlined_call_operand.vmem [shape: bf16[2,18,18,32], index: 7, kind: output, shape index: {2}]
  %8 = xla_tuple %s5, %s6, %s7
  %s9 = sld [smem:[#allocation0]]
  $region69: #{res_block_forward.2} parent=0
    _
  %s11 = ssub.s32 1, %s9
  %s12 = scalar_select 0, %s11, %s9
  loop: start=0, step=1, limit=4
  $region2: #{res_block_forward.2} parent=0 // loop_pre_header
    _
  $region3: #{res_block_forward.2} parent=0 // loop_header
    %s14 = sphi 0, %s18
    %p15 = scmp.ge.s32.totalorder %s14, 4
    %s24 = sphi 0, %s26
    %s27 = sphi 0, %s24
    %s28 = sphi 0, %s27
    %s44 = sphi 0, %s28
    %s48 = sphi 0, %s48
    %s50 = sphi 0, %s48
    %s51 = sphi 0, %s50
    %s65 = sphi 0, %s51
    %s69 = sphi 0, %s69
    %s71 = sphi 0, %s69
    %s72 = sphi 0, %s71
    %s86 = sphi 0, %s72
    %s90 = sphi 0, %s90
    %s92 = sphi 0, %s90
    %s93 = sphi 0, %s92
    %s107 = sphi 0, %s93
    %s111 = sphi 0, %s111
    %s113 = sphi 0, %s111
    %s114 = sphi 0, %s113
    %s128 = sphi 0, %s114
    %s134 = sphi 0, %s136
    %s137 = sphi 0, %s134
    %s138 = sphi 0, %s137
    %s154 = sphi 0, %s138
    %s160 = sphi 0, %s162
    %s163 = sphi 0, %s160
    %s164 = sphi 0, %s163
    %s180 = sphi 0, %s164
    %s186 = sphi 0, %s188
    %s189 = sphi 0, %s186
    %s190 = sphi 0, %s189
    %s206 = sphi 0, %s190
  $region4: #{res_block_forward.2} parent=0 // loop_header_branch
    %17 = sbr.rel (%p15) target = $region8
  $region5: #{res_block_forward.2} parent=0 // loop_body
    %s19 = ssub.s32 %s14, 1
    %s20 = ssub.s32 %s14, 2
    %s21 = sadd.s32 %s14, 1
    %s22 = ssub.s32 %s14, %s21
    %p23 = scmp.eq.s32.totalorder %s22, 0
    %s25 = sadd.s32 %s24, 1
    %s26 = scalar_select %p23, %s24, %s25
    %p29 = pneg %p23
    %p30 = scmp.eq.s32.totalorder %s14, 1
    %p31 = por %p29, %p30
    %p32 = scmp.ne.s32.totalorder %s24, %s27
    %p33 = scmp.eq.s32.totalorder %s14, 0
    %p34 = por %p32, %p33
    %p35 = scmp.ne.s32.totalorder %s24, %s27
    %p36 = scmp.eq.s32.totalorder %s19, 1
    %p37 = por %p35, %p36
    %p38 = scmp.ne.s32.totalorder %s27, %s28
    %p39 = scmp.eq.s32.totalorder %s19, 0
    %p40 = por %p38, %p39
    %p41 = scmp.ne.s32.totalorder %s27, %s28
    %p42 = scmp.eq.s32.totalorder %s20, 1
    %p43 = por %p41, %p42
    %p45 = scmp.ne.s32.totalorder %s28, %s44
    %p46 = scmp.eq.s32.totalorder %s20, 0
    %p47 = por %p45, %p46
    %s49 = sadd.s32 %s48, 1
    %p52 = scmp.eq.s32.totalorder %s14, 1
    %p53 = scmp.ne.s32.totalorder %s48, %s50
    %p54 = scmp.eq.s32.totalorder %s14, 0
    %p55 = por %p53, %p54
    %p56 = scmp.ne.s32.totalorder %s48, %s50
    %p57 = scmp.eq.s32.totalorder %s19, 1
    %p58 = por %p56, %p57
    %p59 = scmp.ne.s32.totalorder %s50, %s51
    %p60 = scmp.eq.s32.totalorder %s19, 0
    %p61 = por %p59, %p60
    %p62 = scmp.ne.s32.totalorder %s50, %s51
    %p63 = scmp.eq.s32.totalorder %s20, 1
    %p64 = por %p62, %p63
    %p66 = scmp.ne.s32.totalorder %s51, %s65
    %p67 = scmp.eq.s32.totalorder %s20, 0
    %p68 = por %p66, %p67
    %s70 = sadd.s32 %s69, 1
    %p73 = scmp.eq.s32.totalorder %s14, 1
    %p74 = scmp.ne.s32.totalorder %s69, %s71
    %p75 = scmp.eq.s32.totalorder %s14, 0
    %p76 = por %p74, %p75
    %p77 = scmp.ne.s32.totalorder %s69, %s71
    %p78 = scmp.eq.s32.totalorder %s19, 1
    %p79 = por %p77, %p78
    %p80 = scmp.ne.s32.totalorder %s71, %s72
    %p81 = scmp.eq.s32.totalorder %s19, 0
    %p82 = por %p80, %p81
    %p83 = scmp.ne.s32.totalorder %s71, %s72
    %p84 = scmp.eq.s32.totalorder %s20, 1
    %p85 = por %p83, %p84
    %p87 = scmp.ne.s32.totalorder %s72, %s86
    %p88 = scmp.eq.s32.totalorder %s20, 0
    %p89 = por %p87, %p88
    %s91 = sadd.s32 %s90, 1
    %p94 = scmp.eq.s32.totalorder %s14, 1
    %p95 = scmp.ne.s32.totalorder %s90, %s92
    %p96 = scmp.eq.s32.totalorder %s14, 0
    %p97 = por %p95, %p96
    %p98 = scmp.ne.s32.totalorder %s90, %s92
    %p99 = scmp.eq.s32.totalorder %s19, 1
    %p100 = por %p98, %p99
    %p101 = scmp.ne.s32.totalorder %s92, %s93
    %p102 = scmp.eq.s32.totalorder %s19, 0
    %p103 = por %p101, %p102
    %p104 = scmp.ne.s32.totalorder %s92, %s93
    %p105 = scmp.eq.s32.totalorder %s20, 1
    %p106 = por %p104, %p105
    %p108 = scmp.ne.s32.totalorder %s93, %s107
    %p109 = scmp.eq.s32.totalorder %s20, 0
    %p110 = por %p108, %p109
    %s112 = sadd.s32 %s111, 1
    %p115 = scmp.eq.s32.totalorder %s14, 1
    %p116 = scmp.ne.s32.totalorder %s111, %s113
    %p117 = scmp.eq.s32.totalorder %s14, 0
    %p118 = por %p116, %p117
    %p119 = scmp.ne.s32.totalorder %s111, %s113
    %p120 = scmp.eq.s32.totalorder %s19, 1
    %p121 = por %p119, %p120
    %p122 = scmp.ne.s32.totalorder %s113, %s114
    %p123 = scmp.eq.s32.totalorder %s19, 0
    %p124 = por %p122, %p123
    %p125 = scmp.ne.s32.totalorder %s113, %s114
    %p126 = scmp.eq.s32.totalorder %s20, 1
    %p127 = por %p125, %p126
    %p129 = scmp.ne.s32.totalorder %s114, %s128
    %p130 = scmp.eq.s32.totalorder %s20, 0
    %p131 = por %p129, %p130
    %s132 = ssub.s32 %s14, %s21
    %p133 = scmp.eq.s32.totalorder %s132, 0
    %s135 = sadd.s32 %s134, 1
    %s136 = scalar_select %p133, %s134, %s135
    %p139 = pneg %p133
    %p140 = scmp.eq.s32.totalorder %s14, 1
    %p141 = por %p139, %p140
    %p142 = scmp.ne.s32.totalorder %s134, %s137
    %p143 = scmp.eq.s32.totalorder %s14, 0
    %p144 = por %p142, %p143
    %p145 = scmp.ne.s32.totalorder %s134, %s137
    %p146 = scmp.eq.s32.totalorder %s19, 1
    %p147 = por %p145, %p146
    %p148 = scmp.ne.s32.totalorder %s137, %s138
    %p149 = scmp.eq.s32.totalorder %s19, 0
    %p150 = por %p148, %p149
    %p151 = scmp.ne.s32.totalorder %s137, %s138
    %p152 = scmp.eq.s32.totalorder %s20, 1
    %p153 = por %p151, %p152
    %p155 = scmp.ne.s32.totalorder %s138, %s154
    %p156 = scmp.eq.s32.totalorder %s20, 0
    %p157 = por %p155, %p156
    %s158 = ssub.s32 %s14, %s21
    %p159 = scmp.eq.s32.totalorder %s158, 0
    %s161 = sadd.s32 %s160, 1
    %s162 = scalar_select %p159, %s160, %s161
    %p165 = pneg %p159
    %p166 = scmp.eq.s32.totalorder %s14, 1
    %p167 = por %p165, %p166
    %p168 = scmp.ne.s32.totalorder %s160, %s163
    %p169 = scmp.eq.s32.totalorder %s14, 0
    %p170 = por %p168, %p169
    %p171 = scmp.ne.s32.totalorder %s160, %s163
    %p172 = scmp.eq.s32.totalorder %s19, 1
    %p173 = por %p171, %p172
    %p174 = scmp.ne.s32.totalorder %s163, %s164
    %p175 = scmp.eq.s32.totalorder %s19, 0
    %p176 = por %p174, %p175
    %p177 = scmp.ne.s32.totalorder %s163, %s164
    %p178 = scmp.eq.s32.totalorder %s20, 1
    %p179 = por %p177, %p178
    %p181 = scmp.ne.s32.totalorder %s164, %s180
    %p182 = scmp.eq.s32.totalorder %s20, 0
    %p183 = por %p181, %p182
    %s184 = ssub.s32 %s14, %s21
    %p185 = scmp.eq.s32.totalorder %s184, 0
    %s187 = sadd.s32 %s186, 1
    %s188 = scalar_select %p185, %s186, %s187
    %p191 = pneg %p185
    %p192 = scmp.eq.s32.totalorder %s14, 1
    %p193 = por %p191, %p192
    %p194 = scmp.ne.s32.totalorder %s186, %s189
    %p195 = scmp.eq.s32.totalorder %s14, 0
    %p196 = por %p194, %p195
    %p197 = scmp.ne.s32.totalorder %s186, %s189
    %p198 = scmp.eq.s32.totalorder %s19, 1
    %p199 = por %p197, %p198
    %p200 = scmp.ne.s32.totalorder %s189, %s190
    %p201 = scmp.eq.s32.totalorder %s19, 0
    %p202 = por %p200, %p201
    %p203 = scmp.ne.s32.totalorder %s189, %s190
    %p204 = scmp.eq.s32.totalorder %s20, 1
    %p205 = por %p203, %p204
    %p207 = scmp.ne.s32.totalorder %s190, %s206
    %p208 = scmp.eq.s32.totalorder %s20, 0
    %p209 = por %p207, %p208
    %p210 = scmp.le.s32.totalorder 1, %s14
    %p211 = scmp.lt.s32.totalorder %s14, 3
    %p212 = pnand %p210, %p211
    %p213 = pneg %p212
    // Predicated region
    $region9: #{res_block_forward.2} parent=5 // pred_check
      _
    $region10: #{res_block_forward.2} parent=5 // pred_check_branch
      %215 = sbr.rel (%p212) target = $region12
    $region11: #{res_block_forward.2} parent=5 // pred_region
      %s216 = ssub.s32 %s14, 1
      // Predicated region
      $region13: #{res_block_forward.2} parent=11 // pred_check
        %p217 = pneg %p61
      $region14: #{res_block_forward.2} parent=11 // pred_check_branch
        %219 = sbr.rel (%p217) target = $region16
      $region15: #{res_block_forward.2} parent=11 // pred_region
        _
      $region16: #{res_block_forward.2} parent=11 // pred_fallthru
        _
      // Predicated region
      $region17: #{res_block_forward.2} parent=11 // pred_check
        %p220 = pneg %p82
      $region18: #{res_block_forward.2} parent=11 // pred_check_branch
        %222 = sbr.rel (%p220) target = $region20
      $region19: #{res_block_forward.2} parent=11 // pred_region
        _
      $region20: #{res_block_forward.2} parent=11 // pred_fallthru
        _
      // Predicated region
      $region21: #{res_block_forward.2} parent=11 // pred_check
        %p223 = pneg %p103
      $region22: #{res_block_forward.2} parent=11 // pred_check_branch
        %225 = sbr.rel (%p223) target = $region24
      $region23: #{res_block_forward.2} parent=11 // pred_region
        _
      $region24: #{res_block_forward.2} parent=11 // pred_fallthru
        _
      // Predicated region
      $region25: #{res_block_forward.2} parent=11 // pred_check
        %p226 = pneg %p124
      $region26: #{res_block_forward.2} parent=11 // pred_check_branch
        %228 = sbr.rel (%p226) target = $region28
      $region27: #{res_block_forward.2} parent=11 // pred_region
        _
      $region28: #{res_block_forward.2} parent=11 // pred_fallthru
        _
    $region12: #{res_block_forward.2} parent=5 // pred_fallthru
      _
    %p229 = scmp.lt.s32.totalorder %s14, 2
    // Predicated region
    $region29: #{res_block_forward.2} parent=5 // pred_check
      %p230 = pneg %p229
    $region30: #{res_block_forward.2} parent=5 // pred_check_branch
      %232 = sbr.rel (%p230) target = $region32
    $region31: #{res_block_forward.2} parent=5 // pred_region
      // Predicated region
      $region33: #{res_block_forward.2} parent=31 // pred_check
        %p233 = pneg %p34
      $region34: #{res_block_forward.2} parent=31 // pred_check_branch
        %235 = sbr.rel (%p233) target = $region36
      $region35: #{res_block_forward.2} parent=31 // pred_region
        %p236 = scmp.lt.s32.totalorder %s14, 1
        %s237 = scalar_select %p236, %s14, 1
        %s238 = smul.addr %s237, 54
        %s239 = smul.addr %s238, 4
        %s240 = scalar_lea.vmem %s0, %s239
      $region36: #{res_block_forward.2} parent=31 // pred_fallthru
        _
    $region32: #{res_block_forward.2} parent=5 // pred_fallthru
      _
    %p241 = scmp.le.s32.totalorder 1, %s14
    %p242 = scmp.lt.s32.totalorder %s14, 3
    %p243 = pnand %p241, %p242
    %p244 = pneg %p243
    // Predicated region
    $region37: #{res_block_forward.2} parent=5 // pred_check
      _
    $region38: #{res_block_forward.2} parent=5 // pred_check_branch
      %246 = sbr.rel (%p243) target = $region40
    $region39: #{res_block_forward.2} parent=5 // pred_region
      %s247 = ssub.s32 %s14, 1
      %p248 = scmp.lt.s32.totalorder %s19, 1
      %s249 = scalar_select %p248, %s19, 1
      %s250 = smul.addr %s249, 54
      %s251 = smul.addr %s250, 4
      %s252 = scalar_lea.vmem %s0, %s251
      %p253 = pneg %p40
      %p254 = pneg %p37
      %p255 = pneg %p61
      %p256 = pneg %p58
      %p257 = pneg %p82
      %p258 = pneg %p79
      %p259 = pneg %p103
      %p260 = pneg %p100
      %p261 = pneg %p124
      %p262 = pneg %p121
      %p263 = pneg %p150
      %p264 = pneg %p147
      %p265 = scmp.lt.s32.totalorder %s19, 1
      %s266 = scalar_select %p265, %s19, 1
      %s267 = smul.addr %s266, 32
      %s268 = smul.addr %s267, 4
      %s269 = scalar_lea.vmem %s5, %s268
      %p270 = pneg %p176
      %p271 = pneg %p173
      %p272 = scmp.lt.s32.totalorder %s19, 1
      %s273 = scalar_select %p272, %s19, 1
      %s274 = smul.addr %s273, 32
      %s275 = smul.addr %s274, 4
      %s276 = scalar_lea.vmem %s6, %s275
      %p277 = pneg %p202
      %p278 = pneg %p199
      %p279 = scmp.lt.s32.totalorder %s19, 1
      %s280 = scalar_select %p279, %s19, 1
      %s281 = smul.addr %s280, 54
      %s282 = smul.addr %s281, 4
      %s283 = scalar_lea.vmem %s7, %s282
      %p284 = scmp.lt.s32.totalorder %s19, 1
      %s285 = scalar_select %p284, %s19, 1
      %s286 = smul.addr %s285, 54
      %s287 = smul.addr %s286, 4
      %s288 = scalar_lea.vmem %s0, %s287
      %p289 = scmp.lt.s32.totalorder %s19, 1
      %s290 = scalar_select %p289, %s19, 1
      %s291 = smul.addr %s290, 32
      %s292 = smul.addr %s291, 4
      %s293 = scalar_lea.vmem %s5, %s292
      %p294 = scmp.lt.s32.totalorder %s19, 1
      %s295 = scalar_select %p294, %s19, 1
      %s296 = smul.addr %s295, 32
      %s297 = smul.addr %s296, 4
      %s298 = scalar_lea.vmem %s6, %s297
      %p299 = scmp.lt.s32.totalorder %s19, 1
      %s300 = scalar_select %p299, %s19, 1
      %s301 = smul.addr %s300, 54
      %s302 = smul.addr %s301, 4
      %s303 = scalar_lea.vmem %s7, %s302
      %v305 = vld [vmem:[%s288] sm:$0xf]
      %v306 = vld [vmem:[%s288 + $0x4] sm:$0xf]
      %v307 = vld [vmem:[%s288 + $0x8] sm:$0x1]
      %v308 = vld [vmem:[%s288 + $0xc] sm:$0xf]
      %v309 = vld [vmem:[%s288 + $0x10] sm:$0xf]
      %v310 = vld [vmem:[%s288 + $0x14] sm:$0x1]
      %v311 = vld [vmem:[%s288 + $0x18] sm:$0xf]
      %v312 = vld [vmem:[%s288 + $0x1c] sm:$0xf]
      %v313 = vld [vmem:[%s288 + $0x20] sm:$0x1]
      %v314 = vld [vmem:[%s288 + $0x24] sm:$0xf]
      %v315 = vld [vmem:[%s288 + $0x28] sm:$0xf]
      %v316 = vld [vmem:[%s288 + $0x2c] sm:$0x1]
      %v317 = vld [vmem:[%s288 + $0x30] sm:$0xf]
      %v318 = vld [vmem:[%s288 + $0x34] sm:$0xf]
      %v319 = vld [vmem:[%s288 + $0x38] sm:$0x1]
      %v320 = vld [vmem:[%s288 + $0x3c] sm:$0xf]
      %v321 = vld [vmem:[%s288 + $0x40] sm:$0xf]
      %v322 = vld [vmem:[%s288 + $0x44] sm:$0x1]
      %v323 = vld [vmem:[%s288 + $0x48] sm:$0xf]
      %v324 = vld [vmem:[%s288 + $0x4c] sm:$0xf]
      %v325 = vld [vmem:[%s288 + $0x50] sm:$0x1]
      %v326 = vld [vmem:[%s288 + $0x54] sm:$0xf]
      %v327 = vld [vmem:[%s288 + $0x58] sm:$0xf]
      %v328 = vld [vmem:[%s288 + $0x5c] sm:$0x1]
      %v329 = vld [vmem:[%s288 + $0x60] sm:$0xf]
      %v330 = vld [vmem:[%s288 + $0x64] sm:$0xf]
      %v331 = vld [vmem:[%s288 + $0x68] sm:$0x1]
      %v332 = vld [vmem:[%s288 + $0x6c] sm:$0xf]
      %v333 = vld [vmem:[%s288 + $0x70] sm:$0xf]
      %v334 = vld [vmem:[%s288 + $0x74] sm:$0x1]
      %v335 = vld [vmem:[%s288 + $0x78] sm:$0xf]
      %v336 = vld [vmem:[%s288 + $0x7c] sm:$0xf]
      %v337 = vld [vmem:[%s288 + $0x80] sm:$0x1]
      %v338 = vld [vmem:[%s288 + $0x84] sm:$0xf]
      %v339 = vld [vmem:[%s288 + $0x88] sm:$0xf]
      %v340 = vld [vmem:[%s288 + $0x8c] sm:$0x1]
      %v341 = vld [vmem:[%s288 + $0x90] sm:$0xf]
      %v342 = vld [vmem:[%s288 + $0x94] sm:$0xf]
      %v343 = vld [vmem:[%s288 + $0x98] sm:$0x1]
      %v344 = vld [vmem:[%s288 + $0x9c] sm:$0xf]
      %v345 = vld [vmem:[%s288 + $0xa0] sm:$0xf]
      %v346 = vld [vmem:[%s288 + $0xa4] sm:$0x1]
      %v347 = vld [vmem:[%s288 + $0xa8] sm:$0xf]
      %v348 = vld [vmem:[%s288 + $0xac] sm:$0xf]
      %v349 = vld [vmem:[%s288 + $0xb0] sm:$0x1]
      %v350 = vld [vmem:[%s288 + $0xb4] sm:$0xf]
      %v351 = vld [vmem:[%s288 + $0xb8] sm:$0xf]
      %v352 = vld [vmem:[%s288 + $0xbc] sm:$0x1]
      %v353 = vld [vmem:[%s288 + $0xc0] sm:$0xf]
      %v354 = vld [vmem:[%s288 + $0xc4] sm:$0xf]
      %v355 = vld [vmem:[%s288 + $0xc8] sm:$0x1]
      %v356 = vld [vmem:[%s288 + $0xcc] sm:$0xf]
      %v357 = vld [vmem:[%s288 + $0xd0] sm:$0xf]
      %v358 = vld [vmem:[%s288 + $0xd4] sm:$0x1]
      %vm359 = vsmask.f32 3328
      %vm360 = vsmask.f32 7440
      %vm361 = vmor %vm359, %vm360
      %v363 = vshrl.u32 %v308, 16
      %v365 = vrot.slane %v363, 4
      %v366 = vshll.u32 %v308, 16
      %v368 = vrot.slane %v366, 5
      %v369 = vor.u32 %v365, %v368
      %v370 = vrot.slane %v369, 4
      %v372 = vshll.u32 %v309, 16
      %v374 = vrot.slane %v372, 5
      %v375 = vsel %vm361, %v370, %v374
      %v376 = vshrl.u32 %v309, 16
      %v378 = vrot.slane %v376, 4
      %v379 = vor.u32 %v378, %v374
      %v380 = vrot.slane %v379, 4
      %v382 = vshll.u32 %v310, 16
      %v384 = vrot.slane %v382, 5
      %v385 = vsel %vm361, %v380, %v384
      %v387 = vshrl.u32 %v311, 16
      %v389 = vrot.slane %v387, 4
      %v390 = vshll.u32 %v311, 16
      %v392 = vrot.slane %v390, 5
      %v393 = vor.u32 %v389, %v392
      %v394 = vrot.slane %v393, 4
      %v396 = vshll.u32 %v312, 16
      %v398 = vrot.slane %v396, 5
      %v399 = vsel %vm361, %v394, %v398
      %v400 = vshrl.u32 %v312, 16
      %v402 = vrot.slane %v400, 4
      %v403 = vor.u32 %v402, %v398
      %v404 = vrot.slane %v403, 4
      %v406 = vshll.u32 %v313, 16
      %v408 = vrot.slane %v406, 5
      %v409 = vsel %vm361, %v404, %v408
      %v411 = vshrl.u32 %v314, 16
      %v413 = vrot.slane %v411, 4
      %v414 = vshll.u32 %v314, 16
      %v416 = vrot.slane %v414, 5
      %v417 = vor.u32 %v413, %v416
      %v418 = vrot.slane %v417, 4
      %v420 = vshll.u32 %v315, 16
      %v422 = vrot.slane %v420, 5
      %v423 = vsel %vm361, %v418, %v422
      %v424 = vshrl.u32 %v315, 16
      %v426 = vrot.slane %v424, 4
      %v427 = vor.u32 %v426, %v422
      %v428 = vrot.slane %v427, 4
      %v430 = vshll.u32 %v316, 16
      %v432 = vrot.slane %v430, 5
      %v433 = vsel %vm361, %v428, %v432
      %v435 = vshrl.u32 %v317, 16
      %v437 = vrot.slane %v435, 4
      %v438 = vshll.u32 %v317, 16
      %v440 = vrot.slane %v438, 5
      %v441 = vor.u32 %v437, %v440
      %v442 = vrot.slane %v441, 4
      %v444 = vshll.u32 %v318, 16
      %v446 = vrot.slane %v444, 5
      %v447 = vsel %vm361, %v442, %v446
      %v448 = vshrl.u32 %v318, 16
      %v450 = vrot.slane %v448, 4
      %v451 = vor.u32 %v450, %v446
      %v452 = vrot.slane %v451, 4
      %v454 = vshll.u32 %v319, 16
      %v456 = vrot.slane %v454, 5
      %v457 = vsel %vm361, %v452, %v456
      %v459 = vshrl.u32 %v320, 16
      %v461 = vrot.slane %v459, 4
      %v462 = vshll.u32 %v320, 16
      %v464 = vrot.slane %v462, 5
      %v465 = vor.u32 %v461, %v464
      %v466 = vrot.slane %v465, 4
      %v468 = vshll.u32 %v321, 16
      %v470 = vrot.slane %v468, 5
      %v471 = vsel %vm361, %v466, %v470
      %v472 = vshrl.u32 %v321, 16
      %v474 = vrot.slane %v472, 4
      %v475 = vor.u32 %v474, %v470
      %v476 = vrot.slane %v475, 4
      %v478 = vshll.u32 %v322, 16
      %v480 = vrot.slane %v478, 5
      %v481 = vsel %vm361, %v476, %v480
      %v483 = vshrl.u32 %v323, 16
      %v485 = vrot.slane %v483, 4
      %v486 = vshll.u32 %v323, 16
      %v488 = vrot.slane %v486, 5
      %v489 = vor.u32 %v485, %v488
      %v490 = vrot.slane %v489, 4
      %v492 = vshll.u32 %v324, 16
      %v494 = vrot.slane %v492, 5
      %v495 = vsel %vm361, %v490, %v494
      %v496 = vshrl.u32 %v324, 16
      %v498 = vrot.slane %v496, 4
      %v499 = vor.u32 %v498, %v494
      %v500 = vrot.slane %v499, 4
      %v502 = vshll.u32 %v325, 16
      %v504 = vrot.slane %v502, 5
      %v505 = vsel %vm361, %v500, %v504
      %v507 = vshrl.u32 %v326, 16
      %v509 = vrot.slane %v507, 4
      %v510 = vshll.u32 %v326, 16
      %v512 = vrot.slane %v510, 5
      %v513 = vor.u32 %v509, %v512
      %v514 = vrot.slane %v513, 4
      %v516 = vshll.u32 %v327, 16
      %v518 = vrot.slane %v516, 5
      %v519 = vsel %vm361, %v514, %v518
      %v520 = vshrl.u32 %v327, 16
      %v522 = vrot.slane %v520, 4
      %v523 = vor.u32 %v522, %v518
      %v524 = vrot.slane %v523, 4
      %v526 = vshll.u32 %v328, 16
      %v528 = vrot.slane %v526, 5
      %v529 = vsel %vm361, %v524, %v528
      %v531 = vshrl.u32 %v329, 16
      %v533 = vrot.slane %v531, 4
      %v534 = vshll.u32 %v329, 16
      %v536 = vrot.slane %v534, 5
      %v537 = vor.u32 %v533, %v536
      %v538 = vrot.slane %v537, 4
      %v540 = vshll.u32 %v330, 16
      %v542 = vrot.slane %v540, 5
      %v543 = vsel %vm361, %v538, %v542
      %v544 = vshrl.u32 %v330, 16
      %v546 = vrot.slane %v544, 4
      %v547 = vor.u32 %v546, %v542
      %v548 = vrot.slane %v547, 4
      %v550 = vshll.u32 %v331, 16
      %v552 = vrot.slane %v550, 5
      %v553 = vsel %vm361, %v548, %v552
      %v555 = vshrl.u32 %v332, 16
      %v557 = vrot.slane %v555, 4
      %v558 = vshll.u32 %v332, 16
      %v560 = vrot.slane %v558, 5
      %v561 = vor.u32 %v557, %v560
      %v562 = vrot.slane %v561, 4
      %v564 = vshll.u32 %v333, 16
      %v566 = vrot.slane %v564, 5
      %v567 = vsel %vm361, %v562, %v566
      %v568 = vshrl.u32 %v333, 16
      %v570 = vrot.slane %v568, 4
      %v571 = vor.u32 %v570, %v566
      %v572 = vrot.slane %v571, 4
      %v574 = vshll.u32 %v334, 16
      %v576 = vrot.slane %v574, 5
      %v577 = vsel %vm361, %v572, %v576
      %v579 = vshrl.u32 %v335, 16
      %v581 = vrot.slane %v579, 4
      %v582 = vshll.u32 %v335, 16
      %v584 = vrot.slane %v582, 5
      %v585 = vor.u32 %v581, %v584
      %v586 = vrot.slane %v585, 4
      %v588 = vshll.u32 %v336, 16
      %v590 = vrot.slane %v588, 5
      %v591 = vsel %vm361, %v586, %v590
      %v592 = vshrl.u32 %v336, 16
      %v594 = vrot.slane %v592, 4
      %v595 = vor.u32 %v594, %v590
      %v596 = vrot.slane %v595, 4
      %v598 = vshll.u32 %v337, 16
      %v600 = vrot.slane %v598, 5
      %v601 = vsel %vm361, %v596, %v600
      %v603 = vshrl.u32 %v338, 16
      %v605 = vrot.slane %v603, 4
      %v606 = vshll.u32 %v338, 16
      %v608 = vrot.slane %v606, 5
      %v609 = vor.u32 %v605, %v608
      %v610 = vrot.slane %v609, 4
      %v612 = vshll.u32 %v339, 16
      %v614 = vrot.slane %v612, 5
      %v615 = vsel %vm361, %v610, %v614
      %v616 = vshrl.u32 %v339, 16
      %v618 = vrot.slane %v616, 4
      %v619 = vor.u32 %v618, %v614
      %v620 = vrot.slane %v619, 4
      %v622 = vshll.u32 %v340, 16
      %v624 = vrot.slane %v622, 5
      %v625 = vsel %vm361, %v620, %v624
      %v627 = vshrl.u32 %v341, 16
      %v629 = vrot.slane %v627, 4
      %v630 = vshll.u32 %v341, 16
      %v632 = vrot.slane %v630, 5
      %v633 = vor.u32 %v629, %v632
      %v634 = vrot.slane %v633, 4
      %v636 = vshll.u32 %v342, 16
      %v638 = vrot.slane %v636, 5
      %v639 = vsel %vm361, %v634, %v638
      %v640 = vshrl.u32 %v342, 16
      %v642 = vrot.slane %v640, 4
      %v643 = vor.u32 %v642, %v638
      %v644 = vrot.slane %v643, 4
      %v646 = vshll.u32 %v343, 16
      %v648 = vrot.slane %v646, 5
      %v649 = vsel %vm361, %v644, %v648
      %v651 = vshrl.u32 %v344, 16
      %v653 = vrot.slane %v651, 4
      %v654 = vshll.u32 %v344, 16
      %v656 = vrot.slane %v654, 5
      %v657 = vor.u32 %v653, %v656
      %v658 = vrot.slane %v657, 4
      %v660 = vshll.u32 %v345, 16
      %v662 = vrot.slane %v660, 5
      %v663 = vsel %vm361, %v658, %v662
      %v664 = vshrl.u32 %v345, 16
      %v666 = vrot.slane %v664, 4
      %v667 = vor.u32 %v666, %v662
      %v668 = vrot.slane %v667, 4
      %v670 = vshll.u32 %v346, 16
      %v672 = vrot.slane %v670, 5
      %v673 = vsel %vm361, %v668, %v672
      %v675 = vshrl.u32 %v347, 16
      %v677 = vrot.slane %v675, 4
      %v678 = vshll.u32 %v347, 16
      %v680 = vrot.slane %v678, 5
      %v681 = vor.u32 %v677, %v680
      %v682 = vrot.slane %v681, 4
      %v684 = vshll.u32 %v348, 16
      %v686 = vrot.slane %v684, 5
      %v687 = vsel %vm361, %v682, %v686
      %v688 = vshrl.u32 %v348, 16
      %v690 = vrot.slane %v688, 4
      %v691 = vor.u32 %v690, %v686
      %v692 = vrot.slane %v691, 4
      %v694 = vshll.u32 %v349, 16
      %v696 = vrot.slane %v694, 5
      %v697 = vsel %vm361, %v692, %v696
      %v699 = vshrl.u32 %v350, 16
      %v701 = vrot.slane %v699, 4
      %v702 = vshll.u32 %v350, 16
      %v704 = vrot.slane %v702, 5
      %v705 = vor.u32 %v701, %v704
      %v706 = vrot.slane %v705, 4
      %v708 = vshll.u32 %v351, 16
      %v710 = vrot.slane %v708, 5
      %v711 = vsel %vm361, %v706, %v710
      %v712 = vshrl.u32 %v351, 16
      %v714 = vrot.slane %v712, 4
      %v715 = vor.u32 %v714, %v710
      %v716 = vrot.slane %v715, 4
      %v718 = vshll.u32 %v352, 16
      %v720 = vrot.slane %v718, 5
      %v721 = vsel %vm361, %v716, %v720
      %v723 = vshrl.u32 %v353, 16
      %v725 = vrot.slane %v723, 4
      %v726 = vshll.u32 %v353, 16
      %v728 = vrot.slane %v726, 5
      %v729 = vor.u32 %v725, %v728
      %v730 = vrot.slane %v729, 4
      %v732 = vshll.u32 %v354, 16
      %v734 = vrot.slane %v732, 5
      %v735 = vsel %vm361, %v730, %v734
      %v736 = vshrl.u32 %v354, 16
      %v738 = vrot.slane %v736, 4
      %v739 = vor.u32 %v738, %v734
      %v740 = vrot.slane %v739, 4
      %v742 = vshll.u32 %v355, 16
      %v744 = vrot.slane %v742, 5
      %v745 = vsel %vm361, %v740, %v744
      %v746 = vld [vmem:[%s2] sm:$0x3]
      %v747 = vld [vmem:[%s4] sm:$0x1]
      %v748 = vlaneseq
      %v749 = vshrl.u32 %v748, 7
      %v750 = vsub.s32 0, %v749
      %v751 = vrot.slane %v747, %v750
      %v752 = vunpack.c.l.b16 %v375
      %v753 = vunpack.c.l.b16 %v385
      %v754 = vunpack.c.l.b16 %v399
      %v755 = vunpack.c.l.b16 %v409
      %v756 = vunpack.c.l.b16 %v423
      %v757 = vunpack.c.l.b16 %v433
      %v758 = vunpack.c.l.b16 %v447
      %v759 = vunpack.c.l.b16 %v457
      %v760 = vunpack.c.l.b16 %v471
      %v761 = vunpack.c.l.b16 %v481
      %v762 = vunpack.c.l.b16 %v495
      %v763 = vunpack.c.l.b16 %v505
      %v764 = vunpack.c.l.b16 %v519
      %v765 = vunpack.c.l.b16 %v529
      %v766 = vunpack.c.l.b16 %v543
      %v767 = vunpack.c.l.b16 %v553
      %v768 = vunpack.c.l.b16 %v567
      %v769 = vunpack.c.l.b16 %v577
      %v770 = vunpack.c.l.b16 %v591
      %v771 = vunpack.c.l.b16 %v601
      %v772 = vunpack.c.l.b16 %v615
      %v773 = vunpack.c.l.b16 %v625
      %v774 = vunpack.c.l.b16 %v639
      %v775 = vunpack.c.l.b16 %v649
      %v776 = vunpack.c.l.b16 %v663
      %v777 = vunpack.c.l.b16 %v673
      %v778 = vunpack.c.l.b16 %v687
      %v779 = vunpack.c.l.b16 %v697
      %v780 = vunpack.c.l.b16 %v711
      %v781 = vunpack.c.l.b16 %v721
      %v782 = vunpack.c.l.b16 %v735
      %v783 = vunpack.c.l.b16 %v745
      %v784 = vpack.c.b16 %v753, %v752
      %v785 = vpack.c.b16 %v755, %v754
      %v786 = vpack.c.b16 %v757, %v756
      %v787 = vpack.c.b16 %v759, %v758
      %v788 = vpack.c.b16 %v761, %v760
      %v789 = vpack.c.b16 %v763, %v762
      %v790 = vpack.c.b16 %v765, %v764
      %v791 = vpack.c.b16 %v767, %v766
      %v792 = vpack.c.b16 %v769, %v768
      %v793 = vpack.c.b16 %v771, %v770
      %v794 = vpack.c.b16 %v773, %v772
      %v795 = vpack.c.b16 %v775, %v774
      %v796 = vpack.c.b16 %v777, %v776
      %v797 = vpack.c.b16 %v779, %v778
      %v798 = vpack.c.b16 %v781, %v780
      %v799 = vpack.c.b16 %v783, %v782
      %vm800 = vcmask 31744
      %v802 = vsel %vm800, %v784, 0
      %v805 = vsel %vm800, %v785, 0
      %v808 = vsel %vm800, %v786, 0
      %v811 = vsel %vm800, %v787, 0
      %v814 = vsel %vm800, %v788, 0
      %v817 = vsel %vm800, %v789, 0
      %v820 = vsel %vm800, %v790, 0
      %v823 = vsel %vm800, %v791, 0
      %v826 = vsel %vm800, %v792, 0
      %v829 = vsel %vm800, %v793, 0
      %v832 = vsel %vm800, %v794, 0
      %v835 = vsel %vm800, %v795, 0
      %v838 = vsel %vm800, %v796, 0
      %v841 = vsel %vm800, %v797, 0
      %v844 = vsel %vm800, %v798, 0
      %v847 = vsel %vm800, %v799, 0
      %vm849 = vcmask 1041408
      %v851 = vsel %vm849, %v746, 0
      %853 = vmatprep.subr.bf16.mxu0 0
      %854 = vmatpush1.bf16.msra.mxu0 %v851
      %855 = vmatprep.subr.bf16.mxu0 0
      %856 = vmatpush1.bf16.msra.mxu0 0
      %857 = vmatprep.subr.bf16.mxu0 0
      %858 = vmatpush1.bf16.msra.mxu0 0
      %859 = vmatprep.subr.bf16.mxu0 0
      %860 = vmatpush1.bf16.msra.mxu0 0
      %861 = vmatprep.subr.bf16.mxu0 0
      %862 = vmatpush1.bf16.msra.mxu0 0
      %863 = vmatprep.subr.bf16.mxu0 0
      %864 = vmatpush1.bf16.msra.mxu0 0
      %865 = vmatprep.subr.bf16.mxu0 0
      %866 = vmatpush1.bf16.msra.mxu0 0
      %867 = vmatprep.subr.bf16.mxu0 0
      %868 = vmatpush1.bf16.msra.mxu0 0
      %869 = vmatprep.subr.bf16.mxu0 0
      %870 = vmatpush1.bf16.msra.mxu0 0
      %871 = vmatprep.subr.bf16.mxu0 0
      %872 = vmatpush1.bf16.msra.mxu0 0
      %873 = vmatprep.subr.bf16.mxu0 0
      %874 = vmatpush1.bf16.msra.mxu0 0
      %875 = vmatprep.subr.bf16.mxu0 0
      %876 = vmatpush1.bf16.msra.mxu0 0
      %877 = vmatprep.subr.bf16.mxu0 0
      %878 = vmatpush1.bf16.msra.mxu0 0
      %879 = vmatprep.subr.bf16.mxu0 0
      %880 = vmatpush1.bf16.msra.mxu0 0
      %881 = vmatprep.subr.bf16.mxu0 0
      %882 = vmatpush1.bf16.msra.mxu0 0
      %883 = vmatprep.subr.bf16.mxu0 0
      %884 = vmatpush1.bf16.msra.mxu0 0
      %885 = vmatprep.mubr.bf16.mxu0 0
      %886 = vmatmul.mubr.bf16.gmra.mrb[0].mxu0 %v802
      %v887 = vpop.f32.mrb[0].mxu0
      %v888 = vadd.f32 %v751, %v887
      %v889 = vpop.f32.mrb[0].mxu0
      %v890 = vpop.f32.mrb[0].mxu0
      %v891 = vadd.f32 %v751, %v890
      %v892 = vpop.f32.mrb[0].mxu0
      %893 = vmatprep.mubr.bf16.mxu0 0
      %894 = vmatmul.mubr.bf16.gmra.mrb[0].mxu0 %v805
      %v895 = vpop.f32.mrb[0].mxu0
      %v896 = vadd.f32 %v751, %v895
      %v897 = vpop.f32.mrb[0].mxu0
      %v898 = vpop.f32.mrb[0].mxu0
      %v899 = vadd.f32 %v751, %v898
      %v900 = vpop.f32.mrb[0].mxu0
      %901 = vmatprep.mubr.bf16.mxu0 0
      %902 = vmatmul.mubr.bf16.gmra.mrb[0].mxu0 %v808
      %v903 = vpop.f32.mrb[0].mxu0
      %v904 = vadd.f32 %v751, %v903
      %v905 = vpop.f32.mrb[0].mxu0
      %v906 = vpop.f32.mrb[0].mxu0
      %v907 = vadd.f32 %v751, %v906
      %v908 = vpop.f32.mrb[0].mxu0
      %909 = vmatprep.mubr.bf16.mxu0 0
      %910 = vmatmul.mubr.bf16.gmra.mrb[0].mxu0 %v811
      %v911 = vpop.f32.mrb[0].mxu0
      %v912 = vadd.f32 %v751, %v911
      %v913 = vpop.f32.mrb[0].mxu0
      %v914 = vpop.f32.mrb[0].mxu0
      %v915 = vadd.f32 %v751, %v914
      %v916 = vpop.f32.mrb[0].mxu0
      %917 = vmatprep.mubr.bf16.mxu0 0
      %918 = vmatmul.mubr.bf16.gmra.mrb[0].mxu0 %v814
      %v919 = vpop.f32.mrb[0].mxu0
      %v920 = vadd.f32 %v751, %v919
      %v921 = vpop.f32.mrb[0].mxu0
      %v922 = vpop.f32.mrb[0].mxu0
      %v923 = vadd.f32 %v751, %v922
      %v924 = vpop.f32.mrb[0].mxu0
      %925 = vmatprep.mubr.bf16.mxu0 0
      %926 = vmatmul.mubr.bf16.gmra.mrb[0].mxu0 %v817
      %v927 = vpop.f32.mrb[0].mxu0
      %v928 = vadd.f32 %v751, %v927
      %v929 = vpop.f32.mrb[0].mxu0
      %v930 = vpop.f32.mrb[0].mxu0
      %v931 = vadd.f32 %v751, %v930
      %v932 = vpop.f32.mrb[0].mxu0
      %933 = vmatprep.mubr.bf16.mxu0 0
      %934 = vmatmul.mubr.bf16.gmra.mrb[0].mxu0 %v820
      %v935 = vpop.f32.mrb[0].mxu0
      %v936 = vadd.f32 %v751, %v935
      %v937 = vpop.f32.mrb[0].mxu0
      %v938 = vpop.f32.mrb[0].mxu0
      %v939 = vadd.f32 %v751, %v938
      %v940 = vpop.f32.mrb[0].mxu0
      %941 = vmatprep.mubr.bf16.mxu0 0
      %942 = vmatmul.mubr.bf16.gmra.mrb[0].mxu0 %v823
      %v943 = vpop.f32.mrb[0].mxu0
      %v944 = vadd.f32 %v751, %v943
      %v945 = vpop.f32.mrb[0].mxu0
      %v946 = vpop.f32.mrb[0].mxu0
      %v947 = vadd.f32 %v751, %v946
      %v948 = vpop.f32.mrb[0].mxu0
      %949 = vmatprep.mubr.bf16.mxu0 0
      %950 = vmatmul.mubr.bf16.gmra.mrb[0].mxu0 %v826
      %v951 = vpop.f32.mrb[0].mxu0
      %v952 = vadd.f32 %v751, %v951
      %v953 = vpop.f32.mrb[0].mxu0
      %v954 = vpop.f32.mrb[0].mxu0
      %v955 = vadd.f32 %v751, %v954
      %v956 = vpop.f32.mrb[0].mxu0
      %957 = vmatprep.mubr.bf16.mxu0 0
      %958 = vmatmul.mubr.bf16.gmra.mrb[0].mxu0 %v829
      %v959 = vpop.f32.mrb[0].mxu0
      %v960 = vadd.f32 %v751, %v959
      %v961 = vpop.f32.mrb[0].mxu0
      %v962 = vpop.f32.mrb[0].mxu0
      %v963 = vadd.f32 %v751, %v962
      %v964 = vpop.f32.mrb[0].mxu0
      %965 = vmatprep.mubr.bf16.mxu0 0
      %966 = vmatmul.mubr.bf16.gmra.mrb[0].mxu0 %v832
      %v967 = vpop.f32.mrb[0].mxu0
      %v968 = vadd.f32 %v751, %v967
      %v969 = vpop.f32.mrb[0].mxu0
      %v970 = vpop.f32.mrb[0].mxu0
      %v971 = vadd.f32 %v751, %v970
      %v972 = vpop.f32.mrb[0].mxu0
      %973 = vmatprep.mubr.bf16.mxu0 0
      %974 = vmatmul.mubr.bf16.gmra.mrb[0].mxu0 %v835
      %v975 = vpop.f32.mrb[0].mxu0
      %v976 = vadd.f32 %v751, %v975
      %v977 = vpop.f32.mrb[0].mxu0
      %v978 = vpop.f32.mrb[0].mxu0
      %v979 = vadd.f32 %v751, %v978
      %v980 = vpop.f32.mrb[0].mxu0
      %981 = vmatprep.mubr.bf16.mxu0 0
      %982 = vmatmul.mubr.bf16.gmra.mrb[0].mxu0 %v838
      %v983 = vpop.f32.mrb[0].mxu0
      %v984 = vadd.f32 %v751, %v983
      %v985 = vpop.f32.mrb[0].mxu0
      %v986 = vpop.f32.mrb[0].mxu0
      %v987 = vadd.f32 %v751, %v986
      %v988 = vpop.f32.mrb[0].mxu0
      %989 = vmatprep.mubr.bf16.mxu0 0
      %990 = vmatmul.mubr.bf16.gmra.mrb[0].mxu0 %v841
      %v991 = vpop.f32.mrb[0].mxu0
      %v992 = vadd.f32 %v751, %v991
      %v993 = vpop.f32.mrb[0].mxu0
      %v994 = vpop.f32.mrb[0].mxu0
      %v995 = vadd.f32 %v751, %v994
      %v996 = vpop.f32.mrb[0].mxu0
      %997 = vmatprep.mubr.bf16.mxu0 0
      %998 = vmatmul.mubr.bf16.gmra.mrb[0].mxu0 %v844
      %v999 = vpop.f32.mrb[0].mxu0
      %v1000 = vadd.f32 %v751, %v999
      %v1001 = vpop.f32.mrb[0].mxu0
      %v1002 = vpop.f32.mrb[0].mxu0
      %v1003 = vadd.f32 %v751, %v1002
      %v1004 = vpop.f32.mrb[0].mxu0
      %1005 = vmatprep.mubr.bf16.mxu0 0
      %1006 = vmatmul.mubr.bf16.gmra.mrb[0].mxu0 %v847
      %v1007 = vpop.f32.mrb[0].mxu0
      %v1008 = vadd.f32 %v751, %v1007
      %v1009 = vpop.f32.mrb[0].mxu0
      %v1010 = vpop.f32.mrb[0].mxu0
      %v1011 = vadd.f32 %v751, %v1010
      %v1012 = vpop.f32.mrb[0].mxu0
      %1013 = vdwg.mxu0
      %vm1014 = vcmp.ge.f32.partialorder %v888, 0.0
      %vm1015 = vcmp.ge.f32.partialorder %v891, 0.0
      %vm1016 = vcmp.ge.f32.partialorder %v896, 0.0
      %vm1017 = vcmp.ge.f32.partialorder %v899, 0.0
      %vm1018 = vcmp.ge.f32.partialorder %v904, 0.0
      %vm1019 = vcmp.ge.f32.partialorder %v907, 0.0
      %vm1020 = vcmp.ge.f32.partialorder %v912, 0.0
      %vm1021 = vcmp.ge.f32.partialorder %v915, 0.0
      %vm1022 = vcmp.ge.f32.partialorder %v920, 0.0
      %vm1023 = vcmp.ge.f32.partialorder %v923, 0.0
      %vm1024 = vcmp.ge.f32.partialorder %v928, 0.0
      %vm1025 = vcmp.ge.f32.partialorder %v931, 0.0
      %vm1026 = vcmp.ge.f32.partialorder %v936, 0.0
      %vm1027 = vcmp.ge.f32.partialorder %v939, 0.0
      %vm1028 = vcmp.ge.f32.partialorder %v944, 0.0
      %vm1029 = vcmp.ge.f32.partialorder %v947, 0.0
      %vm1030 = vcmp.ge.f32.partialorder %v952, 0.0
      %vm1031 = vcmp.ge.f32.partialorder %v955, 0.0
      %vm1032 = vcmp.ge.f32.partialorder %v960, 0.0
      %vm1033 = vcmp.ge.f32.partialorder %v963, 0.0
      %vm1034 = vcmp.ge.f32.partialorder %v968, 0.0
      %vm1035 = vcmp.ge.f32.partialorder %v971, 0.0
      %vm1036 = vcmp.ge.f32.partialorder %v976, 0.0
      %vm1037 = vcmp.ge.f32.partialorder %v979, 0.0
      %vm1038 = vcmp.ge.f32.partialorder %v984, 0.0
      %vm1039 = vcmp.ge.f32.partialorder %v987, 0.0
      %vm1040 = vcmp.ge.f32.partialorder %v992, 0.0
      %vm1041 = vcmp.ge.f32.partialorder %v995, 0.0
      %vm1042 = vcmp.ge.f32.partialorder %v1000, 0.0
      %vm1043 = vcmp.ge.f32.partialorder %v1003, 0.0
      %vm1044 = vcmp.ge.f32.partialorder %v1008, 0.0
      %vm1045 = vcmp.ge.f32.partialorder %v1011, 0.0
      %v1046 = vmul.f32 %v888, 0.01
      %v1047 = vmul.f32 %v891, 0.01
      %v1048 = vmul.f32 %v896, 0.01
      %v1049 = vmul.f32 %v899, 0.01
      %v1050 = vmul.f32 %v904, 0.01
      %v1051 = vmul.f32 %v907, 0.01
      %v1052 = vmul.f32 %v912, 0.01
      %v1053 = vmul.f32 %v915, 0.01
      %v1054 = vmul.f32 %v920, 0.01
      %v1055 = vmul.f32 %v923, 0.01
      %v1056 = vmul.f32 %v928, 0.01
      %v1057 = vmul.f32 %v931, 0.01
      %v1058 = vmul.f32 %v936, 0.01
      %v1059 = vmul.f32 %v939, 0.01
      %v1060 = vmul.f32 %v944, 0.01
      %v1061 = vmul.f32 %v947, 0.01
      %v1062 = vmul.f32 %v952, 0.01
      %v1063 = vmul.f32 %v955, 0.01
      %v1064 = vmul.f32 %v960, 0.01
      %v1065 = vmul.f32 %v963, 0.01
      %v1066 = vmul.f32 %v968, 0.01
      %v1067 = vmul.f32 %v971, 0.01
      %v1068 = vmul.f32 %v976, 0.01
      %v1069 = vmul.f32 %v979, 0.01
      %v1070 = vmul.f32 %v984, 0.01
      %v1071 = vmul.f32 %v987, 0.01
      %v1072 = vmul.f32 %v992, 0.01
      %v1073 = vmul.f32 %v995, 0.01
      %v1074 = vmul.f32 %v1000, 0.01
      %v1075 = vmul.f32 %v1003, 0.01
      %v1076 = vmul.f32 %v1008, 0.01
      %v1077 = vmul.f32 %v1011, 0.01
      %v1078 = vsel %vm1014, %v888, %v1046
      %v1079 = vsel %vm1015, %v891, %v1047
      %v1080 = vsel %vm1016, %v896, %v1048
      %v1081 = vsel %vm1017, %v899, %v1049
      %v1082 = vsel %vm1018, %v904, %v1050
      %v1083 = vsel %vm1019, %v907, %v1051
      %v1084 = vsel %vm1020, %v912, %v1052
      %v1085 = vsel %vm1021, %v915, %v1053
      %v1086 = vsel %vm1022, %v920, %v1054
      %v1087 = vsel %vm1023, %v923, %v1055
      %v1088 = vsel %vm1024, %v928, %v1056
      %v1089 = vsel %vm1025, %v931, %v1057
      %v1090 = vsel %vm1026, %v936, %v1058
      %v1091 = vsel %vm1027, %v939, %v1059
      %v1092 = vsel %vm1028, %v944, %v1060
      %v1093 = vsel %vm1029, %v947, %v1061
      %v1094 = vsel %vm1030, %v952, %v1062
      %v1095 = vsel %vm1031, %v955, %v1063
      %v1096 = vsel %vm1032, %v960, %v1064
      %v1097 = vsel %vm1033, %v963, %v1065
      %v1098 = vsel %vm1034, %v968, %v1066
      %v1099 = vsel %vm1035, %v971, %v1067
      %v1100 = vsel %vm1036, %v976, %v1068
      %v1101 = vsel %vm1037, %v979, %v1069
      %v1102 = vsel %vm1038, %v984, %v1070
      %v1103 = vsel %vm1039, %v987, %v1071
      %v1104 = vsel %vm1040, %v992, %v1072
      %v1105 = vsel %vm1041, %v995, %v1073
      %v1106 = vsel %vm1042, %v1000, %v1074
      %v1107 = vsel %vm1043, %v1003, %v1075
      %v1108 = vsel %vm1044, %v1008, %v1076
      %v1109 = vsel %vm1045, %v1011, %v1077
      %v1110 = vpack.c.bf16 %v1079, %v1078
      %v1111 = vpack.c.bf16 %v1081, %v1080
      %v1112 = vpack.c.bf16 %v1083, %v1082
      %v1113 = vpack.c.bf16 %v1085, %v1084
      %v1114 = vpack.c.bf16 %v1087, %v1086
      %v1115 = vpack.c.bf16 %v1089, %v1088
      %v1116 = vpack.c.bf16 %v1091, %v1090
      %v1117 = vpack.c.bf16 %v1093, %v1092
      %v1118 = vpack.c.bf16 %v1095, %v1094
      %v1119 = vpack.c.bf16 %v1097, %v1096
      %v1120 = vpack.c.bf16 %v1099, %v1098
      %v1121 = vpack.c.bf16 %v1101, %v1100
      %v1122 = vpack.c.bf16 %v1103, %v1102
      %v1123 = vpack.c.bf16 %v1105, %v1104
      %v1124 = vpack.c.bf16 %v1107, %v1106
      %v1125 = vpack.c.bf16 %v1109, %v1108
      %v1142 = vunpack.c.l.b16 %v1110
      %v1143 = vunpack.c.h.b16 %v1110
      %v1144 = vunpack.c.l.b16 %v1111
      %v1145 = vunpack.c.h.b16 %v1111
      %v1146 = vunpack.c.l.b16 %v1112
      %v1147 = vunpack.c.h.b16 %v1112
      %v1148 = vunpack.c.l.b16 %v1113
      %v1149 = vunpack.c.h.b16 %v1113
      %v1150 = vunpack.c.l.b16 %v1114
      %v1151 = vunpack.c.h.b16 %v1114
      %v1152 = vunpack.c.l.b16 %v1115
      %v1153 = vunpack.c.h.b16 %v1115
      %v1154 = vunpack.c.l.b16 %v1116
      %v1155 = vunpack.c.h.b16 %v1116
      %v1156 = vunpack.c.l.b16 %v1117
      %v1157 = vunpack.c.h.b16 %v1117
      %v1158 = vunpack.c.l.b16 %v1118
      %v1159 = vunpack.c.h.b16 %v1118
      %v1160 = vunpack.c.l.b16 %v1119
      %v1161 = vunpack.c.h.b16 %v1119
      %v1162 = vunpack.c.l.b16 %v1120
      %v1163 = vunpack.c.h.b16 %v1120
      %v1164 = vunpack.c.l.b16 %v1121
      %v1165 = vunpack.c.h.b16 %v1121
      %v1166 = vunpack.c.l.b16 %v1122
      %v1167 = vunpack.c.h.b16 %v1122
      %v1168 = vunpack.c.l.b16 %v1123
      %v1169 = vunpack.c.h.b16 %v1123
      %v1170 = vunpack.c.l.b16 %v1124
      %v1171 = vunpack.c.h.b16 %v1124
      %v1172 = vunpack.c.l.b16 %v1125
      %v1173 = vunpack.c.h.b16 %v1125
      %v1174 = vpack.c.b16 %v1142, %v1142
      %v1175 = vpack.c.b16 %v1143, %v1143
      %v1176 = vpack.c.b16 %v1144, %v1144
      %v1177 = vpack.c.b16 %v1145, %v1145
      %v1178 = vpack.c.b16 %v1146, %v1146
      %v1179 = vpack.c.b16 %v1147, %v1147
      %v1180 = vpack.c.b16 %v1148, %v1148
      %v1181 = vpack.c.b16 %v1149, %v1149
      %v1182 = vpack.c.b16 %v1150, %v1150
      %v1183 = vpack.c.b16 %v1151, %v1151
      %v1184 = vpack.c.b16 %v1152, %v1152
      %v1185 = vpack.c.b16 %v1153, %v1153
      %v1186 = vpack.c.b16 %v1154, %v1154
      %v1187 = vpack.c.b16 %v1155, %v1155
      %v1188 = vpack.c.b16 %v1156, %v1156
      %v1189 = vpack.c.b16 %v1157, %v1157
      %v1190 = vpack.c.b16 %v1158, %v1158
      %v1191 = vpack.c.b16 %v1159, %v1159
      %v1192 = vpack.c.b16 %v1160, %v1160
      %v1193 = vpack.c.b16 %v1161, %v1161
      %v1194 = vpack.c.b16 %v1162, %v1162
      %v1195 = vpack.c.b16 %v1163, %v1163
      %v1196 = vpack.c.b16 %v1164, %v1164
      %v1197 = vpack.c.b16 %v1165, %v1165
      %v1198 = vpack.c.b16 %v1166, %v1166
      %v1199 = vpack.c.b16 %v1167, %v1167
      %v1200 = vpack.c.b16 %v1168, %v1168
      %v1201 = vpack.c.b16 %v1169, %v1169
      %v1202 = vpack.c.b16 %v1170, %v1170
      %v1203 = vpack.c.b16 %v1171, %v1171
      %v1204 = vpack.c.b16 %v1172, %v1172
      %v1205 = vpack.c.b16 %v1173, %v1173
      %vm1238 = vcmask 257024
      %1239 = vst.msk [vmem:[%s293] sm:$0xf] %vm1238, %v1174
      %1240 = vst.msk [vmem:[%s293 + $0x4] sm:$0xf] %vm1238, %v1175
      %1241 = vst.msk [vmem:[%s293 + $0x8] sm:$0xf] %vm1238, %v1176
      %1242 = vst.msk [vmem:[%s293 + $0xc] sm:$0xf] %vm1238, %v1177
      %1243 = vst.msk [vmem:[%s293 + $0x10] sm:$0xf] %vm1238, %v1178
      %1244 = vst.msk [vmem:[%s293 + $0x14] sm:$0xf] %vm1238, %v1179
      %1245 = vst.msk [vmem:[%s293 + $0x18] sm:$0xf] %vm1238, %v1180
      %1246 = vst.msk [vmem:[%s293 + $0x1c] sm:$0xf] %vm1238, %v1181
      %1247 = vst.msk [vmem:[%s293 + $0x20] sm:$0xf] %vm1238, %v1182
      %1248 = vst.msk [vmem:[%s293 + $0x24] sm:$0xf] %vm1238, %v1183
      %1249 = vst.msk [vmem:[%s293 + $0x28] sm:$0xf] %vm1238, %v1184
      %1250 = vst.msk [vmem:[%s293 + $0x2c] sm:$0xf] %vm1238, %v1185
      %1251 = vst.msk [vmem:[%s293 + $0x30] sm:$0xf] %vm1238, %v1186
      %1252 = vst.msk [vmem:[%s293 + $0x34] sm:$0xf] %vm1238, %v1187
      %1253 = vst.msk [vmem:[%s293 + $0x38] sm:$0xf] %vm1238, %v1188
      %1254 = vst.msk [vmem:[%s293 + $0x3c] sm:$0xf] %vm1238, %v1189
      %1255 = vst.msk [vmem:[%s293 + $0x40] sm:$0xf] %vm1238, %v1190
      %1256 = vst.msk [vmem:[%s293 + $0x44] sm:$0xf] %vm1238, %v1191
      %1257 = vst.msk [vmem:[%s293 + $0x48] sm:$0xf] %vm1238, %v1192
      %1258 = vst.msk [vmem:[%s293 + $0x4c] sm:$0xf] %vm1238, %v1193
      %1259 = vst.msk [vmem:[%s293 + $0x50] sm:$0xf] %vm1238, %v1194
      %1260 = vst.msk [vmem:[%s293 + $0x54] sm:$0xf] %vm1238, %v1195
      %1261 = vst.msk [vmem:[%s293 + $0x58] sm:$0xf] %vm1238, %v1196
      %1262 = vst.msk [vmem:[%s293 + $0x5c] sm:$0xf] %vm1238, %v1197
      %1263 = vst.msk [vmem:[%s293 + $0x60] sm:$0xf] %vm1238, %v1198
      %1264 = vst.msk [vmem:[%s293 + $0x64] sm:$0xf] %vm1238, %v1199
      %1265 = vst.msk [vmem:[%s293 + $0x68] sm:$0xf] %vm1238, %v1200
      %1266 = vst.msk [vmem:[%s293 + $0x6c] sm:$0xf] %vm1238, %v1201
      %1267 = vst.msk [vmem:[%s293 + $0x70] sm:$0xf] %vm1238, %v1202
      %1268 = vst.msk [vmem:[%s293 + $0x74] sm:$0xf] %vm1238, %v1203
      %1269 = vst.msk [vmem:[%s293 + $0x78] sm:$0xf] %vm1238, %v1204
      %1270 = vst.msk [vmem:[%s293 + $0x7c] sm:$0xf] %vm1238, %v1205
      %v1272 = vshrl.u32 %v305, 16
      %v1274 = vrot.slane %v1272, 4
      %v1275 = vshll.u32 %v305, 16
      %v1277 = vrot.slane %v1275, 5
      %v1278 = vor.u32 %v1274, %v1277
      %v1279 = vrot.slane %v1278, 4
      %v1281 = vshll.u32 %v306, 16
      %v1283 = vrot.slane %v1281, 5
      %v1284 = vsel %vm361, %v1279, %v1283
      %v1285 = vshrl.u32 %v306, 16
      %v1287 = vrot.slane %v1285, 4
      %v1288 = vor.u32 %v1287, %v1283
      %v1289 = vrot.slane %v1288, 4
      %v1291 = vshll.u32 %v307, 16
      %v1293 = vrot.slane %v1291, 5
      %v1294 = vsel %vm361, %v1289, %v1293
      %vm1343 = vcmask 1042432
      %vm1344 = vcmask 1046532
      %vm1345 = vmor %vm1343, %vm1344
      %v1346 = vrot.slane %v305, 5
      %v1347 = vrot.slane %v1346, 4
      %v1348 = vrot.slane %v306, 5
      %v1349 = vsel %vm1345, %v1347, %v1348
      %v1350 = vrot.slane %v1348, 4
      %v1351 = vrot.slane %v307, 5
      %v1352 = vsel %vm1345, %v1350, %v1351
      %v1353 = vrot.slane %v308, 5
      %v1354 = vrot.slane %v1353, 4
      %v1355 = vrot.slane %v309, 5
      %v1356 = vsel %vm1345, %v1354, %v1355
      %v1357 = vrot.slane %v1355, 4
      %v1358 = vrot.slane %v310, 5
      %v1359 = vsel %vm1345, %v1357, %v1358
      %v1360 = vrot.slane %v311, 5
      %v1361 = vrot.slane %v1360, 4
      %v1362 = vrot.slane %v312, 5
      %v1363 = vsel %vm1345, %v1361, %v1362
      %v1364 = vrot.slane %v1362, 4
      %v1365 = vrot.slane %v313, 5
      %v1366 = vsel %vm1345, %v1364, %v1365
      %v1367 = vrot.slane %v314, 5
      %v1368 = vrot.slane %v1367, 4
      %v1369 = vrot.slane %v315, 5
      %v1370 = vsel %vm1345, %v1368, %v1369
      %v1371 = vrot.slane %v1369, 4
      %v1372 = vrot.slane %v316, 5
      %v1373 = vsel %vm1345, %v1371, %v1372
      %v1374 = vrot.slane %v317, 5
      %v1375 = vrot.slane %v1374, 4
      %v1376 = vrot.slane %v318, 5
      %v1377 = vsel %vm1345, %v1375, %v1376
      %v1378 = vrot.slane %v1376, 4
      %v1379 = vrot.slane %v319, 5
      %v1380 = vsel %vm1345, %v1378, %v1379
      %v1381 = vrot.slane %v320, 5
      %v1382 = vrot.slane %v1381, 4
      %v1383 = vrot.slane %v321, 5
      %v1384 = vsel %vm1345, %v1382, %v1383
      %v1385 = vrot.slane %v1383, 4
      %v1386 = vrot.slane %v322, 5
      %v1387 = vsel %vm1345, %v1385, %v1386
      %v1388 = vrot.slane %v323, 5
      %v1389 = vrot.slane %v1388, 4
      %v1390 = vrot.slane %v324, 5
      %v1391 = vsel %vm1345, %v1389, %v1390
      %v1392 = vrot.slane %v1390, 4
      %v1393 = vrot.slane %v325, 5
      %v1394 = vsel %vm1345, %v1392, %v1393
      %v1395 = vrot.slane %v326, 5
      %v1396 = vrot.slane %v1395, 4
      %v1397 = vrot.slane %v327, 5
      %v1398 = vsel %vm1345, %v1396, %v1397
      %v1399 = vrot.slane %v1397, 4
      %v1400 = vrot.slane %v328, 5
      %v1401 = vsel %vm1345, %v1399, %v1400
      %v1402 = vrot.slane %v329, 5
      %v1403 = vrot.slane %v1402, 4
      %v1404 = vrot.slane %v330, 5
      %v1405 = vsel %vm1345, %v1403, %v1404
      %v1406 = vrot.slane %v1404, 4
      %v1407 = vrot.slane %v331, 5
      %v1408 = vsel %vm1345, %v1406, %v1407
      %v1409 = vrot.slane %v332, 5
      %v1410 = vrot.slane %v1409, 4
      %v1411 = vrot.slane %v333, 5
      %v1412 = vsel %vm1345, %v1410, %v1411
      %v1413 = vrot.slane %v1411, 4
      %v1414 = vrot.slane %v334, 5
      %v1415 = vsel %vm1345, %v1413, %v1414
      %v1416 = vrot.slane %v335, 5
      %v1417 = vrot.slane %v1416, 4
      %v1418 = vrot.slane %v336, 5
      %v1419 = vsel %vm1345, %v1417, %v1418
      %v1420 = vrot.slane %v1418, 4
      %v1421 = vrot.slane %v337, 5
      %v1422 = vsel %vm1345, %v1420, %v1421
      %v1423 = vrot.slane %v338, 5
      %v1424 = vrot.slane %v1423, 4
      %v1425 = vrot.slane %v339, 5
      %v1426 = vsel %vm1345, %v1424, %v1425
      %v1427 = vrot.slane %v1425, 4
      %v1428 = vrot.slane %v340, 5
      %v1429 = vsel %vm1345, %v1427, %v1428
      %v1430 = vrot.slane %v341, 5
      %v1431 = vrot.slane %v1430, 4
      %v1432 = vrot.slane %v342, 5
      %v1433 = vsel %vm1345, %v1431, %v1432
      %v1434 = vrot.slane %v1432, 4
      %v1435 = vrot.slane %v343, 5
      %v1436 = vsel %vm1345, %v1434, %v1435
      %v1437 = vrot.slane %v344, 5
      %v1438 = vrot.slane %v1437, 4
      %v1439 = vrot.slane %v345, 5
      %v1440 = vsel %vm1345, %v1438, %v1439
      %v1441 = vrot.slane %v1439, 4
      %v1442 = vrot.slane %v346, 5
      %v1443 = vsel %vm1345, %v1441, %v1442
      %v1444 = vrot.slane %v347, 5
      %v1445 = vrot.slane %v1444, 4
      %v1446 = vrot.slane %v348, 5
      %v1447 = vsel %vm1345, %v1445, %v1446
      %v1448 = vrot.slane %v1446, 4
      %v1449 = vrot.slane %v349, 5
      %v1450 = vsel %vm1345, %v1448, %v1449
      %v1451 = vrot.slane %v350, 5
      %v1452 = vrot.slane %v1451, 4
      %v1453 = vrot.slane %v351, 5
      %v1454 = vsel %vm1345, %v1452, %v1453
      %v1455 = vrot.slane %v1453, 4
      %v1456 = vrot.slane %v352, 5
      %v1457 = vsel %vm1345, %v1455, %v1456
      %v1461 = vrot.slane %v353, 5
      %v1462 = vrot.slane %v1461, 4
      %v1463 = vrot.slane %v354, 5
      %v1464 = vsel %vm1345, %v1462, %v1463
      %v1465 = vrot.slane %v1463, 4
      %v1466 = vrot.slane %v355, 5
      %v1467 = vsel %vm1345, %v1465, %v1466
      %v1469 = vshrl.u32 %v356, 16
      %v1471 = vrot.slane %v1469, 4
      %v1472 = vshll.u32 %v356, 16
      %v1474 = vrot.slane %v1472, 5
      %v1475 = vor.u32 %v1471, %v1474
      %v1476 = vrot.slane %v1475, 4
      %v1478 = vshll.u32 %v357, 16
      %v1480 = vrot.slane %v1478, 5
      %v1481 = vsel %vm361, %v1476, %v1480
      %v1482 = vshrl.u32 %v357, 16
      %v1484 = vrot.slane %v1482, 4
      %v1485 = vor.u32 %v1484, %v1480
      %v1486 = vrot.slane %v1485, 4
      %v1488 = vshll.u32 %v358, 16
      %v1490 = vrot.slane %v1488, 5
      %v1491 = vsel %vm361, %v1486, %v1490
      %v1495 = vrot.slane %v356, 5
      %v1496 = vrot.slane %v1495, 4
      %v1497 = vrot.slane %v357, 5
      %v1498 = vsel %vm1345, %v1496, %v1497
      %v1499 = vrot.slane %v1497, 4
      %v1500 = vrot.slane %v358, 5
      %v1501 = vsel %vm1345, %v1499, %v1500
      %v1502 = vunpack.c.l.b16 %v305
      %v1503 = vunpack.c.l.b16 %v306
      %v1504 = vunpack.c.l.b16 %v308
      %v1505 = vunpack.c.l.b16 %v309
      %v1506 = vunpack.c.l.b16 %v311
      %v1507 = vunpack.c.l.b16 %v312
      %v1508 = vunpack.c.l.b16 %v314
      %v1509 = vunpack.c.l.b16 %v315
      %v1510 = vunpack.c.l.b16 %v317
      %v1511 = vunpack.c.l.b16 %v318
      %v1512 = vunpack.c.l.b16 %v320
      %v1513 = vunpack.c.l.b16 %v321
      %v1514 = vunpack.c.l.b16 %v323
      %v1515 = vunpack.c.l.b16 %v324
      %v1516 = vunpack.c.l.b16 %v326
      %v1517 = vunpack.c.l.b16 %v327
      %v1518 = vunpack.c.l.b16 %v329
      %v1519 = vunpack.c.l.b16 %v330
      %v1520 = vunpack.c.l.b16 %v332
      %v1521 = vunpack.c.l.b16 %v333
      %v1522 = vunpack.c.l.b16 %v335
      %v1523 = vunpack.c.l.b16 %v336
      %v1524 = vunpack.c.l.b16 %v338
      %v1525 = vunpack.c.l.b16 %v339
      %v1526 = vunpack.c.l.b16 %v341
      %v1527 = vunpack.c.l.b16 %v342
      %v1528 = vunpack.c.l.b16 %v344
      %v1529 = vunpack.c.l.b16 %v345
      %v1530 = vunpack.c.l.b16 %v347
      %v1531 = vunpack.c.l.b16 %v348
      %v1532 = vunpack.c.l.b16 %v350
      %v1533 = vunpack.c.l.b16 %v351
      %v1534 = vpack.c.b16 %v1503, %v1502
      %v1535 = vpack.c.b16 %v1505, %v1504
      %v1536 = vpack.c.b16 %v1507, %v1506
      %v1537 = vpack.c.b16 %v1509, %v1508
      %v1538 = vpack.c.b16 %v1511, %v1510
      %v1539 = vpack.c.b16 %v1513, %v1512
      %v1540 = vpack.c.b16 %v1515, %v1514
      %v1541 = vpack.c.b16 %v1517, %v1516
      %v1542 = vpack.c.b16 %v1519, %v1518
      %v1543 = vpack.c.b16 %v1521, %v1520
      %v1544 = vpack.c.b16 %v1523, %v1522
      %v1545 = vpack.c.b16 %v1525, %v1524
      %v1546 = vpack.c.b16 %v1527, %v1526
      %v1547 = vpack.c.b16 %v1529, %v1528
      %v1548 = vpack.c.b16 %v1531, %v1530
      %v1549 = vpack.c.b16 %v1533, %v1532
      %v1550 = vunpack.c.l.b16 %v1284
      %v1551 = vunpack.c.l.b16 %v1294
      %v1552 = vpack.c.b16 %v1551, %v1550
      %1553 = vrot.lane.b32.xlu0 %v1552, 4
      %v1554 = vpop.permute.xlu0 %1553
      %1555 = vrot.lane.b32.xlu0 %v784, 4
      %v1556 = vpop.permute.xlu0 %1555
      %1557 = vrot.lane.b32.xlu0 %v785, 4
      %v1558 = vpop.permute.xlu0 %1557
      %1559 = vrot.lane.b32.xlu0 %v786, 4
      %v1560 = vpop.permute.xlu0 %1559
      %1561 = vrot.lane.b32.xlu0 %v787, 4
      %v1562 = vpop.permute.xlu0 %1561
      %1563 = vrot.lane.b32.xlu0 %v788, 4
      %v1564 = vpop.permute.xlu0 %1563
      %1565 = vrot.lane.b32.xlu0 %v789, 4
      %v1566 = vpop.permute.xlu0 %1565
      %1567 = vrot.lane.b32.xlu0 %v790, 4
      %v1568 = vpop.permute.xlu0 %1567
      %1569 = vrot.lane.b32.xlu0 %v791, 4
      %v1570 = vpop.permute.xlu0 %1569
      %1571 = vrot.lane.b32.xlu0 %v792, 4
      %v1572 = vpop.permute.xlu0 %1571
      %1573 = vrot.lane.b32.xlu0 %v793, 4
      %v1574 = vpop.permute.xlu0 %1573
      %1575 = vrot.lane.b32.xlu0 %v794, 4
      %v1576 = vpop.permute.xlu0 %1575
      %1577 = vrot.lane.b32.xlu0 %v795, 4
      %v1578 = vpop.permute.xlu0 %1577
      %1579 = vrot.lane.b32.xlu0 %v796, 4
      %v1580 = vpop.permute.xlu0 %1579
      %1581 = vrot.lane.b32.xlu0 %v797, 4
      %v1582 = vpop.permute.xlu0 %1581
      %1583 = vrot.lane.b32.xlu0 %v798, 4
      %v1584 = vpop.permute.xlu0 %1583
      %v1585 = vunpack.c.l.b16 %v1349
      %v1586 = vunpack.c.l.b16 %v1352
      %v1587 = vunpack.c.l.b16 %v1356
      %v1588 = vunpack.c.l.b16 %v1359
      %v1589 = vunpack.c.l.b16 %v1363
      %v1590 = vunpack.c.l.b16 %v1366
      %v1591 = vunpack.c.l.b16 %v1370
      %v1592 = vunpack.c.l.b16 %v1373
      %v1593 = vunpack.c.l.b16 %v1377
      %v1594 = vunpack.c.l.b16 %v1380
      %v1595 = vunpack.c.l.b16 %v1384
      %v1596 = vunpack.c.l.b16 %v1387
      %v1597 = vunpack.c.l.b16 %v1391
      %v1598 = vunpack.c.l.b16 %v1394
      %v1599 = vunpack.c.l.b16 %v1398
      %v1600 = vunpack.c.l.b16 %v1401
      %v1601 = vunpack.c.l.b16 %v1405
      %v1602 = vunpack.c.l.b16 %v1408
      %v1603 = vunpack.c.l.b16 %v1412
      %v1604 = vunpack.c.l.b16 %v1415
      %v1605 = vunpack.c.l.b16 %v1419
      %v1606 = vunpack.c.l.b16 %v1422
      %v1607 = vunpack.c.l.b16 %v1426
      %v1608 = vunpack.c.l.b16 %v1429
      %v1609 = vunpack.c.l.b16 %v1433
      %v1610 = vunpack.c.l.b16 %v1436
      %v1611 = vunpack.c.l.b16 %v1440
      %v1612 = vunpack.c.l.b16 %v1443
      %v1613 = vunpack.c.l.b16 %v1447
      %v1614 = vunpack.c.l.b16 %v1450
      %v1615 = vunpack.c.l.b16 %v1454
      %v1616 = vunpack.c.l.b16 %v1457
      %v1617 = vpack.c.b16 %v1586, %v1585
      %v1618 = vpack.c.b16 %v1588, %v1587
      %v1619 = vpack.c.b16 %v1590, %v1589
      %v1620 = vpack.c.b16 %v1592, %v1591
      %v1621 = vpack.c.b16 %v1594, %v1593
      %v1622 = vpack.c.b16 %v1596, %v1595
      %v1623 = vpack.c.b16 %v1598, %v1597
      %v1624 = vpack.c.b16 %v1600, %v1599
      %v1625 = vpack.c.b16 %v1602, %v1601
      %v1626 = vpack.c.b16 %v1604, %v1603
      %v1627 = vpack.c.b16 %v1606, %v1605
      %v1628 = vpack.c.b16 %v1608, %v1607
      %v1629 = vpack.c.b16 %v1610, %v1609
      %v1630 = vpack.c.b16 %v1612, %v1611
      %v1631 = vpack.c.b16 %v1614, %v1613
      %v1632 = vpack.c.b16 %v1616, %v1615
      %1633 = vrot.lane.b32.xlu0 %v1617, 8
      %v1634 = vpop.permute.xlu0 %1633
      %1635 = vrot.lane.b32.xlu0 %v1618, 8
      %v1636 = vpop.permute.xlu0 %1635
      %1637 = vrot.lane.b32.xlu0 %v1619, 8
      %v1638 = vpop.permute.xlu0 %1637
      %1639 = vrot.lane.b32.xlu0 %v1620, 8
      %v1640 = vpop.permute.xlu0 %1639
      %1641 = vrot.lane.b32.xlu0 %v1621, 8
      %v1642 = vpop.permute.xlu0 %1641
      %1643 = vrot.lane.b32.xlu0 %v1622, 8
      %v1644 = vpop.permute.xlu0 %1643
      %1645 = vrot.lane.b32.xlu0 %v1623, 8
      %v1646 = vpop.permute.xlu0 %1645
      %1647 = vrot.lane.b32.xlu0 %v1624, 8
      %v1648 = vpop.permute.xlu0 %1647
      %1649 = vrot.lane.b32.xlu0 %v1625, 8
      %v1650 = vpop.permute.xlu0 %1649
      %1651 = vrot.lane.b32.xlu0 %v1626, 8
      %v1652 = vpop.permute.xlu0 %1651
      %1653 = vrot.lane.b32.xlu0 %v1627, 8
      %v1654 = vpop.permute.xlu0 %1653
      %1655 = vrot.lane.b32.xlu0 %v1628, 8
      %v1656 = vpop.permute.xlu0 %1655
      %1657 = vrot.lane.b32.xlu0 %v1629, 8
      %v1658 = vpop.permute.xlu0 %1657
      %1659 = vrot.lane.b32.xlu0 %v1630, 8
      %v1660 = vpop.permute.xlu0 %1659
      %1661 = vrot.lane.b32.xlu0 %v1631, 8
      %v1662 = vpop.permute.xlu0 %1661
      %1663 = vrot.lane.b32.xlu0 %v1632, 8
      %v1664 = vpop.permute.xlu0 %1663
      %v1665 = vunpack.c.l.b16 %v353
      %v1666 = vunpack.c.l.b16 %v354
      %v1667 = vpack.c.b16 %v1666, %v1665
      %1668 = vrot.lane.b32.xlu0 %v1535, 12
      %v1669 = vpop.permute.xlu0 %1668
      %1670 = vrot.lane.b32.xlu0 %v1536, 12
      %v1671 = vpop.permute.xlu0 %1670
      %1672 = vrot.lane.b32.xlu0 %v1537, 12
      %v1673 = vpop.permute.xlu0 %1672
      %1674 = vrot.lane.b32.xlu0 %v1538, 12
      %v1675 = vpop.permute.xlu0 %1674
      %1676 = vrot.lane.b32.xlu0 %v1539, 12
      %v1677 = vpop.permute.xlu0 %1676
      %1678 = vrot.lane.b32.xlu0 %v1540, 12
      %v1679 = vpop.permute.xlu0 %1678
      %1680 = vrot.lane.b32.xlu0 %v1541, 12
      %v1681 = vpop.permute.xlu0 %1680
      %1682 = vrot.lane.b32.xlu0 %v1542, 12
      %v1683 = vpop.permute.xlu0 %1682
      %1684 = vrot.lane.b32.xlu0 %v1543, 12
      %v1685 = vpop.permute.xlu0 %1684
      %1686 = vrot.lane.b32.xlu0 %v1544, 12
      %v1687 = vpop.permute.xlu0 %1686
      %1688 = vrot.lane.b32.xlu0 %v1545, 12
      %v1689 = vpop.permute.xlu0 %1688
      %1690 = vrot.lane.b32.xlu0 %v1546, 12
      %v1691 = vpop.permute.xlu0 %1690
      %1692 = vrot.lane.b32.xlu0 %v1547, 12
      %v1693 = vpop.permute.xlu0 %1692
      %1694 = vrot.lane.b32.xlu0 %v1548, 12
      %v1695 = vpop.permute.xlu0 %1694
      %1696 = vrot.lane.b32.xlu0 %v1549, 12
      %v1697 = vpop.permute.xlu0 %1696
      %1698 = vrot.lane.b32.xlu0 %v1667, 12
      %v1699 = vpop.permute.xlu0 %1698
      %1700 = vrot.lane.b32.xlu0 %v784, 16
      %v1701 = vpop.permute.xlu0 %1700
      %1702 = vrot.lane.b32.xlu0 %v785, 16
      %v1703 = vpop.permute.xlu0 %1702
      %1704 = vrot.lane.b32.xlu0 %v786, 16
      %v1705 = vpop.permute.xlu0 %1704
      %1706 = vrot.lane.b32.xlu0 %v787, 16
      %v1707 = vpop.permute.xlu0 %1706
      %1708 = vrot.lane.b32.xlu0 %v788, 16
      %v1709 = vpop.permute.xlu0 %1708
      %1710 = vrot.lane.b32.xlu0 %v789, 16
      %v1711 = vpop.permute.xlu0 %1710
      %1712 = vrot.lane.b32.xlu0 %v790, 16
      %v1713 = vpop.permute.xlu0 %1712
      %1714 = vrot.lane.b32.xlu0 %v791, 16
      %v1715 = vpop.permute.xlu0 %1714
      %1716 = vrot.lane.b32.xlu0 %v792, 16
      %v1717 = vpop.permute.xlu0 %1716
      %1718 = vrot.lane.b32.xlu0 %v793, 16
      %v1719 = vpop.permute.xlu0 %1718
      %1720 = vrot.lane.b32.xlu0 %v794, 16
      %v1721 = vpop.permute.xlu0 %1720
      %1722 = vrot.lane.b32.xlu0 %v795, 16
      %v1723 = vpop.permute.xlu0 %1722
      %1724 = vrot.lane.b32.xlu0 %v796, 16
      %v1725 = vpop.permute.xlu0 %1724
      %1726 = vrot.lane.b32.xlu0 %v797, 16
      %v1727 = vpop.permute.xlu0 %1726
      %1728 = vrot.lane.b32.xlu0 %v798, 16
      %v1729 = vpop.permute.xlu0 %1728
      %1730 = vrot.lane.b32.xlu0 %v799, 16
      %v1731 = vpop.permute.xlu0 %1730
      %v1732 = vunpack.c.l.b16 %v1464
      %v1733 = vunpack.c.l.b16 %v1467
      %v1734 = vpack.c.b16 %v1733, %v1732
      %1735 = vrot.lane.b32.xlu0 %v1618, 20
      %v1736 = vpop.permute.xlu0 %1735
      %1737 = vrot.lane.b32.xlu0 %v1619, 20
      %v1738 = vpop.permute.xlu0 %1737
      %1739 = vrot.lane.b32.xlu0 %v1620, 20
      %v1740 = vpop.permute.xlu0 %1739
      %1741 = vrot.lane.b32.xlu0 %v1621, 20
      %v1742 = vpop.permute.xlu0 %1741
      %1743 = vrot.lane.b32.xlu0 %v1622, 20
      %v1744 = vpop.permute.xlu0 %1743
      %1745 = vrot.lane.b32.xlu0 %v1623, 20
      %v1746 = vpop.permute.xlu0 %1745
      %1747 = vrot.lane.b32.xlu0 %v1624, 20
      %v1748 = vpop.permute.xlu0 %1747
      %1749 = vrot.lane.b32.xlu0 %v1625, 20
      %v1750 = vpop.permute.xlu0 %1749
      %1751 = vrot.lane.b32.xlu0 %v1626, 20
      %v1752 = vpop.permute.xlu0 %1751
      %1753 = vrot.lane.b32.xlu0 %v1627, 20
      %v1754 = vpop.permute.xlu0 %1753
      %1755 = vrot.lane.b32.xlu0 %v1628, 20
      %v1756 = vpop.permute.xlu0 %1755
      %1757 = vrot.lane.b32.xlu0 %v1629, 20
      %v1758 = vpop.permute.xlu0 %1757
      %1759 = vrot.lane.b32.xlu0 %v1630, 20
      %v1760 = vpop.permute.xlu0 %1759
      %1761 = vrot.lane.b32.xlu0 %v1631, 20
      %v1762 = vpop.permute.xlu0 %1761
      %1763 = vrot.lane.b32.xlu0 %v1632, 20
      %v1764 = vpop.permute.xlu0 %1763
      %1765 = vrot.lane.b32.xlu0 %v1734, 20
      %v1766 = vpop.permute.xlu0 %1765
      %v1767 = vunpack.c.l.b16 %v356
      %v1768 = vunpack.c.l.b16 %v357
      %v1769 = vpack.c.b16 %v1768, %v1767
      %1770 = vrot.lane.b32.xlu0 %v1536, 24
      %v1771 = vpop.permute.xlu0 %1770
      %1772 = vrot.lane.b32.xlu0 %v1537, 24
      %v1773 = vpop.permute.xlu0 %1772
      %1774 = vrot.lane.b32.xlu0 %v1538, 24
      %v1775 = vpop.permute.xlu0 %1774
      %1776 = vrot.lane.b32.xlu0 %v1539, 24
      %v1777 = vpop.permute.xlu0 %1776
      %1778 = vrot.lane.b32.xlu0 %v1540, 24
      %v1779 = vpop.permute.xlu0 %1778
      %1780 = vrot.lane.b32.xlu0 %v1541, 24
      %v1781 = vpop.permute.xlu0 %1780
      %1782 = vrot.lane.b32.xlu0 %v1542, 24
      %v1783 = vpop.permute.xlu0 %1782
      %1784 = vrot.lane.b32.xlu0 %v1543, 24
      %v1785 = vpop.permute.xlu0 %1784
      %1786 = vrot.lane.b32.xlu0 %v1544, 24
      %v1787 = vpop.permute.xlu0 %1786
      %1788 = vrot.lane.b32.xlu0 %v1545, 24
      %v1789 = vpop.permute.xlu0 %1788
      %1790 = vrot.lane.b32.xlu0 %v1546, 24
      %v1791 = vpop.permute.xlu0 %1790
      %1792 = vrot.lane.b32.xlu0 %v1547, 24
      %v1793 = vpop.permute.xlu0 %1792
      %1794 = vrot.lane.b32.xlu0 %v1548, 24
      %v1795 = vpop.permute.xlu0 %1794
      %1796 = vrot.lane.b32.xlu0 %v1549, 24
      %v1797 = vpop.permute.xlu0 %1796
      %1798 = vrot.lane.b32.xlu0 %v1667, 24
      %v1799 = vpop.permute.xlu0 %1798
      %1800 = vrot.lane.b32.xlu0 %v1769, 24
      %v1801 = vpop.permute.xlu0 %1800
      %v1802 = vunpack.c.l.b16 %v1481
      %v1803 = vunpack.c.l.b16 %v1491
      %v1804 = vpack.c.b16 %v1803, %v1802
      %1805 = vrot.lane.b32.xlu0 %v785, 28
      %v1806 = vpop.permute.xlu0 %1805
      %1807 = vrot.lane.b32.xlu0 %v786, 28
      %v1808 = vpop.permute.xlu0 %1807
      %1809 = vrot.lane.b32.xlu0 %v787, 28
      %v1810 = vpop.permute.xlu0 %1809
      %1811 = vrot.lane.b32.xlu0 %v788, 28
      %v1812 = vpop.permute.xlu0 %1811
      %1813 = vrot.lane.b32.xlu0 %v789, 28
      %v1814 = vpop.permute.xlu0 %1813
      %1815 = vrot.lane.b32.xlu0 %v790, 28
      %v1816 = vpop.permute.xlu0 %1815
      %1817 = vrot.lane.b32.xlu0 %v791, 28
      %v1818 = vpop.permute.xlu0 %1817
      %1819 = vrot.lane.b32.xlu0 %v792, 28
      %v1820 = vpop.permute.xlu0 %1819
      %1821 = vrot.lane.b32.xlu0 %v793, 28
      %v1822 = vpop.permute.xlu0 %1821
      %1823 = vrot.lane.b32.xlu0 %v794, 28
      %v1824 = vpop.permute.xlu0 %1823
      %1825 = vrot.lane.b32.xlu0 %v795, 28
      %v1826 = vpop.permute.xlu0 %1825
      %1827 = vrot.lane.b32.xlu0 %v796, 28
      %v1828 = vpop.permute.xlu0 %1827
      %1829 = vrot.lane.b32.xlu0 %v797, 28
      %v1830 = vpop.permute.xlu0 %1829
      %1831 = vrot.lane.b32.xlu0 %v798, 28
      %v1832 = vpop.permute.xlu0 %1831
      %1833 = vrot.lane.b32.xlu0 %v799, 28
      %v1834 = vpop.permute.xlu0 %1833
      %1835 = vrot.lane.b32.xlu0 %v1804, 28
      %v1836 = vpop.permute.xlu0 %1835
      %v1837 = vunpack.c.l.b16 %v1498
      %v1838 = vunpack.c.l.b16 %v1501
      %v1839 = vpack.c.b16 %v1838, %v1837
      %1840 = vrot.lane.b32.xlu0 %v1619, 32
      %v1841 = vpop.permute.xlu0 %1840
      %1842 = vrot.lane.b32.xlu0 %v1620, 32
      %v1843 = vpop.permute.xlu0 %1842
      %1844 = vrot.lane.b32.xlu0 %v1621, 32
      %v1845 = vpop.permute.xlu0 %1844
      %1846 = vrot.lane.b32.xlu0 %v1622, 32
      %v1847 = vpop.permute.xlu0 %1846
      %1848 = vrot.lane.b32.xlu0 %v1623, 32
      %v1849 = vpop.permute.xlu0 %1848
      %1850 = vrot.lane.b32.xlu0 %v1624, 32
      %v1851 = vpop.permute.xlu0 %1850
      %1852 = vrot.lane.b32.xlu0 %v1625, 32
      %v1853 = vpop.permute.xlu0 %1852
      %1854 = vrot.lane.b32.xlu0 %v1626, 32
      %v1855 = vpop.permute.xlu0 %1854
      %1856 = vrot.lane.b32.xlu0 %v1627, 32
      %v1857 = vpop.permute.xlu0 %1856
      %1858 = vrot.lane.b32.xlu0 %v1628, 32
      %v1859 = vpop.permute.xlu0 %1858
      %1860 = vrot.lane.b32.xlu0 %v1629, 32
      %v1861 = vpop.permute.xlu0 %1860
      %1862 = vrot.lane.b32.xlu0 %v1630, 32
      %v1863 = vpop.permute.xlu0 %1862
      %1864 = vrot.lane.b32.xlu0 %v1631, 32
      %v1865 = vpop.permute.xlu0 %1864
      %1866 = vrot.lane.b32.xlu0 %v1632, 32
      %v1867 = vpop.permute.xlu0 %1866
      %1868 = vrot.lane.b32.xlu0 %v1734, 32
      %v1869 = vpop.permute.xlu0 %1868
      %1870 = vrot.lane.b32.xlu0 %v1839, 32
      %v1871 = vpop.permute.xlu0 %1870
      %v1874 = vsel %vm800, %v1534, %v1554
      %v1877 = vsel %vm800, %v1535, %v1556
      %v1880 = vsel %vm800, %v1536, %v1558
      %v1883 = vsel %vm800, %v1537, %v1560
      %v1886 = vsel %vm800, %v1538, %v1562
      %v1889 = vsel %vm800, %v1539, %v1564
      %v1892 = vsel %vm800, %v1540, %v1566
      %v1895 = vsel %vm800, %v1541, %v1568
      %v1898 = vsel %vm800, %v1542, %v1570
      %v1901 = vsel %vm800, %v1543, %v1572
      %v1904 = vsel %vm800, %v1544, %v1574
      %v1907 = vsel %vm800, %v1545, %v1576
      %v1910 = vsel %vm800, %v1546, %v1578
      %v1913 = vsel %vm800, %v1547, %v1580
      %v1916 = vsel %vm800, %v1548, %v1582
      %v1919 = vsel %vm800, %v1549, %v1584
      %vm1920 = vcmask 64512
      %v1922 = vsel %vm1920, %v1874, %v1634
      %v1924 = vsel %vm1920, %v1877, %v1636
      %v1926 = vsel %vm1920, %v1880, %v1638
      %v1928 = vsel %vm1920, %v1883, %v1640
      %v1930 = vsel %vm1920, %v1886, %v1642
      %v1932 = vsel %vm1920, %v1889, %v1644
      %v1934 = vsel %vm1920, %v1892, %v1646
      %v1936 = vsel %vm1920, %v1895, %v1648
      %v1938 = vsel %vm1920, %v1898, %v1650
      %v1940 = vsel %vm1920, %v1901, %v1652
      %v1942 = vsel %vm1920, %v1904, %v1654
      %v1944 = vsel %vm1920, %v1907, %v1656
      %v1946 = vsel %vm1920, %v1910, %v1658
      %v1948 = vsel %vm1920, %v1913, %v1660
      %v1950 = vsel %vm1920, %v1916, %v1662
      %v1952 = vsel %vm1920, %v1919, %v1664
      %vm1953 = vcmask 97280
      %v1955 = vsel %vm1953, %v1922, %v1669
      %v1957 = vsel %vm1953, %v1924, %v1671
      %v1959 = vsel %vm1953, %v1926, %v1673
      %v1961 = vsel %vm1953, %v1928, %v1675
      %v1963 = vsel %vm1953, %v1930, %v1677
      %v1965 = vsel %vm1953, %v1932, %v1679
      %v1967 = vsel %vm1953, %v1934, %v1681
      %v1969 = vsel %vm1953, %v1936, %v1683
      %v1971 = vsel %vm1953, %v1938, %v1685
      %v1973 = vsel %vm1953, %v1940, %v1687
      %v1975 = vsel %vm1953, %v1942, %v1689
      %v1977 = vsel %vm1953, %v1944, %v1691
      %v1979 = vsel %vm1953, %v1946, %v1693
      %v1981 = vsel %vm1953, %v1948, %v1695
      %v1983 = vsel %vm1953, %v1950, %v1697
      %v1985 = vsel %vm1953, %v1952, %v1699
      %vm1986 = vcmask 130048
      %v1988 = vsel %vm1986, %v1955, %v1701
      %v1990 = vsel %vm1986, %v1957, %v1703
      %v1992 = vsel %vm1986, %v1959, %v1705
      %v1994 = vsel %vm1986, %v1961, %v1707
      %v1996 = vsel %vm1986, %v1963, %v1709
      %v1998 = vsel %vm1986, %v1965, %v1711
      %v2000 = vsel %vm1986, %v1967, %v1713
      %v2002 = vsel %vm1986, %v1969, %v1715
      %v2004 = vsel %vm1986, %v1971, %v1717
      %v2006 = vsel %vm1986, %v1973, %v1719
      %v2008 = vsel %vm1986, %v1975, %v1721
      %v2010 = vsel %vm1986, %v1977, %v1723
      %v2012 = vsel %vm1986, %v1979, %v1725
      %v2014 = vsel %vm1986, %v1981, %v1727
      %v2016 = vsel %vm1986, %v1983, %v1729
      %v2018 = vsel %vm1986, %v1985, %v1731
      %vm2019 = vcmask 162816
      %v2021 = vsel %vm2019, %v1988, %v1736
      %v2023 = vsel %vm2019, %v1990, %v1738
      %v2025 = vsel %vm2019, %v1992, %v1740
      %v2027 = vsel %vm2019, %v1994, %v1742
      %v2029 = vsel %vm2019, %v1996, %v1744
      %v2031 = vsel %vm2019, %v1998, %v1746
      %v2033 = vsel %vm2019, %v2000, %v1748
      %v2035 = vsel %vm2019, %v2002, %v1750
      %v2037 = vsel %vm2019, %v2004, %v1752
      %v2039 = vsel %vm2019, %v2006, %v1754
      %v2041 = vsel %vm2019, %v2008, %v1756
      %v2043 = vsel %vm2019, %v2010, %v1758
      %v2045 = vsel %vm2019, %v2012, %v1760
      %v2047 = vsel %vm2019, %v2014, %v1762
      %v2049 = vsel %vm2019, %v2016, %v1764
      %v2051 = vsel %vm2019, %v2018, %v1766
      %vm2052 = vcmask 195584
      %v2054 = vsel %vm2052, %v2021, %v1771
      %v2056 = vsel %vm2052, %v2023, %v1773
      %v2058 = vsel %vm2052, %v2025, %v1775
      %v2060 = vsel %vm2052, %v2027, %v1777
      %v2062 = vsel %vm2052, %v2029, %v1779
      %v2064 = vsel %vm2052, %v2031, %v1781
      %v2066 = vsel %vm2052, %v2033, %v1783
      %v2068 = vsel %vm2052, %v2035, %v1785
      %v2070 = vsel %vm2052, %v2037, %v1787
      %v2072 = vsel %vm2052, %v2039, %v1789
      %v2074 = vsel %vm2052, %v2041, %v1791
      %v2076 = vsel %vm2052, %v2043, %v1793
      %v2078 = vsel %vm2052, %v2045, %v1795
      %v2080 = vsel %vm2052, %v2047, %v1797
      %v2082 = vsel %vm2052, %v2049, %v1799
      %v2084 = vsel %vm2052, %v2051, %v1801
      %vm2085 = vcmask 228352
      %v2087 = vsel %vm2085, %v2054, %v1806
      %v2089 = vsel %vm2085, %v2056, %v1808
      %v2091 = vsel %vm2085, %v2058, %v1810
      %v2093 = vsel %vm2085, %v2060, %v1812
      %v2095 = vsel %vm2085, %v2062, %v1814
      %v2097 = vsel %vm2085, %v2064, %v1816
      %v2099 = vsel %vm2085, %v2066, %v1818
      %v2101 = vsel %vm2085, %v2068, %v1820
      %v2103 = vsel %vm2085, %v2070, %v1822
      %v2105 = vsel %vm2085, %v2072, %v1824
      %v2107 = vsel %vm2085, %v2074, %v1826
      %v2109 = vsel %vm2085, %v2076, %v1828
      %v2111 = vsel %vm2085, %v2078, %v1830
      %v2113 = vsel %vm2085, %v2080, %v1832
      %v2115 = vsel %vm2085, %v2082, %v1834
      %v2117 = vsel %vm2085, %v2084, %v1836
      %vm2118 = vcmask 261120
      %v2120 = vsel %vm2118, %v2087, %v1841
      %v2122 = vsel %vm2118, %v2089, %v1843
      %v2124 = vsel %vm2118, %v2091, %v1845
      %v2126 = vsel %vm2118, %v2093, %v1847
      %v2128 = vsel %vm2118, %v2095, %v1849
      %v2130 = vsel %vm2118, %v2097, %v1851
      %v2132 = vsel %vm2118, %v2099, %v1853
      %v2134 = vsel %vm2118, %v2101, %v1855
      %v2136 = vsel %vm2118, %v2103, %v1857
      %v2138 = vsel %vm2118, %v2105, %v1859
      %v2140 = vsel %vm2118, %v2107, %v1861
      %v2142 = vsel %vm2118, %v2109, %v1863
      %v2144 = vsel %vm2118, %v2111, %v1865
      %v2146 = vsel %vm2118, %v2113, %v1867
      %v2148 = vsel %vm2118, %v2115, %v1869
      %v2150 = vsel %vm2118, %v2117, %v1871
      %v2151 = vld [vmem:[%s1] sm:$0xf]
      %v2152 = vld [vmem:[%s1 + $0x4] sm:$0xf]
      %v2153 = vld [vmem:[%s1 + $0x8] sm:$0xf]
      %v2154 = vld [vmem:[%s1 + $0xc] sm:$0xf]
      %v2155 = vld [vmem:[%s1 + $0x10] sm:$0x3]
      %v2156 = vld [vmem:[%s4 + $0x1] sm:$0x1]
      %v2157 = vlaneseq
      %v2158 = vshrl.u32 %v2157, 7
      %v2159 = vsub.s32 0, %v2158
      %v2160 = vrot.slane %v2156, %v2159
      %v2166 = vunpack.c.l.b16 %v2151
      %v2167 = vunpack.c.l.b16 %v2152
      %v2168 = vunpack.c.l.b16 %v2153
      %v2169 = vunpack.c.l.b16 %v2154
      %v2170 = vunpack.c.l.b16 %v2155
      %v2171 = vpack.c.b16 %v2167, %v2166
      %v2172 = vpack.c.b16 %v2169, %v2168
      %v2173 = vpack.c.b16 %v2170, %v2170
      %vm2176 = vcmask 293888
      %v2177 = vsel %vm2176, %v2120, 0
      %v2179 = vsel %vm2176, %v2122, 0
      %v2181 = vsel %vm2176, %v2124, 0
      %v2183 = vsel %vm2176, %v2126, 0
      %v2185 = vsel %vm2176, %v2128, 0
      %v2187 = vsel %vm2176, %v2130, 0
      %v2189 = vsel %vm2176, %v2132, 0
      %v2191 = vsel %vm2176, %v2134, 0
      %v2193 = vsel %vm2176, %v2136, 0
      %v2195 = vsel %vm2176, %v2138, 0
      %v2197 = vsel %vm2176, %v2140, 0
      %v2199 = vsel %vm2176, %v2142, 0
      %v2201 = vsel %vm2176, %v2144, 0
      %v2203 = vsel %vm2176, %v2146, 0
      %v2205 = vsel %vm2176, %v2148, 0
      %v2207 = vsel %vm2176, %v2150, 0
      %v2210 = vsel %vm849, %v2173, 0
      %2212 = vmatprep.subr.bf16.mxu0 0
      %2213 = vmatpush1.bf16.msra.mxu0 %v2171
      %2214 = vmatprep.subr.bf16.mxu0 0
      %2215 = vmatpush1.bf16.msra.mxu0 %v2172
      %2216 = vmatprep.subr.bf16.mxu0 0
      %2217 = vmatpush1.bf16.msra.mxu0 %v2210
      %2218 = vmatprep.subr.bf16.mxu0 0
      %2219 = vmatpush1.bf16.msra.mxu0 0
      %2220 = vmatprep.subr.bf16.mxu0 0
      %2221 = vmatpush1.bf16.msra.mxu0 0
      %2222 = vmatprep.subr.bf16.mxu0 0
      %2223 = vmatpush1.bf16.msra.mxu0 0
      %2224 = vmatprep.subr.bf16.mxu0 0
      %2225 = vmatpush1.bf16.msra.mxu0 0
      %2226 = vmatprep.subr.bf16.mxu0 0
      %2227 = vmatpush1.bf16.msra.mxu0 0
      %2228 = vmatprep.subr.bf16.mxu0 0
      %2229 = vmatpush1.bf16.msra.mxu0 0
      %2230 = vmatprep.subr.bf16.mxu0 0
      %2231 = vmatpush1.bf16.msra.mxu0 0
      %2232 = vmatprep.subr.bf16.mxu0 0
      %2233 = vmatpush1.bf16.msra.mxu0 0
      %2234 = vmatprep.subr.bf16.mxu0 0
      %2235 = vmatpush1.bf16.msra.mxu0 0
      %2236 = vmatprep.subr.bf16.mxu0 0
      %2237 = vmatpush1.bf16.msra.mxu0 0
      %2238 = vmatprep.subr.bf16.mxu0 0
      %2239 = vmatpush1.bf16.msra.mxu0 0
      %2240 = vmatprep.subr.bf16.mxu0 0
      %2241 = vmatpush1.bf16.msra.mxu0 0
      %2242 = vmatprep.subr.bf16.mxu0 0
      %2243 = vmatpush1.bf16.msra.mxu0 0
      %2244 = vmatprep.mubr.bf16.mxu0 0
      %2245 = vmatmul.mubr.bf16.gmra.mrb[0].mxu0 %v2177
      %v2246 = vpop.f32.mrb[0].mxu0
      %v2247 = vadd.f32 %v2160, %v2246
      %v2248 = vpop.f32.mrb[0].mxu0
      %v2249 = vpop.f32.mrb[0].mxu0
      %v2250 = vadd.f32 %v2160, %v2249
      %v2251 = vpop.f32.mrb[0].mxu0
      %2252 = vmatprep.mubr.bf16.mxu0 0
      %2253 = vmatmul.mubr.bf16.gmra.mrb[0].mxu0 %v2179
      %v2254 = vpop.f32.mrb[0].mxu0
      %v2255 = vadd.f32 %v2160, %v2254
      %v2256 = vpop.f32.mrb[0].mxu0
      %v2257 = vpop.f32.mrb[0].mxu0
      %v2258 = vadd.f32 %v2160, %v2257
      %v2259 = vpop.f32.mrb[0].mxu0
      %2260 = vmatprep.mubr.bf16.mxu0 0
      %2261 = vmatmul.mubr.bf16.gmra.mrb[0].mxu0 %v2181
      %v2262 = vpop.f32.mrb[0].mxu0
      %v2263 = vadd.f32 %v2160, %v2262
      %v2264 = vpop.f32.mrb[0].mxu0
      %v2265 = vpop.f32.mrb[0].mxu0
      %v2266 = vadd.f32 %v2160, %v2265
      %v2267 = vpop.f32.mrb[0].mxu0
      %2268 = vmatprep.mubr.bf16.mxu0 0
      %2269 = vmatmul.mubr.bf16.gmra.mrb[0].mxu0 %v2183
      %v2270 = vpop.f32.mrb[0].mxu0
      %v2271 = vadd.f32 %v2160, %v2270
      %v2272 = vpop.f32.mrb[0].mxu0
      %v2273 = vpop.f32.mrb[0].mxu0
      %v2274 = vadd.f32 %v2160, %v2273
      %v2275 = vpop.f32.mrb[0].mxu0
      %2276 = vmatprep.mubr.bf16.mxu0 0
      %2277 = vmatmul.mubr.bf16.gmra.mrb[0].mxu0 %v2185
      %v2278 = vpop.f32.mrb[0].mxu0
      %v2279 = vadd.f32 %v2160, %v2278
      %v2280 = vpop.f32.mrb[0].mxu0
      %v2281 = vpop.f32.mrb[0].mxu0
      %v2282 = vadd.f32 %v2160, %v2281
      %v2283 = vpop.f32.mrb[0].mxu0
      %2284 = vmatprep.mubr.bf16.mxu0 0
      %2285 = vmatmul.mubr.bf16.gmra.mrb[0].mxu0 %v2187
      %v2286 = vpop.f32.mrb[0].mxu0
      %v2287 = vadd.f32 %v2160, %v2286
      %v2288 = vpop.f32.mrb[0].mxu0
      %v2289 = vpop.f32.mrb[0].mxu0
      %v2290 = vadd.f32 %v2160, %v2289
      %v2291 = vpop.f32.mrb[0].mxu0
      %2292 = vmatprep.mubr.bf16.mxu0 0
      %2293 = vmatmul.mubr.bf16.gmra.mrb[0].mxu0 %v2189
      %v2294 = vpop.f32.mrb[0].mxu0
      %v2295 = vadd.f32 %v2160, %v2294
      %v2296 = vpop.f32.mrb[0].mxu0
      %v2297 = vpop.f32.mrb[0].mxu0
      %v2298 = vadd.f32 %v2160, %v2297
      %v2299 = vpop.f32.mrb[0].mxu0
      %2300 = vmatprep.mubr.bf16.mxu0 0
      %2301 = vmatmul.mubr.bf16.gmra.mrb[0].mxu0 %v2191
      %v2302 = vpop.f32.mrb[0].mxu0
      %v2303 = vadd.f32 %v2160, %v2302
      %v2304 = vpop.f32.mrb[0].mxu0
      %v2305 = vpop.f32.mrb[0].mxu0
      %v2306 = vadd.f32 %v2160, %v2305
      %v2307 = vpop.f32.mrb[0].mxu0
      %2308 = vmatprep.mubr.bf16.mxu0 0
      %2309 = vmatmul.mubr.bf16.gmra.mrb[0].mxu0 %v2193
      %v2310 = vpop.f32.mrb[0].mxu0
      %v2311 = vadd.f32 %v2160, %v2310
      %v2312 = vpop.f32.mrb[0].mxu0
      %v2313 = vpop.f32.mrb[0].mxu0
      %v2314 = vadd.f32 %v2160, %v2313
      %v2315 = vpop.f32.mrb[0].mxu0
      %2316 = vmatprep.mubr.bf16.mxu0 0
      %2317 = vmatmul.mubr.bf16.gmra.mrb[0].mxu0 %v2195
      %v2318 = vpop.f32.mrb[0].mxu0
      %v2319 = vadd.f32 %v2160, %v2318
      %v2320 = vpop.f32.mrb[0].mxu0
      %v2321 = vpop.f32.mrb[0].mxu0
      %v2322 = vadd.f32 %v2160, %v2321
      %v2323 = vpop.f32.mrb[0].mxu0
      %2324 = vmatprep.mubr.bf16.mxu0 0
      %2325 = vmatmul.mubr.bf16.gmra.mrb[0].mxu0 %v2197
      %v2326 = vpop.f32.mrb[0].mxu0
      %v2327 = vadd.f32 %v2160, %v2326
      %v2328 = vpop.f32.mrb[0].mxu0
      %v2329 = vpop.f32.mrb[0].mxu0
      %v2330 = vadd.f32 %v2160, %v2329
      %v2331 = vpop.f32.mrb[0].mxu0
      %2332 = vmatprep.mubr.bf16.mxu0 0
      %2333 = vmatmul.mubr.bf16.gmra.mrb[0].mxu0 %v2199
      %v2334 = vpop.f32.mrb[0].mxu0
      %v2335 = vadd.f32 %v2160, %v2334
      %v2336 = vpop.f32.mrb[0].mxu0
      %v2337 = vpop.f32.mrb[0].mxu0
      %v2338 = vadd.f32 %v2160, %v2337
      %v2339 = vpop.f32.mrb[0].mxu0
      %2340 = vmatprep.mubr.bf16.mxu0 0
      %2341 = vmatmul.mubr.bf16.gmra.mrb[0].mxu0 %v2201
      %v2342 = vpop.f32.mrb[0].mxu0
      %v2343 = vadd.f32 %v2160, %v2342
      %v2344 = vpop.f32.mrb[0].mxu0
      %v2345 = vpop.f32.mrb[0].mxu0
      %v2346 = vadd.f32 %v2160, %v2345
      %v2347 = vpop.f32.mrb[0].mxu0
      %2348 = vmatprep.mubr.bf16.mxu0 0
      %2349 = vmatmul.mubr.bf16.gmra.mrb[0].mxu0 %v2203
      %v2350 = vpop.f32.mrb[0].mxu0
      %v2351 = vadd.f32 %v2160, %v2350
      %v2352 = vpop.f32.mrb[0].mxu0
      %v2353 = vpop.f32.mrb[0].mxu0
      %v2354 = vadd.f32 %v2160, %v2353
      %v2355 = vpop.f32.mrb[0].mxu0
      %2356 = vmatprep.mubr.bf16.mxu0 0
      %2357 = vmatmul.mubr.bf16.gmra.mrb[0].mxu0 %v2205
      %v2358 = vpop.f32.mrb[0].mxu0
      %v2359 = vadd.f32 %v2160, %v2358
      %v2360 = vpop.f32.mrb[0].mxu0
      %v2361 = vpop.f32.mrb[0].mxu0
      %v2362 = vadd.f32 %v2160, %v2361
      %v2363 = vpop.f32.mrb[0].mxu0
      %2364 = vmatprep.mubr.bf16.mxu0 0
      %2365 = vmatmul.mubr.bf16.gmra.mrb[0].mxu0 %v2207
      %v2366 = vpop.f32.mrb[0].mxu0
      %v2367 = vadd.f32 %v2160, %v2366
      %v2368 = vpop.f32.mrb[0].mxu0
      %v2369 = vpop.f32.mrb[0].mxu0
      %v2370 = vadd.f32 %v2160, %v2369
      %v2371 = vpop.f32.mrb[0].mxu0
      %2372 = vdwg.mxu0
      %vm2373 = vcmp.ge.f32.partialorder %v2247, 0.0
      %vm2374 = vcmp.ge.f32.partialorder %v2250, 0.0
      %vm2375 = vcmp.ge.f32.partialorder %v2255, 0.0
      %vm2376 = vcmp.ge.f32.partialorder %v2258, 0.0
      %vm2377 = vcmp.ge.f32.partialorder %v2263, 0.0
      %vm2378 = vcmp.ge.f32.partialorder %v2266, 0.0
      %vm2379 = vcmp.ge.f32.partialorder %v2271, 0.0
      %vm2380 = vcmp.ge.f32.partialorder %v2274, 0.0
      %vm2381 = vcmp.ge.f32.partialorder %v2279, 0.0
      %vm2382 = vcmp.ge.f32.partialorder %v2282, 0.0
      %vm2383 = vcmp.ge.f32.partialorder %v2287, 0.0
      %vm2384 = vcmp.ge.f32.partialorder %v2290, 0.0
      %vm2385 = vcmp.ge.f32.partialorder %v2295, 0.0
      %vm2386 = vcmp.ge.f32.partialorder %v2298, 0.0
      %vm2387 = vcmp.ge.f32.partialorder %v2303, 0.0
      %vm2388 = vcmp.ge.f32.partialorder %v2306, 0.0
      %vm2389 = vcmp.ge.f32.partialorder %v2311, 0.0
      %vm2390 = vcmp.ge.f32.partialorder %v2314, 0.0
      %vm2391 = vcmp.ge.f32.partialorder %v2319, 0.0
      %vm2392 = vcmp.ge.f32.partialorder %v2322, 0.0
      %vm2393 = vcmp.ge.f32.partialorder %v2327, 0.0
      %vm2394 = vcmp.ge.f32.partialorder %v2330, 0.0
      %vm2395 = vcmp.ge.f32.partialorder %v2335, 0.0
      %vm2396 = vcmp.ge.f32.partialorder %v2338, 0.0
      %vm2397 = vcmp.ge.f32.partialorder %v2343, 0.0
      %vm2398 = vcmp.ge.f32.partialorder %v2346, 0.0
      %vm2399 = vcmp.ge.f32.partialorder %v2351, 0.0
      %vm2400 = vcmp.ge.f32.partialorder %v2354, 0.0
      %vm2401 = vcmp.ge.f32.partialorder %v2359, 0.0
      %vm2402 = vcmp.ge.f32.partialorder %v2362, 0.0
      %vm2403 = vcmp.ge.f32.partialorder %v2367, 0.0
      %vm2404 = vcmp.ge.f32.partialorder %v2370, 0.0
      %v2405 = vmul.f32 %v2247, 0.01
      %v2406 = vmul.f32 %v2250, 0.01
      %v2407 = vmul.f32 %v2255, 0.01
      %v2408 = vmul.f32 %v2258, 0.01
      %v2409 = vmul.f32 %v2263, 0.01
      %v2410 = vmul.f32 %v2266, 0.01
      %v2411 = vmul.f32 %v2271, 0.01
      %v2412 = vmul.f32 %v2274, 0.01
      %v2413 = vmul.f32 %v2279, 0.01
      %v2414 = vmul.f32 %v2282, 0.01
      %v2415 = vmul.f32 %v2287, 0.01
      %v2416 = vmul.f32 %v2290, 0.01
      %v2417 = vmul.f32 %v2295, 0.01
      %v2418 = vmul.f32 %v2298, 0.01
      %v2419 = vmul.f32 %v2303, 0.01
      %v2420 = vmul.f32 %v2306, 0.01
      %v2421 = vmul.f32 %v2311, 0.01
      %v2422 = vmul.f32 %v2314, 0.01
      %v2423 = vmul.f32 %v2319, 0.01
      %v2424 = vmul.f32 %v2322, 0.01
      %v2425 = vmul.f32 %v2327, 0.01
      %v2426 = vmul.f32 %v2330, 0.01
      %v2427 = vmul.f32 %v2335, 0.01
      %v2428 = vmul.f32 %v2338, 0.01
      %v2429 = vmul.f32 %v2343, 0.01
      %v2430 = vmul.f32 %v2346, 0.01
      %v2431 = vmul.f32 %v2351, 0.01
      %v2432 = vmul.f32 %v2354, 0.01
      %v2433 = vmul.f32 %v2359, 0.01
      %v2434 = vmul.f32 %v2362, 0.01
      %v2435 = vmul.f32 %v2367, 0.01
      %v2436 = vmul.f32 %v2370, 0.01
      %v2437 = vsel %vm2373, %v2247, %v2405
      %v2438 = vsel %vm2374, %v2250, %v2406
      %v2439 = vsel %vm2375, %v2255, %v2407
      %v2440 = vsel %vm2376, %v2258, %v2408
      %v2441 = vsel %vm2377, %v2263, %v2409
      %v2442 = vsel %vm2378, %v2266, %v2410
      %v2443 = vsel %vm2379, %v2271, %v2411
      %v2444 = vsel %vm2380, %v2274, %v2412
      %v2445 = vsel %vm2381, %v2279, %v2413
      %v2446 = vsel %vm2382, %v2282, %v2414
      %v2447 = vsel %vm2383, %v2287, %v2415
      %v2448 = vsel %vm2384, %v2290, %v2416
      %v2449 = vsel %vm2385, %v2295, %v2417
      %v2450 = vsel %vm2386, %v2298, %v2418
      %v2451 = vsel %vm2387, %v2303, %v2419
      %v2452 = vsel %vm2388, %v2306, %v2420
      %v2453 = vsel %vm2389, %v2311, %v2421
      %v2454 = vsel %vm2390, %v2314, %v2422
      %v2455 = vsel %vm2391, %v2319, %v2423
      %v2456 = vsel %vm2392, %v2322, %v2424
      %v2457 = vsel %vm2393, %v2327, %v2425
      %v2458 = vsel %vm2394, %v2330, %v2426
      %v2459 = vsel %vm2395, %v2335, %v2427
      %v2460 = vsel %vm2396, %v2338, %v2428
      %v2461 = vsel %vm2397, %v2343, %v2429
      %v2462 = vsel %vm2398, %v2346, %v2430
      %v2463 = vsel %vm2399, %v2351, %v2431
      %v2464 = vsel %vm2400, %v2354, %v2432
      %v2465 = vsel %vm2401, %v2359, %v2433
      %v2466 = vsel %vm2402, %v2362, %v2434
      %v2467 = vsel %vm2403, %v2367, %v2435
      %v2468 = vsel %vm2404, %v2370, %v2436
      %v2469 = vld [vmem:[%s4 + $0x2] sm:$0x1]
      %v2470 = vlaneseq
      %v2471 = vshrl.u32 %v2470, 7
      %v2472 = vsub.s32 0, %v2471
      %v2473 = vrot.slane %v2469, %v2472
      %v2474 = vmul.f32 %v2437, %v2473
      %v2475 = vmul.f32 %v2438, %v2473
      %v2476 = vmul.f32 %v2439, %v2473
      %v2477 = vmul.f32 %v2440, %v2473
      %v2478 = vmul.f32 %v2441, %v2473
      %v2479 = vmul.f32 %v2442, %v2473
      %v2480 = vmul.f32 %v2443, %v2473
      %v2481 = vmul.f32 %v2444, %v2473
      %v2482 = vmul.f32 %v2445, %v2473
      %v2483 = vmul.f32 %v2446, %v2473
      %v2484 = vmul.f32 %v2447, %v2473
      %v2485 = vmul.f32 %v2448, %v2473
      %v2486 = vmul.f32 %v2449, %v2473
      %v2487 = vmul.f32 %v2450, %v2473
      %v2488 = vmul.f32 %v2451, %v2473
      %v2489 = vmul.f32 %v2452, %v2473
      %v2490 = vmul.f32 %v2453, %v2473
      %v2491 = vmul.f32 %v2454, %v2473
      %v2492 = vmul.f32 %v2455, %v2473
      %v2493 = vmul.f32 %v2456, %v2473
      %v2494 = vmul.f32 %v2457, %v2473
      %v2495 = vmul.f32 %v2458, %v2473
      %v2496 = vmul.f32 %v2459, %v2473
      %v2497 = vmul.f32 %v2460, %v2473
      %v2498 = vmul.f32 %v2461, %v2473
      %v2499 = vmul.f32 %v2462, %v2473
      %v2500 = vmul.f32 %v2463, %v2473
      %v2501 = vmul.f32 %v2464, %v2473
      %v2502 = vmul.f32 %v2465, %v2473
      %v2503 = vmul.f32 %v2466, %v2473
      %v2504 = vmul.f32 %v2467, %v2473
      %v2505 = vmul.f32 %v2468, %v2473
      %v2506 = vld [vmem:[%s4 + $0x3] sm:$0x1]
      %v2507 = vlaneseq
      %v2508 = vshrl.u32 %v2507, 7
      %v2509 = vsub.s32 0, %v2508
      %v2510 = vrot.slane %v2506, %v2509
      %v2511 = vadd.f32 %v2474, %v2510
      %v2512 = vadd.f32 %v2475, %v2510
      %v2513 = vadd.f32 %v2476, %v2510
      %v2514 = vadd.f32 %v2477, %v2510
      %v2515 = vadd.f32 %v2478, %v2510
      %v2516 = vadd.f32 %v2479, %v2510
      %v2517 = vadd.f32 %v2480, %v2510
      %v2518 = vadd.f32 %v2481, %v2510
      %v2519 = vadd.f32 %v2482, %v2510
      %v2520 = vadd.f32 %v2483, %v2510
      %v2521 = vadd.f32 %v2484, %v2510
      %v2522 = vadd.f32 %v2485, %v2510
      %v2523 = vadd.f32 %v2486, %v2510
      %v2524 = vadd.f32 %v2487, %v2510
      %v2525 = vadd.f32 %v2488, %v2510
      %v2526 = vadd.f32 %v2489, %v2510
      %v2527 = vadd.f32 %v2490, %v2510
      %v2528 = vadd.f32 %v2491, %v2510
      %v2529 = vadd.f32 %v2492, %v2510
      %v2530 = vadd.f32 %v2493, %v2510
      %v2531 = vadd.f32 %v2494, %v2510
      %v2532 = vadd.f32 %v2495, %v2510
      %v2533 = vadd.f32 %v2496, %v2510
      %v2534 = vadd.f32 %v2497, %v2510
      %v2535 = vadd.f32 %v2498, %v2510
      %v2536 = vadd.f32 %v2499, %v2510
      %v2537 = vadd.f32 %v2500, %v2510
      %v2538 = vadd.f32 %v2501, %v2510
      %v2539 = vadd.f32 %v2502, %v2510
      %v2540 = vadd.f32 %v2503, %v2510
      %v2541 = vadd.f32 %v2504, %v2510
      %v2542 = vadd.f32 %v2505, %v2510
      %v2543 = vpack.c.bf16 %v2512, %v2511
      %v2544 = vpack.c.bf16 %v2514, %v2513
      %v2545 = vpack.c.bf16 %v2516, %v2515
      %v2546 = vpack.c.bf16 %v2518, %v2517
      %v2547 = vpack.c.bf16 %v2520, %v2519
      %v2548 = vpack.c.bf16 %v2522, %v2521
      %v2549 = vpack.c.bf16 %v2524, %v2523
      %v2550 = vpack.c.bf16 %v2526, %v2525
      %v2551 = vpack.c.bf16 %v2528, %v2527
      %v2552 = vpack.c.bf16 %v2530, %v2529
      %v2553 = vpack.c.bf16 %v2532, %v2531
      %v2554 = vpack.c.bf16 %v2534, %v2533
      %v2555 = vpack.c.bf16 %v2536, %v2535
      %v2556 = vpack.c.bf16 %v2538, %v2537
      %v2557 = vpack.c.bf16 %v2540, %v2539
      %v2558 = vpack.c.bf16 %v2542, %v2541
      %v2575 = vunpack.c.l.b16 %v2543
      %v2576 = vunpack.c.h.b16 %v2543
      %v2577 = vunpack.c.l.b16 %v2544
      %v2578 = vunpack.c.h.b16 %v2544
      %v2579 = vunpack.c.l.b16 %v2545
      %v2580 = vunpack.c.h.b16 %v2545
      %v2581 = vunpack.c.l.b16 %v2546
      %v2582 = vunpack.c.h.b16 %v2546
      %v2583 = vunpack.c.l.b16 %v2547
      %v2584 = vunpack.c.h.b16 %v2547
      %v2585 = vunpack.c.l.b16 %v2548
      %v2586 = vunpack.c.h.b16 %v2548
      %v2587 = vunpack.c.l.b16 %v2549
      %v2588 = vunpack.c.h.b16 %v2549
      %v2589 = vunpack.c.l.b16 %v2550
      %v2590 = vunpack.c.h.b16 %v2550
      %v2591 = vunpack.c.l.b16 %v2551
      %v2592 = vunpack.c.h.b16 %v2551
      %v2593 = vunpack.c.l.b16 %v2552
      %v2594 = vunpack.c.h.b16 %v2552
      %v2595 = vunpack.c.l.b16 %v2553
      %v2596 = vunpack.c.h.b16 %v2553
      %v2597 = vunpack.c.l.b16 %v2554
      %v2598 = vunpack.c.h.b16 %v2554
      %v2599 = vunpack.c.l.b16 %v2555
      %v2600 = vunpack.c.h.b16 %v2555
      %v2601 = vunpack.c.l.b16 %v2556
      %v2602 = vunpack.c.h.b16 %v2556
      %v2603 = vunpack.c.l.b16 %v2557
      %v2604 = vunpack.c.h.b16 %v2557
      %v2605 = vunpack.c.l.b16 %v2558
      %v2606 = vunpack.c.h.b16 %v2558
      %v2607 = vpack.c.b16 %v2575, %v2575
      %v2608 = vpack.c.b16 %v2576, %v2576
      %v2609 = vpack.c.b16 %v2577, %v2577
      %v2610 = vpack.c.b16 %v2578, %v2578
      %v2611 = vpack.c.b16 %v2579, %v2579
      %v2612 = vpack.c.b16 %v2580, %v2580
      %v2613 = vpack.c.b16 %v2581, %v2581
      %v2614 = vpack.c.b16 %v2582, %v2582
      %v2615 = vpack.c.b16 %v2583, %v2583
      %v2616 = vpack.c.b16 %v2584, %v2584
      %v2617 = vpack.c.b16 %v2585, %v2585
      %v2618 = vpack.c.b16 %v2586, %v2586
      %v2619 = vpack.c.b16 %v2587, %v2587
      %v2620 = vpack.c.b16 %v2588, %v2588
      %v2621 = vpack.c.b16 %v2589, %v2589
      %v2622 = vpack.c.b16 %v2590, %v2590
      %v2623 = vpack.c.b16 %v2591, %v2591
      %v2624 = vpack.c.b16 %v2592, %v2592
      %v2625 = vpack.c.b16 %v2593, %v2593
      %v2626 = vpack.c.b16 %v2594, %v2594
      %v2627 = vpack.c.b16 %v2595, %v2595
      %v2628 = vpack.c.b16 %v2596, %v2596
      %v2629 = vpack.c.b16 %v2597, %v2597
      %v2630 = vpack.c.b16 %v2598, %v2598
      %v2631 = vpack.c.b16 %v2599, %v2599
      %v2632 = vpack.c.b16 %v2600, %v2600
      %v2633 = vpack.c.b16 %v2601, %v2601
      %v2634 = vpack.c.b16 %v2602, %v2602
      %v2635 = vpack.c.b16 %v2603, %v2603
      %v2636 = vpack.c.b16 %v2604, %v2604
      %v2637 = vpack.c.b16 %v2605, %v2605
      %v2638 = vpack.c.b16 %v2606, %v2606
      %2671 = vst.msk [vmem:[%s298] sm:$0xf] %vm1238, %v2607
      %2672 = vst.msk [vmem:[%s298 + $0x4] sm:$0xf] %vm1238, %v2608
      %2673 = vst.msk [vmem:[%s298 + $0x8] sm:$0xf] %vm1238, %v2609
      %2674 = vst.msk [vmem:[%s298 + $0xc] sm:$0xf] %vm1238, %v2610
      %2675 = vst.msk [vmem:[%s298 + $0x10] sm:$0xf] %vm1238, %v2611
      %2676 = vst.msk [vmem:[%s298 + $0x14] sm:$0xf] %vm1238, %v2612
      %2677 = vst.msk [vmem:[%s298 + $0x18] sm:$0xf] %vm1238, %v2613
      %2678 = vst.msk [vmem:[%s298 + $0x1c] sm:$0xf] %vm1238, %v2614
      %2679 = vst.msk [vmem:[%s298 + $0x20] sm:$0xf] %vm1238, %v2615
      %2680 = vst.msk [vmem:[%s298 + $0x24] sm:$0xf] %vm1238, %v2616
      %2681 = vst.msk [vmem:[%s298 + $0x28] sm:$0xf] %vm1238, %v2617
      %2682 = vst.msk [vmem:[%s298 + $0x2c] sm:$0xf] %vm1238, %v2618
      %2683 = vst.msk [vmem:[%s298 + $0x30] sm:$0xf] %vm1238, %v2619
      %2684 = vst.msk [vmem:[%s298 + $0x34] sm:$0xf] %vm1238, %v2620
      %2685 = vst.msk [vmem:[%s298 + $0x38] sm:$0xf] %vm1238, %v2621
      %2686 = vst.msk [vmem:[%s298 + $0x3c] sm:$0xf] %vm1238, %v2622
      %2687 = vst.msk [vmem:[%s298 + $0x40] sm:$0xf] %vm1238, %v2623
      %2688 = vst.msk [vmem:[%s298 + $0x44] sm:$0xf] %vm1238, %v2624
      %2689 = vst.msk [vmem:[%s298 + $0x48] sm:$0xf] %vm1238, %v2625
      %2690 = vst.msk [vmem:[%s298 + $0x4c] sm:$0xf] %vm1238, %v2626
      %2691 = vst.msk [vmem:[%s298 + $0x50] sm:$0xf] %vm1238, %v2627
      %2692 = vst.msk [vmem:[%s298 + $0x54] sm:$0xf] %vm1238, %v2628
      %2693 = vst.msk [vmem:[%s298 + $0x58] sm:$0xf] %vm1238, %v2629
      %2694 = vst.msk [vmem:[%s298 + $0x5c] sm:$0xf] %vm1238, %v2630
      %2695 = vst.msk [vmem:[%s298 + $0x60] sm:$0xf] %vm1238, %v2631
      %2696 = vst.msk [vmem:[%s298 + $0x64] sm:$0xf] %vm1238, %v2632
      %2697 = vst.msk [vmem:[%s298 + $0x68] sm:$0xf] %vm1238, %v2633
      %2698 = vst.msk [vmem:[%s298 + $0x6c] sm:$0xf] %vm1238, %v2634
      %2699 = vst.msk [vmem:[%s298 + $0x70] sm:$0xf] %vm1238, %v2635
      %2700 = vst.msk [vmem:[%s298 + $0x74] sm:$0xf] %vm1238, %v2636
      %2701 = vst.msk [vmem:[%s298 + $0x78] sm:$0xf] %vm1238, %v2637
      %2702 = vst.msk [vmem:[%s298 + $0x7c] sm:$0xf] %vm1238, %v2638
      %v2704 = vrot.slane 0, 7
      %v2705 = vrot.slane %v2543, 7
      %v2706 = vrot.slane %v2544, 7
      %v2707 = vrot.slane %v2545, 7
      %v2708 = vrot.slane %v2546, 7
      %v2709 = vrot.slane %v2547, 7
      %v2710 = vrot.slane %v2548, 7
      %v2711 = vrot.slane %v2549, 7
      %v2712 = vrot.slane %v2550, 7
      %v2713 = vrot.slane %v2551, 7
      %v2714 = vrot.slane %v2552, 7
      %v2715 = vrot.slane %v2553, 7
      %v2716 = vrot.slane %v2554, 7
      %v2717 = vrot.slane %v2555, 7
      %v2718 = vrot.slane %v2556, 7
      %v2719 = vrot.slane %v2557, 7
      %v2720 = vrot.slane %v2558, 7
      %vm2721 = vcmask 1040384
      %v2724 = vsel %vm2721, 0, %v2704
      %v2726 = vsel %vm2721, 0, %v2705
      %v2728 = vsel %vm2721, 0, %v2706
      %v2730 = vsel %vm2721, 0, %v2707
      %v2732 = vsel %vm2721, 0, %v2708
      %v2734 = vsel %vm2721, 0, %v2709
      %v2736 = vsel %vm2721, 0, %v2710
      %v2738 = vsel %vm2721, 0, %v2711
      %v2740 = vsel %vm2721, 0, %v2712
      %v2742 = vsel %vm2721, 0, %v2713
      %v2744 = vsel %vm2721, 0, %v2714
      %v2746 = vsel %vm2721, 0, %v2715
      %v2748 = vsel %vm2721, 0, %v2716
      %v2750 = vsel %vm2721, 0, %v2717
      %v2752 = vsel %vm2721, 0, %v2718
      %v2754 = vsel %vm2721, 0, %v2719
      %v2756 = vsel %vm2721, 0, %v2720
      %v2757 = vsel %vm2721, %v2704, 0
      %v2758 = vsel %vm2721, %v2705, 0
      %v2759 = vsel %vm2721, %v2706, 0
      %v2760 = vsel %vm2721, %v2707, 0
      %v2761 = vsel %vm2721, %v2708, 0
      %v2762 = vsel %vm2721, %v2709, 0
      %v2763 = vsel %vm2721, %v2710, 0
      %v2764 = vsel %vm2721, %v2711, 0
      %v2765 = vsel %vm2721, %v2712, 0
      %v2766 = vsel %vm2721, %v2713, 0
      %v2767 = vsel %vm2721, %v2714, 0
      %v2768 = vsel %vm2721, %v2715, 0
      %v2769 = vsel %vm2721, %v2716, 0
      %v2770 = vsel %vm2721, %v2717, 0
      %v2771 = vsel %vm2721, %v2718, 0
      %v2772 = vsel %vm2721, %v2719, 0
      %v2773 = vsel %vm2721, %v2720, 0
      %vm2804 = vcmask 1046528
      %v2805 = vrot.slane %v2724, 1
      %v2806 = vrot.slane %v2757, 1
      %v2807 = vsel %vm2804, %v2805, %v2806
      %v2808 = vrot.slane %v2726, 1
      %v2809 = vrot.slane %v2758, 1
      %v2810 = vsel %vm2804, %v2808, %v2809
      %v2811 = vrot.slane %v2728, 1
      %v2812 = vrot.slane %v2759, 1
      %v2813 = vsel %vm2804, %v2811, %v2812
      %v2814 = vrot.slane %v2730, 1
      %v2815 = vrot.slane %v2760, 1
      %v2816 = vsel %vm2804, %v2814, %v2815
      %v2817 = vrot.slane %v2732, 1
      %v2818 = vrot.slane %v2761, 1
      %v2819 = vsel %vm2804, %v2817, %v2818
      %v2820 = vrot.slane %v2734, 1
      %v2821 = vrot.slane %v2762, 1
      %v2822 = vsel %vm2804, %v2820, %v2821
      %v2823 = vrot.slane %v2736, 1
      %v2824 = vrot.slane %v2763, 1
      %v2825 = vsel %vm2804, %v2823, %v2824
      %v2826 = vrot.slane %v2738, 1
      %v2827 = vrot.slane %v2764, 1
      %v2828 = vsel %vm2804, %v2826, %v2827
      %v2829 = vrot.slane %v2740, 1
      %v2830 = vrot.slane %v2765, 1
      %v2831 = vsel %vm2804, %v2829, %v2830
      %v2832 = vrot.slane %v2742, 1
      %v2833 = vrot.slane %v2766, 1
      %v2834 = vsel %vm2804, %v2832, %v2833
      %v2835 = vrot.slane %v2744, 1
      %v2836 = vrot.slane %v2767, 1
      %v2837 = vsel %vm2804, %v2835, %v2836
      %v2838 = vrot.slane %v2746, 1
      %v2839 = vrot.slane %v2768, 1
      %v2840 = vsel %vm2804, %v2838, %v2839
      %v2841 = vrot.slane %v2748, 1
      %v2842 = vrot.slane %v2769, 1
      %v2843 = vsel %vm2804, %v2841, %v2842
      %v2844 = vrot.slane %v2750, 1
      %v2845 = vrot.slane %v2770, 1
      %v2846 = vsel %vm2804, %v2844, %v2845
      %v2847 = vrot.slane %v2752, 1
      %v2848 = vrot.slane %v2771, 1
      %v2849 = vsel %vm2804, %v2847, %v2848
      %vm2850 = vcmask 1045504
      %v2851 = vrot.slane %v2724, 2
      %v2852 = vrot.slane %v2757, 2
      %v2853 = vsel %vm2850, %v2851, %v2852
      %v2854 = vrot.slane %v2726, 2
      %v2855 = vrot.slane %v2758, 2
      %v2856 = vsel %vm2850, %v2854, %v2855
      %v2857 = vrot.slane %v2728, 2
      %v2858 = vrot.slane %v2759, 2
      %v2859 = vsel %vm2850, %v2857, %v2858
      %v2860 = vrot.slane %v2730, 2
      %v2861 = vrot.slane %v2760, 2
      %v2862 = vsel %vm2850, %v2860, %v2861
      %v2863 = vrot.slane %v2732, 2
      %v2864 = vrot.slane %v2761, 2
      %v2865 = vsel %vm2850, %v2863, %v2864
      %v2866 = vrot.slane %v2734, 2
      %v2867 = vrot.slane %v2762, 2
      %v2868 = vsel %vm2850, %v2866, %v2867
      %v2869 = vrot.slane %v2736, 2
      %v2870 = vrot.slane %v2763, 2
      %v2871 = vsel %vm2850, %v2869, %v2870
      %v2872 = vrot.slane %v2738, 2
      %v2873 = vrot.slane %v2764, 2
      %v2874 = vsel %vm2850, %v2872, %v2873
      %v2875 = vrot.slane %v2740, 2
      %v2876 = vrot.slane %v2765, 2
      %v2877 = vsel %vm2850, %v2875, %v2876
      %v2878 = vrot.slane %v2742, 2
      %v2879 = vrot.slane %v2766, 2
      %v2880 = vsel %vm2850, %v2878, %v2879
      %v2881 = vrot.slane %v2744, 2
      %v2882 = vrot.slane %v2767, 2
      %v2883 = vsel %vm2850, %v2881, %v2882
      %v2884 = vrot.slane %v2746, 2
      %v2885 = vrot.slane %v2768, 2
      %v2886 = vsel %vm2850, %v2884, %v2885
      %v2887 = vrot.slane %v2748, 2
      %v2888 = vrot.slane %v2769, 2
      %v2889 = vsel %vm2850, %v2887, %v2888
      %v2890 = vrot.slane %v2750, 2
      %v2891 = vrot.slane %v2770, 2
      %v2892 = vsel %vm2850, %v2890, %v2891
      %v2893 = vrot.slane %v2752, 2
      %v2894 = vrot.slane %v2771, 2
      %v2895 = vsel %vm2850, %v2893, %v2894
      %v2900 = vrot.slane %v2754, 1
      %v2901 = vrot.slane %v2772, 1
      %v2902 = vsel %vm2804, %v2900, %v2901
      %v2903 = vrot.slane %v2756, 1
      %v2904 = vrot.slane %v2773, 1
      %v2905 = vsel %vm2804, %v2903, %v2904
      %v2906 = vrot.slane %v2754, 2
      %v2907 = vrot.slane %v2772, 2
      %v2908 = vsel %vm2850, %v2906, %v2907
      %v2909 = vrot.slane %v2756, 2
      %v2910 = vrot.slane %v2773, 2
      %v2911 = vsel %vm2850, %v2909, %v2910
      %2912 = vrot.lane.b32.xlu0 %v2807, 32
      %v2913 = vpop.permute.xlu0 %2912
      %2914 = vrot.lane.b32.xlu0 %v2810, 32
      %v2915 = vpop.permute.xlu0 %2914
      %2916 = vrot.lane.b32.xlu0 %v2813, 32
      %v2917 = vpop.permute.xlu0 %2916
      %2918 = vrot.lane.b32.xlu0 %v2816, 32
      %v2919 = vpop.permute.xlu0 %2918
      %2920 = vrot.lane.b32.xlu0 %v2819, 32
      %v2921 = vpop.permute.xlu0 %2920
      %2922 = vrot.lane.b32.xlu0 %v2822, 32
      %v2923 = vpop.permute.xlu0 %2922
      %2924 = vrot.lane.b32.xlu0 %v2825, 32
      %v2925 = vpop.permute.xlu0 %2924
      %2926 = vrot.lane.b32.xlu0 %v2828, 32
      %v2927 = vpop.permute.xlu0 %2926
      %2928 = vrot.lane.b32.xlu0 %v2831, 32
      %v2929 = vpop.permute.xlu0 %2928
      %2930 = vrot.lane.b32.xlu0 %v2834, 32
      %v2931 = vpop.permute.xlu0 %2930
      %2932 = vrot.lane.b32.xlu0 %v2837, 32
      %v2933 = vpop.permute.xlu0 %2932
      %2934 = vrot.lane.b32.xlu0 %v2840, 32
      %v2935 = vpop.permute.xlu0 %2934
      %2936 = vrot.lane.b32.xlu0 %v2843, 32
      %v2937 = vpop.permute.xlu0 %2936
      %2938 = vrot.lane.b32.xlu0 %v2846, 32
      %v2939 = vpop.permute.xlu0 %2938
      %2940 = vrot.lane.b32.xlu0 %v2849, 32
      %v2941 = vpop.permute.xlu0 %2940
      %2942 = vrot.lane.b32.xlu0 %v2853, 64
      %v2943 = vpop.permute.xlu0 %2942
      %2944 = vrot.lane.b32.xlu0 %v2856, 64
      %v2945 = vpop.permute.xlu0 %2944
      %2946 = vrot.lane.b32.xlu0 %v2859, 64
      %v2947 = vpop.permute.xlu0 %2946
      %2948 = vrot.lane.b32.xlu0 %v2862, 64
      %v2949 = vpop.permute.xlu0 %2948
      %2950 = vrot.lane.b32.xlu0 %v2865, 64
      %v2951 = vpop.permute.xlu0 %2950
      %2952 = vrot.lane.b32.xlu0 %v2868, 64
      %v2953 = vpop.permute.xlu0 %2952
      %2954 = vrot.lane.b32.xlu0 %v2871, 64
      %v2955 = vpop.permute.xlu0 %2954
      %2956 = vrot.lane.b32.xlu0 %v2874, 64
      %v2957 = vpop.permute.xlu0 %2956
      %2958 = vrot.lane.b32.xlu0 %v2877, 64
      %v2959 = vpop.permute.xlu0 %2958
      %2960 = vrot.lane.b32.xlu0 %v2880, 64
      %v2961 = vpop.permute.xlu0 %2960
      %2962 = vrot.lane.b32.xlu0 %v2883, 64
      %v2963 = vpop.permute.xlu0 %2962
      %2964 = vrot.lane.b32.xlu0 %v2886, 64
      %v2965 = vpop.permute.xlu0 %2964
      %2966 = vrot.lane.b32.xlu0 %v2889, 64
      %v2967 = vpop.permute.xlu0 %2966
      %2968 = vrot.lane.b32.xlu0 %v2892, 64
      %v2969 = vpop.permute.xlu0 %2968
      %2970 = vrot.lane.b32.xlu0 %v2895, 64
      %v2971 = vpop.permute.xlu0 %2970
      %2972 = vrot.lane.b32.xlu0 %v2726, 96
      %v2973 = vpop.permute.xlu0 %2972
      %2974 = vrot.lane.b32.xlu0 %v2728, 96
      %v2975 = vpop.permute.xlu0 %2974
      %2976 = vrot.lane.b32.xlu0 %v2730, 96
      %v2977 = vpop.permute.xlu0 %2976
      %2978 = vrot.lane.b32.xlu0 %v2732, 96
      %v2979 = vpop.permute.xlu0 %2978
      %2980 = vrot.lane.b32.xlu0 %v2734, 96
      %v2981 = vpop.permute.xlu0 %2980
      %2982 = vrot.lane.b32.xlu0 %v2736, 96
      %v2983 = vpop.permute.xlu0 %2982
      %2984 = vrot.lane.b32.xlu0 %v2738, 96
      %v2985 = vpop.permute.xlu0 %2984
      %2986 = vrot.lane.b32.xlu0 %v2740, 96
      %v2987 = vpop.permute.xlu0 %2986
      %2988 = vrot.lane.b32.xlu0 %v2742, 96
      %v2989 = vpop.permute.xlu0 %2988
      %2990 = vrot.lane.b32.xlu0 %v2744, 96
      %v2991 = vpop.permute.xlu0 %2990
      %2992 = vrot.lane.b32.xlu0 %v2746, 96
      %v2993 = vpop.permute.xlu0 %2992
      %2994 = vrot.lane.b32.xlu0 %v2748, 96
      %v2995 = vpop.permute.xlu0 %2994
      %2996 = vrot.lane.b32.xlu0 %v2750, 96
      %v2997 = vpop.permute.xlu0 %2996
      %2998 = vrot.lane.b32.xlu0 %v2752, 96
      %v2999 = vpop.permute.xlu0 %2998
      %3000 = vrot.lane.b32.xlu0 %v2754, 96
      %v3001 = vpop.permute.xlu0 %3000
      %3002 = vrot.lane.b32.xlu0 %v2756, 96
      %v3003 = vpop.permute.xlu0 %3002
      %3004 = vrot.lane.b32.xlu0 %v2856, 32
      %v3005 = vpop.permute.xlu0 %3004
      %3006 = vrot.lane.b32.xlu0 %v2859, 32
      %v3007 = vpop.permute.xlu0 %3006
      %3008 = vrot.lane.b32.xlu0 %v2862, 32
      %v3009 = vpop.permute.xlu0 %3008
      %3010 = vrot.lane.b32.xlu0 %v2865, 32
      %v3011 = vpop.permute.xlu0 %3010
      %3012 = vrot.lane.b32.xlu0 %v2868, 32
      %v3013 = vpop.permute.xlu0 %3012
      %3014 = vrot.lane.b32.xlu0 %v2871, 32
      %v3015 = vpop.permute.xlu0 %3014
      %3016 = vrot.lane.b32.xlu0 %v2874, 32
      %v3017 = vpop.permute.xlu0 %3016
      %3018 = vrot.lane.b32.xlu0 %v2877, 32
      %v3019 = vpop.permute.xlu0 %3018
      %3020 = vrot.lane.b32.xlu0 %v2880, 32
      %v3021 = vpop.permute.xlu0 %3020
      %3022 = vrot.lane.b32.xlu0 %v2883, 32
      %v3023 = vpop.permute.xlu0 %3022
      %3024 = vrot.lane.b32.xlu0 %v2886, 32
      %v3025 = vpop.permute.xlu0 %3024
      %3026 = vrot.lane.b32.xlu0 %v2889, 32
      %v3027 = vpop.permute.xlu0 %3026
      %3028 = vrot.lane.b32.xlu0 %v2892, 32
      %v3029 = vpop.permute.xlu0 %3028
      %3030 = vrot.lane.b32.xlu0 %v2895, 32
      %v3031 = vpop.permute.xlu0 %3030
      %3032 = vrot.lane.b32.xlu0 %v2908, 32
      %v3033 = vpop.permute.xlu0 %3032
      %3034 = vrot.lane.b32.xlu0 %v2911, 32
      %v3035 = vpop.permute.xlu0 %3034
      %3036 = vrot.lane.b32.xlu0 %v2730, 64
      %v3037 = vpop.permute.xlu0 %3036
      %3038 = vrot.lane.b32.xlu0 %v2732, 64
      %v3039 = vpop.permute.xlu0 %3038
      %3040 = vrot.lane.b32.xlu0 %v2734, 64
      %v3041 = vpop.permute.xlu0 %3040
      %3042 = vrot.lane.b32.xlu0 %v2736, 64
      %v3043 = vpop.permute.xlu0 %3042
      %3044 = vrot.lane.b32.xlu0 %v2738, 64
      %v3045 = vpop.permute.xlu0 %3044
      %3046 = vrot.lane.b32.xlu0 %v2740, 64
      %v3047 = vpop.permute.xlu0 %3046
      %3048 = vrot.lane.b32.xlu0 %v2742, 64
      %v3049 = vpop.permute.xlu0 %3048
      %3050 = vrot.lane.b32.xlu0 %v2744, 64
      %v3051 = vpop.permute.xlu0 %3050
      %3052 = vrot.lane.b32.xlu0 %v2746, 64
      %v3053 = vpop.permute.xlu0 %3052
      %3054 = vrot.lane.b32.xlu0 %v2748, 64
      %v3055 = vpop.permute.xlu0 %3054
      %3056 = vrot.lane.b32.xlu0 %v2750, 64
      %v3057 = vpop.permute.xlu0 %3056
      %3058 = vrot.lane.b32.xlu0 %v2752, 64
      %v3059 = vpop.permute.xlu0 %3058
      %3060 = vrot.lane.b32.xlu0 %v2754, 64
      %v3061 = vpop.permute.xlu0 %3060
      %3062 = vrot.lane.b32.xlu0 %v2756, 64
      %v3063 = vpop.permute.xlu0 %3062
      %3064 = vrot.lane.b32.xlu0 %v2724, 64
      %v3065 = vpop.permute.xlu0 %3064
      %3066 = vrot.lane.b32.xlu0 %v2816, 96
      %v3067 = vpop.permute.xlu0 %3066
      %3068 = vrot.lane.b32.xlu0 %v2819, 96
      %v3069 = vpop.permute.xlu0 %3068
      %3070 = vrot.lane.b32.xlu0 %v2822, 96
      %v3071 = vpop.permute.xlu0 %3070
      %3072 = vrot.lane.b32.xlu0 %v2825, 96
      %v3073 = vpop.permute.xlu0 %3072
      %3074 = vrot.lane.b32.xlu0 %v2828, 96
      %v3075 = vpop.permute.xlu0 %3074
      %3076 = vrot.lane.b32.xlu0 %v2831, 96
      %v3077 = vpop.permute.xlu0 %3076
      %3078 = vrot.lane.b32.xlu0 %v2834, 96
      %v3079 = vpop.permute.xlu0 %3078
      %3080 = vrot.lane.b32.xlu0 %v2837, 96
      %v3081 = vpop.permute.xlu0 %3080
      %3082 = vrot.lane.b32.xlu0 %v2840, 96
      %v3083 = vpop.permute.xlu0 %3082
      %3084 = vrot.lane.b32.xlu0 %v2843, 96
      %v3085 = vpop.permute.xlu0 %3084
      %3086 = vrot.lane.b32.xlu0 %v2846, 96
      %v3087 = vpop.permute.xlu0 %3086
      %3088 = vrot.lane.b32.xlu0 %v2849, 96
      %v3089 = vpop.permute.xlu0 %3088
      %3090 = vrot.lane.b32.xlu0 %v2902, 96
      %v3091 = vpop.permute.xlu0 %3090
      %3092 = vrot.lane.b32.xlu0 %v2905, 96
      %v3093 = vpop.permute.xlu0 %3092
      %3094 = vrot.lane.b32.xlu0 %v2807, 96
      %v3095 = vpop.permute.xlu0 %3094
      %v3097 = vsel %vm2118, %v2724, %v2913
      %v3099 = vsel %vm2118, %v2726, %v2915
      %v3101 = vsel %vm2118, %v2728, %v2917
      %v3103 = vsel %vm2118, %v2730, %v2919
      %v3105 = vsel %vm2118, %v2732, %v2921
      %v3107 = vsel %vm2118, %v2734, %v2923
      %v3109 = vsel %vm2118, %v2736, %v2925
      %v3111 = vsel %vm2118, %v2738, %v2927
      %v3113 = vsel %vm2118, %v2740, %v2929
      %v3115 = vsel %vm2118, %v2742, %v2931
      %v3117 = vsel %vm2118, %v2744, %v2933
      %v3119 = vsel %vm2118, %v2746, %v2935
      %v3121 = vsel %vm2118, %v2748, %v2937
      %v3123 = vsel %vm2118, %v2750, %v2939
      %v3125 = vsel %vm2118, %v2752, %v2941
      %vm3126 = vcmask 523264
      %v3128 = vsel %vm3126, %v3097, %v2943
      %v3130 = vsel %vm3126, %v3099, %v2945
      %v3132 = vsel %vm3126, %v3101, %v2947
      %v3134 = vsel %vm3126, %v3103, %v2949
      %v3136 = vsel %vm3126, %v3105, %v2951
      %v3138 = vsel %vm3126, %v3107, %v2953
      %v3140 = vsel %vm3126, %v3109, %v2955
      %v3142 = vsel %vm3126, %v3111, %v2957
      %v3144 = vsel %vm3126, %v3113, %v2959
      %v3146 = vsel %vm3126, %v3115, %v2961
      %v3148 = vsel %vm3126, %v3117, %v2963
      %v3150 = vsel %vm3126, %v3119, %v2965
      %v3152 = vsel %vm3126, %v3121, %v2967
      %v3154 = vsel %vm3126, %v3123, %v2969
      %v3156 = vsel %vm3126, %v3125, %v2971
      %vm3157 = vcmask 785408
      %v3159 = vsel %vm3157, %v3128, %v2973
      %v3162 = vsel %vm3157, %v3128, %v2975
      %v3165 = vsel %vm3157, %v3130, %v2977
      %v3168 = vsel %vm3157, %v3132, %v2979
      %v3171 = vsel %vm3157, %v3134, %v2981
      %v3174 = vsel %vm3157, %v3136, %v2983
      %v3177 = vsel %vm3157, %v3138, %v2985
      %v3180 = vsel %vm3157, %v3140, %v2987
      %v3183 = vsel %vm3157, %v3142, %v2989
      %v3186 = vsel %vm3157, %v3144, %v2991
      %v3189 = vsel %vm3157, %v3146, %v2993
      %v3192 = vsel %vm3157, %v3148, %v2995
      %v3195 = vsel %vm3157, %v3150, %v2997
      %v3198 = vsel %vm3157, %v3152, %v2999
      %v3201 = vsel %vm3157, %v3154, %v3001
      %v3204 = vsel %vm3157, %v3156, %v3003
      %v3208 = vsel %vm2118, %v2810, %v3005
      %v3211 = vsel %vm2118, %v2813, %v3007
      %v3214 = vsel %vm2118, %v2816, %v3009
      %v3217 = vsel %vm2118, %v2819, %v3011
      %v3220 = vsel %vm2118, %v2822, %v3013
      %v3223 = vsel %vm2118, %v2825, %v3015
      %v3226 = vsel %vm2118, %v2828, %v3017
      %v3229 = vsel %vm2118, %v2831, %v3019
      %v3232 = vsel %vm2118, %v2834, %v3021
      %v3235 = vsel %vm2118, %v2837, %v3023
      %v3238 = vsel %vm2118, %v2840, %v3025
      %v3241 = vsel %vm2118, %v2843, %v3027
      %v3244 = vsel %vm2118, %v2846, %v3029
      %v3247 = vsel %vm2118, %v2849, %v3031
      %v3250 = vsel %vm2118, %v2902, %v3033
      %v3253 = vsel %vm2118, %v2905, %v3035
      %v3255 = vsel %vm3126, %v3208, %v3037
      %v3257 = vsel %vm3126, %v3211, %v3039
      %v3259 = vsel %vm3126, %v3214, %v3041
      %v3261 = vsel %vm3126, %v3217, %v3043
      %v3263 = vsel %vm3126, %v3220, %v3045
      %v3265 = vsel %vm3126, %v3223, %v3047
      %v3267 = vsel %vm3126, %v3226, %v3049
      %v3269 = vsel %vm3126, %v3229, %v3051
      %v3271 = vsel %vm3126, %v3232, %v3053
      %v3273 = vsel %vm3126, %v3235, %v3055
      %v3275 = vsel %vm3126, %v3238, %v3057
      %v3277 = vsel %vm3126, %v3241, %v3059
      %v3279 = vsel %vm3126, %v3244, %v3061
      %v3281 = vsel %vm3126, %v3247, %v3063
      %v3283 = vsel %vm3126, %v3250, %v3065
      %v3284 = vsel %vm3126, %v3253, %v3065
      %v3286 = vsel %vm3157, %v3255, %v3067
      %v3289 = vsel %vm3157, %v3257, %v3069
      %v3292 = vsel %vm3157, %v3259, %v3071
      %v3295 = vsel %vm3157, %v3261, %v3073
      %v3298 = vsel %vm3157, %v3263, %v3075
      %v3301 = vsel %vm3157, %v3265, %v3077
      %v3304 = vsel %vm3157, %v3267, %v3079
      %v3307 = vsel %vm3157, %v3269, %v3081
      %v3310 = vsel %vm3157, %v3271, %v3083
      %v3313 = vsel %vm3157, %v3273, %v3085
      %v3316 = vsel %vm3157, %v3275, %v3087
      %v3319 = vsel %vm3157, %v3277, %v3089
      %v3322 = vsel %vm3157, %v3279, %v3091
      %v3325 = vsel %vm3157, %v3281, %v3093
      %v3328 = vsel %vm3157, %v3283, %v3095
      %v3330 = vsel %vm3157, %v3284, %v3095
      %v3332 = vld [vmem:[%s3] sm:$0xf]
      %v3333 = vld [vmem:[%s3 + $0x4] sm:$0xf]
      %v3334 = vld [vmem:[%s3 + $0x8] sm:$0xf]
      %v3335 = vld [vmem:[%s3 + $0xc] sm:$0xf]
      %v3336 = vld [vmem:[%s3 + $0x10] sm:$0xf]
      %v3337 = vld [vmem:[%s3 + $0x14] sm:$0xf]
      %v3338 = vld [vmem:[%s3 + $0x18] sm:$0xf]
      %v3339 = vld [vmem:[%s3 + $0x1c] sm:$0xf]
      %v3340 = vld [vmem:[%s3 + $0x20] sm:$0xf]
      %v3341 = vld [vmem:[%s3 + $0x24] sm:$0xf]
      %v3342 = vld [vmem:[%s3 + $0x28] sm:$0xf]
      %v3343 = vld [vmem:[%s3 + $0x2c] sm:$0xf]
      %v3344 = vld [vmem:[%s3 + $0x30] sm:$0xf]
      %v3345 = vld [vmem:[%s3 + $0x34] sm:$0xf]
      %v3346 = vld [vmem:[%s3 + $0x38] sm:$0xf]
      %v3347 = vld [vmem:[%s3 + $0x3c] sm:$0xf]
      %v3348 = vld [vmem:[%s3 + $0x40] sm:$0xf]
      %v3349 = vld [vmem:[%s3 + $0x44] sm:$0xf]
      %v3350 = vld [vmem:[%s3 + $0x48] sm:$0xf]
      %v3351 = vld [vmem:[%s3 + $0x4c] sm:$0xf]
      %v3352 = vld [vmem:[%s3 + $0x50] sm:$0xf]
      %v3353 = vld [vmem:[%s3 + $0x54] sm:$0xf]
      %v3354 = vld [vmem:[%s3 + $0x58] sm:$0xf]
      %v3355 = vld [vmem:[%s3 + $0x5c] sm:$0xf]
      %v3356 = vld [vmem:[%s3 + $0x60] sm:$0xf]
      %v3357 = vld [vmem:[%s3 + $0x64] sm:$0xf]
      %v3358 = vld [vmem:[%s3 + $0x68] sm:$0xf]
      %v3359 = vld [vmem:[%s3 + $0x6c] sm:$0xf]
      %v3360 = vld [vmem:[%s3 + $0x70] sm:$0xf]
      %v3361 = vld [vmem:[%s3 + $0x74] sm:$0xf]
      %v3362 = vld [vmem:[%s3 + $0x78] sm:$0xf]
      %v3363 = vld [vmem:[%s3 + $0x7c] sm:$0xf]
      %v3364 = vld [vmem:[%s3 + $0x80] sm:$0xf]
      %v3365 = vld [vmem:[%s3 + $0x84] sm:$0xf]
      %v3366 = vld [vmem:[%s3 + $0x88] sm:$0xf]
      %v3367 = vld [vmem:[%s3 + $0x8c] sm:$0xf]
      %v3368 = vld [vmem:[%s4 + $0x4] sm:$0x1]
      %v3369 = vlaneseq
      %v3370 = vshrl.u32 %v3369, 7
      %v3371 = vsub.s32 0, %v3370
      %v3372 = vrot.slane %v3368, %v3371
      %v3409 = vunpack.c.l.b16 %v3332
      %v3410 = vunpack.c.l.b16 %v3333
      %v3411 = vunpack.c.l.b16 %v3334
      %v3412 = vunpack.c.l.b16 %v3335
      %v3413 = vunpack.c.l.b16 %v3336
      %v3414 = vunpack.c.l.b16 %v3337
      %v3415 = vunpack.c.l.b16 %v3338
      %v3416 = vunpack.c.l.b16 %v3339
      %v3417 = vunpack.c.l.b16 %v3340
      %v3418 = vunpack.c.l.b16 %v3341
      %v3419 = vunpack.c.l.b16 %v3342
      %v3420 = vunpack.c.l.b16 %v3343
      %v3421 = vunpack.c.l.b16 %v3344
      %v3422 = vunpack.c.l.b16 %v3345
      %v3423 = vunpack.c.l.b16 %v3346
      %v3424 = vunpack.c.l.b16 %v3347
      %v3425 = vunpack.c.l.b16 %v3348
      %v3426 = vunpack.c.l.b16 %v3349
      %v3427 = vunpack.c.l.b16 %v3350
      %v3428 = vunpack.c.l.b16 %v3351
      %v3429 = vunpack.c.l.b16 %v3352
      %v3430 = vunpack.c.l.b16 %v3353
      %v3431 = vunpack.c.l.b16 %v3354
      %v3432 = vunpack.c.l.b16 %v3355
      %v3433 = vunpack.c.l.b16 %v3356
      %v3434 = vunpack.c.l.b16 %v3357
      %v3435 = vunpack.c.l.b16 %v3358
      %v3436 = vunpack.c.l.b16 %v3359
      %v3437 = vunpack.c.l.b16 %v3360
      %v3438 = vunpack.c.l.b16 %v3361
      %v3439 = vunpack.c.l.b16 %v3362
      %v3440 = vunpack.c.l.b16 %v3363
      %v3441 = vunpack.c.l.b16 %v3364
      %v3442 = vunpack.c.l.b16 %v3365
      %v3443 = vunpack.c.l.b16 %v3366
      %v3444 = vunpack.c.l.b16 %v3367
      %v3445 = vpack.c.b16 %v3410, %v3409
      %v3446 = vpack.c.b16 %v3412, %v3411
      %v3447 = vpack.c.b16 %v3414, %v3413
      %v3448 = vpack.c.b16 %v3416, %v3415
      %v3449 = vpack.c.b16 %v3418, %v3417
      %v3450 = vpack.c.b16 %v3420, %v3419
      %v3451 = vpack.c.b16 %v3422, %v3421
      %v3452 = vpack.c.b16 %v3424, %v3423
      %v3453 = vpack.c.b16 %v3426, %v3425
      %v3454 = vpack.c.b16 %v3428, %v3427
      %v3455 = vpack.c.b16 %v3430, %v3429
      %v3456 = vpack.c.b16 %v3432, %v3431
      %v3457 = vpack.c.b16 %v3434, %v3433
      %v3458 = vpack.c.b16 %v3436, %v3435
      %v3459 = vpack.c.b16 %v3438, %v3437
      %v3460 = vpack.c.b16 %v3440, %v3439
      %v3461 = vpack.c.b16 %v3442, %v3441
      %v3462 = vpack.c.b16 %v3444, %v3443
      %v3482 = vsel %vm2118, %v2862, 0
      %v3485 = vsel %vm2118, %v2865, 0
      %v3488 = vsel %vm2118, %v2868, 0
      %v3491 = vsel %vm2118, %v2871, 0
      %v3494 = vsel %vm2118, %v2874, 0
      %v3497 = vsel %vm2118, %v2877, 0
      %v3500 = vsel %vm2118, %v2880, 0
      %v3503 = vsel %vm2118, %v2883, 0
      %v3506 = vsel %vm2118, %v2886, 0
      %v3509 = vsel %vm2118, %v2889, 0
      %v3512 = vsel %vm2118, %v2892, 0
      %v3515 = vsel %vm2118, %v2895, 0
      %v3518 = vsel %vm2118, %v2908, 0
      %v3521 = vsel %vm2118, %v2911, 0
      %v3524 = vsel %vm2118, %v2853, 0
      %3526 = vmatprep.subr.bf16.mxu0 0
      %3527 = vmatpush1.bf16.msra.mxu0 %v3445
      %3528 = vmatprep.subr.bf16.mxu0 0
      %3529 = vmatpush1.bf16.msra.mxu0 %v3446
      %3530 = vmatprep.subr.bf16.mxu0 0
      %3531 = vmatpush1.bf16.msra.mxu0 %v3447
      %3532 = vmatprep.subr.bf16.mxu0 0
      %3533 = vmatpush1.bf16.msra.mxu0 %v3448
      %3534 = vmatprep.subr.bf16.mxu0 0
      %3535 = vmatpush1.bf16.msra.mxu0 %v3449
      %3536 = vmatprep.subr.bf16.mxu0 0
      %3537 = vmatpush1.bf16.msra.mxu0 %v3450
      %3538 = vmatprep.subr.bf16.mxu0 0
      %3539 = vmatpush1.bf16.msra.mxu0 %v3451
      %3540 = vmatprep.subr.bf16.mxu0 0
      %3541 = vmatpush1.bf16.msra.mxu0 %v3452
      %3542 = vmatprep.subr.bf16.mxu0 0
      %3543 = vmatpush1.bf16.msra.mxu0 %v3453
      %3544 = vmatprep.subr.bf16.mxu0 0
      %3545 = vmatpush1.bf16.msra.mxu0 %v3454
      %3546 = vmatprep.subr.bf16.mxu0 0
      %3547 = vmatpush1.bf16.msra.mxu0 %v3455
      %3548 = vmatprep.subr.bf16.mxu0 0
      %3549 = vmatpush1.bf16.msra.mxu0 %v3456
      %3550 = vmatprep.subr.bf16.mxu0 0
      %3551 = vmatpush1.bf16.msra.mxu0 %v3457
      %3552 = vmatprep.subr.bf16.mxu0 0
      %3553 = vmatpush1.bf16.msra.mxu0 %v3458
      %3554 = vmatprep.subr.bf16.mxu0 0
      %3555 = vmatpush1.bf16.msra.mxu0 %v3459
      %3556 = vmatprep.subr.bf16.mxu0 0
      %3557 = vmatpush1.bf16.msra.mxu0 %v3460
      %3558 = vmatprep.mubr.bf16.mxu0 %v3286
      %3559 = vmatmul.mubr.bf16.gmra.mrb[0].mxu0 %v3159
      %v3560 = vpop.f32.mrb[0].mxu0
      %v3561 = vadd.f32 %v3372, %v3560
      %v3562 = vpop.f32.mrb[0].mxu0
      %v3563 = vpop.f32.mrb[0].mxu0
      %v3564 = vadd.f32 %v3372, %v3563
      %v3565 = vpop.f32.mrb[0].mxu0
      %3566 = vmatprep.mubr.bf16.mxu0 %v3289
      %3567 = vmatmul.mubr.bf16.gmra.mrb[0].mxu0 %v3162
      %v3568 = vpop.f32.mrb[0].mxu0
      %v3569 = vadd.f32 %v3372, %v3568
      %v3570 = vpop.f32.mrb[0].mxu0
      %v3571 = vpop.f32.mrb[0].mxu0
      %v3572 = vadd.f32 %v3372, %v3571
      %v3573 = vpop.f32.mrb[0].mxu0
      %3574 = vmatprep.mubr.bf16.mxu0 %v3292
      %3575 = vmatmul.mubr.bf16.gmra.mrb[0].mxu0 %v3165
      %v3576 = vpop.f32.mrb[0].mxu0
      %v3577 = vadd.f32 %v3372, %v3576
      %v3578 = vpop.f32.mrb[0].mxu0
      %v3579 = vpop.f32.mrb[0].mxu0
      %v3580 = vadd.f32 %v3372, %v3579
      %v3581 = vpop.f32.mrb[0].mxu0
      %3582 = vmatprep.mubr.bf16.mxu0 %v3295
      %3583 = vmatmul.mubr.bf16.gmra.mrb[0].mxu0 %v3168
      %v3584 = vpop.f32.mrb[0].mxu0
      %v3585 = vadd.f32 %v3372, %v3584
      %v3586 = vpop.f32.mrb[0].mxu0
      %v3587 = vpop.f32.mrb[0].mxu0
      %v3588 = vadd.f32 %v3372, %v3587
      %v3589 = vpop.f32.mrb[0].mxu0
      %3590 = vmatprep.mubr.bf16.mxu0 %v3298
      %3591 = vmatmul.mubr.bf16.gmra.mrb[0].mxu0 %v3171
      %v3592 = vpop.f32.mrb[0].mxu0
      %v3593 = vadd.f32 %v3372, %v3592
      %v3594 = vpop.f32.mrb[0].mxu0
      %v3595 = vpop.f32.mrb[0].mxu0
      %v3596 = vadd.f32 %v3372, %v3595
      %v3597 = vpop.f32.mrb[0].mxu0
      %3598 = vmatprep.mubr.bf16.mxu0 %v3301
      %3599 = vmatmul.mubr.bf16.gmra.mrb[0].mxu0 %v3174
      %v3600 = vpop.f32.mrb[0].mxu0
      %v3601 = vadd.f32 %v3372, %v3600
      %v3602 = vpop.f32.mrb[0].mxu0
      %v3603 = vpop.f32.mrb[0].mxu0
      %v3604 = vadd.f32 %v3372, %v3603
      %v3605 = vpop.f32.mrb[0].mxu0
      %3606 = vmatprep.mubr.bf16.mxu0 %v3304
      %3607 = vmatmul.mubr.bf16.gmra.mrb[0].mxu0 %v3177
      %v3608 = vpop.f32.mrb[0].mxu0
      %v3609 = vadd.f32 %v3372, %v3608
      %v3610 = vpop.f32.mrb[0].mxu0
      %v3611 = vpop.f32.mrb[0].mxu0
      %v3612 = vadd.f32 %v3372, %v3611
      %v3613 = vpop.f32.mrb[0].mxu0
      %3614 = vmatprep.mubr.bf16.mxu0 %v3307
      %3615 = vmatmul.mubr.bf16.gmra.mrb[0].mxu0 %v3180
      %v3616 = vpop.f32.mrb[0].mxu0
      %v3617 = vadd.f32 %v3372, %v3616
      %v3618 = vpop.f32.mrb[0].mxu0
      %v3619 = vpop.f32.mrb[0].mxu0
      %v3620 = vadd.f32 %v3372, %v3619
      %v3621 = vpop.f32.mrb[0].mxu0
      %3622 = vmatprep.mubr.bf16.mxu0 %v3310
      %3623 = vmatmul.mubr.bf16.gmra.mrb[0].mxu0 %v3183
      %v3624 = vpop.f32.mrb[0].mxu0
      %v3625 = vadd.f32 %v3372, %v3624
      %v3626 = vpop.f32.mrb[0].mxu0
      %v3627 = vpop.f32.mrb[0].mxu0
      %v3628 = vadd.f32 %v3372, %v3627
      %v3629 = vpop.f32.mrb[0].mxu0
      %3630 = vmatprep.mubr.bf16.mxu0 %v3313
      %3631 = vmatmul.mubr.bf16.gmra.mrb[0].mxu0 %v3186
      %v3632 = vpop.f32.mrb[0].mxu0
      %v3633 = vadd.f32 %v3372, %v3632
      %v3634 = vpop.f32.mrb[0].mxu0
      %v3635 = vpop.f32.mrb[0].mxu0
      %v3636 = vadd.f32 %v3372, %v3635
      %v3637 = vpop.f32.mrb[0].mxu0
      %3638 = vmatprep.mubr.bf16.mxu0 %v3316
      %3639 = vmatmul.mubr.bf16.gmra.mrb[0].mxu0 %v3189
      %v3640 = vpop.f32.mrb[0].mxu0
      %v3641 = vadd.f32 %v3372, %v3640
      %v3642 = vpop.f32.mrb[0].mxu0
      %v3643 = vpop.f32.mrb[0].mxu0
      %v3644 = vadd.f32 %v3372, %v3643
      %v3645 = vpop.f32.mrb[0].mxu0
      %3646 = vmatprep.mubr.bf16.mxu0 %v3319
      %3647 = vmatmul.mubr.bf16.gmra.mrb[0].mxu0 %v3192
      %v3648 = vpop.f32.mrb[0].mxu0
      %v3649 = vadd.f32 %v3372, %v3648
      %v3650 = vpop.f32.mrb[0].mxu0
      %v3651 = vpop.f32.mrb[0].mxu0
      %v3652 = vadd.f32 %v3372, %v3651
      %v3653 = vpop.f32.mrb[0].mxu0
      %3654 = vmatprep.mubr.bf16.mxu0 %v3322
      %3655 = vmatmul.mubr.bf16.gmra.mrb[0].mxu0 %v3195
      %v3656 = vpop.f32.mrb[0].mxu0
      %v3657 = vadd.f32 %v3372, %v3656
      %v3658 = vpop.f32.mrb[0].mxu0
      %v3659 = vpop.f32.mrb[0].mxu0
      %v3660 = vadd.f32 %v3372, %v3659
      %v3661 = vpop.f32.mrb[0].mxu0
      %3662 = vmatprep.mubr.bf16.mxu0 %v3325
      %3663 = vmatmul.mubr.bf16.gmra.mrb[0].mxu0 %v3198
      %v3664 = vpop.f32.mrb[0].mxu0
      %v3665 = vadd.f32 %v3372, %v3664
      %v3666 = vpop.f32.mrb[0].mxu0
      %v3667 = vpop.f32.mrb[0].mxu0
      %v3668 = vadd.f32 %v3372, %v3667
      %v3669 = vpop.f32.mrb[0].mxu0
      %3670 = vmatprep.mubr.bf16.mxu0 %v3328
      %3671 = vmatmul.mubr.bf16.gmra.mrb[0].mxu0 %v3201
      %v3672 = vpop.f32.mrb[0].mxu0
      %v3673 = vadd.f32 %v3372, %v3672
      %v3674 = vpop.f32.mrb[0].mxu0
      %v3675 = vpop.f32.mrb[0].mxu0
      %v3676 = vadd.f32 %v3372, %v3675
      %v3677 = vpop.f32.mrb[0].mxu0
      %3678 = vmatprep.mubr.bf16.mxu0 %v3330
      %3679 = vmatmul.mubr.bf16.gmra.mrb[0].mxu0 %v3204
      %v3680 = vpop.f32.mrb[0].mxu0
      %v3681 = vadd.f32 %v3372, %v3680
      %v3682 = vpop.f32.mrb[0].mxu0
      %v3683 = vpop.f32.mrb[0].mxu0
      %v3684 = vadd.f32 %v3372, %v3683
      %v3685 = vpop.f32.mrb[0].mxu0
      %3686 = vdwg.mxu0
      %3687 = vmatprep.subr.bf16.mxu0 0
      %3688 = vmatpush1.bf16.msra.mxu0 %v3461
      %3689 = vmatprep.subr.bf16.mxu0 0
      %3690 = vmatpush1.bf16.msra.mxu0 %v3462
      %3691 = vmatprep.subr.bf16.mxu0 0
      %3692 = vmatpush1.bf16.msra.mxu0 0
      %3693 = vmatprep.subr.bf16.mxu0 0
      %3694 = vmatpush1.bf16.msra.mxu0 0
      %3695 = vmatprep.subr.bf16.mxu0 0
      %3696 = vmatpush1.bf16.msra.mxu0 0
      %3697 = vmatprep.subr.bf16.mxu0 0
      %3698 = vmatpush1.bf16.msra.mxu0 0
      %3699 = vmatprep.subr.bf16.mxu0 0
      %3700 = vmatpush1.bf16.msra.mxu0 0
      %3701 = vmatprep.subr.bf16.mxu0 0
      %3702 = vmatpush1.bf16.msra.mxu0 0
      %3703 = vmatprep.subr.bf16.mxu0 0
      %3704 = vmatpush1.bf16.msra.mxu0 0
      %3705 = vmatprep.subr.bf16.mxu0 0
      %3706 = vmatpush1.bf16.msra.mxu0 0
      %3707 = vmatprep.subr.bf16.mxu0 0
      %3708 = vmatpush1.bf16.msra.mxu0 0
      %3709 = vmatprep.subr.bf16.mxu0 0
      %3710 = vmatpush1.bf16.msra.mxu0 0
      %3711 = vmatprep.subr.bf16.mxu0 0
      %3712 = vmatpush1.bf16.msra.mxu0 0
      %3713 = vmatprep.subr.bf16.mxu0 0
      %3714 = vmatpush1.bf16.msra.mxu0 0
      %3715 = vmatprep.subr.bf16.mxu0 0
      %3716 = vmatpush1.bf16.msra.mxu0 0
      %3717 = vmatprep.subr.bf16.mxu0 0
      %3718 = vmatpush1.bf16.msra.mxu0 0
      %3719 = vmatprep.mubr.bf16.mxu0 0
      %3720 = vmatmul.mubr.bf16.gmra.mrb[0].mxu0 %v3482
      %v3721 = vpop.f32.mrb[0].mxu0
      %v3722 = vadd.f32 %v3561, %v3721
      %v3723 = vpop.f32.mrb[0].mxu0
      %v3724 = vpop.f32.mrb[0].mxu0
      %v3725 = vadd.f32 %v3564, %v3724
      %v3726 = vpop.f32.mrb[0].mxu0
      %3727 = vmatprep.mubr.bf16.mxu0 0
      %3728 = vmatmul.mubr.bf16.gmra.mrb[0].mxu0 %v3485
      %v3729 = vpop.f32.mrb[0].mxu0
      %v3730 = vadd.f32 %v3569, %v3729
      %v3731 = vpop.f32.mrb[0].mxu0
      %v3732 = vpop.f32.mrb[0].mxu0
      %v3733 = vadd.f32 %v3572, %v3732
      %v3734 = vpop.f32.mrb[0].mxu0
      %3735 = vmatprep.mubr.bf16.mxu0 0
      %3736 = vmatmul.mubr.bf16.gmra.mrb[0].mxu0 %v3488
      %v3737 = vpop.f32.mrb[0].mxu0
      %v3738 = vadd.f32 %v3577, %v3737
      %v3739 = vpop.f32.mrb[0].mxu0
      %v3740 = vpop.f32.mrb[0].mxu0
      %v3741 = vadd.f32 %v3580, %v3740
      %v3742 = vpop.f32.mrb[0].mxu0
      %3743 = vmatprep.mubr.bf16.mxu0 0
      %3744 = vmatmul.mubr.bf16.gmra.mrb[0].mxu0 %v3491
      %v3745 = vpop.f32.mrb[0].mxu0
      %v3746 = vadd.f32 %v3585, %v3745
      %v3747 = vpop.f32.mrb[0].mxu0
      %v3748 = vpop.f32.mrb[0].mxu0
      %v3749 = vadd.f32 %v3588, %v3748
      %v3750 = vpop.f32.mrb[0].mxu0
      %3751 = vmatprep.mubr.bf16.mxu0 0
      %3752 = vmatmul.mubr.bf16.gmra.mrb[0].mxu0 %v3494
      %v3753 = vpop.f32.mrb[0].mxu0
      %v3754 = vadd.f32 %v3593, %v3753
      %v3755 = vpop.f32.mrb[0].mxu0
      %v3756 = vpop.f32.mrb[0].mxu0
      %v3757 = vadd.f32 %v3596, %v3756
      %v3758 = vpop.f32.mrb[0].mxu0
      %3759 = vmatprep.mubr.bf16.mxu0 0
      %3760 = vmatmul.mubr.bf16.gmra.mrb[0].mxu0 %v3497
      %v3761 = vpop.f32.mrb[0].mxu0
      %v3762 = vadd.f32 %v3601, %v3761
      %v3763 = vpop.f32.mrb[0].mxu0
      %v3764 = vpop.f32.mrb[0].mxu0
      %v3765 = vadd.f32 %v3604, %v3764
      %v3766 = vpop.f32.mrb[0].mxu0
      %3767 = vmatprep.mubr.bf16.mxu0 0
      %3768 = vmatmul.mubr.bf16.gmra.mrb[0].mxu0 %v3500
      %v3769 = vpop.f32.mrb[0].mxu0
      %v3770 = vadd.f32 %v3609, %v3769
      %v3771 = vpop.f32.mrb[0].mxu0
      %v3772 = vpop.f32.mrb[0].mxu0
      %v3773 = vadd.f32 %v3612, %v3772
      %v3774 = vpop.f32.mrb[0].mxu0
      %3775 = vmatprep.mubr.bf16.mxu0 0
      %3776 = vmatmul.mubr.bf16.gmra.mrb[0].mxu0 %v3503
      %v3777 = vpop.f32.mrb[0].mxu0
      %v3778 = vadd.f32 %v3617, %v3777
      %v3779 = vpop.f32.mrb[0].mxu0
      %v3780 = vpop.f32.mrb[0].mxu0
      %v3781 = vadd.f32 %v3620, %v3780
      %v3782 = vpop.f32.mrb[0].mxu0
      %3783 = vmatprep.mubr.bf16.mxu0 0
      %3784 = vmatmul.mubr.bf16.gmra.mrb[0].mxu0 %v3506
      %v3785 = vpop.f32.mrb[0].mxu0
      %v3786 = vadd.f32 %v3625, %v3785
      %v3787 = vpop.f32.mrb[0].mxu0
      %v3788 = vpop.f32.mrb[0].mxu0
      %v3789 = vadd.f32 %v3628, %v3788
      %v3790 = vpop.f32.mrb[0].mxu0
      %3791 = vmatprep.mubr.bf16.mxu0 0
      %3792 = vmatmul.mubr.bf16.gmra.mrb[0].mxu0 %v3509
      %v3793 = vpop.f32.mrb[0].mxu0
      %v3794 = vadd.f32 %v3633, %v3793
      %v3795 = vpop.f32.mrb[0].mxu0
      %v3796 = vpop.f32.mrb[0].mxu0
      %v3797 = vadd.f32 %v3636, %v3796
      %v3798 = vpop.f32.mrb[0].mxu0
      %3799 = vmatprep.mubr.bf16.mxu0 0
      %3800 = vmatmul.mubr.bf16.gmra.mrb[0].mxu0 %v3512
      %v3801 = vpop.f32.mrb[0].mxu0
      %v3802 = vadd.f32 %v3641, %v3801
      %v3803 = vpop.f32.mrb[0].mxu0
      %v3804 = vpop.f32.mrb[0].mxu0
      %v3805 = vadd.f32 %v3644, %v3804
      %v3806 = vpop.f32.mrb[0].mxu0
      %3807 = vmatprep.mubr.bf16.mxu0 0
      %3808 = vmatmul.mubr.bf16.gmra.mrb[0].mxu0 %v3515
      %v3809 = vpop.f32.mrb[0].mxu0
      %v3810 = vadd.f32 %v3649, %v3809
      %v3811 = vpop.f32.mrb[0].mxu0
      %v3812 = vpop.f32.mrb[0].mxu0
      %v3813 = vadd.f32 %v3652, %v3812
      %v3814 = vpop.f32.mrb[0].mxu0
      %3815 = vmatprep.mubr.bf16.mxu0 0
      %3816 = vmatmul.mubr.bf16.gmra.mrb[0].mxu0 %v3518
      %v3817 = vpop.f32.mrb[0].mxu0
      %v3818 = vadd.f32 %v3657, %v3817
      %v3819 = vpop.f32.mrb[0].mxu0
      %v3820 = vpop.f32.mrb[0].mxu0
      %v3821 = vadd.f32 %v3660, %v3820
      %v3822 = vpop.f32.mrb[0].mxu0
      %3823 = vmatprep.mubr.bf16.mxu0 0
      %3824 = vmatmul.mubr.bf16.gmra.mrb[0].mxu0 %v3521
      %v3825 = vpop.f32.mrb[0].mxu0
      %v3826 = vadd.f32 %v3665, %v3825
      %v3827 = vpop.f32.mrb[0].mxu0
      %v3828 = vpop.f32.mrb[0].mxu0
      %v3829 = vadd.f32 %v3668, %v3828
      %v3830 = vpop.f32.mrb[0].mxu0
      %3831 = vmatprep.mubr.bf16.mxu0 0
      %3832 = vmatmul.mubr.bf16.gmra.mrb[0].mxu0 %v3524
      %v3833 = vpop.f32.mrb[0].mxu0
      %v3834 = vadd.f32 %v3673, %v3833
      %v3835 = vpop.f32.mrb[0].mxu0
      %v3836 = vpop.f32.mrb[0].mxu0
      %v3837 = vadd.f32 %v3676, %v3836
      %v3838 = vpop.f32.mrb[0].mxu0
      %3839 = vmatprep.mubr.bf16.mxu0 0
      %3840 = vmatmul.mubr.bf16.gmra.mrb[0].mxu0 %v3524
      %v3841 = vpop.f32.mrb[0].mxu0
      %v3842 = vadd.f32 %v3681, %v3841
      %v3843 = vpop.f32.mrb[0].mxu0
      %v3844 = vpop.f32.mrb[0].mxu0
      %v3845 = vadd.f32 %v3684, %v3844
      %v3846 = vpop.f32.mrb[0].mxu0
      %3847 = vdwg.mxu0
      %vm3848 = vcmp.ge.f32.partialorder %v3722, 0.0
      %vm3849 = vcmp.ge.f32.partialorder %v3725, 0.0
      %vm3850 = vcmp.ge.f32.partialorder %v3730, 0.0
      %vm3851 = vcmp.ge.f32.partialorder %v3733, 0.0
      %vm3852 = vcmp.ge.f32.partialorder %v3738, 0.0
      %vm3853 = vcmp.ge.f32.partialorder %v3741, 0.0
      %vm3854 = vcmp.ge.f32.partialorder %v3746, 0.0
      %vm3855 = vcmp.ge.f32.partialorder %v3749, 0.0
      %vm3856 = vcmp.ge.f32.partialorder %v3754, 0.0
      %vm3857 = vcmp.ge.f32.partialorder %v3757, 0.0
      %vm3858 = vcmp.ge.f32.partialorder %v3762, 0.0
      %vm3859 = vcmp.ge.f32.partialorder %v3765, 0.0
      %vm3860 = vcmp.ge.f32.partialorder %v3770, 0.0
      %vm3861 = vcmp.ge.f32.partialorder %v3773, 0.0
      %vm3862 = vcmp.ge.f32.partialorder %v3778, 0.0
      %vm3863 = vcmp.ge.f32.partialorder %v3781, 0.0
      %vm3864 = vcmp.ge.f32.partialorder %v3786, 0.0
      %vm3865 = vcmp.ge.f32.partialorder %v3789, 0.0
      %vm3866 = vcmp.ge.f32.partialorder %v3794, 0.0
      %vm3867 = vcmp.ge.f32.partialorder %v3797, 0.0
      %vm3868 = vcmp.ge.f32.partialorder %v3802, 0.0
      %vm3869 = vcmp.ge.f32.partialorder %v3805, 0.0
      %vm3870 = vcmp.ge.f32.partialorder %v3810, 0.0
      %vm3871 = vcmp.ge.f32.partialorder %v3813, 0.0
      %vm3872 = vcmp.ge.f32.partialorder %v3818, 0.0
      %vm3873 = vcmp.ge.f32.partialorder %v3821, 0.0
      %vm3874 = vcmp.ge.f32.partialorder %v3826, 0.0
      %vm3875 = vcmp.ge.f32.partialorder %v3829, 0.0
      %vm3876 = vcmp.ge.f32.partialorder %v3834, 0.0
      %vm3877 = vcmp.ge.f32.partialorder %v3837, 0.0
      %vm3878 = vcmp.ge.f32.partialorder %v3842, 0.0
      %vm3879 = vcmp.ge.f32.partialorder %v3845, 0.0
      %v3880 = vmul.f32 %v3722, 0.01
      %v3881 = vmul.f32 %v3725, 0.01
      %v3882 = vmul.f32 %v3730, 0.01
      %v3883 = vmul.f32 %v3733, 0.01
      %v3884 = vmul.f32 %v3738, 0.01
      %v3885 = vmul.f32 %v3741, 0.01
      %v3886 = vmul.f32 %v3746, 0.01
      %v3887 = vmul.f32 %v3749, 0.01
      %v3888 = vmul.f32 %v3754, 0.01
      %v3889 = vmul.f32 %v3757, 0.01
      %v3890 = vmul.f32 %v3762, 0.01
      %v3891 = vmul.f32 %v3765, 0.01
      %v3892 = vmul.f32 %v3770, 0.01
      %v3893 = vmul.f32 %v3773, 0.01
      %v3894 = vmul.f32 %v3778, 0.01
      %v3895 = vmul.f32 %v3781, 0.01
      %v3896 = vmul.f32 %v3786, 0.01
      %v3897 = vmul.f32 %v3789, 0.01
      %v3898 = vmul.f32 %v3794, 0.01
      %v3899 = vmul.f32 %v3797, 0.01
      %v3900 = vmul.f32 %v3802, 0.01
      %v3901 = vmul.f32 %v3805, 0.01
      %v3902 = vmul.f32 %v3810, 0.01
      %v3903 = vmul.f32 %v3813, 0.01
      %v3904 = vmul.f32 %v3818, 0.01
      %v3905 = vmul.f32 %v3821, 0.01
      %v3906 = vmul.f32 %v3826, 0.01
      %v3907 = vmul.f32 %v3829, 0.01
      %v3908 = vmul.f32 %v3834, 0.01
      %v3909 = vmul.f32 %v3837, 0.01
      %v3910 = vmul.f32 %v3842, 0.01
      %v3911 = vmul.f32 %v3845, 0.01
      %v3912 = vsel %vm3848, %v3722, %v3880
      %v3913 = vsel %vm3849, %v3725, %v3881
      %v3914 = vsel %vm3850, %v3730, %v3882
      %v3915 = vsel %vm3851, %v3733, %v3883
      %v3916 = vsel %vm3852, %v3738, %v3884
      %v3917 = vsel %vm3853, %v3741, %v3885
      %v3918 = vsel %vm3854, %v3746, %v3886
      %v3919 = vsel %vm3855, %v3749, %v3887
      %v3920 = vsel %vm3856, %v3754, %v3888
      %v3921 = vsel %vm3857, %v3757, %v3889
      %v3922 = vsel %vm3858, %v3762, %v3890
      %v3923 = vsel %vm3859, %v3765, %v3891
      %v3924 = vsel %vm3860, %v3770, %v3892
      %v3925 = vsel %vm3861, %v3773, %v3893
      %v3926 = vsel %vm3862, %v3778, %v3894
      %v3927 = vsel %vm3863, %v3781, %v3895
      %v3928 = vsel %vm3864, %v3786, %v3896
      %v3929 = vsel %vm3865, %v3789, %v3897
      %v3930 = vsel %vm3866, %v3794, %v3898
      %v3931 = vsel %vm3867, %v3797, %v3899
      %v3932 = vsel %vm3868, %v3802, %v3900
      %v3933 = vsel %vm3869, %v3805, %v3901
      %v3934 = vsel %vm3870, %v3810, %v3902
      %v3935 = vsel %vm3871, %v3813, %v3903
      %v3936 = vsel %vm3872, %v3818, %v3904
      %v3937 = vsel %vm3873, %v3821, %v3905
      %v3938 = vsel %vm3874, %v3826, %v3906
      %v3939 = vsel %vm3875, %v3829, %v3907
      %v3940 = vsel %vm3876, %v3834, %v3908
      %v3941 = vsel %vm3877, %v3837, %v3909
      %v3942 = vsel %vm3878, %v3842, %v3910
      %v3943 = vsel %vm3879, %v3845, %v3911
      %v3944 = vld [vmem:[%s4 + $0x5] sm:$0x1]
      %v3945 = vlaneseq
      %v3946 = vshrl.u32 %v3945, 7
      %v3947 = vsub.s32 0, %v3946
      %v3948 = vrot.slane %v3944, %v3947
      %v3949 = vmul.f32 %v3912, %v3948
      %v3950 = vmul.f32 %v3913, %v3948
      %v3951 = vmul.f32 %v3914, %v3948
      %v3952 = vmul.f32 %v3915, %v3948
      %v3953 = vmul.f32 %v3916, %v3948
      %v3954 = vmul.f32 %v3917, %v3948
      %v3955 = vmul.f32 %v3918, %v3948
      %v3956 = vmul.f32 %v3919, %v3948
      %v3957 = vmul.f32 %v3920, %v3948
      %v3958 = vmul.f32 %v3921, %v3948
      %v3959 = vmul.f32 %v3922, %v3948
      %v3960 = vmul.f32 %v3923, %v3948
      %v3961 = vmul.f32 %v3924, %v3948
      %v3962 = vmul.f32 %v3925, %v3948
      %v3963 = vmul.f32 %v3926, %v3948
      %v3964 = vmul.f32 %v3927, %v3948
      %v3965 = vmul.f32 %v3928, %v3948
      %v3966 = vmul.f32 %v3929, %v3948
      %v3967 = vmul.f32 %v3930, %v3948
      %v3968 = vmul.f32 %v3931, %v3948
      %v3969 = vmul.f32 %v3932, %v3948
      %v3970 = vmul.f32 %v3933, %v3948
      %v3971 = vmul.f32 %v3934, %v3948
      %v3972 = vmul.f32 %v3935, %v3948
      %v3973 = vmul.f32 %v3936, %v3948
      %v3974 = vmul.f32 %v3937, %v3948
      %v3975 = vmul.f32 %v3938, %v3948
      %v3976 = vmul.f32 %v3939, %v3948
      %v3977 = vmul.f32 %v3940, %v3948
      %v3978 = vmul.f32 %v3941, %v3948
      %v3979 = vmul.f32 %v3942, %v3948
      %v3980 = vmul.f32 %v3943, %v3948
      %v3981 = vld [vmem:[%s4 + $0x6] sm:$0x1]
      %v3982 = vlaneseq
      %v3983 = vshrl.u32 %v3982, 7
      %v3984 = vsub.s32 0, %v3983
      %v3985 = vrot.slane %v3981, %v3984
      %v3986 = vadd.f32 %v3949, %v3985
      %v3987 = vadd.f32 %v3950, %v3985
      %v3988 = vadd.f32 %v3951, %v3985
      %v3989 = vadd.f32 %v3952, %v3985
      %v3990 = vadd.f32 %v3953, %v3985
      %v3991 = vadd.f32 %v3954, %v3985
      %v3992 = vadd.f32 %v3955, %v3985
      %v3993 = vadd.f32 %v3956, %v3985
      %v3994 = vadd.f32 %v3957, %v3985
      %v3995 = vadd.f32 %v3958, %v3985
      %v3996 = vadd.f32 %v3959, %v3985
      %v3997 = vadd.f32 %v3960, %v3985
      %v3998 = vadd.f32 %v3961, %v3985
      %v3999 = vadd.f32 %v3962, %v3985
      %v4000 = vadd.f32 %v3963, %v3985
      %v4001 = vadd.f32 %v3964, %v3985
      %v4002 = vadd.f32 %v3965, %v3985
      %v4003 = vadd.f32 %v3966, %v3985
      %v4004 = vadd.f32 %v3967, %v3985
      %v4005 = vadd.f32 %v3968, %v3985
      %v4006 = vadd.f32 %v3969, %v3985
      %v4007 = vadd.f32 %v3970, %v3985
      %v4008 = vadd.f32 %v3971, %v3985
      %v4009 = vadd.f32 %v3972, %v3985
      %v4010 = vadd.f32 %v3973, %v3985
      %v4011 = vadd.f32 %v3974, %v3985
      %v4012 = vadd.f32 %v3975, %v3985
      %v4013 = vadd.f32 %v3976, %v3985
      %v4014 = vadd.f32 %v3977, %v3985
      %v4015 = vadd.f32 %v3978, %v3985
      %v4016 = vadd.f32 %v3979, %v3985
      %v4017 = vadd.f32 %v3980, %v3985
      %v4018 = vpack.c.bf16 %v3987, %v3986
      %v4019 = vpack.c.bf16 %v3989, %v3988
      %v4020 = vpack.c.bf16 %v3991, %v3990
      %v4021 = vpack.c.bf16 %v3993, %v3992
      %v4022 = vpack.c.bf16 %v3995, %v3994
      %v4023 = vpack.c.bf16 %v3997, %v3996
      %v4024 = vpack.c.bf16 %v3999, %v3998
      %v4025 = vpack.c.bf16 %v4001, %v4000
      %v4026 = vpack.c.bf16 %v4003, %v4002
      %v4027 = vpack.c.bf16 %v4005, %v4004
      %v4028 = vpack.c.bf16 %v4007, %v4006
      %v4029 = vpack.c.bf16 %v4009, %v4008
      %v4030 = vpack.c.bf16 %v4011, %v4010
      %v4031 = vpack.c.bf16 %v4013, %v4012
      %v4032 = vpack.c.bf16 %v4015, %v4014
      %v4033 = vpack.c.bf16 %v4017, %v4016
      %v4034 = vshrl.u32 0, 16
      %v4036 = vrot.slane %v4034, 7
      %v4037 = vshll.u32 0, 16
      %v4039 = vor.u32 %v4036, %v4037
      %v4041 = vshrl.u32 %v4018, 16
      %v4043 = vrot.slane %v4041, 7
      %v4044 = vshll.u32 %v4018, 16
      %v4046 = vor.u32 %v4043, %v4044
      %v4048 = vshrl.u32 %v4019, 16
      %v4050 = vrot.slane %v4048, 7
      %v4051 = vshll.u32 %v4019, 16
      %v4053 = vor.u32 %v4050, %v4051
      %v4055 = vshrl.u32 %v4020, 16
      %v4057 = vrot.slane %v4055, 7
      %v4058 = vshll.u32 %v4020, 16
      %v4060 = vor.u32 %v4057, %v4058
      %v4062 = vshrl.u32 %v4021, 16
      %v4064 = vrot.slane %v4062, 7
      %v4065 = vshll.u32 %v4021, 16
      %v4067 = vor.u32 %v4064, %v4065
      %v4069 = vshrl.u32 %v4022, 16
      %v4071 = vrot.slane %v4069, 7
      %v4072 = vshll.u32 %v4022, 16
      %v4074 = vor.u32 %v4071, %v4072
      %v4076 = vshrl.u32 %v4023, 16
      %v4078 = vrot.slane %v4076, 7
      %v4079 = vshll.u32 %v4023, 16
      %v4081 = vor.u32 %v4078, %v4079
      %v4083 = vshrl.u32 %v4024, 16
      %v4085 = vrot.slane %v4083, 7
      %v4086 = vshll.u32 %v4024, 16
      %v4088 = vor.u32 %v4085, %v4086
      %v4090 = vshrl.u32 %v4025, 16
      %v4092 = vrot.slane %v4090, 7
      %v4093 = vshll.u32 %v4025, 16
      %v4095 = vor.u32 %v4092, %v4093
      %v4097 = vshrl.u32 %v4026, 16
      %v4099 = vrot.slane %v4097, 7
      %v4100 = vshll.u32 %v4026, 16
      %v4102 = vor.u32 %v4099, %v4100
      %v4104 = vshrl.u32 %v4027, 16
      %v4106 = vrot.slane %v4104, 7
      %v4107 = vshll.u32 %v4027, 16
      %v4109 = vor.u32 %v4106, %v4107
      %v4111 = vshrl.u32 %v4028, 16
      %v4113 = vrot.slane %v4111, 7
      %v4114 = vshll.u32 %v4028, 16
      %v4116 = vor.u32 %v4113, %v4114
      %v4118 = vshrl.u32 %v4029, 16
      %v4120 = vrot.slane %v4118, 7
      %v4121 = vshll.u32 %v4029, 16
      %v4123 = vor.u32 %v4120, %v4121
      %v4125 = vshrl.u32 %v4030, 16
      %v4127 = vrot.slane %v4125, 7
      %v4128 = vshll.u32 %v4030, 16
      %v4130 = vor.u32 %v4127, %v4128
      %v4132 = vshrl.u32 %v4031, 16
      %v4134 = vrot.slane %v4132, 7
      %v4135 = vshll.u32 %v4031, 16
      %v4137 = vor.u32 %v4134, %v4135
      %v4139 = vshrl.u32 %v4032, 16
      %v4141 = vrot.slane %v4139, 7
      %v4142 = vshll.u32 %v4032, 16
      %v4144 = vor.u32 %v4141, %v4142
      %v4146 = vshrl.u32 %v4033, 16
      %v4148 = vrot.slane %v4146, 7
      %v4149 = vshll.u32 %v4033, 16
      %v4151 = vor.u32 %v4148, %v4149
      %vm4186 = vcmask 1040384
      %vm4187 = vsmask.f32 256
      %vm4188 = vmand %vm4186, %vm4187
      %v4189 = vsel %vm4188, 0, %v4039
      %v4190 = vsel %vm4188, 0, %v4046
      %v4191 = vsel %vm4188, 0, %v4053
      %v4192 = vsel %vm4188, 0, %v4060
      %v4193 = vsel %vm4188, 0, %v4067
      %v4194 = vsel %vm4188, 0, %v4074
      %v4195 = vsel %vm4188, 0, %v4081
      %v4196 = vsel %vm4188, 0, %v4088
      %v4197 = vsel %vm4188, 0, %v4095
      %v4198 = vsel %vm4188, 0, %v4102
      %v4199 = vsel %vm4188, 0, %v4109
      %v4200 = vsel %vm4188, 0, %v4116
      %v4201 = vsel %vm4188, 0, %v4123
      %v4202 = vsel %vm4188, 0, %v4130
      %v4203 = vsel %vm4188, 0, %v4137
      %v4204 = vsel %vm4188, 0, %v4144
      %v4205 = vsel %vm4188, 0, %v4151
      %v4206 = vsel %vm4188, %v4036, 0
      %v4207 = vsel %vm4188, %v4043, 0
      %v4208 = vsel %vm4188, %v4050, 0
      %v4209 = vsel %vm4188, %v4057, 0
      %v4210 = vsel %vm4188, %v4064, 0
      %v4211 = vsel %vm4188, %v4071, 0
      %v4212 = vsel %vm4188, %v4078, 0
      %v4213 = vsel %vm4188, %v4085, 0
      %v4214 = vsel %vm4188, %v4092, 0
      %v4215 = vsel %vm4188, %v4099, 0
      %v4216 = vsel %vm4188, %v4106, 0
      %v4217 = vsel %vm4188, %v4113, 0
      %v4218 = vsel %vm4188, %v4120, 0
      %v4219 = vsel %vm4188, %v4127, 0
      %v4220 = vsel %vm4188, %v4134, 0
      %v4221 = vsel %vm4188, %v4141, 0
      %v4222 = vsel %vm4188, %v4148, 0
      %v4257 = vunpack.c.l.b16 %v4189
      %v4258 = vunpack.c.h.b16 %v4189
      %v4259 = vunpack.c.l.b16 %v4206
      %v4260 = vunpack.c.l.b16 %v4190
      %v4261 = vunpack.c.h.b16 %v4190
      %v4262 = vunpack.c.l.b16 %v4207
      %v4263 = vunpack.c.l.b16 %v4191
      %v4264 = vunpack.c.h.b16 %v4191
      %v4265 = vunpack.c.l.b16 %v4208
      %v4266 = vunpack.c.l.b16 %v4192
      %v4267 = vunpack.c.h.b16 %v4192
      %v4268 = vunpack.c.l.b16 %v4209
      %v4269 = vunpack.c.l.b16 %v4193
      %v4270 = vunpack.c.h.b16 %v4193
      %v4271 = vunpack.c.l.b16 %v4210
      %v4272 = vunpack.c.l.b16 %v4194
      %v4273 = vunpack.c.h.b16 %v4194
      %v4274 = vunpack.c.l.b16 %v4211
      %v4275 = vunpack.c.l.b16 %v4195
      %v4276 = vunpack.c.h.b16 %v4195
      %v4277 = vunpack.c.l.b16 %v4212
      %v4278 = vunpack.c.l.b16 %v4196
      %v4279 = vunpack.c.h.b16 %v4196
      %v4280 = vunpack.c.l.b16 %v4213
      %v4281 = vunpack.c.l.b16 %v4197
      %v4282 = vunpack.c.h.b16 %v4197
      %v4283 = vunpack.c.l.b16 %v4214
      %v4284 = vunpack.c.l.b16 %v4198
      %v4285 = vunpack.c.h.b16 %v4198
      %v4286 = vunpack.c.l.b16 %v4215
      %v4287 = vunpack.c.l.b16 %v4199
      %v4288 = vunpack.c.h.b16 %v4199
      %v4289 = vunpack.c.l.b16 %v4216
      %v4290 = vunpack.c.l.b16 %v4200
      %v4291 = vunpack.c.h.b16 %v4200
      %v4292 = vunpack.c.l.b16 %v4217
      %v4293 = vunpack.c.l.b16 %v4201
      %v4294 = vunpack.c.h.b16 %v4201
      %v4295 = vunpack.c.l.b16 %v4218
      %v4296 = vunpack.c.l.b16 %v4202
      %v4297 = vunpack.c.h.b16 %v4202
      %v4298 = vunpack.c.l.b16 %v4219
      %v4299 = vunpack.c.l.b16 %v4203
      %v4300 = vunpack.c.h.b16 %v4203
      %v4301 = vunpack.c.l.b16 %v4220
      %v4302 = vunpack.c.l.b16 %v4204
      %v4303 = vunpack.c.h.b16 %v4204
      %v4304 = vunpack.c.l.b16 %v4221
      %v4305 = vunpack.c.l.b16 %v4205
      %v4306 = vunpack.c.h.b16 %v4205
      %v4307 = vunpack.c.l.b16 %v4222
      %v4308 = vpack.c.b16 %v4257, %v4257
      %v4309 = vpack.c.b16 %v4258, %v4258
      %v4310 = vpack.c.b16 %v4259, %v4259
      %v4311 = vpack.c.b16 %v4260, %v4260
      %v4312 = vpack.c.b16 %v4261, %v4261
      %v4313 = vpack.c.b16 %v4262, %v4262
      %v4314 = vpack.c.b16 %v4263, %v4263
      %v4315 = vpack.c.b16 %v4264, %v4264
      %v4316 = vpack.c.b16 %v4265, %v4265
      %v4317 = vpack.c.b16 %v4266, %v4266
      %v4318 = vpack.c.b16 %v4267, %v4267
      %v4319 = vpack.c.b16 %v4268, %v4268
      %v4320 = vpack.c.b16 %v4269, %v4269
      %v4321 = vpack.c.b16 %v4270, %v4270
      %v4322 = vpack.c.b16 %v4271, %v4271
      %v4323 = vpack.c.b16 %v4272, %v4272
      %v4324 = vpack.c.b16 %v4273, %v4273
      %v4325 = vpack.c.b16 %v4274, %v4274
      %v4326 = vpack.c.b16 %v4275, %v4275
      %v4327 = vpack.c.b16 %v4276, %v4276
      %v4328 = vpack.c.b16 %v4277, %v4277
      %v4329 = vpack.c.b16 %v4278, %v4278
      %v4330 = vpack.c.b16 %v4279, %v4279
      %v4331 = vpack.c.b16 %v4280, %v4280
      %v4332 = vpack.c.b16 %v4281, %v4281
      %v4333 = vpack.c.b16 %v4282, %v4282
      %v4334 = vpack.c.b16 %v4283, %v4283
      %v4335 = vpack.c.b16 %v4284, %v4284
      %v4336 = vpack.c.b16 %v4285, %v4285
      %v4337 = vpack.c.b16 %v4286, %v4286
      %v4338 = vpack.c.b16 %v4287, %v4287
      %v4339 = vpack.c.b16 %v4288, %v4288
      %v4340 = vpack.c.b16 %v4289, %v4289
      %v4341 = vpack.c.b16 %v4290, %v4290
      %v4342 = vpack.c.b16 %v4291, %v4291
      %v4343 = vpack.c.b16 %v4292, %v4292
      %v4344 = vpack.c.b16 %v4293, %v4293
      %v4345 = vpack.c.b16 %v4294, %v4294
      %v4346 = vpack.c.b16 %v4295, %v4295
      %v4347 = vpack.c.b16 %v4296, %v4296
      %v4348 = vpack.c.b16 %v4297, %v4297
      %v4349 = vpack.c.b16 %v4298, %v4298
      %v4350 = vpack.c.b16 %v4299, %v4299
      %v4351 = vpack.c.b16 %v4300, %v4300
      %v4352 = vpack.c.b16 %v4301, %v4301
      %v4353 = vpack.c.b16 %v4302, %v4302
      %v4354 = vpack.c.b16 %v4303, %v4303
      %v4355 = vpack.c.b16 %v4304, %v4304
      %v4356 = vpack.c.b16 %v4305, %v4305
      %v4357 = vpack.c.b16 %v4306, %v4306
      %v4358 = vpack.c.b16 %v4307, %v4307
      %4410 = vst.msk [vmem:[%s303] sm:$0xf] %vm1238, %v4308
      %4411 = vst.msk [vmem:[%s303 + $0x4] sm:$0xf] %vm1238, %v4309
      %vm4412 = vcmask 253952
      %4413 = vst.msk [vmem:[%s303 + $0x8] sm:$0x1] %vm4412, %v4310
      %4414 = vst.msk [vmem:[%s303 + $0xc] sm:$0xf] %vm1238, %v4311
      %4415 = vst.msk [vmem:[%s303 + $0x10] sm:$0xf] %vm1238, %v4312
      %4416 = vst.msk [vmem:[%s303 + $0x14] sm:$0x1] %vm4412, %v4313
      %4417 = vst.msk [vmem:[%s303 + $0x18] sm:$0xf] %vm1238, %v4314
      %4418 = vst.msk [vmem:[%s303 + $0x1c] sm:$0xf] %vm1238, %v4315
      %4419 = vst.msk [vmem:[%s303 + $0x20] sm:$0x1] %vm4412, %v4316
      %4420 = vst.msk [vmem:[%s303 + $0x24] sm:$0xf] %vm1238, %v4317
      %4421 = vst.msk [vmem:[%s303 + $0x28] sm:$0xf] %vm1238, %v4318
      %4422 = vst.msk [vmem:[%s303 + $0x2c] sm:$0x1] %vm4412, %v4319
      %4423 = vst.msk [vmem:[%s303 + $0x30] sm:$0xf] %vm1238, %v4320
      %4424 = vst.msk [vmem:[%s303 + $0x34] sm:$0xf] %vm1238, %v4321
      %4425 = vst.msk [vmem:[%s303 + $0x38] sm:$0x1] %vm4412, %v4322
      %4426 = vst.msk [vmem:[%s303 + $0x3c] sm:$0xf] %vm1238, %v4323
      %4427 = vst.msk [vmem:[%s303 + $0x40] sm:$0xf] %vm1238, %v4324
      %4428 = vst.msk [vmem:[%s303 + $0x44] sm:$0x1] %vm4412, %v4325
      %4429 = vst.msk [vmem:[%s303 + $0x48] sm:$0xf] %vm1238, %v4326
      %4430 = vst.msk [vmem:[%s303 + $0x4c] sm:$0xf] %vm1238, %v4327
      %4431 = vst.msk [vmem:[%s303 + $0x50] sm:$0x1] %vm4412, %v4328
      %4432 = vst.msk [vmem:[%s303 + $0x54] sm:$0xf] %vm1238, %v4329
      %4433 = vst.msk [vmem:[%s303 + $0x58] sm:$0xf] %vm1238, %v4330
      %4434 = vst.msk [vmem:[%s303 + $0x5c] sm:$0x1] %vm4412, %v4331
      %4435 = vst.msk [vmem:[%s303 + $0x60] sm:$0xf] %vm1238, %v4332
      %4436 = vst.msk [vmem:[%s303 + $0x64] sm:$0xf] %vm1238, %v4333
      %4437 = vst.msk [vmem:[%s303 + $0x68] sm:$0x1] %vm4412, %v4334
      %4438 = vst.msk [vmem:[%s303 + $0x6c] sm:$0xf] %vm1238, %v4335
      %4439 = vst.msk [vmem:[%s303 + $0x70] sm:$0xf] %vm1238, %v4336
      %4440 = vst.msk [vmem:[%s303 + $0x74] sm:$0x1] %vm4412, %v4337
      %4441 = vst.msk [vmem:[%s303 + $0x78] sm:$0xf] %vm1238, %v4338
      %4442 = vst.msk [vmem:[%s303 + $0x7c] sm:$0xf] %vm1238, %v4339
      %4443 = vst.msk [vmem:[%s303 + $0x80] sm:$0x1] %vm4412, %v4340
      %4444 = vst.msk [vmem:[%s303 + $0x84] sm:$0xf] %vm1238, %v4341
      %4445 = vst.msk [vmem:[%s303 + $0x88] sm:$0xf] %vm1238, %v4342
      %4446 = vst.msk [vmem:[%s303 + $0x8c] sm:$0x1] %vm4412, %v4343
      %4447 = vst.msk [vmem:[%s303 + $0x90] sm:$0xf] %vm1238, %v4344
      %4448 = vst.msk [vmem:[%s303 + $0x94] sm:$0xf] %vm1238, %v4345
      %4449 = vst.msk [vmem:[%s303 + $0x98] sm:$0x1] %vm4412, %v4346
      %4450 = vst.msk [vmem:[%s303 + $0x9c] sm:$0xf] %vm1238, %v4347
      %4451 = vst.msk [vmem:[%s303 + $0xa0] sm:$0xf] %vm1238, %v4348
      %4452 = vst.msk [vmem:[%s303 + $0xa4] sm:$0x1] %vm4412, %v4349
      %4453 = vst.msk [vmem:[%s303 + $0xa8] sm:$0xf] %vm1238, %v4350
      %4454 = vst.msk [vmem:[%s303 + $0xac] sm:$0xf] %vm1238, %v4351
      %4455 = vst.msk [vmem:[%s303 + $0xb0] sm:$0x1] %vm4412, %v4352
      %4456 = vst.msk [vmem:[%s303 + $0xb4] sm:$0xf] %vm1238, %v4353
      %4457 = vst.msk [vmem:[%s303 + $0xb8] sm:$0xf] %vm1238, %v4354
      %4458 = vst.msk [vmem:[%s303 + $0xbc] sm:$0x1] %vm4412, %v4355
      %4459 = vst.msk [vmem:[%s303 + $0xc0] sm:$0xf] %vm1238, %v4356
      %4460 = vst.msk [vmem:[%s303 + $0xc4] sm:$0xf] %vm1238, %v4357
      %4461 = vst.msk [vmem:[%s303 + $0xc8] sm:$0x1] %vm4412, %v4358
      %4462 = vst.msk [vmem:[%s303 + $0xcc] sm:$0xf] %vm1238, %v4308
      %4463 = vst.msk [vmem:[%s303 + $0xd0] sm:$0xf] %vm1238, %v4309
      %4464 = vst.msk [vmem:[%s303 + $0xd4] sm:$0x1] %vm4412, %v4310
      %p4465 = scmp.lt.s32.totalorder %s19, 1
      %s4466 = scalar_select %p4465, %s19, 1
      %s4467 = smul.addr %s4466, 32
      %s4468 = smul.addr %s4467, 4
      %s4469 = scalar_lea.vmem %s5, %s4468
      %p4470 = scmp.lt.s32.totalorder %s19, 1
      %s4471 = scalar_select %p4470, %s19, 1
      %s4472 = smul.addr %s4471, 32
      %s4473 = smul.addr %s4472, 4
      %s4474 = scalar_lea.vmem %s6, %s4473
      %p4475 = scmp.lt.s32.totalorder %s19, 1
      %s4476 = scalar_select %p4475, %s19, 1
      %s4477 = smul.addr %s4476, 54
      %s4478 = smul.addr %s4477, 4
      %s4479 = scalar_lea.vmem %s7, %s4478
      // Predicated region
      $region41: #{res_block_forward.2} parent=39 // pred_check
        %p4480 = pneg %p147
      $region42: #{res_block_forward.2} parent=39 // pred_check_branch
        %4482 = sbr.rel (%p4480) target = $region44
      $region43: #{res_block_forward.2} parent=39 // pred_region
        _
      $region44: #{res_block_forward.2} parent=39 // pred_fallthru
        _
      // Predicated region
      $region45: #{res_block_forward.2} parent=39 // pred_check
        %p4483 = pneg %p173
      $region46: #{res_block_forward.2} parent=39 // pred_check_branch
        %4485 = sbr.rel (%p4483) target = $region48
      $region47: #{res_block_forward.2} parent=39 // pred_region
        _
      $region48: #{res_block_forward.2} parent=39 // pred_fallthru
        _
      // Predicated region
      $region49: #{res_block_forward.2} parent=39 // pred_check
        %p4486 = pneg %p199
      $region50: #{res_block_forward.2} parent=39 // pred_check_branch
        %4488 = sbr.rel (%p4486) target = $region52
      $region51: #{res_block_forward.2} parent=39 // pred_region
        _
      $region52: #{res_block_forward.2} parent=39 // pred_fallthru
        _
    $region40: #{res_block_forward.2} parent=5 // pred_fallthru
      _
    %p4489 = scmp.le.s32.totalorder 2, %s14
    // Predicated region
    $region53: #{res_block_forward.2} parent=5 // pred_check
      %p4490 = pneg %p4489
    $region54: #{res_block_forward.2} parent=5 // pred_check_branch
      %4492 = sbr.rel (%p4490) target = $region56
    $region55: #{res_block_forward.2} parent=5 // pred_region
      %s4493 = ssub.s32 %s14, 2
      // Predicated region
      $region57: #{res_block_forward.2} parent=55 // pred_check
        %p4494 = pneg %p153
      $region58: #{res_block_forward.2} parent=55 // pred_check_branch
        %4496 = sbr.rel (%p4494) target = $region60
      $region59: #{res_block_forward.2} parent=55 // pred_region
        %p4497 = scmp.lt.s32.totalorder %s20, 1
        %s4498 = scalar_select %p4497, %s20, 1
        %s4499 = smul.addr %s4498, 32
        %s4500 = smul.addr %s4499, 4
        %s4501 = scalar_lea.vmem %s5, %s4500
      $region60: #{res_block_forward.2} parent=55 // pred_fallthru
        _
      // Predicated region
      $region61: #{res_block_forward.2} parent=55 // pred_check
        %p4502 = pneg %p179
      $region62: #{res_block_forward.2} parent=55 // pred_check_branch
        %4504 = sbr.rel (%p4502) target = $region64
      $region63: #{res_block_forward.2} parent=55 // pred_region
        %p4505 = scmp.lt.s32.totalorder %s20, 1
        %s4506 = scalar_select %p4505, %s20, 1
        %s4507 = smul.addr %s4506, 32
        %s4508 = smul.addr %s4507, 4
        %s4509 = scalar_lea.vmem %s6, %s4508
      $region64: #{res_block_forward.2} parent=55 // pred_fallthru
        _
      // Predicated region
      $region65: #{res_block_forward.2} parent=55 // pred_check
        %p4510 = pneg %p205
      $region66: #{res_block_forward.2} parent=55 // pred_check_branch
        %4512 = sbr.rel (%p4510) target = $region68
      $region67: #{res_block_forward.2} parent=55 // pred_region
        %p4513 = scmp.lt.s32.totalorder %s20, 1
        %s4514 = scalar_select %p4513, %s20, 1
        %s4515 = smul.addr %s4514, 54
        %s4516 = smul.addr %s4515, 4
        %s4517 = scalar_lea.vmem %s7, %s4516
      $region68: #{res_block_forward.2} parent=55 // pred_fallthru
        _
    $region56: #{res_block_forward.2} parent=5 // pred_fallthru
      _
  $region6: #{res_block_forward.2} parent=0 // loop_footer
    %s18 = sadd.s32 1, %s14
  $region7: #{res_block_forward.2} parent=0 // loop_footer_branch
    %13 = sbr.rel target = $region3
  $region8: #{res_block_forward.2} parent=0 // loop_exit
    _

</llo_original>
